<compile_context>
chip_gen: v7x
topology: tpu7x:2x2x1
jax: 0.10.0
libtpu: 0.0.40
codegen_flags: <defaults>
</compile_context>

<pallas_src>
import jax
import jax.numpy as jnp
import numpy as np
from jax import lax
from jax.experimental import pallas as pl
from jax.experimental.pallas import tpu as pltpu

NUM_GROUPS = 32
EPS = 1e-5
LANE = 128


# ---------------------------------------------------------------------------
# Wrapper-side helpers (padding / masks / sizing)
# ---------------------------------------------------------------------------
def _round_up(n, m):
    return ((n + m - 1) // m) * m


def _pad_axis(a, axis, target):
    pad = target - a.shape[axis]
    if pad == 0:
        return a
    cfg = [(0, 0)] * a.ndim
    cfg[axis] = (0, pad)
    return jnp.pad(a, cfg)


def _group_masks(C, Cp):
    """(Cp, G) one-hot channel->group reduce and (G, Cp) broadcast-back masks.

    Channels >= C (lane padding) are excluded from the stats reduce and mapped
    to group 0 on broadcast-back; their gamma/beta are zero-padded, so they
    normalize to exactly 0 and stay 0 through SiLU / conv / output.
    """
    cpg = C // NUM_GROUPS
    ch = np.arange(Cp)
    gid = np.minimum(ch // cpg, NUM_GROUPS - 1)
    valid = ch < C
    oh = np.zeros((Cp, NUM_GROUPS), np.float32)
    oh[ch[valid], gid[valid]] = 1.0
    bk = np.zeros((NUM_GROUPS, Cp), np.float32)
    bk[np.where(valid, gid, 0), ch] = 1.0
    return jnp.asarray(oh), jnp.asarray(bk), cpg


def _pick_batch_tile(B, H, W, target_rows=512):
    """Largest divisor of B keeping Bb*H*W near `target_rows` (MXU M)."""
    cap = max(1, target_rows // (H * W))
    bb = 1
    for d in range(1, B + 1):
        if B % d == 0 and d <= cap:
            bb = d
    return bb


def _vmem_limit_bytes(Bb, H, W, Cinp, Coutp, Tc):
    """Per-step working set (+50% headroom), clamped to sane bounds."""
    cmax = max(Cinp, Coutp)
    hw = H * W
    io = 2 * Bb * hw * (Cinp + Coutp) * 4                # x/out blocks, double-buffered f32
    pad = Bb * (H + 2) * (W + 2) * cmax * 2              # shared bf16 scratch (single)
    wts = 2 * (9 * Cinp * Coutp + 9 * Coutp * Coutp      # bf16 weights, single-buffered
               + Cinp * Coutp + Tc * Coutp)
    small = 4 * (4 * Cinp + 8 * Coutp + 2 * NUM_GROUPS * (Cinp + Coutp))
    live = 4 * Bb * hw * (2 * cmax + 3 * Coutp)          # in-flight f32 values (x/hn/h/acc)
    total = io + pad + wts + small + live
    return min(max(int(1.5 * total) + (8 << 20), 32 << 20), 100 << 20)


# ---------------------------------------------------------------------------
# In-kernel helpers
# ---------------------------------------------------------------------------
def _gn_silu(x3, gamma, beta, oh, bk, inv_cnt):
    """GroupNorm(32) + SiLU over a (Bb, H*W, Cp) f32 block (stats per image).

    The group-reduce and broadcast-back matmuls are fused ([s1;s2] and
    [mean;rstd]) and kept f32 on the MXU so GN statistics are not demoted.
    One-pass E[x^2]-E[x]^2 with a >=0 clamp (adequate at checked tolerance).
    """
    Bb = x3.shape[0]
    s1 = jnp.sum(x3, axis=1)                                          # (Bb, Cp)
    s2 = jnp.sum(x3 * x3, axis=1)                                     # (Bb, Cp)
    g12 = jnp.dot(jnp.concatenate([s1, s2], axis=0), oh,
                  preferred_element_type=jnp.float32)                 # (2Bb, G)
    gmean = g12[:Bb] * inv_cnt
    gvar = jnp.maximum(g12[Bb:] * inv_cnt - gmean * gmean, 0.0)       # clamp
    ginv = lax.rsqrt(gvar + EPS)
    mi = jnp.dot(jnp.concatenate([gmean, ginv], axis=0), bk,
                 preferred_element_type=jnp.float32)                  # (2Bb, Cp)
    xn = (x3 - mi[:Bb][:, None, :]) * mi[Bb:][:, None, :] * gamma + beta
    return xn * jax.nn.sigmoid(xn)                                    # SiLU


def _fill_pad(pad_ref, img):
    """Write a (Bb, H, W, C) bf16 block into the interior of the shared
    (Bb, H+2, W+2, Cmax) scratch; re-zero only the 1-px border each step
    (megacore-safe; interior is fully overwritten)."""
    Bb, H, W, C = img.shape
    zrow = jnp.zeros((Bb, 1, W + 2, C), jnp.bfloat16)
    zcol = jnp.zeros((Bb, H, 1, C), jnp.bfloat16)
    pad_ref[:, 0:1, :, 0:C] = zrow
    pad_ref[:, H + 1:H + 2, :, 0:C] = zrow
    pad_ref[:, 1:H + 1, 0:1, 0:C] = zcol
    pad_ref[:, 1:H + 1, W + 1:W + 2, 0:C] = zcol
    pad_ref[:, 1:H + 1, 1:W + 1, 0:C] = img


def _conv3x3(pad_ref, w_ref, bias, Bb, H, W, Cin):
    """3x3 'same' conv on the shared bf16 padded scratch: 9 K=Cin bf16 matmuls
    accumulated in f32 (no im2col concatenate)."""
    Cout = w_ref.shape[-1]
    acc = jnp.zeros((Bb * H * W, Cout), jnp.float32)
    for ky in range(3):
        for kx in range(3):
            tap = pad_ref[:, ky:ky + H, kx:kx + W, 0:Cin]
            acc = acc + jnp.dot(tap.reshape(Bb * H * W, Cin),
                                w_ref[3 * ky + kx],
                                preferred_element_type=jnp.float32)
    return acc + bias


# ---------------------------------------------------------------------------
# Fused kernel (Bb batch elements per grid step)
# ---------------------------------------------------------------------------
def _make_kernel(Bb, H, W, Cinp, Coutp, cpg1, cpg2, has_proj):
    HW = H * W

    def kernel(x_ref, t_ref, g1_ref, b1_ref, oh1_ref, bk1_ref, w1_ref, wb1_ref,
               wt_ref, bt_ref, g2_ref, b2_ref, oh2_ref, bk2_ref, w2_ref, wb2_ref,
               *rest):
        if has_proj:
            wsc_ref, bsc_ref, o_ref, pad_ref = rest
        else:
            o_ref, pad_ref = rest

        # x loaded once: feeds GroupNorm1 and the shortcut.
        x3 = x_ref[...].reshape(Bb, HW, Cinp)                         # f32

        # ---- conv1 path: GroupNorm(in) + SiLU + Conv3x3(in -> out) ----
        hn1 = _gn_silu(x3, g1_ref[...], b1_ref[...], oh1_ref[...], bk1_ref[...],
                       1.0 / float(HW * cpg1))
        _fill_pad(pad_ref, hn1.reshape(Bb, H, W, Cinp).astype(jnp.bfloat16))
        h = _conv3x3(pad_ref, w1_ref, wb1_ref[...], Bb, H, W, Cinp)   # (Bb*HW, Coutp)

        # ---- time embedding: Linear(SiLU(t)), broadcast over spatial ----
        t = t_ref[...]
        ts = (t * jax.nn.sigmoid(t)).astype(jnp.bfloat16)
        temb = jnp.dot(ts, wt_ref[...],
                       preferred_element_type=jnp.float32) + bt_ref[...]
        h3 = h.reshape(Bb, HW, Coutp) + temb[:, None, :]

        # ---- conv2 path: GroupNorm(out) + SiLU + Dropout(id) + Conv3x3 ----
        hn2 = _gn_silu(h3, g2_ref[...], b2_ref[...], oh2_ref[...], bk2_ref[...],
                       1.0 / float(HW * cpg2))
        # TODO(synk): nn.Dropout is identity here (eval mode); training-mode dropout not implemented.
        _fill_pad(pad_ref, hn2.reshape(Bb, H, W, Coutp).astype(jnp.bfloat16))
        out = _conv3x3(pad_ref, w2_ref, wb2_ref[...], Bb, H, W, Coutp)

        # ---- shortcut ----
        if has_proj:
            sc = jnp.dot(x3.reshape(Bb * HW, Cinp).astype(jnp.bfloat16),
                         wsc_ref[...],
                         preferred_element_type=jnp.float32) + bsc_ref[...]
        else:
            sc = x3.reshape(Bb * HW, Cinp)   # identity: Cin == Cout (same pad)

        o_ref[...] = (out + sc).reshape(Bb, H, W, Coutp)

    return kernel


# ---------------------------------------------------------------------------
# Wrappers
# ---------------------------------------------------------------------------
def residual_block_forward_nhwc(x, t, p):
    """x: (B, H, W, Cin) NHWC; t: (B, Tc).  Returns (B, H, W, Cout) NHWC."""
    x = x.astype(jnp.float32)
    B, H, W, Cin = x.shape
    Cout = p["w1"].shape[-1]
    Tc = t.shape[1]
    has_proj = Cin != Cout

    # Channels padded to a 128 multiple -> lane-dense vregs / MXU N / stores.
    Cinp = _round_up(Cin, LANE)
    Coutp = _round_up(Cout, LANE)
    Cmaxp = max(Cinp, Coutp)

    # Pack Bb images per step so M = Bb*H*W fills the MXU (v5e/v6e sequential grid).
    # TODO(synk): v7x with B//Bb < 2: add a second "parallel" axis splitting H
    # (1-row halo) so both TensorCores stay busy.
    Bb = _pick_batch_tile(B, H, W)

    oh1, bk1, cpg1 = _group_masks(Cin, Cinp)
    oh2, bk2, cpg2 = _group_masks(Cout, Coutp)

    f32, bf16 = jnp.float32, jnp.bfloat16
    xp = _pad_axis(x, 3, Cinp)
    g1 = _pad_axis(p["g1"].astype(f32), 1, Cinp)
    b1 = _pad_axis(p["b1"].astype(f32), 1, Cinp)
    # conv weights: HWIO, pad channels, tap-major -> (9, Cin_p, Cout_p) bf16.
    w1 = _pad_axis(_pad_axis(p["w1"].astype(f32), 2, Cinp), 3, Coutp)
    w1 = w1.reshape(9, Cinp, Coutp).astype(bf16)
    wb1 = _pad_axis(p["wb1"].astype(f32), 1, Coutp)
    wt = _pad_axis(p["wt"].astype(f32), 1, Coutp).astype(bf16)
    bt = _pad_axis(p["bt"].astype(f32), 1, Coutp)
    g2 = _pad_axis(p["g2"].astype(f32), 1, Coutp)
    b2 = _pad_axis(p["b2"].astype(f32), 1, Coutp)
    w2 = _pad_axis(_pad_axis(p["w2"].astype(f32), 2, Coutp), 3, Coutp)
    w2 = w2.reshape(9, Coutp, Coutp).astype(bf16)
    wb2 = _pad_axis(p["wb2"].astype(f32), 1, Coutp)

    ins = [xp, t.astype(f32), g1, b1, oh1, bk1, w1, wb1, wt, bt,
           g2, b2, oh2, bk2, w2, wb2]
    if has_proj:
        wsc = _pad_axis(_pad_axis(p["wsc"].astype(f32), 0, Cinp), 1, Coutp)
        ins += [wsc.astype(bf16), _pad_axis(p["bsc"].astype(f32), 1, Coutp)]

    # Grid-invariant operands: single-buffered (they never change across the
    # batch grid -- double-buffering only doubles their VMEM footprint).
    def invariant(a):
        nd = a.ndim
        return pl.BlockSpec(a.shape, lambda b, _n=nd: (0,) * _n,
                            pipeline_mode=pl.Buffered(1))

    in_specs = [pl.BlockSpec((Bb, H, W, Cinp), lambda b: (b, 0, 0, 0)),
                pl.BlockSpec((Bb, Tc), lambda b: (b, 0))]
    in_specs += [invariant(a) for a in ins[2:]]

    kernel = _make_kernel(Bb, H, W, Cinp, Coutp, cpg1, cpg2, has_proj)

    out_p = pl.pallas_call(
        kernel,
        out_shape=jax.ShapeDtypeStruct((B, H, W, Coutp), jnp.float32),
        grid_spec=pltpu.PrefetchScalarGridSpec(
            num_scalar_prefetch=0,
            grid=(B // Bb,),
            in_specs=in_specs,
            out_specs=pl.BlockSpec((Bb, H, W, Coutp), lambda b: (b, 0, 0, 0)),
            # One shared bf16 padded-conv scratch reused by conv1 and conv2.
            # TODO(synk): v7x / C>=1024: tile the conv weights along Cout (+HW
            # row blocks) with an inner emit_pipeline over HBM-resident w2 so
            # the live set fits 64 MiB VMEM.
            scratch_shapes=[pltpu.VMEM((Bb, H + 2, W + 2, Cmaxp), jnp.bfloat16)],
        ),
        compiler_params=pltpu.CompilerParams(
            # "parallel": both v7x TensorCores when B//Bb >= 2; sequential
            # loop on v5e/v6e.
            dimension_semantics=("parallel",),
            vmem_limit_bytes=_vmem_limit_bytes(Bb, H, W, Cinp, Coutp, Tc),
        ),
    )(*ins)

    # No-op at production channel counts (Cout % 128 == 0); otherwise one
    # extra pass to drop lane padding.
    return out_p[..., :Cout] if Coutp != Cout else out_p


def residual_block_forward(x_nchw, t, p):
    """PyTorch-layout entry: x (B, Cin, H, W) -> (B, Cout, H, W).

    NOTE: the two transposes are full HBM passes; keep the surrounding model
    NHWC and call residual_block_forward_nhwc directly to avoid them.
    """
    x = jnp.transpose(x_nchw, (0, 2, 3, 1))
    y = residual_block_forward_nhwc(x, t, p)
    return jnp.transpose(y, (0, 3, 1, 2))


# ---------------------------------------------------------------------------
# Pure-JAX reference (for correctness check)
# ---------------------------------------------------------------------------
def _ref_group_norm(x, gamma, beta):                    # x: NHWC
    B, H, W, C = x.shape
    cpg = C // NUM_GROUPS
    xg = x.reshape(B, H, W, NUM_GROUPS, cpg)
    mean = xg.mean(axis=(1, 2, 4), keepdims=True)
    var = ((xg - mean) ** 2).mean(axis=(1, 2, 4), keepdims=True)
    xn = ((xg - mean) / jnp.sqrt(var + EPS)).reshape(B, H, W, C)
    return xn * gamma.reshape(1, 1, 1, C) + beta.reshape(1, 1, 1, C)


def _ref_silu(x):
    return x * jax.nn.sigmoid(x)


def _ref_conv3x3(x, w_hwio, b):
    y = lax.conv_general_dilated(x, w_hwio, (1, 1), "SAME",
                                 dimension_numbers=("NHWC", "HWIO", "NHWC"))
    return y + b.reshape(1, 1, 1, -1)


def residual_block_reference(x_nchw, t, p):
    x = jnp.transpose(x_nchw, (0, 2, 3, 1)).astype(jnp.float32)
    Cin, Cout = x.shape[-1], p["w1"].shape[-1]
    h = _ref_conv3x3(_ref_silu(_ref_group_norm(x, p["g1"], p["b1"])),
                     p["w1"], p["wb1"])
    temb = _ref_silu(t) @ p["wt"] + p["bt"]
    h = h + temb[:, None, None, :]
    h = _ref_conv3x3(_ref_silu(_ref_group_norm(h, p["g2"], p["b2"])),
                     p["w2"], p["wb2"])
    if Cin != Cout:
        sc = jnp.einsum("bhwc,cd->bhwd", x, p["wsc"]) + p["bsc"].reshape(1, 1, 1, -1)
    else:
        sc = x
    return jnp.transpose(h + sc, (0, 3, 1, 2))


# ---------------------------------------------------------------------------
# Main
# ---------------------------------------------------------------------------
def _make_params(key, Cin, Cout, Tc):
    ks = jax.random.split(key, 12)
    f32 = jnp.float32
    p = {
        "g1": 1.0 + 0.1 * jax.random.normal(ks[0], (1, Cin), f32),
        "b1": 0.1 * jax.random.normal(ks[1], (1, Cin), f32),
        "w1": 0.1 * jax.random.normal(ks[2], (3, 3, Cin, Cout), f32),
        "wb1": 0.1 * jax.random.normal(ks[3], (1, Cout), f32),
        "wt": 0.1 * jax.random.normal(ks[4], (Tc, Cout), f32),
        "bt": 0.1 * jax.random.normal(ks[5], (1, Cout), f32),
        "g2": 1.0 + 0.1 * jax.random.normal(ks[6], (1, Cout), f32),
        "b2": 0.1 * jax.random.normal(ks[7], (1, Cout), f32),
        "w2": 0.1 * jax.random.normal(ks[8], (3, 3, Cout, Cout), f32),
        "wb2": 0.1 * jax.random.normal(ks[9], (1, Cout), f32),
    }
    if Cin != Cout:
        p["wsc"] = 0.1 * jax.random.normal(ks[10], (Cin, Cout), f32)
        p["bsc"] = 0.1 * jax.random.normal(ks[11], (1, Cout), f32)
    return p


if __name__ == "__main__":
    B, H, W, Tc = 2, 8, 8, 32        # GroupNorm(32) needs C % 32 == 0
    key = jax.random.PRNGKey(0)
    k_p, k_x, k_t = jax.random.split(key, 3)

    fwd = jax.jit(residual_block_forward)

    # case 1: Cin != Cout (1x1-conv shortcut); case 2: Cin == Cout (identity).
    for Cin, Cout in [(32, 64), (32, 32)]:
        params = _make_params(k_p, Cin, Cout, Tc)
        x = jax.random.normal(k_x, (B, Cin, H, W), jnp.float32)   # NCHW like PyTorch
        t = jax.random.normal(k_t, (B, Tc), jnp.float32)

        out = jax.block_until_ready(fwd(x, t, params))
        assert out.shape == (B, Cout, H, W)

        ref = np.asarray(residual_block_reference(x, t, params))
        got = np.asarray(out)
        # bf16 MXU feeds -> tolerance looser than a pure-f32 path.
        np.testing.assert_allclose(got, ref, rtol=3e-2, atol=3e-2)
        rel = np.linalg.norm(got - ref) / np.linalg.norm(ref)
        assert rel < 2e-2, f"relative error too large: {rel}"

    print("KERNEL_OK")
</pallas_src>

<mosaic_0001>
module attributes {stable_mosaic.version = 11 : i64} {
  func.func @kernel(%arg0: i32, %arg1: memref<2x8x8x128xf32, #tpu.memory_space<vmem>>, %arg2: memref<2x32xf32, #tpu.memory_space<vmem>>, %arg3: memref<1x128xf32, #tpu.memory_space<vmem>>, %arg4: memref<1x128xf32, #tpu.memory_space<vmem>>, %arg5: memref<128x32xf32, #tpu.memory_space<vmem>>, %arg6: memref<32x128xf32, #tpu.memory_space<vmem>>, %arg7: memref<9x128x128xbf16, #tpu.memory_space<vmem>>, %arg8: memref<1x128xf32, #tpu.memory_space<vmem>>, %arg9: memref<32x128xbf16, #tpu.memory_space<vmem>>, %arg10: memref<1x128xf32, #tpu.memory_space<vmem>>, %arg11: memref<1x128xf32, #tpu.memory_space<vmem>>, %arg12: memref<1x128xf32, #tpu.memory_space<vmem>>, %arg13: memref<128x32xf32, #tpu.memory_space<vmem>>, %arg14: memref<32x128xf32, #tpu.memory_space<vmem>>, %arg15: memref<9x128x128xbf16, #tpu.memory_space<vmem>>, %arg16: memref<1x128xf32, #tpu.memory_space<vmem>>, %arg17: memref<128x128xbf16, #tpu.memory_space<vmem>>, %arg18: memref<1x128xf32, #tpu.memory_space<vmem>>, %arg19: memref<2x8x8x128xf32, #tpu.memory_space<vmem>>, %arg20: memref<2x10x10x128xbf16, #tpu.memory_space<vmem>>) attributes {dimension_semantics = [#tpu.dimension_semantics<parallel>], iteration_bounds = array<i64: 1>, scalar_prefetch = 0 : i64, scratch_operands = 1 : i64, tpu.core_type = #tpu.core_type<tc>, window_params = [{transform_indices = @transform_0, window_bounds = array<i64: 2, 8, 8, 128>}, {transform_indices = @transform_1, window_bounds = array<i64: 2, 32>}, {pipeline_mode = #tpu.pipeline_mode<synchronous>, transform_indices = @transform_2, window_bounds = array<i64: 1, 128>}, {pipeline_mode = #tpu.pipeline_mode<synchronous>, transform_indices = @transform_3, window_bounds = array<i64: 1, 128>}, {pipeline_mode = #tpu.pipeline_mode<synchronous>, transform_indices = @transform_4, window_bounds = array<i64: 128, 32>}, {pipeline_mode = #tpu.pipeline_mode<synchronous>, transform_indices = @transform_5, window_bounds = array<i64: 32, 128>}, {pipeline_mode = #tpu.pipeline_mode<synchronous>, transform_indices = @transform_6, window_bounds = array<i64: 9, 128, 128>}, {pipeline_mode = #tpu.pipeline_mode<synchronous>, transform_indices = @transform_7, window_bounds = array<i64: 1, 128>}, {pipeline_mode = #tpu.pipeline_mode<synchronous>, transform_indices = @transform_8, window_bounds = array<i64: 32, 128>}, {pipeline_mode = #tpu.pipeline_mode<synchronous>, transform_indices = @transform_9, window_bounds = array<i64: 1, 128>}, {pipeline_mode = #tpu.pipeline_mode<synchronous>, transform_indices = @transform_10, window_bounds = array<i64: 1, 128>}, {pipeline_mode = #tpu.pipeline_mode<synchronous>, transform_indices = @transform_11, window_bounds = array<i64: 1, 128>}, {pipeline_mode = #tpu.pipeline_mode<synchronous>, transform_indices = @transform_12, window_bounds = array<i64: 128, 32>}, {pipeline_mode = #tpu.pipeline_mode<synchronous>, transform_indices = @transform_13, window_bounds = array<i64: 32, 128>}, {pipeline_mode = #tpu.pipeline_mode<synchronous>, transform_indices = @transform_14, window_bounds = array<i64: 9, 128, 128>}, {pipeline_mode = #tpu.pipeline_mode<synchronous>, transform_indices = @transform_15, window_bounds = array<i64: 1, 128>}, {pipeline_mode = #tpu.pipeline_mode<synchronous>, transform_indices = @transform_16, window_bounds = array<i64: 128, 128>}, {pipeline_mode = #tpu.pipeline_mode<synchronous>, transform_indices = @transform_17, window_bounds = array<i64: 1, 128>}, {transform_indices = @transform_18, window_bounds = array<i64: 2, 8, 8, 128>}]} {
    %c0 = arith.constant 0 : index
    %c0_0 = arith.constant 0 : index
    %c0_1 = arith.constant 0 : index
    %c0_2 = arith.constant 0 : index
    %0 = vector.load %arg1[%c0, %c0_0, %c0_1, %c0_2] : memref<2x8x8x128xf32, #tpu.memory_space<vmem>>, vector<2x8x8x128xf32>
    %1 = vector.shape_cast %0 : vector<2x8x8x128xf32> to vector<2x64x128xf32>
    %c0_3 = arith.constant 0 : index
    %c0_4 = arith.constant 0 : index
    %2 = vector.load %arg3[%c0_3, %c0_4] : memref<1x128xf32, #tpu.memory_space<vmem>>, vector<1x128xf32>
    %c0_5 = arith.constant 0 : index
    %c0_6 = arith.constant 0 : index
    %3 = vector.load %arg4[%c0_5, %c0_6] : memref<1x128xf32, #tpu.memory_space<vmem>>, vector<1x128xf32>
    %c0_7 = arith.constant 0 : index
    %c0_8 = arith.constant 0 : index
    %4 = vector.load %arg5[%c0_7, %c0_8] : memref<128x32xf32, #tpu.memory_space<vmem>>, vector<128x32xf32>
    %c0_9 = arith.constant 0 : index
    %c0_10 = arith.constant 0 : index
    %5 = vector.load %arg6[%c0_9, %c0_10] : memref<32x128xf32, #tpu.memory_space<vmem>>, vector<32x128xf32>
    %cst = arith.constant dense<0.000000e+00> : vector<2x128xf32>
    %6 = vector.multi_reduction <add>, %1, %cst [1] : vector<2x64x128xf32> to vector<2x128xf32>
    %7 = arith.mulf %1, %1 : vector<2x64x128xf32>
    %cst_11 = arith.constant dense<0.000000e+00> : vector<2x128xf32>
    %8 = vector.multi_reduction <add>, %7, %cst_11 [1] : vector<2x64x128xf32> to vector<2x128xf32>
    %9 = tpu.concatenate %6, %8 in 0 : vector<2x128xf32>, vector<2x128xf32> -> vector<4x128xf32>
    %cst_12 = arith.constant dense<0.000000e+00> : vector<4x32xf32>
    %10 = tpu.matmul %9, %4, %cst_12 {dimension_numbers = #tpu.dot_dimension_numbers<[1], [0], [0], [1], [0, 0, 1, 1], [], []>} : vector<4x128xf32>, vector<128x32xf32>, vector<4x32xf32> -> vector<4x32xf32>
    %11 = vector.extract_strided_slice %10 {offsets = [0, 0], sizes = [2, 32], strides = [1, 1]} : vector<4x32xf32> to vector<2x32xf32>
    %cst_13 = arith.constant 1.562500e-02 : f32
    %12 = vector.broadcast %cst_13 : f32 to vector<2x32xf32>
    %13 = arith.mulf %11, %12 : vector<2x32xf32>
    %14 = vector.extract_strided_slice %10 {offsets = [2, 0], sizes = [2, 32], strides = [1, 1]} : vector<4x32xf32> to vector<2x32xf32>
    %cst_14 = arith.constant 1.562500e-02 : f32
    %15 = vector.broadcast %cst_14 : f32 to vector<2x32xf32>
    %16 = arith.mulf %14, %15 : vector<2x32xf32>
    %17 = arith.mulf %13, %13 : vector<2x32xf32>
    %18 = arith.subf %16, %17 : vector<2x32xf32>
    %cst_15 = arith.constant 0.000000e+00 : f32
    %19 = vector.broadcast %cst_15 : f32 to vector<2x32xf32>
    %20 = arith.maximumf %18, %19 : vector<2x32xf32>
    %cst_16 = arith.constant 9.99999974E-6 : f32
    %21 = vector.broadcast %cst_16 : f32 to vector<2x32xf32>
    %22 = arith.addf %20, %21 : vector<2x32xf32>
    %23 = math.rsqrt %22 : vector<2x32xf32>
    %24 = tpu.concatenate %13, %23 in 0 : vector<2x32xf32>, vector<2x32xf32> -> vector<4x32xf32>
    %cst_17 = arith.constant dense<0.000000e+00> : vector<4x128xf32>
    %25 = tpu.matmul %24, %5, %cst_17 {dimension_numbers = #tpu.dot_dimension_numbers<[1], [0], [0], [1], [0, 0, 1, 1], [], []>} : vector<4x32xf32>, vector<32x128xf32>, vector<4x128xf32> -> vector<4x128xf32>
    %26 = vector.extract_strided_slice %25 {offsets = [0, 0], sizes = [2, 128], strides = [1, 1]} : vector<4x128xf32> to vector<2x128xf32>
    %27 = vector.shape_cast %26 : vector<2x128xf32> to vector<2x1x128xf32>
    %28 = vector.broadcast %27 : vector<2x1x128xf32> to vector<2x64x128xf32>
    %29 = arith.subf %1, %28 : vector<2x64x128xf32>
    %30 = vector.extract_strided_slice %25 {offsets = [2, 0], sizes = [2, 128], strides = [1, 1]} : vector<4x128xf32> to vector<2x128xf32>
    %31 = vector.shape_cast %30 : vector<2x128xf32> to vector<2x1x128xf32>
    %32 = vector.broadcast %31 : vector<2x1x128xf32> to vector<2x64x128xf32>
    %33 = arith.mulf %29, %32 : vector<2x64x128xf32>
    %34 = vector.shape_cast %2 : vector<1x128xf32> to vector<1x1x128xf32>
    %35 = vector.broadcast %34 : vector<1x1x128xf32> to vector<2x64x128xf32>
    %36 = arith.mulf %33, %35 : vector<2x64x128xf32>
    %37 = vector.shape_cast %3 : vector<1x128xf32> to vector<1x1x128xf32>
    %38 = vector.broadcast %37 : vector<1x1x128xf32> to vector<2x64x128xf32>
    %39 = arith.addf %36, %38 : vector<2x64x128xf32>
    %40 = arith.negf %39 : vector<2x64x128xf32>
    %41 = math.exp %40 : vector<2x64x128xf32>
    %cst_18 = arith.constant 1.000000e+00 : f32
    %42 = vector.broadcast %cst_18 : f32 to vector<2x64x128xf32>
    %43 = arith.addf %42, %41 : vector<2x64x128xf32>
    %44 = arith.divf %42, %43 : vector<2x64x128xf32>
    %45 = arith.mulf %39, %44 : vector<2x64x128xf32>
    %46 = vector.shape_cast %45 : vector<2x64x128xf32> to vector<2x8x8x128xf32>
    %47 = arith.truncf %46 : vector<2x8x8x128xf32> to vector<2x8x8x128xbf16>
    %cst_19 = arith.constant 0.000000e+00 : bf16
    %48 = vector.broadcast %cst_19 : bf16 to vector<2x1x10x128xbf16>
    %cst_20 = arith.constant 0.000000e+00 : bf16
    %49 = vector.broadcast %cst_20 : bf16 to vector<2x8x1x128xbf16>
    %c0_21 = arith.constant 0 : index
    %c0_22 = arith.constant 0 : index
    %c0_23 = arith.constant 0 : index
    %c0_24 = arith.constant 0 : index
    %50 = vector.load %arg20[%c0_21, %c0_22, %c0_23, %c0_24] : memref<2x10x10x128xbf16, #tpu.memory_space<vmem>>, vector<2x1x10x128xbf16>
    tpu.vector_store %arg20[%c0_21, %c0_22, %c0_23, %c0_24], %48 {strides = array<i32>} : memref<2x10x10x128xbf16, #tpu.memory_space<vmem>>, vector<2x1x10x128xbf16>,
    %c0_25 = arith.constant 0 : index
    %c9 = arith.constant 9 : index
    %c0_26 = arith.constant 0 : index
    %c0_27 = arith.constant 0 : index
    %51 = vector.load %arg20[%c0_25, %c9, %c0_26, %c0_27] : memref<2x10x10x128xbf16, #tpu.memory_space<vmem>>, vector<2x1x10x128xbf16>
    tpu.vector_store %arg20[%c0_25, %c9, %c0_26, %c0_27], %48 {strides = array<i32>} : memref<2x10x10x128xbf16, #tpu.memory_space<vmem>>, vector<2x1x10x128xbf16>,
    %c0_28 = arith.constant 0 : index
    %c1 = arith.constant 1 : index
    %c0_29 = arith.constant 0 : index
    %c0_30 = arith.constant 0 : index
    %52 = vector.load %arg20[%c0_28, %c1, %c0_29, %c0_30] : memref<2x10x10x128xbf16, #tpu.memory_space<vmem>>, vector<2x8x1x128xbf16>
    tpu.vector_store %arg20[%c0_28, %c1, %c0_29, %c0_30], %49 {strides = array<i32>} : memref<2x10x10x128xbf16, #tpu.memory_space<vmem>>, vector<2x8x1x128xbf16>,
    %c0_31 = arith.constant 0 : index
    %c1_32 = arith.constant 1 : index
    %c9_33 = arith.constant 9 : index
    %c0_34 = arith.constant 0 : index
    %53 = vector.load %arg20[%c0_31, %c1_32, %c9_33, %c0_34] : memref<2x10x10x128xbf16, #tpu.memory_space<vmem>>, vector<2x8x1x128xbf16>
    tpu.vector_store %arg20[%c0_31, %c1_32, %c9_33, %c0_34], %49 {strides = array<i32>} : memref<2x10x10x128xbf16, #tpu.memory_space<vmem>>, vector<2x8x1x128xbf16>,
    %c0_35 = arith.constant 0 : index
    %c1_36 = arith.constant 1 : index
    %c1_37 = arith.constant 1 : index
    %c0_38 = arith.constant 0 : index
    %54 = vector.load %arg20[%c0_35, %c1_36, %c1_37, %c0_38] : memref<2x10x10x128xbf16, #tpu.memory_space<vmem>>, vector<2x8x8x128xbf16>
    tpu.vector_store %arg20[%c0_35, %c1_36, %c1_37, %c0_38], %47 {strides = array<i32>} : memref<2x10x10x128xbf16, #tpu.memory_space<vmem>>, vector<2x8x8x128xbf16>,
    %c0_39 = arith.constant 0 : index
    %c0_40 = arith.constant 0 : index
    %55 = vector.load %arg8[%c0_39, %c0_40] : memref<1x128xf32, #tpu.memory_space<vmem>>, vector<1x128xf32>
    %cst_41 = arith.constant 0.000000e+00 : f32
    %56 = vector.broadcast %cst_41 : f32 to vector<128x128xf32>
    %c0_42 = arith.constant 0 : index
    %c0_43 = arith.constant 0 : index
    %c0_44 = arith.constant 0 : index
    %c0_45 = arith.constant 0 : index
    %57 = vector.load %arg20[%c0_42, %c0_43, %c0_44, %c0_45] : memref<2x10x10x128xbf16, #tpu.memory_space<vmem>>, vector<2x8x8x128xbf16>
    %58 = vector.shape_cast %57 : vector<2x8x8x128xbf16> to vector<128x128xbf16>
    %c0_46 = arith.constant 0 : index
    %c0_47 = arith.constant 0 : index
    %c0_48 = arith.constant 0 : index
    %59 = vector.load %arg7[%c0_46, %c0_47, %c0_48] : memref<9x128x128xbf16, #tpu.memory_space<vmem>>, vector<1x128x128xbf16>
    %60 = vector.shape_cast %59 : vector<1x128x128xbf16> to vector<128x128xbf16>
    %cst_49 = arith.constant dense<0.000000e+00> : vector<128x128xf32>
    %61 = tpu.matmul %58, %60, %cst_49 {dimension_numbers = #tpu.dot_dimension_numbers<[1], [0], [0], [1], [0, 0, 1, 1], [], []>} : vector<128x128xbf16>, vector<128x128xbf16>, vector<128x128xf32> -> vector<128x128xf32>
    %62 = arith.addf %56, %61 : vector<128x128xf32>
    %c0_50 = arith.constant 0 : index
    %c0_51 = arith.constant 0 : index
    %c1_52 = arith.constant 1 : index
    %c0_53 = arith.constant 0 : index
    %63 = vector.load %arg20[%c0_50, %c0_51, %c1_52, %c0_53] : memref<2x10x10x128xbf16, #tpu.memory_space<vmem>>, vector<2x8x8x128xbf16>
    %64 = vector.shape_cast %63 : vector<2x8x8x128xbf16> to vector<128x128xbf16>
    %c1_54 = arith.constant 1 : index
    %c0_55 = arith.constant 0 : index
    %c0_56 = arith.constant 0 : index
    %65 = vector.load %arg7[%c1_54, %c0_55, %c0_56] : memref<9x128x128xbf16, #tpu.memory_space<vmem>>, vector<1x128x128xbf16>
    %66 = vector.shape_cast %65 : vector<1x128x128xbf16> to vector<128x128xbf16>
    %cst_57 = arith.constant dense<0.000000e+00> : vector<128x128xf32>
    %67 = tpu.matmul %64, %66, %cst_57 {dimension_numbers = #tpu.dot_dimension_numbers<[1], [0], [0], [1], [0, 0, 1, 1], [], []>} : vector<128x128xbf16>, vector<128x128xbf16>, vector<128x128xf32> -> vector<128x128xf32>
    %68 = arith.addf %62, %67 : vector<128x128xf32>
    %c0_58 = arith.constant 0 : index
    %c0_59 = arith.constant 0 : index
    %c2 = arith.constant 2 : index
    %c0_60 = arith.constant 0 : index
    %69 = vector.load %arg20[%c0_58, %c0_59, %c2, %c0_60] : memref<2x10x10x128xbf16, #tpu.memory_space<vmem>>, vector<2x8x8x128xbf16>
    %70 = vector.shape_cast %69 : vector<2x8x8x128xbf16> to vector<128x128xbf16>
    %c2_61 = arith.constant 2 : index
    %c0_62 = arith.constant 0 : index
    %c0_63 = arith.constant 0 : index
    %71 = vector.load %arg7[%c2_61, %c0_62, %c0_63] : memref<9x128x128xbf16, #tpu.memory_space<vmem>>, vector<1x128x128xbf16>
    %72 = vector.shape_cast %71 : vector<1x128x128xbf16> to vector<128x128xbf16>
    %cst_64 = arith.constant dense<0.000000e+00> : vector<128x128xf32>
    %73 = tpu.matmul %70, %72, %cst_64 {dimension_numbers = #tpu.dot_dimension_numbers<[1], [0], [0], [1], [0, 0, 1, 1], [], []>} : vector<128x128xbf16>, vector<128x128xbf16>, vector<128x128xf32> -> vector<128x128xf32>
    %74 = arith.addf %68, %73 : vector<128x128xf32>
    %c0_65 = arith.constant 0 : index
    %c1_66 = arith.constant 1 : index
    %c0_67 = arith.constant 0 : index
    %c0_68 = arith.constant 0 : index
    %75 = vector.load %arg20[%c0_65, %c1_66, %c0_67, %c0_68] : memref<2x10x10x128xbf16, #tpu.memory_space<vmem>>, vector<2x8x8x128xbf16>
    %76 = vector.shape_cast %75 : vector<2x8x8x128xbf16> to vector<128x128xbf16>
    %c3 = arith.constant 3 : index
    %c0_69 = arith.constant 0 : index
    %c0_70 = arith.constant 0 : index
    %77 = vector.load %arg7[%c3, %c0_69, %c0_70] : memref<9x128x128xbf16, #tpu.memory_space<vmem>>, vector<1x128x128xbf16>
    %78 = vector.shape_cast %77 : vector<1x128x128xbf16> to vector<128x128xbf16>
    %cst_71 = arith.constant dense<0.000000e+00> : vector<128x128xf32>
    %79 = tpu.matmul %76, %78, %cst_71 {dimension_numbers = #tpu.dot_dimension_numbers<[1], [0], [0], [1], [0, 0, 1, 1], [], []>} : vector<128x128xbf16>, vector<128x128xbf16>, vector<128x128xf32> -> vector<128x128xf32>
    %80 = arith.addf %74, %79 : vector<128x128xf32>
    %c0_72 = arith.constant 0 : index
    %c1_73 = arith.constant 1 : index
    %c1_74 = arith.constant 1 : index
    %c0_75 = arith.constant 0 : index
    %81 = vector.load %arg20[%c0_72, %c1_73, %c1_74, %c0_75] : memref<2x10x10x128xbf16, #tpu.memory_space<vmem>>, vector<2x8x8x128xbf16>
    %82 = vector.shape_cast %81 : vector<2x8x8x128xbf16> to vector<128x128xbf16>
    %c4 = arith.constant 4 : index
    %c0_76 = arith.constant 0 : index
    %c0_77 = arith.constant 0 : index
    %83 = vector.load %arg7[%c4, %c0_76, %c0_77] : memref<9x128x128xbf16, #tpu.memory_space<vmem>>, vector<1x128x128xbf16>
    %84 = vector.shape_cast %83 : vector<1x128x128xbf16> to vector<128x128xbf16>
    %cst_78 = arith.constant dense<0.000000e+00> : vector<128x128xf32>
    %85 = tpu.matmul %82, %84, %cst_78 {dimension_numbers = #tpu.dot_dimension_numbers<[1], [0], [0], [1], [0, 0, 1, 1], [], []>} : vector<128x128xbf16>, vector<128x128xbf16>, vector<128x128xf32> -> vector<128x128xf32>
    %86 = arith.addf %80, %85 : vector<128x128xf32>
    %c0_79 = arith.constant 0 : index
    %c1_80 = arith.constant 1 : index
    %c2_81 = arith.constant 2 : index
    %c0_82 = arith.constant 0 : index
    %87 = vector.load %arg20[%c0_79, %c1_80, %c2_81, %c0_82] : memref<2x10x10x128xbf16, #tpu.memory_space<vmem>>, vector<2x8x8x128xbf16>
    %88 = vector.shape_cast %87 : vector<2x8x8x128xbf16> to vector<128x128xbf16>
    %c5 = arith.constant 5 : index
    %c0_83 = arith.constant 0 : index
    %c0_84 = arith.constant 0 : index
    %89 = vector.load %arg7[%c5, %c0_83, %c0_84] : memref<9x128x128xbf16, #tpu.memory_space<vmem>>, vector<1x128x128xbf16>
    %90 = vector.shape_cast %89 : vector<1x128x128xbf16> to vector<128x128xbf16>
    %cst_85 = arith.constant dense<0.000000e+00> : vector<128x128xf32>
    %91 = tpu.matmul %88, %90, %cst_85 {dimension_numbers = #tpu.dot_dimension_numbers<[1], [0], [0], [1], [0, 0, 1, 1], [], []>} : vector<128x128xbf16>, vector<128x128xbf16>, vector<128x128xf32> -> vector<128x128xf32>
    %92 = arith.addf %86, %91 : vector<128x128xf32>
    %c0_86 = arith.constant 0 : index
    %c2_87 = arith.constant 2 : index
    %c0_88 = arith.constant 0 : index
    %c0_89 = arith.constant 0 : index
    %93 = vector.load %arg20[%c0_86, %c2_87, %c0_88, %c0_89] : memref<2x10x10x128xbf16, #tpu.memory_space<vmem>>, vector<2x8x8x128xbf16>
    %94 = vector.shape_cast %93 : vector<2x8x8x128xbf16> to vector<128x128xbf16>
    %c6 = arith.constant 6 : index
    %c0_90 = arith.constant 0 : index
    %c0_91 = arith.constant 0 : index
    %95 = vector.load %arg7[%c6, %c0_90, %c0_91] : memref<9x128x128xbf16, #tpu.memory_space<vmem>>, vector<1x128x128xbf16>
    %96 = vector.shape_cast %95 : vector<1x128x128xbf16> to vector<128x128xbf16>
    %cst_92 = arith.constant dense<0.000000e+00> : vector<128x128xf32>
    %97 = tpu.matmul %94, %96, %cst_92 {dimension_numbers = #tpu.dot_dimension_numbers<[1], [0], [0], [1], [0, 0, 1, 1], [], []>} : vector<128x128xbf16>, vector<128x128xbf16>, vector<128x128xf32> -> vector<128x128xf32>
    %98 = arith.addf %92, %97 : vector<128x128xf32>
    %c0_93 = arith.constant 0 : index
    %c2_94 = arith.constant 2 : index
    %c1_95 = arith.constant 1 : index
    %c0_96 = arith.constant 0 : index
    %99 = vector.load %arg20[%c0_93, %c2_94, %c1_95, %c0_96] : memref<2x10x10x128xbf16, #tpu.memory_space<vmem>>, vector<2x8x8x128xbf16>
    %100 = vector.shape_cast %99 : vector<2x8x8x128xbf16> to vector<128x128xbf16>
    %c7 = arith.constant 7 : index
    %c0_97 = arith.constant 0 : index
    %c0_98 = arith.constant 0 : index
    %101 = vector.load %arg7[%c7, %c0_97, %c0_98] : memref<9x128x128xbf16, #tpu.memory_space<vmem>>, vector<1x128x128xbf16>
    %102 = vector.shape_cast %101 : vector<1x128x128xbf16> to vector<128x128xbf16>
    %cst_99 = arith.constant dense<0.000000e+00> : vector<128x128xf32>
    %103 = tpu.matmul %100, %102, %cst_99 {dimension_numbers = #tpu.dot_dimension_numbers<[1], [0], [0], [1], [0, 0, 1, 1], [], []>} : vector<128x128xbf16>, vector<128x128xbf16>, vector<128x128xf32> -> vector<128x128xf32>
    %104 = arith.addf %98, %103 : vector<128x128xf32>
    %c0_100 = arith.constant 0 : index
    %c2_101 = arith.constant 2 : index
    %c2_102 = arith.constant 2 : index
    %c0_103 = arith.constant 0 : index
    %105 = vector.load %arg20[%c0_100, %c2_101, %c2_102, %c0_103] : memref<2x10x10x128xbf16, #tpu.memory_space<vmem>>, vector<2x8x8x128xbf16>
    %106 = vector.shape_cast %105 : vector<2x8x8x128xbf16> to vector<128x128xbf16>
    %c8 = arith.constant 8 : index
    %c0_104 = arith.constant 0 : index
    %c0_105 = arith.constant 0 : index
    %107 = vector.load %arg7[%c8, %c0_104, %c0_105] : memref<9x128x128xbf16, #tpu.memory_space<vmem>>, vector<1x128x128xbf16>
    %108 = vector.shape_cast %107 : vector<1x128x128xbf16> to vector<128x128xbf16>
    %cst_106 = arith.constant dense<0.000000e+00> : vector<128x128xf32>
    %109 = tpu.matmul %106, %108, %cst_106 {dimension_numbers = #tpu.dot_dimension_numbers<[1], [0], [0], [1], [0, 0, 1, 1], [], []>} : vector<128x128xbf16>, vector<128x128xbf16>, vector<128x128xf32> -> vector<128x128xf32>
    %110 = arith.addf %104, %109 : vector<128x128xf32>
    %111 = vector.broadcast %55 : vector<1x128xf32> to vector<128x128xf32>
    %112 = arith.addf %110, %111 : vector<128x128xf32>
    %c0_107 = arith.constant 0 : index
    %c0_108 = arith.constant 0 : index
    %113 = vector.load %arg2[%c0_107, %c0_108] : memref<2x32xf32, #tpu.memory_space<vmem>>, vector<2x32xf32>
    %114 = arith.negf %113 : vector<2x32xf32>
    %115 = math.exp %114 : vector<2x32xf32>
    %cst_109 = arith.constant 1.000000e+00 : f32
    %116 = vector.broadcast %cst_109 : f32 to vector<2x32xf32>
    %117 = arith.addf %116, %115 : vector<2x32xf32>
    %118 = arith.divf %116, %117 : vector<2x32xf32>
    %119 = arith.mulf %113, %118 : vector<2x32xf32>
    %120 = arith.truncf %119 : vector<2x32xf32> to vector<2x32xbf16>
    %c0_110 = arith.constant 0 : index
    %c0_111 = arith.constant 0 : index
    %121 = vector.load %arg9[%c0_110, %c0_111] : memref<32x128xbf16, #tpu.memory_space<vmem>>, vector<32x128xbf16>
    %cst_112 = arith.constant dense<0.000000e+00> : vector<2x128xf32>
    %122 = tpu.matmul %120, %121, %cst_112 {dimension_numbers = #tpu.dot_dimension_numbers<[1], [0], [0], [1], [0, 0, 1, 1], [], []>} : vector<2x32xbf16>, vector<32x128xbf16>, vector<2x128xf32> -> vector<2x128xf32>
    %c0_113 = arith.constant 0 : index
    %c0_114 = arith.constant 0 : index
    %123 = vector.load %arg10[%c0_113, %c0_114] : memref<1x128xf32, #tpu.memory_space<vmem>>, vector<1x128xf32>
    %124 = vector.broadcast %123 : vector<1x128xf32> to vector<2x128xf32>
    %125 = arith.addf %122, %124 : vector<2x128xf32>
    %126 = vector.shape_cast %112 : vector<128x128xf32> to vector<2x64x128xf32>
    %127 = vector.shape_cast %125 : vector<2x128xf32> to vector<2x1x128xf32>
    %128 = vector.broadcast %127 : vector<2x1x128xf32> to vector<2x64x128xf32>
    %129 = arith.addf %126, %128 : vector<2x64x128xf32>
    %c0_115 = arith.constant 0 : index
    %c0_116 = arith.constant 0 : index
    %130 = vector.load %arg11[%c0_115, %c0_116] : memref<1x128xf32, #tpu.memory_space<vmem>>, vector<1x128xf32>
    %c0_117 = arith.constant 0 : index
    %c0_118 = arith.constant 0 : index
    %131 = vector.load %arg12[%c0_117, %c0_118] : memref<1x128xf32, #tpu.memory_space<vmem>>, vector<1x128xf32>
    %c0_119 = arith.constant 0 : index
    %c0_120 = arith.constant 0 : index
    %132 = vector.load %arg13[%c0_119, %c0_120] : memref<128x32xf32, #tpu.memory_space<vmem>>, vector<128x32xf32>
    %c0_121 = arith.constant 0 : index
    %c0_122 = arith.constant 0 : index
    %133 = vector.load %arg14[%c0_121, %c0_122] : memref<32x128xf32, #tpu.memory_space<vmem>>, vector<32x128xf32>
    %cst_123 = arith.constant dense<0.000000e+00> : vector<2x128xf32>
    %134 = vector.multi_reduction <add>, %129, %cst_123 [1] : vector<2x64x128xf32> to vector<2x128xf32>
    %135 = arith.mulf %129, %129 : vector<2x64x128xf32>
    %cst_124 = arith.constant dense<0.000000e+00> : vector<2x128xf32>
    %136 = vector.multi_reduction <add>, %135, %cst_124 [1] : vector<2x64x128xf32> to vector<2x128xf32>
    %137 = tpu.concatenate %134, %136 in 0 : vector<2x128xf32>, vector<2x128xf32> -> vector<4x128xf32>
    %cst_125 = arith.constant dense<0.000000e+00> : vector<4x32xf32>
    %138 = tpu.matmul %137, %132, %cst_125 {dimension_numbers = #tpu.dot_dimension_numbers<[1], [0], [0], [1], [0, 0, 1, 1], [], []>} : vector<4x128xf32>, vector<128x32xf32>, vector<4x32xf32> -> vector<4x32xf32>
    %139 = vector.extract_strided_slice %138 {offsets = [0, 0], sizes = [2, 32], strides = [1, 1]} : vector<4x32xf32> to vector<2x32xf32>
    %cst_126 = arith.constant 7.812500e-03 : f32
    %140 = vector.broadcast %cst_126 : f32 to vector<2x32xf32>
    %141 = arith.mulf %139, %140 : vector<2x32xf32>
    %142 = vector.extract_strided_slice %138 {offsets = [2, 0], sizes = [2, 32], strides = [1, 1]} : vector<4x32xf32> to vector<2x32xf32>
    %cst_127 = arith.constant 7.812500e-03 : f32
    %143 = vector.broadcast %cst_127 : f32 to vector<2x32xf32>
    %144 = arith.mulf %142, %143 : vector<2x32xf32>
    %145 = arith.mulf %141, %141 : vector<2x32xf32>
    %146 = arith.subf %144, %145 : vector<2x32xf32>
    %cst_128 = arith.constant 0.000000e+00 : f32
    %147 = vector.broadcast %cst_128 : f32 to vector<2x32xf32>
    %148 = arith.maximumf %146, %147 : vector<2x32xf32>
    %cst_129 = arith.constant 9.99999974E-6 : f32
    %149 = vector.broadcast %cst_129 : f32 to vector<2x32xf32>
    %150 = arith.addf %148, %149 : vector<2x32xf32>
    %151 = math.rsqrt %150 : vector<2x32xf32>
    %152 = tpu.concatenate %141, %151 in 0 : vector<2x32xf32>, vector<2x32xf32> -> vector<4x32xf32>
    %cst_130 = arith.constant dense<0.000000e+00> : vector<4x128xf32>
    %153 = tpu.matmul %152, %133, %cst_130 {dimension_numbers = #tpu.dot_dimension_numbers<[1], [0], [0], [1], [0, 0, 1, 1], [], []>} : vector<4x32xf32>, vector<32x128xf32>, vector<4x128xf32> -> vector<4x128xf32>
    %154 = vector.extract_strided_slice %153 {offsets = [0, 0], sizes = [2, 128], strides = [1, 1]} : vector<4x128xf32> to vector<2x128xf32>
    %155 = vector.shape_cast %154 : vector<2x128xf32> to vector<2x1x128xf32>
    %156 = vector.broadcast %155 : vector<2x1x128xf32> to vector<2x64x128xf32>
    %157 = arith.subf %129, %156 : vector<2x64x128xf32>
    %158 = vector.extract_strided_slice %153 {offsets = [2, 0], sizes = [2, 128], strides = [1, 1]} : vector<4x128xf32> to vector<2x128xf32>
    %159 = vector.shape_cast %158 : vector<2x128xf32> to vector<2x1x128xf32>
    %160 = vector.broadcast %159 : vector<2x1x128xf32> to vector<2x64x128xf32>
    %161 = arith.mulf %157, %160 : vector<2x64x128xf32>
    %162 = vector.shape_cast %130 : vector<1x128xf32> to vector<1x1x128xf32>
    %163 = vector.broadcast %162 : vector<1x1x128xf32> to vector<2x64x128xf32>
    %164 = arith.mulf %161, %163 : vector<2x64x128xf32>
    %165 = vector.shape_cast %131 : vector<1x128xf32> to vector<1x1x128xf32>
    %166 = vector.broadcast %165 : vector<1x1x128xf32> to vector<2x64x128xf32>
    %167 = arith.addf %164, %166 : vector<2x64x128xf32>
    %168 = arith.negf %167 : vector<2x64x128xf32>
    %169 = math.exp %168 : vector<2x64x128xf32>
    %cst_131 = arith.constant 1.000000e+00 : f32
    %170 = vector.broadcast %cst_131 : f32 to vector<2x64x128xf32>
    %171 = arith.addf %170, %169 : vector<2x64x128xf32>
    %172 = arith.divf %170, %171 : vector<2x64x128xf32>
    %173 = arith.mulf %167, %172 : vector<2x64x128xf32>
    %174 = vector.shape_cast %173 : vector<2x64x128xf32> to vector<2x8x8x128xf32>
    %175 = arith.truncf %174 : vector<2x8x8x128xf32> to vector<2x8x8x128xbf16>
    %cst_132 = arith.constant 0.000000e+00 : bf16
    %176 = vector.broadcast %cst_132 : bf16 to vector<2x1x10x128xbf16>
    %cst_133 = arith.constant 0.000000e+00 : bf16
    %177 = vector.broadcast %cst_133 : bf16 to vector<2x8x1x128xbf16>
    %c0_134 = arith.constant 0 : index
    %c0_135 = arith.constant 0 : index
    %c0_136 = arith.constant 0 : index
    %c0_137 = arith.constant 0 : index
    %178 = vector.load %arg20[%c0_134, %c0_135, %c0_136, %c0_137] : memref<2x10x10x128xbf16, #tpu.memory_space<vmem>>, vector<2x1x10x128xbf16>
    tpu.vector_store %arg20[%c0_134, %c0_135, %c0_136, %c0_137], %176 {strides = array<i32>} : memref<2x10x10x128xbf16, #tpu.memory_space<vmem>>, vector<2x1x10x128xbf16>,
    %c0_138 = arith.constant 0 : index
    %c9_139 = arith.constant 9 : index
    %c0_140 = arith.constant 0 : index
    %c0_141 = arith.constant 0 : index
    %179 = vector.load %arg20[%c0_138, %c9_139, %c0_140, %c0_141] : memref<2x10x10x128xbf16, #tpu.memory_space<vmem>>, vector<2x1x10x128xbf16>
    tpu.vector_store %arg20[%c0_138, %c9_139, %c0_140, %c0_141], %176 {strides = array<i32>} : memref<2x10x10x128xbf16, #tpu.memory_space<vmem>>, vector<2x1x10x128xbf16>,
    %c0_142 = arith.constant 0 : index
    %c1_143 = arith.constant 1 : index
    %c0_144 = arith.constant 0 : index
    %c0_145 = arith.constant 0 : index
    %180 = vector.load %arg20[%c0_142, %c1_143, %c0_144, %c0_145] : memref<2x10x10x128xbf16, #tpu.memory_space<vmem>>, vector<2x8x1x128xbf16>
    tpu.vector_store %arg20[%c0_142, %c1_143, %c0_144, %c0_145], %177 {strides = array<i32>} : memref<2x10x10x128xbf16, #tpu.memory_space<vmem>>, vector<2x8x1x128xbf16>,
    %c0_146 = arith.constant 0 : index
    %c1_147 = arith.constant 1 : index
    %c9_148 = arith.constant 9 : index
    %c0_149 = arith.constant 0 : index
    %181 = vector.load %arg20[%c0_146, %c1_147, %c9_148, %c0_149] : memref<2x10x10x128xbf16, #tpu.memory_space<vmem>>, vector<2x8x1x128xbf16>
    tpu.vector_store %arg20[%c0_146, %c1_147, %c9_148, %c0_149], %177 {strides = array<i32>} : memref<2x10x10x128xbf16, #tpu.memory_space<vmem>>, vector<2x8x1x128xbf16>,
    %c0_150 = arith.constant 0 : index
    %c1_151 = arith.constant 1 : index
    %c1_152 = arith.constant 1 : index
    %c0_153 = arith.constant 0 : index
    %182 = vector.load %arg20[%c0_150, %c1_151, %c1_152, %c0_153] : memref<2x10x10x128xbf16, #tpu.memory_space<vmem>>, vector<2x8x8x128xbf16>
    tpu.vector_store %arg20[%c0_150, %c1_151, %c1_152, %c0_153], %175 {strides = array<i32>} : memref<2x10x10x128xbf16, #tpu.memory_space<vmem>>, vector<2x8x8x128xbf16>,
    %c0_154 = arith.constant 0 : index
    %c0_155 = arith.constant 0 : index
    %183 = vector.load %arg16[%c0_154, %c0_155] : memref<1x128xf32, #tpu.memory_space<vmem>>, vector<1x128xf32>
    %cst_156 = arith.constant 0.000000e+00 : f32
    %184 = vector.broadcast %cst_156 : f32 to vector<128x128xf32>
    %c0_157 = arith.constant 0 : index
    %c0_158 = arith.constant 0 : index
    %c0_159 = arith.constant 0 : index
    %c0_160 = arith.constant 0 : index
    %185 = vector.load %arg20[%c0_157, %c0_158, %c0_159, %c0_160] : memref<2x10x10x128xbf16, #tpu.memory_space<vmem>>, vector<2x8x8x128xbf16>
    %186 = vector.shape_cast %185 : vector<2x8x8x128xbf16> to vector<128x128xbf16>
    %c0_161 = arith.constant 0 : index
    %c0_162 = arith.constant 0 : index
    %c0_163 = arith.constant 0 : index
    %187 = vector.load %arg15[%c0_161, %c0_162, %c0_163] : memref<9x128x128xbf16, #tpu.memory_space<vmem>>, vector<1x128x128xbf16>
    %188 = vector.shape_cast %187 : vector<1x128x128xbf16> to vector<128x128xbf16>
    %cst_164 = arith.constant dense<0.000000e+00> : vector<128x128xf32>
    %189 = tpu.matmul %186, %188, %cst_164 {dimension_numbers = #tpu.dot_dimension_numbers<[1], [0], [0], [1], [0, 0, 1, 1], [], []>} : vector<128x128xbf16>, vector<128x128xbf16>, vector<128x128xf32> -> vector<128x128xf32>
    %190 = arith.addf %184, %189 : vector<128x128xf32>
    %c0_165 = arith.constant 0 : index
    %c0_166 = arith.constant 0 : index
    %c1_167 = arith.constant 1 : index
    %c0_168 = arith.constant 0 : index
    %191 = vector.load %arg20[%c0_165, %c0_166, %c1_167, %c0_168] : memref<2x10x10x128xbf16, #tpu.memory_space<vmem>>, vector<2x8x8x128xbf16>
    %192 = vector.shape_cast %191 : vector<2x8x8x128xbf16> to vector<128x128xbf16>
    %c1_169 = arith.constant 1 : index
    %c0_170 = arith.constant 0 : index
    %c0_171 = arith.constant 0 : index
    %193 = vector.load %arg15[%c1_169, %c0_170, %c0_171] : memref<9x128x128xbf16, #tpu.memory_space<vmem>>, vector<1x128x128xbf16>
    %194 = vector.shape_cast %193 : vector<1x128x128xbf16> to vector<128x128xbf16>
    %cst_172 = arith.constant dense<0.000000e+00> : vector<128x128xf32>
    %195 = tpu.matmul %192, %194, %cst_172 {dimension_numbers = #tpu.dot_dimension_numbers<[1], [0], [0], [1], [0, 0, 1, 1], [], []>} : vector<128x128xbf16>, vector<128x128xbf16>, vector<128x128xf32> -> vector<128x128xf32>
    %196 = arith.addf %190, %195 : vector<128x128xf32>
    %c0_173 = arith.constant 0 : index
    %c0_174 = arith.constant 0 : index
    %c2_175 = arith.constant 2 : index
    %c0_176 = arith.constant 0 : index
    %197 = vector.load %arg20[%c0_173, %c0_174, %c2_175, %c0_176] : memref<2x10x10x128xbf16, #tpu.memory_space<vmem>>, vector<2x8x8x128xbf16>
    %198 = vector.shape_cast %197 : vector<2x8x8x128xbf16> to vector<128x128xbf16>
    %c2_177 = arith.constant 2 : index
    %c0_178 = arith.constant 0 : index
    %c0_179 = arith.constant 0 : index
    %199 = vector.load %arg15[%c2_177, %c0_178, %c0_179] : memref<9x128x128xbf16, #tpu.memory_space<vmem>>, vector<1x128x128xbf16>
    %200 = vector.shape_cast %199 : vector<1x128x128xbf16> to vector<128x128xbf16>
    %cst_180 = arith.constant dense<0.000000e+00> : vector<128x128xf32>
    %201 = tpu.matmul %198, %200, %cst_180 {dimension_numbers = #tpu.dot_dimension_numbers<[1], [0], [0], [1], [0, 0, 1, 1], [], []>} : vector<128x128xbf16>, vector<128x128xbf16>, vector<128x128xf32> -> vector<128x128xf32>
    %202 = arith.addf %196, %201 : vector<128x128xf32>
    %c0_181 = arith.constant 0 : index
    %c1_182 = arith.constant 1 : index
    %c0_183 = arith.constant 0 : index
    %c0_184 = arith.constant 0 : index
    %203 = vector.load %arg20[%c0_181, %c1_182, %c0_183, %c0_184] : memref<2x10x10x128xbf16, #tpu.memory_space<vmem>>, vector<2x8x8x128xbf16>
    %204 = vector.shape_cast %203 : vector<2x8x8x128xbf16> to vector<128x128xbf16>
    %c3_185 = arith.constant 3 : index
    %c0_186 = arith.constant 0 : index
    %c0_187 = arith.constant 0 : index
    %205 = vector.load %arg15[%c3_185, %c0_186, %c0_187] : memref<9x128x128xbf16, #tpu.memory_space<vmem>>, vector<1x128x128xbf16>
    %206 = vector.shape_cast %205 : vector<1x128x128xbf16> to vector<128x128xbf16>
    %cst_188 = arith.constant dense<0.000000e+00> : vector<128x128xf32>
    %207 = tpu.matmul %204, %206, %cst_188 {dimension_numbers = #tpu.dot_dimension_numbers<[1], [0], [0], [1], [0, 0, 1, 1], [], []>} : vector<128x128xbf16>, vector<128x128xbf16>, vector<128x128xf32> -> vector<128x128xf32>
    %208 = arith.addf %202, %207 : vector<128x128xf32>
    %c0_189 = arith.constant 0 : index
    %c1_190 = arith.constant 1 : index
    %c1_191 = arith.constant 1 : index
    %c0_192 = arith.constant 0 : index
    %209 = vector.load %arg20[%c0_189, %c1_190, %c1_191, %c0_192] : memref<2x10x10x128xbf16, #tpu.memory_space<vmem>>, vector<2x8x8x128xbf16>
    %210 = vector.shape_cast %209 : vector<2x8x8x128xbf16> to vector<128x128xbf16>
    %c4_193 = arith.constant 4 : index
    %c0_194 = arith.constant 0 : index
    %c0_195 = arith.constant 0 : index
    %211 = vector.load %arg15[%c4_193, %c0_194, %c0_195] : memref<9x128x128xbf16, #tpu.memory_space<vmem>>, vector<1x128x128xbf16>
    %212 = vector.shape_cast %211 : vector<1x128x128xbf16> to vector<128x128xbf16>
    %cst_196 = arith.constant dense<0.000000e+00> : vector<128x128xf32>
    %213 = tpu.matmul %210, %212, %cst_196 {dimension_numbers = #tpu.dot_dimension_numbers<[1], [0], [0], [1], [0, 0, 1, 1], [], []>} : vector<128x128xbf16>, vector<128x128xbf16>, vector<128x128xf32> -> vector<128x128xf32>
    %214 = arith.addf %208, %213 : vector<128x128xf32>
    %c0_197 = arith.constant 0 : index
    %c1_198 = arith.constant 1 : index
    %c2_199 = arith.constant 2 : index
    %c0_200 = arith.constant 0 : index
    %215 = vector.load %arg20[%c0_197, %c1_198, %c2_199, %c0_200] : memref<2x10x10x128xbf16, #tpu.memory_space<vmem>>, vector<2x8x8x128xbf16>
    %216 = vector.shape_cast %215 : vector<2x8x8x128xbf16> to vector<128x128xbf16>
    %c5_201 = arith.constant 5 : index
    %c0_202 = arith.constant 0 : index
    %c0_203 = arith.constant 0 : index
    %217 = vector.load %arg15[%c5_201, %c0_202, %c0_203] : memref<9x128x128xbf16, #tpu.memory_space<vmem>>, vector<1x128x128xbf16>
    %218 = vector.shape_cast %217 : vector<1x128x128xbf16> to vector<128x128xbf16>
    %cst_204 = arith.constant dense<0.000000e+00> : vector<128x128xf32>
    %219 = tpu.matmul %216, %218, %cst_204 {dimension_numbers = #tpu.dot_dimension_numbers<[1], [0], [0], [1], [0, 0, 1, 1], [], []>} : vector<128x128xbf16>, vector<128x128xbf16>, vector<128x128xf32> -> vector<128x128xf32>
    %220 = arith.addf %214, %219 : vector<128x128xf32>
    %c0_205 = arith.constant 0 : index
    %c2_206 = arith.constant 2 : index
    %c0_207 = arith.constant 0 : index
    %c0_208 = arith.constant 0 : index
    %221 = vector.load %arg20[%c0_205, %c2_206, %c0_207, %c0_208] : memref<2x10x10x128xbf16, #tpu.memory_space<vmem>>, vector<2x8x8x128xbf16>
    %222 = vector.shape_cast %221 : vector<2x8x8x128xbf16> to vector<128x128xbf16>
    %c6_209 = arith.constant 6 : index
    %c0_210 = arith.constant 0 : index
    %c0_211 = arith.constant 0 : index
    %223 = vector.load %arg15[%c6_209, %c0_210, %c0_211] : memref<9x128x128xbf16, #tpu.memory_space<vmem>>, vector<1x128x128xbf16>
    %224 = vector.shape_cast %223 : vector<1x128x128xbf16> to vector<128x128xbf16>
    %cst_212 = arith.constant dense<0.000000e+00> : vector<128x128xf32>
    %225 = tpu.matmul %222, %224, %cst_212 {dimension_numbers = #tpu.dot_dimension_numbers<[1], [0], [0], [1], [0, 0, 1, 1], [], []>} : vector<128x128xbf16>, vector<128x128xbf16>, vector<128x128xf32> -> vector<128x128xf32>
    %226 = arith.addf %220, %225 : vector<128x128xf32>
    %c0_213 = arith.constant 0 : index
    %c2_214 = arith.constant 2 : index
    %c1_215 = arith.constant 1 : index
    %c0_216 = arith.constant 0 : index
    %227 = vector.load %arg20[%c0_213, %c2_214, %c1_215, %c0_216] : memref<2x10x10x128xbf16, #tpu.memory_space<vmem>>, vector<2x8x8x128xbf16>
    %228 = vector.shape_cast %227 : vector<2x8x8x128xbf16> to vector<128x128xbf16>
    %c7_217 = arith.constant 7 : index
    %c0_218 = arith.constant 0 : index
    %c0_219 = arith.constant 0 : index
    %229 = vector.load %arg15[%c7_217, %c0_218, %c0_219] : memref<9x128x128xbf16, #tpu.memory_space<vmem>>, vector<1x128x128xbf16>
    %230 = vector.shape_cast %229 : vector<1x128x128xbf16> to vector<128x128xbf16>
    %cst_220 = arith.constant dense<0.000000e+00> : vector<128x128xf32>
    %231 = tpu.matmul %228, %230, %cst_220 {dimension_numbers = #tpu.dot_dimension_numbers<[1], [0], [0], [1], [0, 0, 1, 1], [], []>} : vector<128x128xbf16>, vector<128x128xbf16>, vector<128x128xf32> -> vector<128x128xf32>
    %232 = arith.addf %226, %231 : vector<128x128xf32>
    %c0_221 = arith.constant 0 : index
    %c2_222 = arith.constant 2 : index
    %c2_223 = arith.constant 2 : index
    %c0_224 = arith.constant 0 : index
    %233 = vector.load %arg20[%c0_221, %c2_222, %c2_223, %c0_224] : memref<2x10x10x128xbf16, #tpu.memory_space<vmem>>, vector<2x8x8x128xbf16>
    %234 = vector.shape_cast %233 : vector<2x8x8x128xbf16> to vector<128x128xbf16>
    %c8_225 = arith.constant 8 : index
    %c0_226 = arith.constant 0 : index
    %c0_227 = arith.constant 0 : index
    %235 = vector.load %arg15[%c8_225, %c0_226, %c0_227] : memref<9x128x128xbf16, #tpu.memory_space<vmem>>, vector<1x128x128xbf16>
    %236 = vector.shape_cast %235 : vector<1x128x128xbf16> to vector<128x128xbf16>
    %cst_228 = arith.constant dense<0.000000e+00> : vector<128x128xf32>
    %237 = tpu.matmul %234, %236, %cst_228 {dimension_numbers = #tpu.dot_dimension_numbers<[1], [0], [0], [1], [0, 0, 1, 1], [], []>} : vector<128x128xbf16>, vector<128x128xbf16>, vector<128x128xf32> -> vector<128x128xf32>
    %238 = arith.addf %232, %237 : vector<128x128xf32>
    %239 = vector.broadcast %183 : vector<1x128xf32> to vector<128x128xf32>
    %240 = arith.addf %238, %239 : vector<128x128xf32>
    %241 = vector.shape_cast %1 : vector<2x64x128xf32> to vector<128x128xf32>
    %242 = arith.truncf %241 : vector<128x128xf32> to vector<128x128xbf16>
    %c0_229 = arith.constant 0 : index
    %c0_230 = arith.constant 0 : index
    %243 = vector.load %arg17[%c0_229, %c0_230] : memref<128x128xbf16, #tpu.memory_space<vmem>>, vector<128x128xbf16>
    %cst_231 = arith.constant dense<0.000000e+00> : vector<128x128xf32>
    %244 = tpu.matmul %242, %243, %cst_231 {dimension_numbers = #tpu.dot_dimension_numbers<[1], [0], [0], [1], [0, 0, 1, 1], [], []>} : vector<128x128xbf16>, vector<128x128xbf16>, vector<128x128xf32> -> vector<128x128xf32>
    %c0_232 = arith.constant 0 : index
    %c0_233 = arith.constant 0 : index
    %245 = vector.load %arg18[%c0_232, %c0_233] : memref<1x128xf32, #tpu.memory_space<vmem>>, vector<1x128xf32>
    %246 = vector.broadcast %245 : vector<1x128xf32> to vector<128x128xf32>
    %247 = arith.addf %244, %246 : vector<128x128xf32>
    %248 = arith.addf %240, %247 : vector<128x128xf32>
    %249 = vector.shape_cast %248 : vector<128x128xf32> to vector<2x8x8x128xf32>
    %c0_234 = arith.constant 0 : index
    %c0_235 = arith.constant 0 : index
    %c0_236 = arith.constant 0 : index
    %c0_237 = arith.constant 0 : index
    %250 = vector.load %arg19[%c0_234, %c0_235, %c0_236, %c0_237] : memref<2x8x8x128xf32, #tpu.memory_space<vmem>>, vector<2x8x8x128xf32>
    tpu.vector_store %arg19[%c0_234, %c0_235, %c0_236, %c0_237], %249 {strides = array<i32>} : memref<2x8x8x128xf32, #tpu.memory_space<vmem>>, vector<2x8x8x128xf32>,
    return
  }
  func.func @transform_0(%arg0: i32) -> (i32, i32, i32, i32) {
    %c0_i32 = arith.constant 0 : i32
    %c0_i32_0 = arith.constant 0 : i32
    %c0_i32_1 = arith.constant 0 : i32
    %c0_i32_2 = arith.constant 0 : i32
    return %arg0, %c0_i32, %c0_i32_0, %c0_i32_1 : i32, i32, i32, i32
  }
  func.func @transform_1(%arg0: i32) -> (i32, i32) {
    %c0_i32 = arith.constant 0 : i32
    %c0_i32_0 = arith.constant 0 : i32
    return %arg0, %c0_i32 : i32, i32
  }
  func.func @transform_2(%arg0: i32) -> (i32, i32) {
    %c0_i32 = arith.constant 0 : i32
    %c0_i32_0 = arith.constant 0 : i32
    %c0_i32_1 = arith.constant 0 : i32
    return %c0_i32, %c0_i32_0 : i32, i32
  }
  func.func @transform_3(%arg0: i32) -> (i32, i32) {
    %c0_i32 = arith.constant 0 : i32
    %c0_i32_0 = arith.constant 0 : i32
    %c0_i32_1 = arith.constant 0 : i32
    return %c0_i32, %c0_i32_0 : i32, i32
  }
  func.func @transform_4(%arg0: i32) -> (i32, i32) {
    %c0_i32 = arith.constant 0 : i32
    %c0_i32_0 = arith.constant 0 : i32
    %c0_i32_1 = arith.constant 0 : i32
    return %c0_i32, %c0_i32_0 : i32, i32
  }
  func.func @transform_5(%arg0: i32) -> (i32, i32) {
    %c0_i32 = arith.constant 0 : i32
    %c0_i32_0 = arith.constant 0 : i32
    %c0_i32_1 = arith.constant 0 : i32
    return %c0_i32, %c0_i32_0 : i32, i32
  }
  func.func @transform_6(%arg0: i32) -> (i32, i32, i32) {
    %c0_i32 = arith.constant 0 : i32
    %c0_i32_0 = arith.constant 0 : i32
    %c0_i32_1 = arith.constant 0 : i32
    %c0_i32_2 = arith.constant 0 : i32
    return %c0_i32, %c0_i32_0, %c0_i32_1 : i32, i32, i32
  }
  func.func @transform_7(%arg0: i32) -> (i32, i32) {
    %c0_i32 = arith.constant 0 : i32
    %c0_i32_0 = arith.constant 0 : i32
    %c0_i32_1 = arith.constant 0 : i32
    return %c0_i32, %c0_i32_0 : i32, i32
  }
  func.func @transform_8(%arg0: i32) -> (i32, i32) {
    %c0_i32 = arith.constant 0 : i32
    %c0_i32_0 = arith.constant 0 : i32
    %c0_i32_1 = arith.constant 0 : i32
    return %c0_i32, %c0_i32_0 : i32, i32
  }
  func.func @transform_9(%arg0: i32) -> (i32, i32) {
    %c0_i32 = arith.constant 0 : i32
    %c0_i32_0 = arith.constant 0 : i32
    %c0_i32_1 = arith.constant 0 : i32
    return %c0_i32, %c0_i32_0 : i32, i32
  }
  func.func @transform_10(%arg0: i32) -> (i32, i32) {
    %c0_i32 = arith.constant 0 : i32
    %c0_i32_0 = arith.constant 0 : i32
    %c0_i32_1 = arith.constant 0 : i32
    return %c0_i32, %c0_i32_0 : i32, i32
  }
  func.func @transform_11(%arg0: i32) -> (i32, i32) {
    %c0_i32 = arith.constant 0 : i32
    %c0_i32_0 = arith.constant 0 : i32
    %c0_i32_1 = arith.constant 0 : i32
    return %c0_i32, %c0_i32_0 : i32, i32
  }
  func.func @transform_12(%arg0: i32) -> (i32, i32) {
    %c0_i32 = arith.constant 0 : i32
    %c0_i32_0 = arith.constant 0 : i32
    %c0_i32_1 = arith.constant 0 : i32
    return %c0_i32, %c0_i32_0 : i32, i32
  }
  func.func @transform_13(%arg0: i32) -> (i32, i32) {
    %c0_i32 = arith.constant 0 : i32
    %c0_i32_0 = arith.constant 0 : i32
    %c0_i32_1 = arith.constant 0 : i32
    return %c0_i32, %c0_i32_0 : i32, i32
  }
  func.func @transform_14(%arg0: i32) -> (i32, i32, i32) {
    %c0_i32 = arith.constant 0 : i32
    %c0_i32_0 = arith.constant 0 : i32
    %c0_i32_1 = arith.constant 0 : i32
    %c0_i32_2 = arith.constant 0 : i32
    return %c0_i32, %c0_i32_0, %c0_i32_1 : i32, i32, i32
  }
  func.func @transform_15(%arg0: i32) -> (i32, i32) {
    %c0_i32 = arith.constant 0 : i32
    %c0_i32_0 = arith.constant 0 : i32
    %c0_i32_1 = arith.constant 0 : i32
    return %c0_i32, %c0_i32_0 : i32, i32
  }
  func.func @transform_16(%arg0: i32) -> (i32, i32) {
    %c0_i32 = arith.constant 0 : i32
    %c0_i32_0 = arith.constant 0 : i32
    %c0_i32_1 = arith.constant 0 : i32
    return %c0_i32, %c0_i32_0 : i32, i32
  }
  func.func @transform_17(%arg0: i32) -> (i32, i32) {
    %c0_i32 = arith.constant 0 : i32
    %c0_i32_0 = arith.constant 0 : i32
    %c0_i32_1 = arith.constant 0 : i32
    return %c0_i32, %c0_i32_0 : i32, i32
  }
  func.func @transform_18(%arg0: i32) -> (i32, i32, i32, i32) {
    %c0_i32 = arith.constant 0 : i32
    %c0_i32_0 = arith.constant 0 : i32
    %c0_i32_1 = arith.constant 0 : i32
    %c0_i32_2 = arith.constant 0 : i32
    return %arg0, %c0_i32, %c0_i32_0, %c0_i32_1 : i32, i32, i32, i32
  }
}

</mosaic_0001>

<llo_original>
// kernel: residual_block_forward.1
$region0: #{residual_block_forward.1}
  #allocation0 [shape = 'u32[]', space=smem, size = 0x4, offset = 0x4, fixed_abs, tag = 'smem constant byte address 0x4 - core index']
  #allocation1 [shape = 'u32[144,128]{1,0:T(1,128)}', space=vmem, size = 0x12000, scoped, tag = 'internal scratch']
  #allocation2 [shape = 'bf16[2,10,10,128]{3,2,1,0:T(8,128)(2,1)}', space=vmem, size = 0x14000, scoped, tag = 'scratch operand']
  %s0 = inlined_call_operand.vmem [shape: f32[2,8,8,128], index: 0, kind: input, shape index: {}]
  %s1 = inlined_call_operand.vmem [shape: f32[2,32], index: 1, kind: input, shape index: {}]
  %s2 = inlined_call_operand.vmem [shape: f32[1,128], index: 2, kind: input, shape index: {}]
  %s3 = inlined_call_operand.vmem [shape: f32[1,128], index: 3, kind: input, shape index: {}]
  %s4 = inlined_call_operand.vmem [shape: f32[128,32], index: 4, kind: input, shape index: {}]
  %s5 = inlined_call_operand.vmem [shape: f32[32,128], index: 5, kind: input, shape index: {}]
  %s6 = inlined_call_operand.vmem [shape: bf16[9,128,128], index: 6, kind: input, shape index: {}]
  %s7 = inlined_call_operand.vmem [shape: f32[1,128], index: 7, kind: input, shape index: {}]
  %s8 = inlined_call_operand.vmem [shape: bf16[32,128], index: 8, kind: input, shape index: {}]
  %s9 = inlined_call_operand.vmem [shape: f32[1,128], index: 9, kind: input, shape index: {}]
  %s10 = inlined_call_operand.vmem [shape: f32[1,128], index: 10, kind: input, shape index: {}]
  %s11 = inlined_call_operand.vmem [shape: f32[1,128], index: 11, kind: input, shape index: {}]
  %s12 = inlined_call_operand.vmem [shape: f32[128,32], index: 12, kind: input, shape index: {}]
  %s13 = inlined_call_operand.vmem [shape: f32[32,128], index: 13, kind: input, shape index: {}]
  %s14 = inlined_call_operand.vmem [shape: bf16[9,128,128], index: 14, kind: input, shape index: {}]
  %s15 = inlined_call_operand.vmem [shape: f32[1,128], index: 15, kind: input, shape index: {}]
  %s16 = inlined_call_operand.vmem [shape: bf16[128,128], index: 16, kind: input, shape index: {}]
  %s17 = inlined_call_operand.vmem [shape: f32[1,128], index: 17, kind: input, shape index: {}]
  %s18 = inlined_call_operand.vmem [shape: f32[2,8,8,128], index: 18, kind: output, shape index: {}]
  %s19 = sld [smem:[#allocation0]]
  $region82: #{residual_block_forward.1} parent=0
    _
  %s21 = ssub.s32 1, %s19
  %s22 = scalar_select 0, %s21, %s19
  // Predicated region
  $region2: #{residual_block_forward.1} parent=0 // pred_check
    _
  $region3: #{residual_block_forward.1} parent=0 // pred_check_branch
    %24 = sbr.rel (0) target = $region5
  $region4: #{residual_block_forward.1} parent=0 // pred_region
    _
  $region5: #{residual_block_forward.1} parent=0 // pred_fallthru
    _
  // Predicated region
  $region6: #{residual_block_forward.1} parent=0 // pred_check
    _
  $region7: #{residual_block_forward.1} parent=0 // pred_check_branch
    %26 = sbr.rel (0) target = $region9
  $region8: #{residual_block_forward.1} parent=0 // pred_region
    _
  $region9: #{residual_block_forward.1} parent=0 // pred_fallthru
    _
  // Predicated region
  $region10: #{residual_block_forward.1} parent=0 // pred_check
    _
  $region11: #{residual_block_forward.1} parent=0 // pred_check_branch
    %28 = sbr.rel (0) target = $region13
  $region12: #{residual_block_forward.1} parent=0 // pred_region
    _
  $region13: #{residual_block_forward.1} parent=0 // pred_fallthru
    _
  // Predicated region
  $region14: #{residual_block_forward.1} parent=0 // pred_check
    _
  $region15: #{residual_block_forward.1} parent=0 // pred_check_branch
    %30 = sbr.rel (0) target = $region17
  $region16: #{residual_block_forward.1} parent=0 // pred_region
    _
  $region17: #{residual_block_forward.1} parent=0 // pred_fallthru
    _
  // Predicated region
  $region18: #{residual_block_forward.1} parent=0 // pred_check
    _
  $region19: #{residual_block_forward.1} parent=0 // pred_check_branch
    %32 = sbr.rel (0) target = $region21
  $region20: #{residual_block_forward.1} parent=0 // pred_region
    _
  $region21: #{residual_block_forward.1} parent=0 // pred_fallthru
    _
  // Predicated region
  $region22: #{residual_block_forward.1} parent=0 // pred_check
    _
  $region23: #{residual_block_forward.1} parent=0 // pred_check_branch
    %34 = sbr.rel (0) target = $region25
  $region24: #{residual_block_forward.1} parent=0 // pred_region
    _
  $region25: #{residual_block_forward.1} parent=0 // pred_fallthru
    _
  // Predicated region
  $region26: #{residual_block_forward.1} parent=0 // pred_check
    _
  $region27: #{residual_block_forward.1} parent=0 // pred_check_branch
    %36 = sbr.rel (0) target = $region29
  $region28: #{residual_block_forward.1} parent=0 // pred_region
    _
  $region29: #{residual_block_forward.1} parent=0 // pred_fallthru
    _
  // Predicated region
  $region30: #{residual_block_forward.1} parent=0 // pred_check
    _
  $region31: #{residual_block_forward.1} parent=0 // pred_check_branch
    %38 = sbr.rel (0) target = $region33
  $region32: #{residual_block_forward.1} parent=0 // pred_region
    _
  $region33: #{residual_block_forward.1} parent=0 // pred_fallthru
    _
  // Predicated region
  $region34: #{residual_block_forward.1} parent=0 // pred_check
    _
  $region35: #{residual_block_forward.1} parent=0 // pred_check_branch
    %40 = sbr.rel (0) target = $region37
  $region36: #{residual_block_forward.1} parent=0 // pred_region
    _
  $region37: #{residual_block_forward.1} parent=0 // pred_fallthru
    _
  // Predicated region
  $region38: #{residual_block_forward.1} parent=0 // pred_check
    _
  $region39: #{residual_block_forward.1} parent=0 // pred_check_branch
    %42 = sbr.rel (0) target = $region41
  $region40: #{residual_block_forward.1} parent=0 // pred_region
    _
  $region41: #{residual_block_forward.1} parent=0 // pred_fallthru
    _
  // Predicated region
  $region42: #{residual_block_forward.1} parent=0 // pred_check
    _
  $region43: #{residual_block_forward.1} parent=0 // pred_check_branch
    %44 = sbr.rel (0) target = $region45
  $region44: #{residual_block_forward.1} parent=0 // pred_region
    _
  $region45: #{residual_block_forward.1} parent=0 // pred_fallthru
    _
  // Predicated region
  $region46: #{residual_block_forward.1} parent=0 // pred_check
    _
  $region47: #{residual_block_forward.1} parent=0 // pred_check_branch
    %46 = sbr.rel (0) target = $region49
  $region48: #{residual_block_forward.1} parent=0 // pred_region
    _
  $region49: #{residual_block_forward.1} parent=0 // pred_fallthru
    _
  // Predicated region
  $region50: #{residual_block_forward.1} parent=0 // pred_check
    _
  $region51: #{residual_block_forward.1} parent=0 // pred_check_branch
    %48 = sbr.rel (0) target = $region53
  $region52: #{residual_block_forward.1} parent=0 // pred_region
    _
  $region53: #{residual_block_forward.1} parent=0 // pred_fallthru
    _
  // Predicated region
  $region54: #{residual_block_forward.1} parent=0 // pred_check
    _
  $region55: #{residual_block_forward.1} parent=0 // pred_check_branch
    %50 = sbr.rel (0) target = $region57
  $region56: #{residual_block_forward.1} parent=0 // pred_region
    _
  $region57: #{residual_block_forward.1} parent=0 // pred_fallthru
    _
  // Predicated region
  $region58: #{residual_block_forward.1} parent=0 // pred_check
    _
  $region59: #{residual_block_forward.1} parent=0 // pred_check_branch
    %52 = sbr.rel (0) target = $region61
  $region60: #{residual_block_forward.1} parent=0 // pred_region
    _
  $region61: #{residual_block_forward.1} parent=0 // pred_fallthru
    _
  // Predicated region
  $region62: #{residual_block_forward.1} parent=0 // pred_check
    _
  $region63: #{residual_block_forward.1} parent=0 // pred_check_branch
    %54 = sbr.rel (0) target = $region65
  $region64: #{residual_block_forward.1} parent=0 // pred_region
    _
  $region65: #{residual_block_forward.1} parent=0 // pred_fallthru
    _
  // Predicated region
  $region66: #{residual_block_forward.1} parent=0 // pred_check
    _
  $region67: #{residual_block_forward.1} parent=0 // pred_check_branch
    %56 = sbr.rel (0) target = $region69
  $region68: #{residual_block_forward.1} parent=0 // pred_region
    _
  $region69: #{residual_block_forward.1} parent=0 // pred_fallthru
    _
  // Predicated region
  $region70: #{residual_block_forward.1} parent=0 // pred_check
    _
  $region71: #{residual_block_forward.1} parent=0 // pred_check_branch
    %58 = sbr.rel (0) target = $region73
  $region72: #{residual_block_forward.1} parent=0 // pred_region
    _
  $region73: #{residual_block_forward.1} parent=0 // pred_fallthru
    _
  %v60 = vld [vmem:[%s0] sm:$0xff]
  %v61 = vld [vmem:[%s0 + $0x8] sm:$0xff]
  %v62 = vld [vmem:[%s0 + $0x10] sm:$0xff]
  %v63 = vld [vmem:[%s0 + $0x18] sm:$0xff]
  %v64 = vld [vmem:[%s0 + $0x20] sm:$0xff]
  %v65 = vld [vmem:[%s0 + $0x28] sm:$0xff]
  %v66 = vld [vmem:[%s0 + $0x30] sm:$0xff]
  %v67 = vld [vmem:[%s0 + $0x38] sm:$0xff]
  %v68 = vld [vmem:[%s0 + $0x40] sm:$0xff]
  %v69 = vld [vmem:[%s0 + $0x48] sm:$0xff]
  %v70 = vld [vmem:[%s0 + $0x50] sm:$0xff]
  %v71 = vld [vmem:[%s0 + $0x58] sm:$0xff]
  %v72 = vld [vmem:[%s0 + $0x60] sm:$0xff]
  %v73 = vld [vmem:[%s0 + $0x68] sm:$0xff]
  %v74 = vld [vmem:[%s0 + $0x70] sm:$0xff]
  %v75 = vld [vmem:[%s0 + $0x78] sm:$0xff]
  %v76 = vld [vmem:[%s2] sm:$0x1]
  %v77 = vld [vmem:[%s3] sm:$0x1]
  %v78 = vld [vmem:[%s4] sm:$0xff]
  %v79 = vld [vmem:[%s4 + $0x8] sm:$0xff]
  %v80 = vld [vmem:[%s4 + $0x10] sm:$0xff]
  %v81 = vld [vmem:[%s4 + $0x18] sm:$0xff]
  %v82 = vld [vmem:[%s4 + $0x20] sm:$0xff]
  %v83 = vld [vmem:[%s4 + $0x28] sm:$0xff]
  %v84 = vld [vmem:[%s4 + $0x30] sm:$0xff]
  %v85 = vld [vmem:[%s4 + $0x38] sm:$0xff]
  %v86 = vld [vmem:[%s4 + $0x40] sm:$0xff]
  %v87 = vld [vmem:[%s4 + $0x48] sm:$0xff]
  %v88 = vld [vmem:[%s4 + $0x50] sm:$0xff]
  %v89 = vld [vmem:[%s4 + $0x58] sm:$0xff]
  %v90 = vld [vmem:[%s4 + $0x60] sm:$0xff]
  %v91 = vld [vmem:[%s4 + $0x68] sm:$0xff]
  %v92 = vld [vmem:[%s4 + $0x70] sm:$0xff]
  %v93 = vld [vmem:[%s4 + $0x78] sm:$0xff]
  %v94 = vld [vmem:[%s5] sm:$0xff]
  %v95 = vld [vmem:[%s5 + $0x8] sm:$0xff]
  %v96 = vld [vmem:[%s5 + $0x10] sm:$0xff]
  %v97 = vld [vmem:[%s5 + $0x18] sm:$0xff]
  %v98 = vadd.f32 %v60, %v61
  %v99 = vadd.f32 %v98, %v62
  %v100 = vadd.f32 %v99, %v63
  %v101 = vadd.f32 %v100, %v64
  %v102 = vadd.f32 %v101, %v65
  %v103 = vadd.f32 %v102, %v66
  %v104 = vadd.f32 %v103, %v67
  %v105 = vrot.slane %v104, 4
  %v106 = vadd.f32 %v104, %v105
  %v107 = vrot.slane %v106, 2
  %v108 = vadd.f32 %v106, %v107
  %v109 = vrot.slane %v108, 1
  %v110 = vadd.f32 %v108, %v109
  %v111 = vadd.f32 %v68, %v69
  %v112 = vadd.f32 %v111, %v70
  %v113 = vadd.f32 %v112, %v71
  %v114 = vadd.f32 %v113, %v72
  %v115 = vadd.f32 %v114, %v73
  %v116 = vadd.f32 %v115, %v74
  %v117 = vadd.f32 %v116, %v75
  %v118 = vrot.slane %v117, 4
  %v119 = vadd.f32 %v117, %v118
  %v120 = vrot.slane %v119, 2
  %v121 = vadd.f32 %v119, %v120
  %v122 = vrot.slane %v121, 1
  %v123 = vadd.f32 %v121, %v122
  %v124 = vmul.f32 %v60, %v60
  %v125 = vmul.f32 %v61, %v61
  %v126 = vmul.f32 %v62, %v62
  %v127 = vmul.f32 %v63, %v63
  %v128 = vmul.f32 %v64, %v64
  %v129 = vmul.f32 %v65, %v65
  %v130 = vmul.f32 %v66, %v66
  %v131 = vmul.f32 %v67, %v67
  %v132 = vmul.f32 %v68, %v68
  %v133 = vmul.f32 %v69, %v69
  %v134 = vmul.f32 %v70, %v70
  %v135 = vmul.f32 %v71, %v71
  %v136 = vmul.f32 %v72, %v72
  %v137 = vmul.f32 %v73, %v73
  %v138 = vmul.f32 %v74, %v74
  %v139 = vmul.f32 %v75, %v75
  %v140 = vadd.f32 %v124, %v125
  %v141 = vadd.f32 %v140, %v126
  %v142 = vadd.f32 %v141, %v127
  %v143 = vadd.f32 %v142, %v128
  %v144 = vadd.f32 %v143, %v129
  %v145 = vadd.f32 %v144, %v130
  %v146 = vadd.f32 %v145, %v131
  %v147 = vrot.slane %v146, 4
  %v148 = vadd.f32 %v146, %v147
  %v149 = vrot.slane %v148, 2
  %v150 = vadd.f32 %v148, %v149
  %v151 = vrot.slane %v150, 1
  %v152 = vadd.f32 %v150, %v151
  %v153 = vadd.f32 %v132, %v133
  %v154 = vadd.f32 %v153, %v134
  %v155 = vadd.f32 %v154, %v135
  %v156 = vadd.f32 %v155, %v136
  %v157 = vadd.f32 %v156, %v137
  %v158 = vadd.f32 %v157, %v138
  %v159 = vadd.f32 %v158, %v139
  %v160 = vrot.slane %v159, 4
  %v161 = vadd.f32 %v159, %v160
  %v162 = vrot.slane %v161, 2
  %v163 = vadd.f32 %v161, %v162
  %v164 = vrot.slane %v163, 1
  %v165 = vadd.f32 %v163, %v164
  %vm168 = vcmask 1041409
  %v169 = vsel %vm168, %v123, %v110
  %vm173 = vcmask 1043459
  %v174 = vsel %vm173, %v165, %v152
  %vm176 = vcmask 1041408
  %v177 = vsel %vm176, %v169, %v174
  %178 = vmatprep.subr.mxu0 0.0
  %179 = vmatpush1.msra.mxu0 %v78
  %180 = vmatprep.subr.mxu0 0.0
  %181 = vmatpush1.msra.mxu0 %v79
  %182 = vmatprep.subr.mxu0 0.0
  %183 = vmatpush1.msra.mxu0 %v80
  %184 = vmatprep.subr.mxu0 0.0
  %185 = vmatpush1.msra.mxu0 %v81
  %186 = vmatprep.subr.mxu0 0.0
  %187 = vmatpush1.msra.mxu0 %v82
  %188 = vmatprep.subr.mxu0 0.0
  %189 = vmatpush1.msra.mxu0 %v83
  %190 = vmatprep.subr.mxu0 0.0
  %191 = vmatpush1.msra.mxu0 %v84
  %192 = vmatprep.subr.mxu0 0.0
  %193 = vmatpush1.msra.mxu0 %v85
  %194 = vmatprep.subr.mxu0 0.0
  %195 = vmatpush1.msra.mxu0 %v86
  %196 = vmatprep.subr.mxu0 0.0
  %197 = vmatpush1.msra.mxu0 %v87
  %198 = vmatprep.subr.mxu0 0.0
  %199 = vmatpush1.msra.mxu0 %v88
  %200 = vmatprep.subr.mxu0 0.0
  %201 = vmatpush1.msra.mxu0 %v89
  %202 = vmatprep.subr.mxu0 0.0
  %203 = vmatpush1.msra.mxu0 %v90
  %204 = vmatprep.subr.mxu0 0.0
  %205 = vmatpush1.msra.mxu0 %v91
  %206 = vmatprep.subr.mxu0 0.0
  %207 = vmatpush1.msra.mxu0 %v92
  %208 = vmatprep.subr.mxu0 0.0
  %209 = vmatpush1.msra.mxu0 %v93
  %210 = vmatprep.subr.mxu0 0.0
  %211 = vmatpush1.msra.mxu0 0.0
  %212 = vmatprep.subr.mxu0 0.0
  %213 = vmatpush1.msra.mxu0 0.0
  %214 = vmatprep.subr.mxu0 0.0
  %215 = vmatpush1.msra.mxu0 0.0
  %216 = vmatprep.subr.mxu0 0.0
  %217 = vmatpush1.msra.mxu0 0.0
  %218 = vmatprep.subr.mxu0 0.0
  %219 = vmatpush1.msra.mxu0 0.0
  %220 = vmatprep.subr.mxu0 0.0
  %221 = vmatpush1.msra.mxu0 0.0
  %222 = vmatprep.subr.mxu0 0.0
  %223 = vmatpush1.msra.mxu0 0.0
  %224 = vmatprep.subr.mxu0 0.0
  %225 = vmatpush1.msra.mxu0 0.0
  %226 = vmatprep.subr.mxu0 0.0
  %227 = vmatpush1.msra.mxu0 0.0
  %228 = vmatprep.subr.mxu0 0.0
  %229 = vmatpush1.msra.mxu0 0.0
  %230 = vmatprep.subr.mxu0 0.0
  %231 = vmatpush1.msra.mxu0 0.0
  %232 = vmatprep.subr.mxu0 0.0
  %233 = vmatpush1.msra.mxu0 0.0
  %234 = vmatprep.subr.mxu0 0.0
  %235 = vmatpush1.msra.mxu0 0.0
  %236 = vmatprep.subr.mxu0 0.0
  %237 = vmatpush1.msra.mxu0 0.0
  %238 = vmatprep.subr.mxu0 0.0
  %239 = vmatpush1.msra.mxu0 0.0
  %240 = vmatprep.subr.mxu0 0.0
  %241 = vmatpush1.msra.mxu0 0.0
  %242 = vmatprep.mubr.f32.mxu0 0.0
  %243 = vmatmul.mubr.f32.gmra.mrb[0].mxu0 %v177
  %v244 = vpop.f32.mrb[0].mxu0
  %v245 = vadd.f32 0.0, %v244
  %v246 = vpop.f32.mrb[0].mxu0
  %247 = vdwg.mxu0
  %v248 = vmul.f32 %v245, 0.015625
  %v249 = vmul.f32 %v248, %v248
  %v251 = vrot.slane %v249, 6
  %v253 = vsub.f32 %v248, %v251
  %v254 = vmax.f32 %v253, 0.0
  %v255 = vadd.f32 %v254, 1e-05
  %v256 = vrsqrt.pop %v255
  %v257 = vsel %vm176, %v248, %v256
  %vm258 = vcmask 261120
  %v260 = vsel %vm258, %v257, 0
  %262 = vmatprep.subr.mxu0 0.0
  %263 = vmatpush1.msra.mxu0 %v94
  %264 = vmatprep.subr.mxu0 0.0
  %265 = vmatpush1.msra.mxu0 %v95
  %266 = vmatprep.subr.mxu0 0.0
  %267 = vmatpush1.msra.mxu0 %v96
  %268 = vmatprep.subr.mxu0 0.0
  %269 = vmatpush1.msra.mxu0 %v97
  %270 = vmatprep.subr.mxu0 0.0
  %271 = vmatpush1.msra.mxu0 0.0
  %272 = vmatprep.subr.mxu0 0.0
  %273 = vmatpush1.msra.mxu0 0.0
  %274 = vmatprep.subr.mxu0 0.0
  %275 = vmatpush1.msra.mxu0 0.0
  %276 = vmatprep.subr.mxu0 0.0
  %277 = vmatpush1.msra.mxu0 0.0
  %278 = vmatprep.subr.mxu0 0.0
  %279 = vmatpush1.msra.mxu0 0.0
  %280 = vmatprep.subr.mxu0 0.0
  %281 = vmatpush1.msra.mxu0 0.0
  %282 = vmatprep.subr.mxu0 0.0
  %283 = vmatpush1.msra.mxu0 0.0
  %284 = vmatprep.subr.mxu0 0.0
  %285 = vmatpush1.msra.mxu0 0.0
  %286 = vmatprep.subr.mxu0 0.0
  %287 = vmatpush1.msra.mxu0 0.0
  %288 = vmatprep.subr.mxu0 0.0
  %289 = vmatpush1.msra.mxu0 0.0
  %290 = vmatprep.subr.mxu0 0.0
  %291 = vmatpush1.msra.mxu0 0.0
  %292 = vmatprep.subr.mxu0 0.0
  %293 = vmatpush1.msra.mxu0 0.0
  %294 = vmatprep.subr.mxu0 0.0
  %295 = vmatpush1.msra.mxu0 0.0
  %296 = vmatprep.subr.mxu0 0.0
  %297 = vmatpush1.msra.mxu0 0.0
  %298 = vmatprep.subr.mxu0 0.0
  %299 = vmatpush1.msra.mxu0 0.0
  %300 = vmatprep.subr.mxu0 0.0
  %301 = vmatpush1.msra.mxu0 0.0
  %302 = vmatprep.subr.mxu0 0.0
  %303 = vmatpush1.msra.mxu0 0.0
  %304 = vmatprep.subr.mxu0 0.0
  %305 = vmatpush1.msra.mxu0 0.0
  %306 = vmatprep.subr.mxu0 0.0
  %307 = vmatpush1.msra.mxu0 0.0
  %308 = vmatprep.subr.mxu0 0.0
  %309 = vmatpush1.msra.mxu0 0.0
  %310 = vmatprep.subr.mxu0 0.0
  %311 = vmatpush1.msra.mxu0 0.0
  %312 = vmatprep.subr.mxu0 0.0
  %313 = vmatpush1.msra.mxu0 0.0
  %314 = vmatprep.subr.mxu0 0.0
  %315 = vmatpush1.msra.mxu0 0.0
  %316 = vmatprep.subr.mxu0 0.0
  %317 = vmatpush1.msra.mxu0 0.0
  %318 = vmatprep.subr.mxu0 0.0
  %319 = vmatpush1.msra.mxu0 0.0
  %320 = vmatprep.subr.mxu0 0.0
  %321 = vmatpush1.msra.mxu0 0.0
  %322 = vmatprep.subr.mxu0 0.0
  %323 = vmatpush1.msra.mxu0 0.0
  %324 = vmatprep.subr.mxu0 0.0
  %325 = vmatpush1.msra.mxu0 0.0
  %326 = vmatprep.mubr.f32.mxu0 0.0
  %327 = vmatmul.mubr.f32.gmra.mrb[0].mxu0 %v260
  %v328 = vpop.f32.mrb[0].mxu0
  %v329 = vadd.f32 0.0, %v328
  %v330 = vpop.f32.mrb[0].mxu0
  %331 = vdwg.mxu0
  %v334 = vunpack.c.l.s4 1966171168
  %v335 = vunpack.c.0.s8 %v334
  %v336 = vlaneseq
  %v337 = vshrl.u32 %v336, 7
  %v338 = vsub.s32 %v335, %v337
  %v339 = vrot.slane %v329, %v338
  %v340 = vcombine.high %v339, %v339
  %v342 = vunpack.c.l.s4 1966171168
  %v343 = vunpack.c.0.s8 %v342
  %v344 = vlaneseq
  %v345 = vshrl.u32 %v344, 7
  %v346 = vsub.s32 %v343, %v345
  %v347 = vrot.slane %v339, %v346
  %v349 = vunpack.c.l.s4 1966171168
  %v350 = vunpack.c.0.s8 %v349
  %v351 = vlaneseq
  %v352 = vshrl.u32 %v351, 7
  %v353 = vsub.s32 %v350, %v352
  %v354 = vrot.slane %v340, %v353
  %v355 = vlaneseq
  %v356 = vshrl.u32 %v355, 7
  %v357 = vsub.s32 0, %v356
  %v358 = vrot.slane %v347, %v357
  %v359 = vlaneseq
  %v360 = vshrl.u32 %v359, 7
  %v361 = vsub.s32 0, %v360
  %v362 = vrot.slane %v354, %v361
  %v365 = vsub.f32 %v60, %v358
  %v366 = vsub.f32 %v61, %v358
  %v367 = vsub.f32 %v62, %v358
  %v368 = vsub.f32 %v63, %v358
  %v369 = vsub.f32 %v64, %v358
  %v370 = vsub.f32 %v65, %v358
  %v371 = vsub.f32 %v66, %v358
  %v372 = vsub.f32 %v67, %v358
  %v373 = vsub.f32 %v68, %v362
  %v374 = vsub.f32 %v69, %v362
  %v375 = vsub.f32 %v70, %v362
  %v376 = vsub.f32 %v71, %v362
  %v377 = vsub.f32 %v72, %v362
  %v378 = vsub.f32 %v73, %v362
  %v379 = vsub.f32 %v74, %v362
  %v380 = vsub.f32 %v75, %v362
  %v381 = vcombine.high %v347, %v347
  %v382 = vcombine.high %v354, %v354
  %v383 = vlaneseq
  %v384 = vshrl.u32 %v383, 7
  %v385 = vsub.s32 0, %v384
  %v386 = vrot.slane %v381, %v385
  %v387 = vlaneseq
  %v388 = vshrl.u32 %v387, 7
  %v389 = vsub.s32 0, %v388
  %v390 = vrot.slane %v382, %v389
  %v393 = vmul.f32 %v365, %v386
  %v394 = vmul.f32 %v366, %v386
  %v395 = vmul.f32 %v367, %v386
  %v396 = vmul.f32 %v368, %v386
  %v397 = vmul.f32 %v369, %v386
  %v398 = vmul.f32 %v370, %v386
  %v399 = vmul.f32 %v371, %v386
  %v400 = vmul.f32 %v372, %v386
  %v401 = vmul.f32 %v373, %v390
  %v402 = vmul.f32 %v374, %v390
  %v403 = vmul.f32 %v375, %v390
  %v404 = vmul.f32 %v376, %v390
  %v405 = vmul.f32 %v377, %v390
  %v406 = vmul.f32 %v378, %v390
  %v407 = vmul.f32 %v379, %v390
  %v408 = vmul.f32 %v380, %v390
  %v410 = vlaneseq
  %v411 = vshrl.u32 %v410, 7
  %v412 = vsub.s32 0, %v411
  %v413 = vrot.slane %v76, %v412
  %v415 = vmul.f32 %v393, %v413
  %v416 = vmul.f32 %v394, %v413
  %v417 = vmul.f32 %v395, %v413
  %v418 = vmul.f32 %v396, %v413
  %v419 = vmul.f32 %v397, %v413
  %v420 = vmul.f32 %v398, %v413
  %v421 = vmul.f32 %v399, %v413
  %v422 = vmul.f32 %v400, %v413
  %v423 = vmul.f32 %v401, %v413
  %v424 = vmul.f32 %v402, %v413
  %v425 = vmul.f32 %v403, %v413
  %v426 = vmul.f32 %v404, %v413
  %v427 = vmul.f32 %v405, %v413
  %v428 = vmul.f32 %v406, %v413
  %v429 = vmul.f32 %v407, %v413
  %v430 = vmul.f32 %v408, %v413
  %v432 = vlaneseq
  %v433 = vshrl.u32 %v432, 7
  %v434 = vsub.s32 0, %v433
  %v435 = vrot.slane %v77, %v434
  %v437 = vadd.f32 %v415, %v435
  %v438 = vadd.f32 %v416, %v435
  %v439 = vadd.f32 %v417, %v435
  %v440 = vadd.f32 %v418, %v435
  %v441 = vadd.f32 %v419, %v435
  %v442 = vadd.f32 %v420, %v435
  %v443 = vadd.f32 %v421, %v435
  %v444 = vadd.f32 %v422, %v435
  %v445 = vadd.f32 %v423, %v435
  %v446 = vadd.f32 %v424, %v435
  %v447 = vadd.f32 %v425, %v435
  %v448 = vadd.f32 %v426, %v435
  %v449 = vadd.f32 %v427, %v435
  %v450 = vadd.f32 %v428, %v435
  %v451 = vadd.f32 %v429, %v435
  %v452 = vadd.f32 %v430, %v435
  %v453 = vxor.u32 %v437, 2147483648
  %v454 = vxor.u32 %v438, 2147483648
  %v455 = vxor.u32 %v439, 2147483648
  %v456 = vxor.u32 %v440, 2147483648
  %v457 = vxor.u32 %v441, 2147483648
  %v458 = vxor.u32 %v442, 2147483648
  %v459 = vxor.u32 %v443, 2147483648
  %v460 = vxor.u32 %v444, 2147483648
  %v461 = vxor.u32 %v445, 2147483648
  %v462 = vxor.u32 %v446, 2147483648
  %v463 = vxor.u32 %v447, 2147483648
  %v464 = vxor.u32 %v448, 2147483648
  %v465 = vxor.u32 %v449, 2147483648
  %v466 = vxor.u32 %v450, 2147483648
  %v467 = vxor.u32 %v451, 2147483648
  %v468 = vxor.u32 %v452, 2147483648
  %v469 = vmul.f32 %v453, 1.442695
  %v470 = vpow.pop %v469
  %v471 = vmul.f32 %v454, 1.442695
  %v472 = vpow.pop %v471
  %v473 = vmul.f32 %v455, 1.442695
  %v474 = vpow.pop %v473
  %v475 = vmul.f32 %v456, 1.442695
  %v476 = vpow.pop %v475
  %v477 = vmul.f32 %v457, 1.442695
  %v478 = vpow.pop %v477
  %v479 = vmul.f32 %v458, 1.442695
  %v480 = vpow.pop %v479
  %v481 = vmul.f32 %v459, 1.442695
  %v482 = vpow.pop %v481
  %v483 = vmul.f32 %v460, 1.442695
  %v484 = vpow.pop %v483
  %v485 = vmul.f32 %v461, 1.442695
  %v486 = vpow.pop %v485
  %v487 = vmul.f32 %v462, 1.442695
  %v488 = vpow.pop %v487
  %v489 = vmul.f32 %v463, 1.442695
  %v490 = vpow.pop %v489
  %v491 = vmul.f32 %v464, 1.442695
  %v492 = vpow.pop %v491
  %v493 = vmul.f32 %v465, 1.442695
  %v494 = vpow.pop %v493
  %v495 = vmul.f32 %v466, 1.442695
  %v496 = vpow.pop %v495
  %v497 = vmul.f32 %v467, 1.442695
  %v498 = vpow.pop %v497
  %v499 = vmul.f32 %v468, 1.442695
  %v500 = vpow.pop %v499
  %v501 = vadd.f32 %v470, 1.0
  %v502 = vadd.f32 %v472, 1.0
  %v503 = vadd.f32 %v474, 1.0
  %v504 = vadd.f32 %v476, 1.0
  %v505 = vadd.f32 %v478, 1.0
  %v506 = vadd.f32 %v480, 1.0
  %v507 = vadd.f32 %v482, 1.0
  %v508 = vadd.f32 %v484, 1.0
  %v509 = vadd.f32 %v486, 1.0
  %v510 = vadd.f32 %v488, 1.0
  %v511 = vadd.f32 %v490, 1.0
  %v512 = vadd.f32 %v492, 1.0
  %v513 = vadd.f32 %v494, 1.0
  %v514 = vadd.f32 %v496, 1.0
  %v515 = vadd.f32 %v498, 1.0
  %v516 = vadd.f32 %v500, 1.0
  %v517 = vrcp.pop %v501
  %v518 = vmul.f32 1.0, %v517
  %v519 = vrcp.pop %v502
  %v520 = vmul.f32 1.0, %v519
  %v521 = vrcp.pop %v503
  %v522 = vmul.f32 1.0, %v521
  %v523 = vrcp.pop %v504
  %v524 = vmul.f32 1.0, %v523
  %v525 = vrcp.pop %v505
  %v526 = vmul.f32 1.0, %v525
  %v527 = vrcp.pop %v506
  %v528 = vmul.f32 1.0, %v527
  %v529 = vrcp.pop %v507
  %v530 = vmul.f32 1.0, %v529
  %v531 = vrcp.pop %v508
  %v532 = vmul.f32 1.0, %v531
  %v533 = vrcp.pop %v509
  %v534 = vmul.f32 1.0, %v533
  %v535 = vrcp.pop %v510
  %v536 = vmul.f32 1.0, %v535
  %v537 = vrcp.pop %v511
  %v538 = vmul.f32 1.0, %v537
  %v539 = vrcp.pop %v512
  %v540 = vmul.f32 1.0, %v539
  %v541 = vrcp.pop %v513
  %v542 = vmul.f32 1.0, %v541
  %v543 = vrcp.pop %v514
  %v544 = vmul.f32 1.0, %v543
  %v545 = vrcp.pop %v515
  %v546 = vmul.f32 1.0, %v545
  %v547 = vrcp.pop %v516
  %v548 = vmul.f32 1.0, %v547
  %v549 = vmul.f32 %v437, %v518
  %v550 = vmul.f32 %v438, %v520
  %v551 = vmul.f32 %v439, %v522
  %v552 = vmul.f32 %v440, %v524
  %v553 = vmul.f32 %v441, %v526
  %v554 = vmul.f32 %v442, %v528
  %v555 = vmul.f32 %v443, %v530
  %v556 = vmul.f32 %v444, %v532
  %v557 = vmul.f32 %v445, %v534
  %v558 = vmul.f32 %v446, %v536
  %v559 = vmul.f32 %v447, %v538
  %v560 = vmul.f32 %v448, %v540
  %v561 = vmul.f32 %v449, %v542
  %v562 = vmul.f32 %v450, %v544
  %v563 = vmul.f32 %v451, %v546
  %v564 = vmul.f32 %v452, %v548
  %v565 = vpack.c.bf16 %v549, %v549
  %v566 = vpack.c.bf16 %v550, %v550
  %v567 = vpack.c.bf16 %v551, %v551
  %v568 = vpack.c.bf16 %v552, %v552
  %v569 = vpack.c.bf16 %v553, %v553
  %v570 = vpack.c.bf16 %v554, %v554
  %v571 = vpack.c.bf16 %v555, %v555
  %v572 = vpack.c.bf16 %v556, %v556
  %v573 = vpack.c.bf16 %v557, %v557
  %v574 = vpack.c.bf16 %v558, %v558
  %v575 = vpack.c.bf16 %v559, %v559
  %v576 = vpack.c.bf16 %v560, %v560
  %v577 = vpack.c.bf16 %v561, %v561
  %v578 = vpack.c.bf16 %v562, %v562
  %v579 = vpack.c.bf16 %v563, %v563
  %v580 = vpack.c.bf16 %v564, %v564
  %581 = vst [vmem:[#allocation2] sm:$0xf] 0
  %582 = vst [vmem:[#allocation2 + $0x4] sm:$0x1] 0
  %583 = vst [vmem:[#allocation2 + $0x50] sm:$0xf] 0
  %584 = vst [vmem:[#allocation2 + $0x54] sm:$0x1] 0
  %s585 = scalar_lea.vmem [#allocation2], 72
  %586 = vst [vmem:[%s585] sm:$0xf] 0
  %587 = vst [vmem:[%s585 + $0x4] sm:$0x1] 0
  %588 = vst [vmem:[%s585 + $0x50] sm:$0xf] 0
  %589 = vst [vmem:[%s585 + $0x54] sm:$0x1] 0
  %s590 = scalar_lea.vmem [#allocation2], 8
  %vm591 = vcmask 1040384
  %vm592 = vsmask.f32 256
  %vm593 = vmand %vm591, %vm592
  %v594 = vld [vmem:[%s590] sm:$0x1]
  %v595 = vsel %vm593, 0, %v594
  %596 = vst [vmem:[%s590] sm:$0x1] %v595
  %v597 = vld [vmem:[%s590 + $0x8] sm:$0x1]
  %v598 = vsel %vm593, 0, %v597
  %599 = vst [vmem:[%s590 + $0x8] sm:$0x1] %v598
  %v600 = vld [vmem:[%s590 + $0x10] sm:$0x1]
  %v601 = vsel %vm593, 0, %v600
  %602 = vst [vmem:[%s590 + $0x10] sm:$0x1] %v601
  %v603 = vld [vmem:[%s590 + $0x18] sm:$0x1]
  %v604 = vsel %vm593, 0, %v603
  %605 = vst [vmem:[%s590 + $0x18] sm:$0x1] %v604
  %v606 = vld [vmem:[%s590 + $0x20] sm:$0x1]
  %v607 = vsel %vm593, 0, %v606
  %608 = vst [vmem:[%s590 + $0x20] sm:$0x1] %v607
  %v609 = vld [vmem:[%s590 + $0x28] sm:$0x1]
  %v610 = vsel %vm593, 0, %v609
  %611 = vst [vmem:[%s590 + $0x28] sm:$0x1] %v610
  %v612 = vld [vmem:[%s590 + $0x30] sm:$0x1]
  %v613 = vsel %vm593, 0, %v612
  %614 = vst [vmem:[%s590 + $0x30] sm:$0x1] %v613
  %v615 = vld [vmem:[%s590 + $0x38] sm:$0x1]
  %v616 = vsel %vm593, 0, %v615
  %617 = vst [vmem:[%s590 + $0x38] sm:$0x1] %v616
  %v618 = vld [vmem:[%s590 + $0x50] sm:$0x1]
  %v619 = vsel %vm593, 0, %v618
  %620 = vst [vmem:[%s590 + $0x50] sm:$0x1] %v619
  %v621 = vld [vmem:[%s590 + $0x58] sm:$0x1]
  %v622 = vsel %vm593, 0, %v621
  %623 = vst [vmem:[%s590 + $0x58] sm:$0x1] %v622
  %v624 = vld [vmem:[%s590 + $0x60] sm:$0x1]
  %v625 = vsel %vm593, 0, %v624
  %626 = vst [vmem:[%s590 + $0x60] sm:$0x1] %v625
  %v627 = vld [vmem:[%s590 + $0x68] sm:$0x1]
  %v628 = vsel %vm593, 0, %v627
  %629 = vst [vmem:[%s590 + $0x68] sm:$0x1] %v628
  %v630 = vld [vmem:[%s590 + $0x70] sm:$0x1]
  %v631 = vsel %vm593, 0, %v630
  %632 = vst [vmem:[%s590 + $0x70] sm:$0x1] %v631
  %v633 = vld [vmem:[%s590 + $0x78] sm:$0x1]
  %v634 = vsel %vm593, 0, %v633
  %635 = vst [vmem:[%s590 + $0x78] sm:$0x1] %v634
  %v636 = vld [vmem:[%s590 + $0x80] sm:$0x1]
  %v637 = vsel %vm593, 0, %v636
  %638 = vst [vmem:[%s590 + $0x80] sm:$0x1] %v637
  %v639 = vld [vmem:[%s590 + $0x88] sm:$0x1]
  %v640 = vsel %vm593, 0, %v639
  %641 = vst [vmem:[%s590 + $0x88] sm:$0x1] %v640
  %vm642 = vsmask.f32 7938
  %vm643 = vmand %vm591, %vm642
  %v644 = vld [vmem:[%s590 + $0x4] sm:$0x1]
  %v645 = vsel %vm643, 0, %v644
  %646 = vst [vmem:[%s590 + $0x4] sm:$0x1] %v645
  %v647 = vld [vmem:[%s590 + $0xc] sm:$0x1]
  %v648 = vsel %vm643, 0, %v647
  %649 = vst [vmem:[%s590 + $0xc] sm:$0x1] %v648
  %v650 = vld [vmem:[%s590 + $0x14] sm:$0x1]
  %v651 = vsel %vm643, 0, %v650
  %652 = vst [vmem:[%s590 + $0x14] sm:$0x1] %v651
  %v653 = vld [vmem:[%s590 + $0x1c] sm:$0x1]
  %v654 = vsel %vm643, 0, %v653
  %655 = vst [vmem:[%s590 + $0x1c] sm:$0x1] %v654
  %v656 = vld [vmem:[%s590 + $0x24] sm:$0x1]
  %v657 = vsel %vm643, 0, %v656
  %658 = vst [vmem:[%s590 + $0x24] sm:$0x1] %v657
  %v659 = vld [vmem:[%s590 + $0x2c] sm:$0x1]
  %v660 = vsel %vm643, 0, %v659
  %661 = vst [vmem:[%s590 + $0x2c] sm:$0x1] %v660
  %v662 = vld [vmem:[%s590 + $0x34] sm:$0x1]
  %v663 = vsel %vm643, 0, %v662
  %664 = vst [vmem:[%s590 + $0x34] sm:$0x1] %v663
  %v665 = vld [vmem:[%s590 + $0x3c] sm:$0x1]
  %v666 = vsel %vm643, 0, %v665
  %667 = vst [vmem:[%s590 + $0x3c] sm:$0x1] %v666
  %v668 = vld [vmem:[%s590 + $0x54] sm:$0x1]
  %v669 = vsel %vm643, 0, %v668
  %670 = vst [vmem:[%s590 + $0x54] sm:$0x1] %v669
  %v671 = vld [vmem:[%s590 + $0x5c] sm:$0x1]
  %v672 = vsel %vm643, 0, %v671
  %673 = vst [vmem:[%s590 + $0x5c] sm:$0x1] %v672
  %v674 = vld [vmem:[%s590 + $0x64] sm:$0x1]
  %v675 = vsel %vm643, 0, %v674
  %676 = vst [vmem:[%s590 + $0x64] sm:$0x1] %v675
  %v677 = vld [vmem:[%s590 + $0x6c] sm:$0x1]
  %v678 = vsel %vm643, 0, %v677
  %679 = vst [vmem:[%s590 + $0x6c] sm:$0x1] %v678
  %v680 = vld [vmem:[%s590 + $0x74] sm:$0x1]
  %v681 = vsel %vm643, 0, %v680
  %682 = vst [vmem:[%s590 + $0x74] sm:$0x1] %v681
  %v683 = vld [vmem:[%s590 + $0x7c] sm:$0x1]
  %v684 = vsel %vm643, 0, %v683
  %685 = vst [vmem:[%s590 + $0x7c] sm:$0x1] %v684
  %v686 = vld [vmem:[%s590 + $0x84] sm:$0x1]
  %v687 = vsel %vm643, 0, %v686
  %688 = vst [vmem:[%s590 + $0x84] sm:$0x1] %v687
  %v689 = vld [vmem:[%s590 + $0x8c] sm:$0x1]
  %v690 = vsel %vm643, 0, %v689
  %691 = vst [vmem:[%s590 + $0x8c] sm:$0x1] %v690
  %v708 = vunpack.c.l.b16 %v565
  %v709 = vunpack.c.l.b16 %v566
  %v710 = vunpack.c.l.b16 %v567
  %v711 = vunpack.c.l.b16 %v568
  %v712 = vunpack.c.l.b16 %v569
  %v713 = vunpack.c.l.b16 %v570
  %v714 = vunpack.c.l.b16 %v571
  %v715 = vunpack.c.l.b16 %v572
  %v716 = vunpack.c.l.b16 %v573
  %v717 = vunpack.c.l.b16 %v574
  %v718 = vunpack.c.l.b16 %v575
  %v719 = vunpack.c.l.b16 %v576
  %v720 = vunpack.c.l.b16 %v577
  %v721 = vunpack.c.l.b16 %v578
  %v722 = vunpack.c.l.b16 %v579
  %v723 = vunpack.c.l.b16 %v580
  %v724 = vpack.c.b16 %v708, %v708
  %v725 = vpack.c.b16 %v709, %v709
  %v726 = vpack.c.b16 %v710, %v710
  %v727 = vpack.c.b16 %v711, %v711
  %v728 = vpack.c.b16 %v712, %v712
  %v729 = vpack.c.b16 %v713, %v713
  %v730 = vpack.c.b16 %v714, %v714
  %v731 = vpack.c.b16 %v715, %v715
  %v732 = vpack.c.b16 %v716, %v716
  %v733 = vpack.c.b16 %v717, %v717
  %v734 = vpack.c.b16 %v718, %v718
  %v735 = vpack.c.b16 %v719, %v719
  %v736 = vpack.c.b16 %v720, %v720
  %v737 = vpack.c.b16 %v721, %v721
  %v738 = vpack.c.b16 %v722, %v722
  %v739 = vpack.c.b16 %v723, %v723
  %v741 = vshrl.u32 %v724, 16
  %v743 = vrot.slane %v741, 7
  %v744 = vshll.u32 %v724, 16
  %v746 = vor.u32 %v743, %v744
  %v747 = vrot.slane %v743, 4
  %v749 = vshrl.u32 %v725, 16
  %v751 = vrot.slane %v749, 7
  %v752 = vshll.u32 %v725, 16
  %v754 = vor.u32 %v751, %v752
  %v755 = vrot.slane %v751, 4
  %v757 = vshrl.u32 %v726, 16
  %v759 = vrot.slane %v757, 7
  %v760 = vshll.u32 %v726, 16
  %v762 = vor.u32 %v759, %v760
  %v763 = vrot.slane %v759, 4
  %v765 = vshrl.u32 %v727, 16
  %v767 = vrot.slane %v765, 7
  %v768 = vshll.u32 %v727, 16
  %v770 = vor.u32 %v767, %v768
  %v771 = vrot.slane %v767, 4
  %v773 = vshrl.u32 %v728, 16
  %v775 = vrot.slane %v773, 7
  %v776 = vshll.u32 %v728, 16
  %v778 = vor.u32 %v775, %v776
  %v779 = vrot.slane %v775, 4
  %v781 = vshrl.u32 %v729, 16
  %v783 = vrot.slane %v781, 7
  %v784 = vshll.u32 %v729, 16
  %v786 = vor.u32 %v783, %v784
  %v787 = vrot.slane %v783, 4
  %v789 = vshrl.u32 %v730, 16
  %v791 = vrot.slane %v789, 7
  %v792 = vshll.u32 %v730, 16
  %v794 = vor.u32 %v791, %v792
  %v795 = vrot.slane %v791, 4
  %v797 = vshrl.u32 %v731, 16
  %v799 = vrot.slane %v797, 7
  %v800 = vshll.u32 %v731, 16
  %v802 = vor.u32 %v799, %v800
  %v803 = vrot.slane %v799, 4
  %v805 = vshrl.u32 %v732, 16
  %v807 = vrot.slane %v805, 7
  %v808 = vshll.u32 %v732, 16
  %v810 = vor.u32 %v807, %v808
  %v811 = vrot.slane %v807, 4
  %v813 = vshrl.u32 %v733, 16
  %v815 = vrot.slane %v813, 7
  %v816 = vshll.u32 %v733, 16
  %v818 = vor.u32 %v815, %v816
  %v819 = vrot.slane %v815, 4
  %v821 = vshrl.u32 %v734, 16
  %v823 = vrot.slane %v821, 7
  %v824 = vshll.u32 %v734, 16
  %v826 = vor.u32 %v823, %v824
  %v827 = vrot.slane %v823, 4
  %v829 = vshrl.u32 %v735, 16
  %v831 = vrot.slane %v829, 7
  %v832 = vshll.u32 %v735, 16
  %v834 = vor.u32 %v831, %v832
  %v835 = vrot.slane %v831, 4
  %v837 = vshrl.u32 %v736, 16
  %v839 = vrot.slane %v837, 7
  %v840 = vshll.u32 %v736, 16
  %v842 = vor.u32 %v839, %v840
  %v843 = vrot.slane %v839, 4
  %v845 = vshrl.u32 %v737, 16
  %v847 = vrot.slane %v845, 7
  %v848 = vshll.u32 %v737, 16
  %v850 = vor.u32 %v847, %v848
  %v851 = vrot.slane %v847, 4
  %v853 = vshrl.u32 %v738, 16
  %v855 = vrot.slane %v853, 7
  %v856 = vshll.u32 %v738, 16
  %v858 = vor.u32 %v855, %v856
  %v859 = vrot.slane %v855, 4
  %v861 = vshrl.u32 %v739, 16
  %v863 = vrot.slane %v861, 7
  %v864 = vshll.u32 %v739, 16
  %v866 = vor.u32 %v863, %v864
  %v867 = vrot.slane %v863, 4
  %vm900 = vcmask 1043456
  %vm901 = vmand %vm900, %vm642
  %v902 = vld [vmem:[%s590] sm:$0xf]
  %v903 = vsel %vm901, %v746, %v902
  %904 = vst [vmem:[%s590] sm:$0xf] %v903
  %v905 = vld [vmem:[%s590 + $0x4] sm:$0x1]
  %v906 = vsel %vm593, %v747, %v905
  %907 = vst [vmem:[%s590 + $0x4] sm:$0x1] %v906
  %v908 = vld [vmem:[%s590 + $0x8] sm:$0xf]
  %v909 = vsel %vm901, %v754, %v908
  %910 = vst [vmem:[%s590 + $0x8] sm:$0xf] %v909
  %v911 = vld [vmem:[%s590 + $0xc] sm:$0x1]
  %v912 = vsel %vm593, %v755, %v911
  %913 = vst [vmem:[%s590 + $0xc] sm:$0x1] %v912
  %v914 = vld [vmem:[%s590 + $0x10] sm:$0xf]
  %v915 = vsel %vm901, %v762, %v914
  %916 = vst [vmem:[%s590 + $0x10] sm:$0xf] %v915
  %v917 = vld [vmem:[%s590 + $0x14] sm:$0x1]
  %v918 = vsel %vm593, %v763, %v917
  %919 = vst [vmem:[%s590 + $0x14] sm:$0x1] %v918
  %v920 = vld [vmem:[%s590 + $0x18] sm:$0xf]
  %v921 = vsel %vm901, %v770, %v920
  %922 = vst [vmem:[%s590 + $0x18] sm:$0xf] %v921
  %v923 = vld [vmem:[%s590 + $0x1c] sm:$0x1]
  %v924 = vsel %vm593, %v771, %v923
  %925 = vst [vmem:[%s590 + $0x1c] sm:$0x1] %v924
  %v926 = vld [vmem:[%s590 + $0x20] sm:$0xf]
  %v927 = vsel %vm901, %v778, %v926
  %928 = vst [vmem:[%s590 + $0x20] sm:$0xf] %v927
  %v929 = vld [vmem:[%s590 + $0x24] sm:$0x1]
  %v930 = vsel %vm593, %v779, %v929
  %931 = vst [vmem:[%s590 + $0x24] sm:$0x1] %v930
  %v932 = vld [vmem:[%s590 + $0x28] sm:$0xf]
  %v933 = vsel %vm901, %v786, %v932
  %934 = vst [vmem:[%s590 + $0x28] sm:$0xf] %v933
  %v935 = vld [vmem:[%s590 + $0x2c] sm:$0x1]
  %v936 = vsel %vm593, %v787, %v935
  %937 = vst [vmem:[%s590 + $0x2c] sm:$0x1] %v936
  %v938 = vld [vmem:[%s590 + $0x30] sm:$0xf]
  %v939 = vsel %vm901, %v794, %v938
  %940 = vst [vmem:[%s590 + $0x30] sm:$0xf] %v939
  %v941 = vld [vmem:[%s590 + $0x34] sm:$0x1]
  %v942 = vsel %vm593, %v795, %v941
  %943 = vst [vmem:[%s590 + $0x34] sm:$0x1] %v942
  %v944 = vld [vmem:[%s590 + $0x38] sm:$0xf]
  %v945 = vsel %vm901, %v802, %v944
  %946 = vst [vmem:[%s590 + $0x38] sm:$0xf] %v945
  %v947 = vld [vmem:[%s590 + $0x3c] sm:$0x1]
  %v948 = vsel %vm593, %v803, %v947
  %949 = vst [vmem:[%s590 + $0x3c] sm:$0x1] %v948
  %v950 = vld [vmem:[%s590 + $0x50] sm:$0xf]
  %v951 = vsel %vm901, %v810, %v950
  %952 = vst [vmem:[%s590 + $0x50] sm:$0xf] %v951
  %v953 = vld [vmem:[%s590 + $0x54] sm:$0x1]
  %v954 = vsel %vm593, %v811, %v953
  %955 = vst [vmem:[%s590 + $0x54] sm:$0x1] %v954
  %v956 = vld [vmem:[%s590 + $0x58] sm:$0xf]
  %v957 = vsel %vm901, %v818, %v956
  %958 = vst [vmem:[%s590 + $0x58] sm:$0xf] %v957
  %v959 = vld [vmem:[%s590 + $0x5c] sm:$0x1]
  %v960 = vsel %vm593, %v819, %v959
  %961 = vst [vmem:[%s590 + $0x5c] sm:$0x1] %v960
  %v962 = vld [vmem:[%s590 + $0x60] sm:$0xf]
  %v963 = vsel %vm901, %v826, %v962
  %964 = vst [vmem:[%s590 + $0x60] sm:$0xf] %v963
  %v965 = vld [vmem:[%s590 + $0x64] sm:$0x1]
  %v966 = vsel %vm593, %v827, %v965
  %967 = vst [vmem:[%s590 + $0x64] sm:$0x1] %v966
  %v968 = vld [vmem:[%s590 + $0x68] sm:$0xf]
  %v969 = vsel %vm901, %v834, %v968
  %970 = vst [vmem:[%s590 + $0x68] sm:$0xf] %v969
  %v971 = vld [vmem:[%s590 + $0x6c] sm:$0x1]
  %v972 = vsel %vm593, %v835, %v971
  %973 = vst [vmem:[%s590 + $0x6c] sm:$0x1] %v972
  %v974 = vld [vmem:[%s590 + $0x70] sm:$0xf]
  %v975 = vsel %vm901, %v842, %v974
  %976 = vst [vmem:[%s590 + $0x70] sm:$0xf] %v975
  %v977 = vld [vmem:[%s590 + $0x74] sm:$0x1]
  %v978 = vsel %vm593, %v843, %v977
  %979 = vst [vmem:[%s590 + $0x74] sm:$0x1] %v978
  %v980 = vld [vmem:[%s590 + $0x78] sm:$0xf]
  %v981 = vsel %vm901, %v850, %v980
  %982 = vst [vmem:[%s590 + $0x78] sm:$0xf] %v981
  %v983 = vld [vmem:[%s590 + $0x7c] sm:$0x1]
  %v984 = vsel %vm593, %v851, %v983
  %985 = vst [vmem:[%s590 + $0x7c] sm:$0x1] %v984
  %v986 = vld [vmem:[%s590 + $0x80] sm:$0xf]
  %v987 = vsel %vm901, %v858, %v986
  %988 = vst [vmem:[%s590 + $0x80] sm:$0xf] %v987
  %v989 = vld [vmem:[%s590 + $0x84] sm:$0x1]
  %v990 = vsel %vm593, %v859, %v989
  %991 = vst [vmem:[%s590 + $0x84] sm:$0x1] %v990
  %v992 = vld [vmem:[%s590 + $0x88] sm:$0xf]
  %v993 = vsel %vm901, %v866, %v992
  %994 = vst [vmem:[%s590 + $0x88] sm:$0xf] %v993
  %v995 = vld [vmem:[%s590 + $0x8c] sm:$0x1]
  %v996 = vsel %vm593, %v867, %v995
  %997 = vst [vmem:[%s590 + $0x8c] sm:$0x1] %v996
  %v998 = vld [vmem:[%s7] sm:$0x1]
  %v999 = vld [vmem:[#allocation2] sm:$0xf]
  %v1000 = vld [vmem:[#allocation2 + $0x8] sm:$0xf]
  %v1001 = vld [vmem:[#allocation2 + $0x10] sm:$0xf]
  %v1002 = vld [vmem:[#allocation2 + $0x18] sm:$0xf]
  %v1003 = vld [vmem:[#allocation2 + $0x20] sm:$0xf]
  %v1004 = vld [vmem:[#allocation2 + $0x28] sm:$0xf]
  %v1005 = vld [vmem:[#allocation2 + $0x30] sm:$0xf]
  %v1006 = vld [vmem:[#allocation2 + $0x38] sm:$0xf]
  %v1007 = vld [vmem:[#allocation2 + $0x50] sm:$0xf]
  %v1008 = vld [vmem:[#allocation2 + $0x58] sm:$0xf]
  %v1009 = vld [vmem:[#allocation2 + $0x60] sm:$0xf]
  %v1010 = vld [vmem:[#allocation2 + $0x68] sm:$0xf]
  %v1011 = vld [vmem:[#allocation2 + $0x70] sm:$0xf]
  %v1012 = vld [vmem:[#allocation2 + $0x78] sm:$0xf]
  %v1013 = vld [vmem:[#allocation2 + $0x80] sm:$0xf]
  %v1014 = vld [vmem:[#allocation2 + $0x88] sm:$0xf]
  %v1015 = vld [vmem:[%s6] sm:$0xf]
  %v1016 = vld [vmem:[%s6 + $0x4] sm:$0xf]
  %v1017 = vld [vmem:[%s6 + $0x8] sm:$0xf]
  %v1018 = vld [vmem:[%s6 + $0xc] sm:$0xf]
  %v1019 = vld [vmem:[%s6 + $0x10] sm:$0xf]
  %v1020 = vld [vmem:[%s6 + $0x14] sm:$0xf]
  %v1021 = vld [vmem:[%s6 + $0x18] sm:$0xf]
  %v1022 = vld [vmem:[%s6 + $0x1c] sm:$0xf]
  %v1023 = vld [vmem:[%s6 + $0x20] sm:$0xf]
  %v1024 = vld [vmem:[%s6 + $0x24] sm:$0xf]
  %v1025 = vld [vmem:[%s6 + $0x28] sm:$0xf]
  %v1026 = vld [vmem:[%s6 + $0x2c] sm:$0xf]
  %v1027 = vld [vmem:[%s6 + $0x30] sm:$0xf]
  %v1028 = vld [vmem:[%s6 + $0x34] sm:$0xf]
  %v1029 = vld [vmem:[%s6 + $0x38] sm:$0xf]
  %v1030 = vld [vmem:[%s6 + $0x3c] sm:$0xf]
  %v1031 = vld [vmem:[#allocation2 + $0x4] sm:$0x1]
  %v1032 = vld [vmem:[#allocation2 + $0xc] sm:$0x1]
  %v1033 = vld [vmem:[#allocation2 + $0x14] sm:$0x1]
  %v1034 = vld [vmem:[#allocation2 + $0x1c] sm:$0x1]
  %v1035 = vld [vmem:[#allocation2 + $0x24] sm:$0x1]
  %v1036 = vld [vmem:[#allocation2 + $0x2c] sm:$0x1]
  %v1037 = vld [vmem:[#allocation2 + $0x34] sm:$0x1]
  %v1038 = vld [vmem:[#allocation2 + $0x3c] sm:$0x1]
  %v1039 = vld [vmem:[#allocation2 + $0x54] sm:$0x1]
  %v1040 = vld [vmem:[#allocation2 + $0x5c] sm:$0x1]
  %v1041 = vld [vmem:[#allocation2 + $0x64] sm:$0x1]
  %v1042 = vld [vmem:[#allocation2 + $0x6c] sm:$0x1]
  %v1043 = vld [vmem:[#allocation2 + $0x74] sm:$0x1]
  %v1044 = vld [vmem:[#allocation2 + $0x7c] sm:$0x1]
  %v1045 = vld [vmem:[#allocation2 + $0x84] sm:$0x1]
  %v1046 = vld [vmem:[#allocation2 + $0x8c] sm:$0x1]
  %vm1047 = vsmask.f32 3328
  %vm1048 = vsmask.f32 7440
  %vm1049 = vmor %vm1047, %vm1048
  %v1051 = vshrl.u32 %v999, 16
  %v1053 = vrot.slane %v1051, 4
  %v1054 = vshll.u32 %v999, 16
  %v1056 = vrot.slane %v1054, 5
  %v1057 = vor.u32 %v1053, %v1056
  %v1058 = vrot.slane %v1057, 4
  %v1060 = vshll.u32 %v1031, 16
  %v1062 = vrot.slane %v1060, 5
  %v1063 = vsel %vm1049, %v1058, %v1062
  %v1065 = vshrl.u32 %v1000, 16
  %v1067 = vrot.slane %v1065, 4
  %v1068 = vshll.u32 %v1000, 16
  %v1070 = vrot.slane %v1068, 5
  %v1071 = vor.u32 %v1067, %v1070
  %v1072 = vrot.slane %v1071, 4
  %v1074 = vshll.u32 %v1032, 16
  %v1076 = vrot.slane %v1074, 5
  %v1077 = vsel %vm1049, %v1072, %v1076
  %v1079 = vshrl.u32 %v1001, 16
  %v1081 = vrot.slane %v1079, 4
  %v1082 = vshll.u32 %v1001, 16
  %v1084 = vrot.slane %v1082, 5
  %v1085 = vor.u32 %v1081, %v1084
  %v1086 = vrot.slane %v1085, 4
  %v1088 = vshll.u32 %v1033, 16
  %v1090 = vrot.slane %v1088, 5
  %v1091 = vsel %vm1049, %v1086, %v1090
  %v1093 = vshrl.u32 %v1002, 16
  %v1095 = vrot.slane %v1093, 4
  %v1096 = vshll.u32 %v1002, 16
  %v1098 = vrot.slane %v1096, 5
  %v1099 = vor.u32 %v1095, %v1098
  %v1100 = vrot.slane %v1099, 4
  %v1102 = vshll.u32 %v1034, 16
  %v1104 = vrot.slane %v1102, 5
  %v1105 = vsel %vm1049, %v1100, %v1104
  %v1107 = vshrl.u32 %v1003, 16
  %v1109 = vrot.slane %v1107, 4
  %v1110 = vshll.u32 %v1003, 16
  %v1112 = vrot.slane %v1110, 5
  %v1113 = vor.u32 %v1109, %v1112
  %v1114 = vrot.slane %v1113, 4
  %v1116 = vshll.u32 %v1035, 16
  %v1118 = vrot.slane %v1116, 5
  %v1119 = vsel %vm1049, %v1114, %v1118
  %v1121 = vshrl.u32 %v1004, 16
  %v1123 = vrot.slane %v1121, 4
  %v1124 = vshll.u32 %v1004, 16
  %v1126 = vrot.slane %v1124, 5
  %v1127 = vor.u32 %v1123, %v1126
  %v1128 = vrot.slane %v1127, 4
  %v1130 = vshll.u32 %v1036, 16
  %v1132 = vrot.slane %v1130, 5
  %v1133 = vsel %vm1049, %v1128, %v1132
  %v1135 = vshrl.u32 %v1005, 16
  %v1137 = vrot.slane %v1135, 4
  %v1138 = vshll.u32 %v1005, 16
  %v1140 = vrot.slane %v1138, 5
  %v1141 = vor.u32 %v1137, %v1140
  %v1142 = vrot.slane %v1141, 4
  %v1144 = vshll.u32 %v1037, 16
  %v1146 = vrot.slane %v1144, 5
  %v1147 = vsel %vm1049, %v1142, %v1146
  %v1149 = vshrl.u32 %v1006, 16
  %v1151 = vrot.slane %v1149, 4
  %v1152 = vshll.u32 %v1006, 16
  %v1154 = vrot.slane %v1152, 5
  %v1155 = vor.u32 %v1151, %v1154
  %v1156 = vrot.slane %v1155, 4
  %v1158 = vshll.u32 %v1038, 16
  %v1160 = vrot.slane %v1158, 5
  %v1161 = vsel %vm1049, %v1156, %v1160
  %v1163 = vshrl.u32 %v1007, 16
  %v1165 = vrot.slane %v1163, 4
  %v1166 = vshll.u32 %v1007, 16
  %v1168 = vrot.slane %v1166, 5
  %v1169 = vor.u32 %v1165, %v1168
  %v1170 = vrot.slane %v1169, 4
  %v1172 = vshll.u32 %v1039, 16
  %v1174 = vrot.slane %v1172, 5
  %v1175 = vsel %vm1049, %v1170, %v1174
  %v1177 = vshrl.u32 %v1008, 16
  %v1179 = vrot.slane %v1177, 4
  %v1180 = vshll.u32 %v1008, 16
  %v1182 = vrot.slane %v1180, 5
  %v1183 = vor.u32 %v1179, %v1182
  %v1184 = vrot.slane %v1183, 4
  %v1186 = vshll.u32 %v1040, 16
  %v1188 = vrot.slane %v1186, 5
  %v1189 = vsel %vm1049, %v1184, %v1188
  %v1191 = vshrl.u32 %v1009, 16
  %v1193 = vrot.slane %v1191, 4
  %v1194 = vshll.u32 %v1009, 16
  %v1196 = vrot.slane %v1194, 5
  %v1197 = vor.u32 %v1193, %v1196
  %v1198 = vrot.slane %v1197, 4
  %v1200 = vshll.u32 %v1041, 16
  %v1202 = vrot.slane %v1200, 5
  %v1203 = vsel %vm1049, %v1198, %v1202
  %v1205 = vshrl.u32 %v1010, 16
  %v1207 = vrot.slane %v1205, 4
  %v1208 = vshll.u32 %v1010, 16
  %v1210 = vrot.slane %v1208, 5
  %v1211 = vor.u32 %v1207, %v1210
  %v1212 = vrot.slane %v1211, 4
  %v1214 = vshll.u32 %v1042, 16
  %v1216 = vrot.slane %v1214, 5
  %v1217 = vsel %vm1049, %v1212, %v1216
  %v1219 = vshrl.u32 %v1011, 16
  %v1221 = vrot.slane %v1219, 4
  %v1222 = vshll.u32 %v1011, 16
  %v1224 = vrot.slane %v1222, 5
  %v1225 = vor.u32 %v1221, %v1224
  %v1226 = vrot.slane %v1225, 4
  %v1228 = vshll.u32 %v1043, 16
  %v1230 = vrot.slane %v1228, 5
  %v1231 = vsel %vm1049, %v1226, %v1230
  %v1233 = vshrl.u32 %v1012, 16
  %v1235 = vrot.slane %v1233, 4
  %v1236 = vshll.u32 %v1012, 16
  %v1238 = vrot.slane %v1236, 5
  %v1239 = vor.u32 %v1235, %v1238
  %v1240 = vrot.slane %v1239, 4
  %v1242 = vshll.u32 %v1044, 16
  %v1244 = vrot.slane %v1242, 5
  %v1245 = vsel %vm1049, %v1240, %v1244
  %v1247 = vshrl.u32 %v1013, 16
  %v1249 = vrot.slane %v1247, 4
  %v1250 = vshll.u32 %v1013, 16
  %v1252 = vrot.slane %v1250, 5
  %v1253 = vor.u32 %v1249, %v1252
  %v1254 = vrot.slane %v1253, 4
  %v1256 = vshll.u32 %v1045, 16
  %v1258 = vrot.slane %v1256, 5
  %v1259 = vsel %vm1049, %v1254, %v1258
  %v1261 = vshrl.u32 %v1014, 16
  %v1263 = vrot.slane %v1261, 4
  %v1264 = vshll.u32 %v1014, 16
  %v1266 = vrot.slane %v1264, 5
  %v1267 = vor.u32 %v1263, %v1266
  %v1268 = vrot.slane %v1267, 4
  %v1270 = vshll.u32 %v1046, 16
  %v1272 = vrot.slane %v1270, 5
  %v1273 = vsel %vm1049, %v1268, %v1272
  %s1274 = scalar_lea.vmem %s6, 64
  %v1275 = vld [vmem:[%s1274] sm:$0xf]
  %v1276 = vld [vmem:[%s1274 + $0x4] sm:$0xf]
  %v1277 = vld [vmem:[%s1274 + $0x8] sm:$0xf]
  %v1278 = vld [vmem:[%s1274 + $0xc] sm:$0xf]
  %v1279 = vld [vmem:[%s1274 + $0x10] sm:$0xf]
  %v1280 = vld [vmem:[%s1274 + $0x14] sm:$0xf]
  %v1281 = vld [vmem:[%s1274 + $0x18] sm:$0xf]
  %v1282 = vld [vmem:[%s1274 + $0x1c] sm:$0xf]
  %v1283 = vld [vmem:[%s1274 + $0x20] sm:$0xf]
  %v1284 = vld [vmem:[%s1274 + $0x24] sm:$0xf]
  %v1285 = vld [vmem:[%s1274 + $0x28] sm:$0xf]
  %v1286 = vld [vmem:[%s1274 + $0x2c] sm:$0xf]
  %v1287 = vld [vmem:[%s1274 + $0x30] sm:$0xf]
  %v1288 = vld [vmem:[%s1274 + $0x34] sm:$0xf]
  %v1289 = vld [vmem:[%s1274 + $0x38] sm:$0xf]
  %v1290 = vld [vmem:[%s1274 + $0x3c] sm:$0xf]
  %v1291 = vunpack.c.l.b16 %v1063
  %v1292 = vunpack.c.l.b16 %v1077
  %v1293 = vunpack.c.l.b16 %v1091
  %v1294 = vunpack.c.l.b16 %v1105
  %v1295 = vunpack.c.l.b16 %v1119
  %v1296 = vunpack.c.l.b16 %v1133
  %v1297 = vunpack.c.l.b16 %v1147
  %v1298 = vunpack.c.l.b16 %v1161
  %v1299 = vunpack.c.l.b16 %v1175
  %v1300 = vunpack.c.l.b16 %v1189
  %v1301 = vunpack.c.l.b16 %v1203
  %v1302 = vunpack.c.l.b16 %v1217
  %v1303 = vunpack.c.l.b16 %v1231
  %v1304 = vunpack.c.l.b16 %v1245
  %v1305 = vunpack.c.l.b16 %v1259
  %v1306 = vunpack.c.l.b16 %v1273
  %v1307 = vpack.c.b16 %v1292, %v1291
  %v1308 = vpack.c.b16 %v1294, %v1293
  %v1309 = vpack.c.b16 %v1296, %v1295
  %v1310 = vpack.c.b16 %v1298, %v1297
  %v1311 = vpack.c.b16 %v1300, %v1299
  %v1312 = vpack.c.b16 %v1302, %v1301
  %v1313 = vpack.c.b16 %v1304, %v1303
  %v1314 = vpack.c.b16 %v1306, %v1305
  %v1339 = vunpack.c.l.b16 %v1275
  %v1340 = vunpack.c.l.b16 %v1276
  %v1341 = vunpack.c.l.b16 %v1277
  %v1342 = vunpack.c.l.b16 %v1278
  %v1343 = vunpack.c.l.b16 %v1279
  %v1344 = vunpack.c.l.b16 %v1280
  %v1345 = vunpack.c.l.b16 %v1281
  %v1346 = vunpack.c.l.b16 %v1282
  %v1347 = vunpack.c.l.b16 %v1283
  %v1348 = vunpack.c.l.b16 %v1284
  %v1349 = vunpack.c.l.b16 %v1285
  %v1350 = vunpack.c.l.b16 %v1286
  %v1351 = vunpack.c.l.b16 %v1287
  %v1352 = vunpack.c.l.b16 %v1288
  %v1353 = vunpack.c.l.b16 %v1289
  %v1354 = vunpack.c.l.b16 %v1290
  %v1355 = vpack.c.b16 %v1340, %v1339
  %v1356 = vpack.c.b16 %v1342, %v1341
  %v1357 = vpack.c.b16 %v1344, %v1343
  %v1358 = vpack.c.b16 %v1346, %v1345
  %v1359 = vpack.c.b16 %v1348, %v1347
  %v1360 = vpack.c.b16 %v1350, %v1349
  %v1361 = vpack.c.b16 %v1352, %v1351
  %v1362 = vpack.c.b16 %v1354, %v1353
  %1371 = vmatprep.subr.bf16.mxu0 0
  %1372 = vmatpush1.bf16.msra.mxu0 %v1355
  %1373 = vmatprep.subr.bf16.mxu0 0
  %1374 = vmatpush1.bf16.msra.mxu0 %v1356
  %1375 = vmatprep.subr.bf16.mxu0 0
  %1376 = vmatpush1.bf16.msra.mxu0 %v1357
  %1377 = vmatprep.subr.bf16.mxu0 0
  %1378 = vmatpush1.bf16.msra.mxu0 %v1358
  %1379 = vmatprep.subr.bf16.mxu0 0
  %1380 = vmatpush1.bf16.msra.mxu0 %v1359
  %1381 = vmatprep.subr.bf16.mxu0 0
  %1382 = vmatpush1.bf16.msra.mxu0 %v1360
  %1383 = vmatprep.subr.bf16.mxu0 0
  %1384 = vmatpush1.bf16.msra.mxu0 %v1361
  %1385 = vmatprep.subr.bf16.mxu0 0
  %1386 = vmatpush1.bf16.msra.mxu0 %v1362
  %1387 = vmatprep.subr.bf16.mxu0 0
  %1388 = vmatpush1.bf16.msra.mxu0 0
  %1389 = vmatprep.subr.bf16.mxu0 0
  %1390 = vmatpush1.bf16.msra.mxu0 0
  %1391 = vmatprep.subr.bf16.mxu0 0
  %1392 = vmatpush1.bf16.msra.mxu0 0
  %1393 = vmatprep.subr.bf16.mxu0 0
  %1394 = vmatpush1.bf16.msra.mxu0 0
  %1395 = vmatprep.subr.bf16.mxu0 0
  %1396 = vmatpush1.bf16.msra.mxu0 0
  %1397 = vmatprep.subr.bf16.mxu0 0
  %1398 = vmatpush1.bf16.msra.mxu0 0
  %1399 = vmatprep.subr.bf16.mxu0 0
  %1400 = vmatpush1.bf16.msra.mxu0 0
  %1401 = vmatprep.subr.bf16.mxu0 0
  %1402 = vmatpush1.bf16.msra.mxu0 0
  %1403 = vmatprep.mubr.bf16.mxu0 0
  %1404 = vmatmul.mubr.bf16.gmra.mrb[0].mxu0 %v1307
  %v1405 = vpop.f32.mrb[0].mxu0
  %v1406 = vadd.f32 0.0, %v1405
  %v1407 = vpop.f32.mrb[0].mxu0
  %v1408 = vpop.f32.mrb[0].mxu0
  %v1409 = vadd.f32 0.0, %v1408
  %v1410 = vpop.f32.mrb[0].mxu0
  %1411 = vmatprep.mubr.bf16.mxu0 0
  %1412 = vmatmul.mubr.bf16.gmra.mrb[0].mxu0 %v1308
  %v1413 = vpop.f32.mrb[0].mxu0
  %v1414 = vadd.f32 0.0, %v1413
  %v1415 = vpop.f32.mrb[0].mxu0
  %v1416 = vpop.f32.mrb[0].mxu0
  %v1417 = vadd.f32 0.0, %v1416
  %v1418 = vpop.f32.mrb[0].mxu0
  %1419 = vmatprep.mubr.bf16.mxu0 0
  %1420 = vmatmul.mubr.bf16.gmra.mrb[0].mxu0 %v1309
  %v1421 = vpop.f32.mrb[0].mxu0
  %v1422 = vadd.f32 0.0, %v1421
  %v1423 = vpop.f32.mrb[0].mxu0
  %v1424 = vpop.f32.mrb[0].mxu0
  %v1425 = vadd.f32 0.0, %v1424
  %v1426 = vpop.f32.mrb[0].mxu0
  %1427 = vmatprep.mubr.bf16.mxu0 0
  %1428 = vmatmul.mubr.bf16.gmra.mrb[0].mxu0 %v1310
  %v1429 = vpop.f32.mrb[0].mxu0
  %v1430 = vadd.f32 0.0, %v1429
  %v1431 = vpop.f32.mrb[0].mxu0
  %v1432 = vpop.f32.mrb[0].mxu0
  %v1433 = vadd.f32 0.0, %v1432
  %v1434 = vpop.f32.mrb[0].mxu0
  %1435 = vmatprep.mubr.bf16.mxu0 0
  %1436 = vmatmul.mubr.bf16.gmra.mrb[0].mxu0 %v1311
  %v1437 = vpop.f32.mrb[0].mxu0
  %v1438 = vadd.f32 0.0, %v1437
  %v1439 = vpop.f32.mrb[0].mxu0
  %v1440 = vpop.f32.mrb[0].mxu0
  %v1441 = vadd.f32 0.0, %v1440
  %v1442 = vpop.f32.mrb[0].mxu0
  %1443 = vmatprep.mubr.bf16.mxu0 0
  %1444 = vmatmul.mubr.bf16.gmra.mrb[0].mxu0 %v1312
  %v1445 = vpop.f32.mrb[0].mxu0
  %v1446 = vadd.f32 0.0, %v1445
  %v1447 = vpop.f32.mrb[0].mxu0
  %v1448 = vpop.f32.mrb[0].mxu0
  %v1449 = vadd.f32 0.0, %v1448
  %v1450 = vpop.f32.mrb[0].mxu0
  %1451 = vmatprep.mubr.bf16.mxu0 0
  %1452 = vmatmul.mubr.bf16.gmra.mrb[0].mxu0 %v1313
  %v1453 = vpop.f32.mrb[0].mxu0
  %v1454 = vadd.f32 0.0, %v1453
  %v1455 = vpop.f32.mrb[0].mxu0
  %v1456 = vpop.f32.mrb[0].mxu0
  %v1457 = vadd.f32 0.0, %v1456
  %v1458 = vpop.f32.mrb[0].mxu0
  %1459 = vmatprep.mubr.bf16.mxu0 0
  %1460 = vmatmul.mubr.bf16.gmra.mrb[0].mxu0 %v1314
  %v1461 = vpop.f32.mrb[0].mxu0
  %v1462 = vadd.f32 0.0, %v1461
  %v1463 = vpop.f32.mrb[0].mxu0
  %v1464 = vpop.f32.mrb[0].mxu0
  %v1465 = vadd.f32 0.0, %v1464
  %v1466 = vpop.f32.mrb[0].mxu0
  %1467 = vdwg.mxu0
  %v1484 = vunpack.c.l.b16 %v999
  %v1485 = vunpack.c.l.b16 %v1000
  %v1486 = vunpack.c.l.b16 %v1001
  %v1487 = vunpack.c.l.b16 %v1002
  %v1488 = vunpack.c.l.b16 %v1003
  %v1489 = vunpack.c.l.b16 %v1004
  %v1490 = vunpack.c.l.b16 %v1005
  %v1491 = vunpack.c.l.b16 %v1006
  %v1492 = vunpack.c.l.b16 %v1007
  %v1493 = vunpack.c.l.b16 %v1008
  %v1494 = vunpack.c.l.b16 %v1009
  %v1495 = vunpack.c.l.b16 %v1010
  %v1496 = vunpack.c.l.b16 %v1011
  %v1497 = vunpack.c.l.b16 %v1012
  %v1498 = vunpack.c.l.b16 %v1013
  %v1499 = vunpack.c.l.b16 %v1014
  %v1500 = vpack.c.b16 %v1485, %v1484
  %v1501 = vpack.c.b16 %v1487, %v1486
  %v1502 = vpack.c.b16 %v1489, %v1488
  %v1503 = vpack.c.b16 %v1491, %v1490
  %v1504 = vpack.c.b16 %v1493, %v1492
  %v1505 = vpack.c.b16 %v1495, %v1494
  %v1506 = vpack.c.b16 %v1497, %v1496
  %v1507 = vpack.c.b16 %v1499, %v1498
  %v1532 = vunpack.c.l.b16 %v1015
  %v1533 = vunpack.c.l.b16 %v1016
  %v1534 = vunpack.c.l.b16 %v1017
  %v1535 = vunpack.c.l.b16 %v1018
  %v1536 = vunpack.c.l.b16 %v1019
  %v1537 = vunpack.c.l.b16 %v1020
  %v1538 = vunpack.c.l.b16 %v1021
  %v1539 = vunpack.c.l.b16 %v1022
  %v1540 = vunpack.c.l.b16 %v1023
  %v1541 = vunpack.c.l.b16 %v1024
  %v1542 = vunpack.c.l.b16 %v1025
  %v1543 = vunpack.c.l.b16 %v1026
  %v1544 = vunpack.c.l.b16 %v1027
  %v1545 = vunpack.c.l.b16 %v1028
  %v1546 = vunpack.c.l.b16 %v1029
  %v1547 = vunpack.c.l.b16 %v1030
  %v1548 = vpack.c.b16 %v1533, %v1532
  %v1549 = vpack.c.b16 %v1535, %v1534
  %v1550 = vpack.c.b16 %v1537, %v1536
  %v1551 = vpack.c.b16 %v1539, %v1538
  %v1552 = vpack.c.b16 %v1541, %v1540
  %v1553 = vpack.c.b16 %v1543, %v1542
  %v1554 = vpack.c.b16 %v1545, %v1544
  %v1555 = vpack.c.b16 %v1547, %v1546
  %1564 = vmatprep.subr.bf16.mxu0 0
  %1565 = vmatpush1.bf16.msra.mxu0 %v1548
  %1566 = vmatprep.subr.bf16.mxu0 0
  %1567 = vmatpush1.bf16.msra.mxu0 %v1549
  %1568 = vmatprep.subr.bf16.mxu0 0
  %1569 = vmatpush1.bf16.msra.mxu0 %v1550
  %1570 = vmatprep.subr.bf16.mxu0 0
  %1571 = vmatpush1.bf16.msra.mxu0 %v1551
  %1572 = vmatprep.subr.bf16.mxu0 0
  %1573 = vmatpush1.bf16.msra.mxu0 %v1552
  %1574 = vmatprep.subr.bf16.mxu0 0
  %1575 = vmatpush1.bf16.msra.mxu0 %v1553
  %1576 = vmatprep.subr.bf16.mxu0 0
  %1577 = vmatpush1.bf16.msra.mxu0 %v1554
  %1578 = vmatprep.subr.bf16.mxu0 0
  %1579 = vmatpush1.bf16.msra.mxu0 %v1555
  %1580 = vmatprep.subr.bf16.mxu0 0
  %1581 = vmatpush1.bf16.msra.mxu0 0
  %1582 = vmatprep.subr.bf16.mxu0 0
  %1583 = vmatpush1.bf16.msra.mxu0 0
  %1584 = vmatprep.subr.bf16.mxu0 0
  %1585 = vmatpush1.bf16.msra.mxu0 0
  %1586 = vmatprep.subr.bf16.mxu0 0
  %1587 = vmatpush1.bf16.msra.mxu0 0
  %1588 = vmatprep.subr.bf16.mxu0 0
  %1589 = vmatpush1.bf16.msra.mxu0 0
  %1590 = vmatprep.subr.bf16.mxu0 0
  %1591 = vmatpush1.bf16.msra.mxu0 0
  %1592 = vmatprep.subr.bf16.mxu0 0
  %1593 = vmatpush1.bf16.msra.mxu0 0
  %1594 = vmatprep.subr.bf16.mxu0 0
  %1595 = vmatpush1.bf16.msra.mxu0 0
  %1596 = vmatprep.mubr.bf16.mxu0 0
  %1597 = vmatmul.mubr.bf16.gmra.mrb[0].mxu0 %v1500
  %v1598 = vpop.f32.mrb[0].mxu0
  %v1599 = vadd.f32 %v1406, %v1598
  %v1600 = vpop.f32.mrb[0].mxu0
  %v1601 = vpop.f32.mrb[0].mxu0
  %v1602 = vadd.f32 %v1409, %v1601
  %v1603 = vpop.f32.mrb[0].mxu0
  %1604 = vmatprep.mubr.bf16.mxu0 0
  %1605 = vmatmul.mubr.bf16.gmra.mrb[0].mxu0 %v1501
  %v1606 = vpop.f32.mrb[0].mxu0
  %v1607 = vadd.f32 %v1414, %v1606
  %v1608 = vpop.f32.mrb[0].mxu0
  %v1609 = vpop.f32.mrb[0].mxu0
  %v1610 = vadd.f32 %v1417, %v1609
  %v1611 = vpop.f32.mrb[0].mxu0
  %1612 = vmatprep.mubr.bf16.mxu0 0
  %1613 = vmatmul.mubr.bf16.gmra.mrb[0].mxu0 %v1502
  %v1614 = vpop.f32.mrb[0].mxu0
  %v1615 = vadd.f32 %v1422, %v1614
  %v1616 = vpop.f32.mrb[0].mxu0
  %v1617 = vpop.f32.mrb[0].mxu0
  %v1618 = vadd.f32 %v1425, %v1617
  %v1619 = vpop.f32.mrb[0].mxu0
  %1620 = vmatprep.mubr.bf16.mxu0 0
  %1621 = vmatmul.mubr.bf16.gmra.mrb[0].mxu0 %v1503
  %v1622 = vpop.f32.mrb[0].mxu0
  %v1623 = vadd.f32 %v1430, %v1622
  %v1624 = vpop.f32.mrb[0].mxu0
  %v1625 = vpop.f32.mrb[0].mxu0
  %v1626 = vadd.f32 %v1433, %v1625
  %v1627 = vpop.f32.mrb[0].mxu0
  %1628 = vmatprep.mubr.bf16.mxu0 0
  %1629 = vmatmul.mubr.bf16.gmra.mrb[0].mxu0 %v1504
  %v1630 = vpop.f32.mrb[0].mxu0
  %v1631 = vadd.f32 %v1438, %v1630
  %v1632 = vpop.f32.mrb[0].mxu0
  %v1633 = vpop.f32.mrb[0].mxu0
  %v1634 = vadd.f32 %v1441, %v1633
  %v1635 = vpop.f32.mrb[0].mxu0
  %1636 = vmatprep.mubr.bf16.mxu0 0
  %1637 = vmatmul.mubr.bf16.gmra.mrb[0].mxu0 %v1505
  %v1638 = vpop.f32.mrb[0].mxu0
  %v1639 = vadd.f32 %v1446, %v1638
  %v1640 = vpop.f32.mrb[0].mxu0
  %v1641 = vpop.f32.mrb[0].mxu0
  %v1642 = vadd.f32 %v1449, %v1641
  %v1643 = vpop.f32.mrb[0].mxu0
  %1644 = vmatprep.mubr.bf16.mxu0 0
  %1645 = vmatmul.mubr.bf16.gmra.mrb[0].mxu0 %v1506
  %v1646 = vpop.f32.mrb[0].mxu0
  %v1647 = vadd.f32 %v1454, %v1646
  %v1648 = vpop.f32.mrb[0].mxu0
  %v1649 = vpop.f32.mrb[0].mxu0
  %v1650 = vadd.f32 %v1457, %v1649
  %v1651 = vpop.f32.mrb[0].mxu0
  %1652 = vmatprep.mubr.bf16.mxu0 0
  %1653 = vmatmul.mubr.bf16.gmra.mrb[0].mxu0 %v1507
  %v1654 = vpop.f32.mrb[0].mxu0
  %v1655 = vadd.f32 %v1462, %v1654
  %v1656 = vpop.f32.mrb[0].mxu0
  %v1657 = vpop.f32.mrb[0].mxu0
  %v1658 = vadd.f32 %v1465, %v1657
  %v1659 = vpop.f32.mrb[0].mxu0
  %1660 = vdwg.mxu0
  %v1661 = vld [vmem:[#allocation2] sm:$0xe]
  %v1662 = vld [vmem:[#allocation2 + $0x8] sm:$0xe]
  %v1663 = vld [vmem:[#allocation2 + $0x10] sm:$0xe]
  %v1664 = vld [vmem:[#allocation2 + $0x18] sm:$0xe]
  %v1665 = vld [vmem:[#allocation2 + $0x20] sm:$0xe]
  %v1666 = vld [vmem:[#allocation2 + $0x28] sm:$0xe]
  %v1667 = vld [vmem:[#allocation2 + $0x30] sm:$0xe]
  %v1668 = vld [vmem:[#allocation2 + $0x38] sm:$0xe]
  %v1669 = vld [vmem:[#allocation2 + $0x50] sm:$0xe]
  %v1670 = vld [vmem:[#allocation2 + $0x58] sm:$0xe]
  %v1671 = vld [vmem:[#allocation2 + $0x60] sm:$0xe]
  %v1672 = vld [vmem:[#allocation2 + $0x68] sm:$0xe]
  %v1673 = vld [vmem:[#allocation2 + $0x70] sm:$0xe]
  %v1674 = vld [vmem:[#allocation2 + $0x78] sm:$0xe]
  %v1675 = vld [vmem:[#allocation2 + $0x80] sm:$0xe]
  %v1676 = vld [vmem:[#allocation2 + $0x88] sm:$0xe]
  %vm1709 = vcmask 1042432
  %vm1710 = vcmask 1046532
  %vm1711 = vmor %vm1709, %vm1710
  %v1712 = vrot.slane %v1661, 5
  %v1713 = vrot.slane %v1712, 4
  %v1714 = vrot.slane %v1031, 5
  %v1715 = vsel %vm1711, %v1713, %v1714
  %v1716 = vrot.slane %v1662, 5
  %v1717 = vrot.slane %v1716, 4
  %v1718 = vrot.slane %v1032, 5
  %v1719 = vsel %vm1711, %v1717, %v1718
  %v1720 = vrot.slane %v1663, 5
  %v1721 = vrot.slane %v1720, 4
  %v1722 = vrot.slane %v1033, 5
  %v1723 = vsel %vm1711, %v1721, %v1722
  %v1724 = vrot.slane %v1664, 5
  %v1725 = vrot.slane %v1724, 4
  %v1726 = vrot.slane %v1034, 5
  %v1727 = vsel %vm1711, %v1725, %v1726
  %v1728 = vrot.slane %v1665, 5
  %v1729 = vrot.slane %v1728, 4
  %v1730 = vrot.slane %v1035, 5
  %v1731 = vsel %vm1711, %v1729, %v1730
  %v1732 = vrot.slane %v1666, 5
  %v1733 = vrot.slane %v1732, 4
  %v1734 = vrot.slane %v1036, 5
  %v1735 = vsel %vm1711, %v1733, %v1734
  %v1736 = vrot.slane %v1667, 5
  %v1737 = vrot.slane %v1736, 4
  %v1738 = vrot.slane %v1037, 5
  %v1739 = vsel %vm1711, %v1737, %v1738
  %v1740 = vrot.slane %v1668, 5
  %v1741 = vrot.slane %v1740, 4
  %v1742 = vrot.slane %v1038, 5
  %v1743 = vsel %vm1711, %v1741, %v1742
  %v1744 = vrot.slane %v1669, 5
  %v1745 = vrot.slane %v1744, 4
  %v1746 = vrot.slane %v1039, 5
  %v1747 = vsel %vm1711, %v1745, %v1746
  %v1748 = vrot.slane %v1670, 5
  %v1749 = vrot.slane %v1748, 4
  %v1750 = vrot.slane %v1040, 5
  %v1751 = vsel %vm1711, %v1749, %v1750
  %v1752 = vrot.slane %v1671, 5
  %v1753 = vrot.slane %v1752, 4
  %v1754 = vrot.slane %v1041, 5
  %v1755 = vsel %vm1711, %v1753, %v1754
  %v1756 = vrot.slane %v1672, 5
  %v1757 = vrot.slane %v1756, 4
  %v1758 = vrot.slane %v1042, 5
  %v1759 = vsel %vm1711, %v1757, %v1758
  %v1760 = vrot.slane %v1673, 5
  %v1761 = vrot.slane %v1760, 4
  %v1762 = vrot.slane %v1043, 5
  %v1763 = vsel %vm1711, %v1761, %v1762
  %v1764 = vrot.slane %v1674, 5
  %v1765 = vrot.slane %v1764, 4
  %v1766 = vrot.slane %v1044, 5
  %v1767 = vsel %vm1711, %v1765, %v1766
  %v1768 = vrot.slane %v1675, 5
  %v1769 = vrot.slane %v1768, 4
  %v1770 = vrot.slane %v1045, 5
  %v1771 = vsel %vm1711, %v1769, %v1770
  %v1772 = vrot.slane %v1676, 5
  %v1773 = vrot.slane %v1772, 4
  %v1774 = vrot.slane %v1046, 5
  %v1775 = vsel %vm1711, %v1773, %v1774
  %s1776 = scalar_lea.vmem %s6, 128
  %v1777 = vld [vmem:[%s1776] sm:$0xf]
  %v1778 = vld [vmem:[%s1776 + $0x4] sm:$0xf]
  %v1779 = vld [vmem:[%s1776 + $0x8] sm:$0xf]
  %v1780 = vld [vmem:[%s1776 + $0xc] sm:$0xf]
  %v1781 = vld [vmem:[%s1776 + $0x10] sm:$0xf]
  %v1782 = vld [vmem:[%s1776 + $0x14] sm:$0xf]
  %v1783 = vld [vmem:[%s1776 + $0x18] sm:$0xf]
  %v1784 = vld [vmem:[%s1776 + $0x1c] sm:$0xf]
  %v1785 = vld [vmem:[%s1776 + $0x20] sm:$0xf]
  %v1786 = vld [vmem:[%s1776 + $0x24] sm:$0xf]
  %v1787 = vld [vmem:[%s1776 + $0x28] sm:$0xf]
  %v1788 = vld [vmem:[%s1776 + $0x2c] sm:$0xf]
  %v1789 = vld [vmem:[%s1776 + $0x30] sm:$0xf]
  %v1790 = vld [vmem:[%s1776 + $0x34] sm:$0xf]
  %v1791 = vld [vmem:[%s1776 + $0x38] sm:$0xf]
  %v1792 = vld [vmem:[%s1776 + $0x3c] sm:$0xf]
  %v1793 = vunpack.c.l.b16 %v1715
  %v1794 = vunpack.c.l.b16 %v1719
  %v1795 = vunpack.c.l.b16 %v1723
  %v1796 = vunpack.c.l.b16 %v1727
  %v1797 = vunpack.c.l.b16 %v1731
  %v1798 = vunpack.c.l.b16 %v1735
  %v1799 = vunpack.c.l.b16 %v1739
  %v1800 = vunpack.c.l.b16 %v1743
  %v1801 = vunpack.c.l.b16 %v1747
  %v1802 = vunpack.c.l.b16 %v1751
  %v1803 = vunpack.c.l.b16 %v1755
  %v1804 = vunpack.c.l.b16 %v1759
  %v1805 = vunpack.c.l.b16 %v1763
  %v1806 = vunpack.c.l.b16 %v1767
  %v1807 = vunpack.c.l.b16 %v1771
  %v1808 = vunpack.c.l.b16 %v1775
  %v1809 = vpack.c.b16 %v1794, %v1793
  %v1810 = vpack.c.b16 %v1796, %v1795
  %v1811 = vpack.c.b16 %v1798, %v1797
  %v1812 = vpack.c.b16 %v1800, %v1799
  %v1813 = vpack.c.b16 %v1802, %v1801
  %v1814 = vpack.c.b16 %v1804, %v1803
  %v1815 = vpack.c.b16 %v1806, %v1805
  %v1816 = vpack.c.b16 %v1808, %v1807
  %v1841 = vunpack.c.l.b16 %v1777
  %v1842 = vunpack.c.l.b16 %v1778
  %v1843 = vunpack.c.l.b16 %v1779
  %v1844 = vunpack.c.l.b16 %v1780
  %v1845 = vunpack.c.l.b16 %v1781
  %v1846 = vunpack.c.l.b16 %v1782
  %v1847 = vunpack.c.l.b16 %v1783
  %v1848 = vunpack.c.l.b16 %v1784
  %v1849 = vunpack.c.l.b16 %v1785
  %v1850 = vunpack.c.l.b16 %v1786
  %v1851 = vunpack.c.l.b16 %v1787
  %v1852 = vunpack.c.l.b16 %v1788
  %v1853 = vunpack.c.l.b16 %v1789
  %v1854 = vunpack.c.l.b16 %v1790
  %v1855 = vunpack.c.l.b16 %v1791
  %v1856 = vunpack.c.l.b16 %v1792
  %v1857 = vpack.c.b16 %v1842, %v1841
  %v1858 = vpack.c.b16 %v1844, %v1843
  %v1859 = vpack.c.b16 %v1846, %v1845
  %v1860 = vpack.c.b16 %v1848, %v1847
  %v1861 = vpack.c.b16 %v1850, %v1849
  %v1862 = vpack.c.b16 %v1852, %v1851
  %v1863 = vpack.c.b16 %v1854, %v1853
  %v1864 = vpack.c.b16 %v1856, %v1855
  %1873 = vmatprep.subr.bf16.mxu0 0
  %1874 = vmatpush1.bf16.msra.mxu0 %v1857
  %1875 = vmatprep.subr.bf16.mxu0 0
  %1876 = vmatpush1.bf16.msra.mxu0 %v1858
  %1877 = vmatprep.subr.bf16.mxu0 0
  %1878 = vmatpush1.bf16.msra.mxu0 %v1859
  %1879 = vmatprep.subr.bf16.mxu0 0
  %1880 = vmatpush1.bf16.msra.mxu0 %v1860
  %1881 = vmatprep.subr.bf16.mxu0 0
  %1882 = vmatpush1.bf16.msra.mxu0 %v1861
  %1883 = vmatprep.subr.bf16.mxu0 0
  %1884 = vmatpush1.bf16.msra.mxu0 %v1862
  %1885 = vmatprep.subr.bf16.mxu0 0
  %1886 = vmatpush1.bf16.msra.mxu0 %v1863
  %1887 = vmatprep.subr.bf16.mxu0 0
  %1888 = vmatpush1.bf16.msra.mxu0 %v1864
  %1889 = vmatprep.subr.bf16.mxu0 0
  %1890 = vmatpush1.bf16.msra.mxu0 0
  %1891 = vmatprep.subr.bf16.mxu0 0
  %1892 = vmatpush1.bf16.msra.mxu0 0
  %1893 = vmatprep.subr.bf16.mxu0 0
  %1894 = vmatpush1.bf16.msra.mxu0 0
  %1895 = vmatprep.subr.bf16.mxu0 0
  %1896 = vmatpush1.bf16.msra.mxu0 0
  %1897 = vmatprep.subr.bf16.mxu0 0
  %1898 = vmatpush1.bf16.msra.mxu0 0
  %1899 = vmatprep.subr.bf16.mxu0 0
  %1900 = vmatpush1.bf16.msra.mxu0 0
  %1901 = vmatprep.subr.bf16.mxu0 0
  %1902 = vmatpush1.bf16.msra.mxu0 0
  %1903 = vmatprep.subr.bf16.mxu0 0
  %1904 = vmatpush1.bf16.msra.mxu0 0
  %1905 = vmatprep.mubr.bf16.mxu0 0
  %1906 = vmatmul.mubr.bf16.gmra.mrb[0].mxu0 %v1809
  %v1907 = vpop.f32.mrb[0].mxu0
  %v1908 = vadd.f32 0.0, %v1907
  %v1909 = vpop.f32.mrb[0].mxu0
  %v1910 = vpop.f32.mrb[0].mxu0
  %v1911 = vadd.f32 0.0, %v1910
  %v1912 = vpop.f32.mrb[0].mxu0
  %1913 = vmatprep.mubr.bf16.mxu0 0
  %1914 = vmatmul.mubr.bf16.gmra.mrb[0].mxu0 %v1810
  %v1915 = vpop.f32.mrb[0].mxu0
  %v1916 = vadd.f32 0.0, %v1915
  %v1917 = vpop.f32.mrb[0].mxu0
  %v1918 = vpop.f32.mrb[0].mxu0
  %v1919 = vadd.f32 0.0, %v1918
  %v1920 = vpop.f32.mrb[0].mxu0
  %1921 = vmatprep.mubr.bf16.mxu0 0
  %1922 = vmatmul.mubr.bf16.gmra.mrb[0].mxu0 %v1811
  %v1923 = vpop.f32.mrb[0].mxu0
  %v1924 = vadd.f32 0.0, %v1923
  %v1925 = vpop.f32.mrb[0].mxu0
  %v1926 = vpop.f32.mrb[0].mxu0
  %v1927 = vadd.f32 0.0, %v1926
  %v1928 = vpop.f32.mrb[0].mxu0
  %1929 = vmatprep.mubr.bf16.mxu0 0
  %1930 = vmatmul.mubr.bf16.gmra.mrb[0].mxu0 %v1812
  %v1931 = vpop.f32.mrb[0].mxu0
  %v1932 = vadd.f32 0.0, %v1931
  %v1933 = vpop.f32.mrb[0].mxu0
  %v1934 = vpop.f32.mrb[0].mxu0
  %v1935 = vadd.f32 0.0, %v1934
  %v1936 = vpop.f32.mrb[0].mxu0
  %1937 = vmatprep.mubr.bf16.mxu0 0
  %1938 = vmatmul.mubr.bf16.gmra.mrb[0].mxu0 %v1813
  %v1939 = vpop.f32.mrb[0].mxu0
  %v1940 = vadd.f32 0.0, %v1939
  %v1941 = vpop.f32.mrb[0].mxu0
  %v1942 = vpop.f32.mrb[0].mxu0
  %v1943 = vadd.f32 0.0, %v1942
  %v1944 = vpop.f32.mrb[0].mxu0
  %1945 = vmatprep.mubr.bf16.mxu0 0
  %1946 = vmatmul.mubr.bf16.gmra.mrb[0].mxu0 %v1814
  %v1947 = vpop.f32.mrb[0].mxu0
  %v1948 = vadd.f32 0.0, %v1947
  %v1949 = vpop.f32.mrb[0].mxu0
  %v1950 = vpop.f32.mrb[0].mxu0
  %v1951 = vadd.f32 0.0, %v1950
  %v1952 = vpop.f32.mrb[0].mxu0
  %1953 = vmatprep.mubr.bf16.mxu0 0
  %1954 = vmatmul.mubr.bf16.gmra.mrb[0].mxu0 %v1815
  %v1955 = vpop.f32.mrb[0].mxu0
  %v1956 = vadd.f32 0.0, %v1955
  %v1957 = vpop.f32.mrb[0].mxu0
  %v1958 = vpop.f32.mrb[0].mxu0
  %v1959 = vadd.f32 0.0, %v1958
  %v1960 = vpop.f32.mrb[0].mxu0
  %1961 = vmatprep.mubr.bf16.mxu0 0
  %1962 = vmatmul.mubr.bf16.gmra.mrb[0].mxu0 %v1816
  %v1963 = vpop.f32.mrb[0].mxu0
  %v1964 = vadd.f32 0.0, %v1963
  %v1965 = vpop.f32.mrb[0].mxu0
  %v1966 = vpop.f32.mrb[0].mxu0
  %v1967 = vadd.f32 0.0, %v1966
  %v1968 = vpop.f32.mrb[0].mxu0
  %1969 = vdwg.mxu0
  %v1970 = vadd.f32 %v1599, %v1908
  %v1971 = vadd.f32 %v1602, %v1911
  %v1972 = vadd.f32 %v1607, %v1916
  %v1973 = vadd.f32 %v1610, %v1919
  %v1974 = vadd.f32 %v1615, %v1924
  %v1975 = vadd.f32 %v1618, %v1927
  %v1976 = vadd.f32 %v1623, %v1932
  %v1977 = vadd.f32 %v1626, %v1935
  %v1978 = vadd.f32 %v1631, %v1940
  %v1979 = vadd.f32 %v1634, %v1943
  %v1980 = vadd.f32 %v1639, %v1948
  %v1981 = vadd.f32 %v1642, %v1951
  %v1982 = vadd.f32 %v1647, %v1956
  %v1983 = vadd.f32 %v1650, %v1959
  %v1984 = vadd.f32 %v1655, %v1964
  %v1985 = vadd.f32 %v1658, %v1967
  %v1986 = vld [vmem:[%s590] sm:$0xf]
  %v1987 = vld [vmem:[%s590 + $0x8] sm:$0xf]
  %v1988 = vld [vmem:[%s590 + $0x10] sm:$0xf]
  %v1989 = vld [vmem:[%s590 + $0x18] sm:$0xf]
  %v1990 = vld [vmem:[%s590 + $0x20] sm:$0xf]
  %v1991 = vld [vmem:[%s590 + $0x28] sm:$0xf]
  %v1992 = vld [vmem:[%s590 + $0x30] sm:$0xf]
  %v1993 = vld [vmem:[%s590 + $0x38] sm:$0xf]
  %v1994 = vld [vmem:[%s590 + $0x50] sm:$0xf]
  %v1995 = vld [vmem:[%s590 + $0x58] sm:$0xf]
  %v1996 = vld [vmem:[%s590 + $0x60] sm:$0xf]
  %v1997 = vld [vmem:[%s590 + $0x68] sm:$0xf]
  %v1998 = vld [vmem:[%s590 + $0x70] sm:$0xf]
  %v1999 = vld [vmem:[%s590 + $0x78] sm:$0xf]
  %v2000 = vld [vmem:[%s590 + $0x80] sm:$0xf]
  %v2001 = vld [vmem:[%s590 + $0x88] sm:$0xf]
  %s2002 = scalar_lea.vmem %s6, 192
  %v2003 = vld [vmem:[%s2002] sm:$0xf]
  %v2004 = vld [vmem:[%s2002 + $0x4] sm:$0xf]
  %v2005 = vld [vmem:[%s2002 + $0x8] sm:$0xf]
  %v2006 = vld [vmem:[%s2002 + $0xc] sm:$0xf]
  %v2007 = vld [vmem:[%s2002 + $0x10] sm:$0xf]
  %v2008 = vld [vmem:[%s2002 + $0x14] sm:$0xf]
  %v2009 = vld [vmem:[%s2002 + $0x18] sm:$0xf]
  %v2010 = vld [vmem:[%s2002 + $0x1c] sm:$0xf]
  %v2011 = vld [vmem:[%s2002 + $0x20] sm:$0xf]
  %v2012 = vld [vmem:[%s2002 + $0x24] sm:$0xf]
  %v2013 = vld [vmem:[%s2002 + $0x28] sm:$0xf]
  %v2014 = vld [vmem:[%s2002 + $0x2c] sm:$0xf]
  %v2015 = vld [vmem:[%s2002 + $0x30] sm:$0xf]
  %v2016 = vld [vmem:[%s2002 + $0x34] sm:$0xf]
  %v2017 = vld [vmem:[%s2002 + $0x38] sm:$0xf]
  %v2018 = vld [vmem:[%s2002 + $0x3c] sm:$0xf]
  %v2035 = vunpack.c.l.b16 %v1986
  %v2036 = vunpack.c.l.b16 %v1987
  %v2037 = vunpack.c.l.b16 %v1988
  %v2038 = vunpack.c.l.b16 %v1989
  %v2039 = vunpack.c.l.b16 %v1990
  %v2040 = vunpack.c.l.b16 %v1991
  %v2041 = vunpack.c.l.b16 %v1992
  %v2042 = vunpack.c.l.b16 %v1993
  %v2043 = vunpack.c.l.b16 %v1994
  %v2044 = vunpack.c.l.b16 %v1995
  %v2045 = vunpack.c.l.b16 %v1996
  %v2046 = vunpack.c.l.b16 %v1997
  %v2047 = vunpack.c.l.b16 %v1998
  %v2048 = vunpack.c.l.b16 %v1999
  %v2049 = vunpack.c.l.b16 %v2000
  %v2050 = vunpack.c.l.b16 %v2001
  %v2051 = vpack.c.b16 %v2036, %v2035
  %v2052 = vpack.c.b16 %v2038, %v2037
  %v2053 = vpack.c.b16 %v2040, %v2039
  %v2054 = vpack.c.b16 %v2042, %v2041
  %v2055 = vpack.c.b16 %v2044, %v2043
  %v2056 = vpack.c.b16 %v2046, %v2045
  %v2057 = vpack.c.b16 %v2048, %v2047
  %v2058 = vpack.c.b16 %v2050, %v2049
  %v2083 = vunpack.c.l.b16 %v2003
  %v2084 = vunpack.c.l.b16 %v2004
  %v2085 = vunpack.c.l.b16 %v2005
  %v2086 = vunpack.c.l.b16 %v2006
  %v2087 = vunpack.c.l.b16 %v2007
  %v2088 = vunpack.c.l.b16 %v2008
  %v2089 = vunpack.c.l.b16 %v2009
  %v2090 = vunpack.c.l.b16 %v2010
  %v2091 = vunpack.c.l.b16 %v2011
  %v2092 = vunpack.c.l.b16 %v2012
  %v2093 = vunpack.c.l.b16 %v2013
  %v2094 = vunpack.c.l.b16 %v2014
  %v2095 = vunpack.c.l.b16 %v2015
  %v2096 = vunpack.c.l.b16 %v2016
  %v2097 = vunpack.c.l.b16 %v2017
  %v2098 = vunpack.c.l.b16 %v2018
  %v2099 = vpack.c.b16 %v2084, %v2083
  %v2100 = vpack.c.b16 %v2086, %v2085
  %v2101 = vpack.c.b16 %v2088, %v2087
  %v2102 = vpack.c.b16 %v2090, %v2089
  %v2103 = vpack.c.b16 %v2092, %v2091
  %v2104 = vpack.c.b16 %v2094, %v2093
  %v2105 = vpack.c.b16 %v2096, %v2095
  %v2106 = vpack.c.b16 %v2098, %v2097
  %2115 = vmatprep.subr.bf16.mxu0 0
  %2116 = vmatpush1.bf16.msra.mxu0 %v2099
  %2117 = vmatprep.subr.bf16.mxu0 0
  %2118 = vmatpush1.bf16.msra.mxu0 %v2100
  %2119 = vmatprep.subr.bf16.mxu0 0
  %2120 = vmatpush1.bf16.msra.mxu0 %v2101
  %2121 = vmatprep.subr.bf16.mxu0 0
  %2122 = vmatpush1.bf16.msra.mxu0 %v2102
  %2123 = vmatprep.subr.bf16.mxu0 0
  %2124 = vmatpush1.bf16.msra.mxu0 %v2103
  %2125 = vmatprep.subr.bf16.mxu0 0
  %2126 = vmatpush1.bf16.msra.mxu0 %v2104
  %2127 = vmatprep.subr.bf16.mxu0 0
  %2128 = vmatpush1.bf16.msra.mxu0 %v2105
  %2129 = vmatprep.subr.bf16.mxu0 0
  %2130 = vmatpush1.bf16.msra.mxu0 %v2106
  %2131 = vmatprep.subr.bf16.mxu0 0
  %2132 = vmatpush1.bf16.msra.mxu0 0
  %2133 = vmatprep.subr.bf16.mxu0 0
  %2134 = vmatpush1.bf16.msra.mxu0 0
  %2135 = vmatprep.subr.bf16.mxu0 0
  %2136 = vmatpush1.bf16.msra.mxu0 0
  %2137 = vmatprep.subr.bf16.mxu0 0
  %2138 = vmatpush1.bf16.msra.mxu0 0
  %2139 = vmatprep.subr.bf16.mxu0 0
  %2140 = vmatpush1.bf16.msra.mxu0 0
  %2141 = vmatprep.subr.bf16.mxu0 0
  %2142 = vmatpush1.bf16.msra.mxu0 0
  %2143 = vmatprep.subr.bf16.mxu0 0
  %2144 = vmatpush1.bf16.msra.mxu0 0
  %2145 = vmatprep.subr.bf16.mxu0 0
  %2146 = vmatpush1.bf16.msra.mxu0 0
  %2147 = vmatprep.mubr.bf16.mxu0 0
  %2148 = vmatmul.mubr.bf16.gmra.mrb[0].mxu0 %v2051
  %v2149 = vpop.f32.mrb[0].mxu0
  %v2150 = vadd.f32 0.0, %v2149
  %v2151 = vpop.f32.mrb[0].mxu0
  %v2152 = vpop.f32.mrb[0].mxu0
  %v2153 = vadd.f32 0.0, %v2152
  %v2154 = vpop.f32.mrb[0].mxu0
  %2155 = vmatprep.mubr.bf16.mxu0 0
  %2156 = vmatmul.mubr.bf16.gmra.mrb[0].mxu0 %v2052
  %v2157 = vpop.f32.mrb[0].mxu0
  %v2158 = vadd.f32 0.0, %v2157
  %v2159 = vpop.f32.mrb[0].mxu0
  %v2160 = vpop.f32.mrb[0].mxu0
  %v2161 = vadd.f32 0.0, %v2160
  %v2162 = vpop.f32.mrb[0].mxu0
  %2163 = vmatprep.mubr.bf16.mxu0 0
  %2164 = vmatmul.mubr.bf16.gmra.mrb[0].mxu0 %v2053
  %v2165 = vpop.f32.mrb[0].mxu0
  %v2166 = vadd.f32 0.0, %v2165
  %v2167 = vpop.f32.mrb[0].mxu0
  %v2168 = vpop.f32.mrb[0].mxu0
  %v2169 = vadd.f32 0.0, %v2168
  %v2170 = vpop.f32.mrb[0].mxu0
  %2171 = vmatprep.mubr.bf16.mxu0 0
  %2172 = vmatmul.mubr.bf16.gmra.mrb[0].mxu0 %v2054
  %v2173 = vpop.f32.mrb[0].mxu0
  %v2174 = vadd.f32 0.0, %v2173
  %v2175 = vpop.f32.mrb[0].mxu0
  %v2176 = vpop.f32.mrb[0].mxu0
  %v2177 = vadd.f32 0.0, %v2176
  %v2178 = vpop.f32.mrb[0].mxu0
  %2179 = vmatprep.mubr.bf16.mxu0 0
  %2180 = vmatmul.mubr.bf16.gmra.mrb[0].mxu0 %v2055
  %v2181 = vpop.f32.mrb[0].mxu0
  %v2182 = vadd.f32 0.0, %v2181
  %v2183 = vpop.f32.mrb[0].mxu0
  %v2184 = vpop.f32.mrb[0].mxu0
  %v2185 = vadd.f32 0.0, %v2184
  %v2186 = vpop.f32.mrb[0].mxu0
  %2187 = vmatprep.mubr.bf16.mxu0 0
  %2188 = vmatmul.mubr.bf16.gmra.mrb[0].mxu0 %v2056
  %v2189 = vpop.f32.mrb[0].mxu0
  %v2190 = vadd.f32 0.0, %v2189
  %v2191 = vpop.f32.mrb[0].mxu0
  %v2192 = vpop.f32.mrb[0].mxu0
  %v2193 = vadd.f32 0.0, %v2192
  %v2194 = vpop.f32.mrb[0].mxu0
  %2195 = vmatprep.mubr.bf16.mxu0 0
  %2196 = vmatmul.mubr.bf16.gmra.mrb[0].mxu0 %v2057
  %v2197 = vpop.f32.mrb[0].mxu0
  %v2198 = vadd.f32 0.0, %v2197
  %v2199 = vpop.f32.mrb[0].mxu0
  %v2200 = vpop.f32.mrb[0].mxu0
  %v2201 = vadd.f32 0.0, %v2200
  %v2202 = vpop.f32.mrb[0].mxu0
  %2203 = vmatprep.mubr.bf16.mxu0 0
  %2204 = vmatmul.mubr.bf16.gmra.mrb[0].mxu0 %v2058
  %v2205 = vpop.f32.mrb[0].mxu0
  %v2206 = vadd.f32 0.0, %v2205
  %v2207 = vpop.f32.mrb[0].mxu0
  %v2208 = vpop.f32.mrb[0].mxu0
  %v2209 = vadd.f32 0.0, %v2208
  %v2210 = vpop.f32.mrb[0].mxu0
  %2211 = vdwg.mxu0
  %v2212 = vadd.f32 %v1970, %v2150
  %v2213 = vadd.f32 %v1971, %v2153
  %v2214 = vadd.f32 %v1972, %v2158
  %v2215 = vadd.f32 %v1973, %v2161
  %v2216 = vadd.f32 %v1974, %v2166
  %v2217 = vadd.f32 %v1975, %v2169
  %v2218 = vadd.f32 %v1976, %v2174
  %v2219 = vadd.f32 %v1977, %v2177
  %v2220 = vadd.f32 %v1978, %v2182
  %v2221 = vadd.f32 %v1979, %v2185
  %v2222 = vadd.f32 %v1980, %v2190
  %v2223 = vadd.f32 %v1981, %v2193
  %v2224 = vadd.f32 %v1982, %v2198
  %v2225 = vadd.f32 %v1983, %v2201
  %v2226 = vadd.f32 %v1984, %v2206
  %v2227 = vadd.f32 %v1985, %v2209
  %v2228 = vld [vmem:[%s590] sm:$0xf]
  %v2229 = vld [vmem:[%s590 + $0x4] sm:$0x1]
  %v2230 = vld [vmem:[%s590 + $0x8] sm:$0xf]
  %v2231 = vld [vmem:[%s590 + $0xc] sm:$0x1]
  %v2232 = vld [vmem:[%s590 + $0x10] sm:$0xf]
  %v2233 = vld [vmem:[%s590 + $0x14] sm:$0x1]
  %v2234 = vld [vmem:[%s590 + $0x18] sm:$0xf]
  %v2235 = vld [vmem:[%s590 + $0x1c] sm:$0x1]
  %v2236 = vld [vmem:[%s590 + $0x20] sm:$0xf]
  %v2237 = vld [vmem:[%s590 + $0x24] sm:$0x1]
  %v2238 = vld [vmem:[%s590 + $0x28] sm:$0xf]
  %v2239 = vld [vmem:[%s590 + $0x2c] sm:$0x1]
  %v2240 = vld [vmem:[%s590 + $0x30] sm:$0xf]
  %v2241 = vld [vmem:[%s590 + $0x34] sm:$0x1]
  %v2242 = vld [vmem:[%s590 + $0x38] sm:$0xf]
  %v2243 = vld [vmem:[%s590 + $0x3c] sm:$0x1]
  %v2244 = vld [vmem:[%s590 + $0x50] sm:$0xf]
  %v2245 = vld [vmem:[%s590 + $0x54] sm:$0x1]
  %v2246 = vld [vmem:[%s590 + $0x58] sm:$0xf]
  %v2247 = vld [vmem:[%s590 + $0x5c] sm:$0x1]
  %v2248 = vld [vmem:[%s590 + $0x60] sm:$0xf]
  %v2249 = vld [vmem:[%s590 + $0x64] sm:$0x1]
  %v2250 = vld [vmem:[%s590 + $0x68] sm:$0xf]
  %v2251 = vld [vmem:[%s590 + $0x6c] sm:$0x1]
  %v2252 = vld [vmem:[%s590 + $0x70] sm:$0xf]
  %v2253 = vld [vmem:[%s590 + $0x74] sm:$0x1]
  %v2254 = vld [vmem:[%s590 + $0x78] sm:$0xf]
  %v2255 = vld [vmem:[%s590 + $0x7c] sm:$0x1]
  %v2256 = vld [vmem:[%s590 + $0x80] sm:$0xf]
  %v2257 = vld [vmem:[%s590 + $0x84] sm:$0x1]
  %v2258 = vld [vmem:[%s590 + $0x88] sm:$0xf]
  %v2259 = vld [vmem:[%s590 + $0x8c] sm:$0x1]
  %v2261 = vshrl.u32 %v2228, 16
  %v2263 = vrot.slane %v2261, 4
  %v2264 = vshll.u32 %v2228, 16
  %v2266 = vrot.slane %v2264, 5
  %v2267 = vor.u32 %v2263, %v2266
  %v2268 = vrot.slane %v2267, 4
  %v2270 = vshll.u32 %v2229, 16
  %v2272 = vrot.slane %v2270, 5
  %v2273 = vsel %vm1049, %v2268, %v2272
  %v2275 = vshrl.u32 %v2230, 16
  %v2277 = vrot.slane %v2275, 4
  %v2278 = vshll.u32 %v2230, 16
  %v2280 = vrot.slane %v2278, 5
  %v2281 = vor.u32 %v2277, %v2280
  %v2282 = vrot.slane %v2281, 4
  %v2284 = vshll.u32 %v2231, 16
  %v2286 = vrot.slane %v2284, 5
  %v2287 = vsel %vm1049, %v2282, %v2286
  %v2289 = vshrl.u32 %v2232, 16
  %v2291 = vrot.slane %v2289, 4
  %v2292 = vshll.u32 %v2232, 16
  %v2294 = vrot.slane %v2292, 5
  %v2295 = vor.u32 %v2291, %v2294
  %v2296 = vrot.slane %v2295, 4
  %v2298 = vshll.u32 %v2233, 16
  %v2300 = vrot.slane %v2298, 5
  %v2301 = vsel %vm1049, %v2296, %v2300
  %v2303 = vshrl.u32 %v2234, 16
  %v2305 = vrot.slane %v2303, 4
  %v2306 = vshll.u32 %v2234, 16
  %v2308 = vrot.slane %v2306, 5
  %v2309 = vor.u32 %v2305, %v2308
  %v2310 = vrot.slane %v2309, 4
  %v2312 = vshll.u32 %v2235, 16
  %v2314 = vrot.slane %v2312, 5
  %v2315 = vsel %vm1049, %v2310, %v2314
  %v2317 = vshrl.u32 %v2236, 16
  %v2319 = vrot.slane %v2317, 4
  %v2320 = vshll.u32 %v2236, 16
  %v2322 = vrot.slane %v2320, 5
  %v2323 = vor.u32 %v2319, %v2322
  %v2324 = vrot.slane %v2323, 4
  %v2326 = vshll.u32 %v2237, 16
  %v2328 = vrot.slane %v2326, 5
  %v2329 = vsel %vm1049, %v2324, %v2328
  %v2331 = vshrl.u32 %v2238, 16
  %v2333 = vrot.slane %v2331, 4
  %v2334 = vshll.u32 %v2238, 16
  %v2336 = vrot.slane %v2334, 5
  %v2337 = vor.u32 %v2333, %v2336
  %v2338 = vrot.slane %v2337, 4
  %v2340 = vshll.u32 %v2239, 16
  %v2342 = vrot.slane %v2340, 5
  %v2343 = vsel %vm1049, %v2338, %v2342
  %v2345 = vshrl.u32 %v2240, 16
  %v2347 = vrot.slane %v2345, 4
  %v2348 = vshll.u32 %v2240, 16
  %v2350 = vrot.slane %v2348, 5
  %v2351 = vor.u32 %v2347, %v2350
  %v2352 = vrot.slane %v2351, 4
  %v2354 = vshll.u32 %v2241, 16
  %v2356 = vrot.slane %v2354, 5
  %v2357 = vsel %vm1049, %v2352, %v2356
  %v2359 = vshrl.u32 %v2242, 16
  %v2361 = vrot.slane %v2359, 4
  %v2362 = vshll.u32 %v2242, 16
  %v2364 = vrot.slane %v2362, 5
  %v2365 = vor.u32 %v2361, %v2364
  %v2366 = vrot.slane %v2365, 4
  %v2368 = vshll.u32 %v2243, 16
  %v2370 = vrot.slane %v2368, 5
  %v2371 = vsel %vm1049, %v2366, %v2370
  %v2373 = vshrl.u32 %v2244, 16
  %v2375 = vrot.slane %v2373, 4
  %v2376 = vshll.u32 %v2244, 16
  %v2378 = vrot.slane %v2376, 5
  %v2379 = vor.u32 %v2375, %v2378
  %v2380 = vrot.slane %v2379, 4
  %v2382 = vshll.u32 %v2245, 16
  %v2384 = vrot.slane %v2382, 5
  %v2385 = vsel %vm1049, %v2380, %v2384
  %v2387 = vshrl.u32 %v2246, 16
  %v2389 = vrot.slane %v2387, 4
  %v2390 = vshll.u32 %v2246, 16
  %v2392 = vrot.slane %v2390, 5
  %v2393 = vor.u32 %v2389, %v2392
  %v2394 = vrot.slane %v2393, 4
  %v2396 = vshll.u32 %v2247, 16
  %v2398 = vrot.slane %v2396, 5
  %v2399 = vsel %vm1049, %v2394, %v2398
  %v2401 = vshrl.u32 %v2248, 16
  %v2403 = vrot.slane %v2401, 4
  %v2404 = vshll.u32 %v2248, 16
  %v2406 = vrot.slane %v2404, 5
  %v2407 = vor.u32 %v2403, %v2406
  %v2408 = vrot.slane %v2407, 4
  %v2410 = vshll.u32 %v2249, 16
  %v2412 = vrot.slane %v2410, 5
  %v2413 = vsel %vm1049, %v2408, %v2412
  %v2415 = vshrl.u32 %v2250, 16
  %v2417 = vrot.slane %v2415, 4
  %v2418 = vshll.u32 %v2250, 16
  %v2420 = vrot.slane %v2418, 5
  %v2421 = vor.u32 %v2417, %v2420
  %v2422 = vrot.slane %v2421, 4
  %v2424 = vshll.u32 %v2251, 16
  %v2426 = vrot.slane %v2424, 5
  %v2427 = vsel %vm1049, %v2422, %v2426
  %v2429 = vshrl.u32 %v2252, 16
  %v2431 = vrot.slane %v2429, 4
  %v2432 = vshll.u32 %v2252, 16
  %v2434 = vrot.slane %v2432, 5
  %v2435 = vor.u32 %v2431, %v2434
  %v2436 = vrot.slane %v2435, 4
  %v2438 = vshll.u32 %v2253, 16
  %v2440 = vrot.slane %v2438, 5
  %v2441 = vsel %vm1049, %v2436, %v2440
  %v2443 = vshrl.u32 %v2254, 16
  %v2445 = vrot.slane %v2443, 4
  %v2446 = vshll.u32 %v2254, 16
  %v2448 = vrot.slane %v2446, 5
  %v2449 = vor.u32 %v2445, %v2448
  %v2450 = vrot.slane %v2449, 4
  %v2452 = vshll.u32 %v2255, 16
  %v2454 = vrot.slane %v2452, 5
  %v2455 = vsel %vm1049, %v2450, %v2454
  %v2457 = vshrl.u32 %v2256, 16
  %v2459 = vrot.slane %v2457, 4
  %v2460 = vshll.u32 %v2256, 16
  %v2462 = vrot.slane %v2460, 5
  %v2463 = vor.u32 %v2459, %v2462
  %v2464 = vrot.slane %v2463, 4
  %v2466 = vshll.u32 %v2257, 16
  %v2468 = vrot.slane %v2466, 5
  %v2469 = vsel %vm1049, %v2464, %v2468
  %v2471 = vshrl.u32 %v2258, 16
  %v2473 = vrot.slane %v2471, 4
  %v2474 = vshll.u32 %v2258, 16
  %v2476 = vrot.slane %v2474, 5
  %v2477 = vor.u32 %v2473, %v2476
  %v2478 = vrot.slane %v2477, 4
  %v2480 = vshll.u32 %v2259, 16
  %v2482 = vrot.slane %v2480, 5
  %v2483 = vsel %vm1049, %v2478, %v2482
  %s2484 = scalar_lea.vmem %s6, 256
  %v2485 = vld [vmem:[%s2484] sm:$0xf]
  %v2486 = vld [vmem:[%s2484 + $0x4] sm:$0xf]
  %v2487 = vld [vmem:[%s2484 + $0x8] sm:$0xf]
  %v2488 = vld [vmem:[%s2484 + $0xc] sm:$0xf]
  %v2489 = vld [vmem:[%s2484 + $0x10] sm:$0xf]
  %v2490 = vld [vmem:[%s2484 + $0x14] sm:$0xf]
  %v2491 = vld [vmem:[%s2484 + $0x18] sm:$0xf]
  %v2492 = vld [vmem:[%s2484 + $0x1c] sm:$0xf]
  %v2493 = vld [vmem:[%s2484 + $0x20] sm:$0xf]
  %v2494 = vld [vmem:[%s2484 + $0x24] sm:$0xf]
  %v2495 = vld [vmem:[%s2484 + $0x28] sm:$0xf]
  %v2496 = vld [vmem:[%s2484 + $0x2c] sm:$0xf]
  %v2497 = vld [vmem:[%s2484 + $0x30] sm:$0xf]
  %v2498 = vld [vmem:[%s2484 + $0x34] sm:$0xf]
  %v2499 = vld [vmem:[%s2484 + $0x38] sm:$0xf]
  %v2500 = vld [vmem:[%s2484 + $0x3c] sm:$0xf]
  %v2501 = vunpack.c.l.b16 %v2273
  %v2502 = vunpack.c.l.b16 %v2287
  %v2503 = vunpack.c.l.b16 %v2301
  %v2504 = vunpack.c.l.b16 %v2315
  %v2505 = vunpack.c.l.b16 %v2329
  %v2506 = vunpack.c.l.b16 %v2343
  %v2507 = vunpack.c.l.b16 %v2357
  %v2508 = vunpack.c.l.b16 %v2371
  %v2509 = vunpack.c.l.b16 %v2385
  %v2510 = vunpack.c.l.b16 %v2399
  %v2511 = vunpack.c.l.b16 %v2413
  %v2512 = vunpack.c.l.b16 %v2427
  %v2513 = vunpack.c.l.b16 %v2441
  %v2514 = vunpack.c.l.b16 %v2455
  %v2515 = vunpack.c.l.b16 %v2469
  %v2516 = vunpack.c.l.b16 %v2483
  %v2517 = vpack.c.b16 %v2502, %v2501
  %v2518 = vpack.c.b16 %v2504, %v2503
  %v2519 = vpack.c.b16 %v2506, %v2505
  %v2520 = vpack.c.b16 %v2508, %v2507
  %v2521 = vpack.c.b16 %v2510, %v2509
  %v2522 = vpack.c.b16 %v2512, %v2511
  %v2523 = vpack.c.b16 %v2514, %v2513
  %v2524 = vpack.c.b16 %v2516, %v2515
  %v2549 = vunpack.c.l.b16 %v2485
  %v2550 = vunpack.c.l.b16 %v2486
  %v2551 = vunpack.c.l.b16 %v2487
  %v2552 = vunpack.c.l.b16 %v2488
  %v2553 = vunpack.c.l.b16 %v2489
  %v2554 = vunpack.c.l.b16 %v2490
  %v2555 = vunpack.c.l.b16 %v2491
  %v2556 = vunpack.c.l.b16 %v2492
  %v2557 = vunpack.c.l.b16 %v2493
  %v2558 = vunpack.c.l.b16 %v2494
  %v2559 = vunpack.c.l.b16 %v2495
  %v2560 = vunpack.c.l.b16 %v2496
  %v2561 = vunpack.c.l.b16 %v2497
  %v2562 = vunpack.c.l.b16 %v2498
  %v2563 = vunpack.c.l.b16 %v2499
  %v2564 = vunpack.c.l.b16 %v2500
  %v2565 = vpack.c.b16 %v2550, %v2549
  %v2566 = vpack.c.b16 %v2552, %v2551
  %v2567 = vpack.c.b16 %v2554, %v2553
  %v2568 = vpack.c.b16 %v2556, %v2555
  %v2569 = vpack.c.b16 %v2558, %v2557
  %v2570 = vpack.c.b16 %v2560, %v2559
  %v2571 = vpack.c.b16 %v2562, %v2561
  %v2572 = vpack.c.b16 %v2564, %v2563
  %2581 = vmatprep.subr.bf16.mxu0 0
  %2582 = vmatpush1.bf16.msra.mxu0 %v2565
  %2583 = vmatprep.subr.bf16.mxu0 0
  %2584 = vmatpush1.bf16.msra.mxu0 %v2566
  %2585 = vmatprep.subr.bf16.mxu0 0
  %2586 = vmatpush1.bf16.msra.mxu0 %v2567
  %2587 = vmatprep.subr.bf16.mxu0 0
  %2588 = vmatpush1.bf16.msra.mxu0 %v2568
  %2589 = vmatprep.subr.bf16.mxu0 0
  %2590 = vmatpush1.bf16.msra.mxu0 %v2569
  %2591 = vmatprep.subr.bf16.mxu0 0
  %2592 = vmatpush1.bf16.msra.mxu0 %v2570
  %2593 = vmatprep.subr.bf16.mxu0 0
  %2594 = vmatpush1.bf16.msra.mxu0 %v2571
  %2595 = vmatprep.subr.bf16.mxu0 0
  %2596 = vmatpush1.bf16.msra.mxu0 %v2572
  %2597 = vmatprep.subr.bf16.mxu0 0
  %2598 = vmatpush1.bf16.msra.mxu0 0
  %2599 = vmatprep.subr.bf16.mxu0 0
  %2600 = vmatpush1.bf16.msra.mxu0 0
  %2601 = vmatprep.subr.bf16.mxu0 0
  %2602 = vmatpush1.bf16.msra.mxu0 0
  %2603 = vmatprep.subr.bf16.mxu0 0
  %2604 = vmatpush1.bf16.msra.mxu0 0
  %2605 = vmatprep.subr.bf16.mxu0 0
  %2606 = vmatpush1.bf16.msra.mxu0 0
  %2607 = vmatprep.subr.bf16.mxu0 0
  %2608 = vmatpush1.bf16.msra.mxu0 0
  %2609 = vmatprep.subr.bf16.mxu0 0
  %2610 = vmatpush1.bf16.msra.mxu0 0
  %2611 = vmatprep.subr.bf16.mxu0 0
  %2612 = vmatpush1.bf16.msra.mxu0 0
  %2613 = vmatprep.mubr.bf16.mxu0 0
  %2614 = vmatmul.mubr.bf16.gmra.mrb[0].mxu0 %v2517
  %v2615 = vpop.f32.mrb[0].mxu0
  %v2616 = vadd.f32 0.0, %v2615
  %v2617 = vpop.f32.mrb[0].mxu0
  %v2618 = vpop.f32.mrb[0].mxu0
  %v2619 = vadd.f32 0.0, %v2618
  %v2620 = vpop.f32.mrb[0].mxu0
  %2621 = vmatprep.mubr.bf16.mxu0 0
  %2622 = vmatmul.mubr.bf16.gmra.mrb[0].mxu0 %v2518
  %v2623 = vpop.f32.mrb[0].mxu0
  %v2624 = vadd.f32 0.0, %v2623
  %v2625 = vpop.f32.mrb[0].mxu0
  %v2626 = vpop.f32.mrb[0].mxu0
  %v2627 = vadd.f32 0.0, %v2626
  %v2628 = vpop.f32.mrb[0].mxu0
  %2629 = vmatprep.mubr.bf16.mxu0 0
  %2630 = vmatmul.mubr.bf16.gmra.mrb[0].mxu0 %v2519
  %v2631 = vpop.f32.mrb[0].mxu0
  %v2632 = vadd.f32 0.0, %v2631
  %v2633 = vpop.f32.mrb[0].mxu0
  %v2634 = vpop.f32.mrb[0].mxu0
  %v2635 = vadd.f32 0.0, %v2634
  %v2636 = vpop.f32.mrb[0].mxu0
  %2637 = vmatprep.mubr.bf16.mxu0 0
  %2638 = vmatmul.mubr.bf16.gmra.mrb[0].mxu0 %v2520
  %v2639 = vpop.f32.mrb[0].mxu0
  %v2640 = vadd.f32 0.0, %v2639
  %v2641 = vpop.f32.mrb[0].mxu0
  %v2642 = vpop.f32.mrb[0].mxu0
  %v2643 = vadd.f32 0.0, %v2642
  %v2644 = vpop.f32.mrb[0].mxu0
  %2645 = vmatprep.mubr.bf16.mxu0 0
  %2646 = vmatmul.mubr.bf16.gmra.mrb[0].mxu0 %v2521
  %v2647 = vpop.f32.mrb[0].mxu0
  %v2648 = vadd.f32 0.0, %v2647
  %v2649 = vpop.f32.mrb[0].mxu0
  %v2650 = vpop.f32.mrb[0].mxu0
  %v2651 = vadd.f32 0.0, %v2650
  %v2652 = vpop.f32.mrb[0].mxu0
  %2653 = vmatprep.mubr.bf16.mxu0 0
  %2654 = vmatmul.mubr.bf16.gmra.mrb[0].mxu0 %v2522
  %v2655 = vpop.f32.mrb[0].mxu0
  %v2656 = vadd.f32 0.0, %v2655
  %v2657 = vpop.f32.mrb[0].mxu0
  %v2658 = vpop.f32.mrb[0].mxu0
  %v2659 = vadd.f32 0.0, %v2658
  %v2660 = vpop.f32.mrb[0].mxu0
  %2661 = vmatprep.mubr.bf16.mxu0 0
  %2662 = vmatmul.mubr.bf16.gmra.mrb[0].mxu0 %v2523
  %v2663 = vpop.f32.mrb[0].mxu0
  %v2664 = vadd.f32 0.0, %v2663
  %v2665 = vpop.f32.mrb[0].mxu0
  %v2666 = vpop.f32.mrb[0].mxu0
  %v2667 = vadd.f32 0.0, %v2666
  %v2668 = vpop.f32.mrb[0].mxu0
  %2669 = vmatprep.mubr.bf16.mxu0 0
  %2670 = vmatmul.mubr.bf16.gmra.mrb[0].mxu0 %v2524
  %v2671 = vpop.f32.mrb[0].mxu0
  %v2672 = vadd.f32 0.0, %v2671
  %v2673 = vpop.f32.mrb[0].mxu0
  %v2674 = vpop.f32.mrb[0].mxu0
  %v2675 = vadd.f32 0.0, %v2674
  %v2676 = vpop.f32.mrb[0].mxu0
  %2677 = vdwg.mxu0
  %v2678 = vadd.f32 %v2212, %v2616
  %v2679 = vadd.f32 %v2213, %v2619
  %v2680 = vadd.f32 %v2214, %v2624
  %v2681 = vadd.f32 %v2215, %v2627
  %v2682 = vadd.f32 %v2216, %v2632
  %v2683 = vadd.f32 %v2217, %v2635
  %v2684 = vadd.f32 %v2218, %v2640
  %v2685 = vadd.f32 %v2219, %v2643
  %v2686 = vadd.f32 %v2220, %v2648
  %v2687 = vadd.f32 %v2221, %v2651
  %v2688 = vadd.f32 %v2222, %v2656
  %v2689 = vadd.f32 %v2223, %v2659
  %v2690 = vadd.f32 %v2224, %v2664
  %v2691 = vadd.f32 %v2225, %v2667
  %v2692 = vadd.f32 %v2226, %v2672
  %v2693 = vadd.f32 %v2227, %v2675
  %v2694 = vld [vmem:[%s590] sm:$0xe]
  %v2695 = vld [vmem:[%s590 + $0x8] sm:$0xe]
  %v2696 = vld [vmem:[%s590 + $0x10] sm:$0xe]
  %v2697 = vld [vmem:[%s590 + $0x18] sm:$0xe]
  %v2698 = vld [vmem:[%s590 + $0x20] sm:$0xe]
  %v2699 = vld [vmem:[%s590 + $0x28] sm:$0xe]
  %v2700 = vld [vmem:[%s590 + $0x30] sm:$0xe]
  %v2701 = vld [vmem:[%s590 + $0x38] sm:$0xe]
  %v2702 = vld [vmem:[%s590 + $0x50] sm:$0xe]
  %v2703 = vld [vmem:[%s590 + $0x58] sm:$0xe]
  %v2704 = vld [vmem:[%s590 + $0x60] sm:$0xe]
  %v2705 = vld [vmem:[%s590 + $0x68] sm:$0xe]
  %v2706 = vld [vmem:[%s590 + $0x70] sm:$0xe]
  %v2707 = vld [vmem:[%s590 + $0x78] sm:$0xe]
  %v2708 = vld [vmem:[%s590 + $0x80] sm:$0xe]
  %v2709 = vld [vmem:[%s590 + $0x88] sm:$0xe]
  %v2742 = vrot.slane %v2694, 5
  %v2743 = vrot.slane %v2742, 4
  %v2744 = vrot.slane %v2229, 5
  %v2745 = vsel %vm1711, %v2743, %v2744
  %v2746 = vrot.slane %v2695, 5
  %v2747 = vrot.slane %v2746, 4
  %v2748 = vrot.slane %v2231, 5
  %v2749 = vsel %vm1711, %v2747, %v2748
  %v2750 = vrot.slane %v2696, 5
  %v2751 = vrot.slane %v2750, 4
  %v2752 = vrot.slane %v2233, 5
  %v2753 = vsel %vm1711, %v2751, %v2752
  %v2754 = vrot.slane %v2697, 5
  %v2755 = vrot.slane %v2754, 4
  %v2756 = vrot.slane %v2235, 5
  %v2757 = vsel %vm1711, %v2755, %v2756
  %v2758 = vrot.slane %v2698, 5
  %v2759 = vrot.slane %v2758, 4
  %v2760 = vrot.slane %v2237, 5
  %v2761 = vsel %vm1711, %v2759, %v2760
  %v2762 = vrot.slane %v2699, 5
  %v2763 = vrot.slane %v2762, 4
  %v2764 = vrot.slane %v2239, 5
  %v2765 = vsel %vm1711, %v2763, %v2764
  %v2766 = vrot.slane %v2700, 5
  %v2767 = vrot.slane %v2766, 4
  %v2768 = vrot.slane %v2241, 5
  %v2769 = vsel %vm1711, %v2767, %v2768
  %v2770 = vrot.slane %v2701, 5
  %v2771 = vrot.slane %v2770, 4
  %v2772 = vrot.slane %v2243, 5
  %v2773 = vsel %vm1711, %v2771, %v2772
  %v2774 = vrot.slane %v2702, 5
  %v2775 = vrot.slane %v2774, 4
  %v2776 = vrot.slane %v2245, 5
  %v2777 = vsel %vm1711, %v2775, %v2776
  %v2778 = vrot.slane %v2703, 5
  %v2779 = vrot.slane %v2778, 4
  %v2780 = vrot.slane %v2247, 5
  %v2781 = vsel %vm1711, %v2779, %v2780
  %v2782 = vrot.slane %v2704, 5
  %v2783 = vrot.slane %v2782, 4
  %v2784 = vrot.slane %v2249, 5
  %v2785 = vsel %vm1711, %v2783, %v2784
  %v2786 = vrot.slane %v2705, 5
  %v2787 = vrot.slane %v2786, 4
  %v2788 = vrot.slane %v2251, 5
  %v2789 = vsel %vm1711, %v2787, %v2788
  %v2790 = vrot.slane %v2706, 5
  %v2791 = vrot.slane %v2790, 4
  %v2792 = vrot.slane %v2253, 5
  %v2793 = vsel %vm1711, %v2791, %v2792
  %v2794 = vrot.slane %v2707, 5
  %v2795 = vrot.slane %v2794, 4
  %v2796 = vrot.slane %v2255, 5
  %v2797 = vsel %vm1711, %v2795, %v2796
  %v2798 = vrot.slane %v2708, 5
  %v2799 = vrot.slane %v2798, 4
  %v2800 = vrot.slane %v2257, 5
  %v2801 = vsel %vm1711, %v2799, %v2800
  %v2802 = vrot.slane %v2709, 5
  %v2803 = vrot.slane %v2802, 4
  %v2804 = vrot.slane %v2259, 5
  %v2805 = vsel %vm1711, %v2803, %v2804
  %s2806 = scalar_lea.vmem %s6, 320
  %v2807 = vld [vmem:[%s2806] sm:$0xf]
  %v2808 = vld [vmem:[%s2806 + $0x4] sm:$0xf]
  %v2809 = vld [vmem:[%s2806 + $0x8] sm:$0xf]
  %v2810 = vld [vmem:[%s2806 + $0xc] sm:$0xf]
  %v2811 = vld [vmem:[%s2806 + $0x10] sm:$0xf]
  %v2812 = vld [vmem:[%s2806 + $0x14] sm:$0xf]
  %v2813 = vld [vmem:[%s2806 + $0x18] sm:$0xf]
  %v2814 = vld [vmem:[%s2806 + $0x1c] sm:$0xf]
  %v2815 = vld [vmem:[%s2806 + $0x20] sm:$0xf]
  %v2816 = vld [vmem:[%s2806 + $0x24] sm:$0xf]
  %v2817 = vld [vmem:[%s2806 + $0x28] sm:$0xf]
  %v2818 = vld [vmem:[%s2806 + $0x2c] sm:$0xf]
  %v2819 = vld [vmem:[%s2806 + $0x30] sm:$0xf]
  %v2820 = vld [vmem:[%s2806 + $0x34] sm:$0xf]
  %v2821 = vld [vmem:[%s2806 + $0x38] sm:$0xf]
  %v2822 = vld [vmem:[%s2806 + $0x3c] sm:$0xf]
  %v2823 = vunpack.c.l.b16 %v2745
  %v2824 = vunpack.c.l.b16 %v2749
  %v2825 = vunpack.c.l.b16 %v2753
  %v2826 = vunpack.c.l.b16 %v2757
  %v2827 = vunpack.c.l.b16 %v2761
  %v2828 = vunpack.c.l.b16 %v2765
  %v2829 = vunpack.c.l.b16 %v2769
  %v2830 = vunpack.c.l.b16 %v2773
  %v2831 = vunpack.c.l.b16 %v2777
  %v2832 = vunpack.c.l.b16 %v2781
  %v2833 = vunpack.c.l.b16 %v2785
  %v2834 = vunpack.c.l.b16 %v2789
  %v2835 = vunpack.c.l.b16 %v2793
  %v2836 = vunpack.c.l.b16 %v2797
  %v2837 = vunpack.c.l.b16 %v2801
  %v2838 = vunpack.c.l.b16 %v2805
  %v2839 = vpack.c.b16 %v2824, %v2823
  %v2840 = vpack.c.b16 %v2826, %v2825
  %v2841 = vpack.c.b16 %v2828, %v2827
  %v2842 = vpack.c.b16 %v2830, %v2829
  %v2843 = vpack.c.b16 %v2832, %v2831
  %v2844 = vpack.c.b16 %v2834, %v2833
  %v2845 = vpack.c.b16 %v2836, %v2835
  %v2846 = vpack.c.b16 %v2838, %v2837
  %v2871 = vunpack.c.l.b16 %v2807
  %v2872 = vunpack.c.l.b16 %v2808
  %v2873 = vunpack.c.l.b16 %v2809
  %v2874 = vunpack.c.l.b16 %v2810
  %v2875 = vunpack.c.l.b16 %v2811
  %v2876 = vunpack.c.l.b16 %v2812
  %v2877 = vunpack.c.l.b16 %v2813
  %v2878 = vunpack.c.l.b16 %v2814
  %v2879 = vunpack.c.l.b16 %v2815
  %v2880 = vunpack.c.l.b16 %v2816
  %v2881 = vunpack.c.l.b16 %v2817
  %v2882 = vunpack.c.l.b16 %v2818
  %v2883 = vunpack.c.l.b16 %v2819
  %v2884 = vunpack.c.l.b16 %v2820
  %v2885 = vunpack.c.l.b16 %v2821
  %v2886 = vunpack.c.l.b16 %v2822
  %v2887 = vpack.c.b16 %v2872, %v2871
  %v2888 = vpack.c.b16 %v2874, %v2873
  %v2889 = vpack.c.b16 %v2876, %v2875
  %v2890 = vpack.c.b16 %v2878, %v2877
  %v2891 = vpack.c.b16 %v2880, %v2879
  %v2892 = vpack.c.b16 %v2882, %v2881
  %v2893 = vpack.c.b16 %v2884, %v2883
  %v2894 = vpack.c.b16 %v2886, %v2885
  %2903 = vmatprep.subr.bf16.mxu0 0
  %2904 = vmatpush1.bf16.msra.mxu0 %v2887
  %2905 = vmatprep.subr.bf16.mxu0 0
  %2906 = vmatpush1.bf16.msra.mxu0 %v2888
  %2907 = vmatprep.subr.bf16.mxu0 0
  %2908 = vmatpush1.bf16.msra.mxu0 %v2889
  %2909 = vmatprep.subr.bf16.mxu0 0
  %2910 = vmatpush1.bf16.msra.mxu0 %v2890
  %2911 = vmatprep.subr.bf16.mxu0 0
  %2912 = vmatpush1.bf16.msra.mxu0 %v2891
  %2913 = vmatprep.subr.bf16.mxu0 0
  %2914 = vmatpush1.bf16.msra.mxu0 %v2892
  %2915 = vmatprep.subr.bf16.mxu0 0
  %2916 = vmatpush1.bf16.msra.mxu0 %v2893
  %2917 = vmatprep.subr.bf16.mxu0 0
  %2918 = vmatpush1.bf16.msra.mxu0 %v2894
  %2919 = vmatprep.subr.bf16.mxu0 0
  %2920 = vmatpush1.bf16.msra.mxu0 0
  %2921 = vmatprep.subr.bf16.mxu0 0
  %2922 = vmatpush1.bf16.msra.mxu0 0
  %2923 = vmatprep.subr.bf16.mxu0 0
  %2924 = vmatpush1.bf16.msra.mxu0 0
  %2925 = vmatprep.subr.bf16.mxu0 0
  %2926 = vmatpush1.bf16.msra.mxu0 0
  %2927 = vmatprep.subr.bf16.mxu0 0
  %2928 = vmatpush1.bf16.msra.mxu0 0
  %2929 = vmatprep.subr.bf16.mxu0 0
  %2930 = vmatpush1.bf16.msra.mxu0 0
  %2931 = vmatprep.subr.bf16.mxu0 0
  %2932 = vmatpush1.bf16.msra.mxu0 0
  %2933 = vmatprep.subr.bf16.mxu0 0
  %2934 = vmatpush1.bf16.msra.mxu0 0
  %2935 = vmatprep.mubr.bf16.mxu0 0
  %2936 = vmatmul.mubr.bf16.gmra.mrb[0].mxu0 %v2839
  %v2937 = vpop.f32.mrb[0].mxu0
  %v2938 = vadd.f32 0.0, %v2937
  %v2939 = vpop.f32.mrb[0].mxu0
  %v2940 = vpop.f32.mrb[0].mxu0
  %v2941 = vadd.f32 0.0, %v2940
  %v2942 = vpop.f32.mrb[0].mxu0
  %2943 = vmatprep.mubr.bf16.mxu0 0
  %2944 = vmatmul.mubr.bf16.gmra.mrb[0].mxu0 %v2840
  %v2945 = vpop.f32.mrb[0].mxu0
  %v2946 = vadd.f32 0.0, %v2945
  %v2947 = vpop.f32.mrb[0].mxu0
  %v2948 = vpop.f32.mrb[0].mxu0
  %v2949 = vadd.f32 0.0, %v2948
  %v2950 = vpop.f32.mrb[0].mxu0
  %2951 = vmatprep.mubr.bf16.mxu0 0
  %2952 = vmatmul.mubr.bf16.gmra.mrb[0].mxu0 %v2841
  %v2953 = vpop.f32.mrb[0].mxu0
  %v2954 = vadd.f32 0.0, %v2953
  %v2955 = vpop.f32.mrb[0].mxu0
  %v2956 = vpop.f32.mrb[0].mxu0
  %v2957 = vadd.f32 0.0, %v2956
  %v2958 = vpop.f32.mrb[0].mxu0
  %2959 = vmatprep.mubr.bf16.mxu0 0
  %2960 = vmatmul.mubr.bf16.gmra.mrb[0].mxu0 %v2842
  %v2961 = vpop.f32.mrb[0].mxu0
  %v2962 = vadd.f32 0.0, %v2961
  %v2963 = vpop.f32.mrb[0].mxu0
  %v2964 = vpop.f32.mrb[0].mxu0
  %v2965 = vadd.f32 0.0, %v2964
  %v2966 = vpop.f32.mrb[0].mxu0
  %2967 = vmatprep.mubr.bf16.mxu0 0
  %2968 = vmatmul.mubr.bf16.gmra.mrb[0].mxu0 %v2843
  %v2969 = vpop.f32.mrb[0].mxu0
  %v2970 = vadd.f32 0.0, %v2969
  %v2971 = vpop.f32.mrb[0].mxu0
  %v2972 = vpop.f32.mrb[0].mxu0
  %v2973 = vadd.f32 0.0, %v2972
  %v2974 = vpop.f32.mrb[0].mxu0
  %2975 = vmatprep.mubr.bf16.mxu0 0
  %2976 = vmatmul.mubr.bf16.gmra.mrb[0].mxu0 %v2844
  %v2977 = vpop.f32.mrb[0].mxu0
  %v2978 = vadd.f32 0.0, %v2977
  %v2979 = vpop.f32.mrb[0].mxu0
  %v2980 = vpop.f32.mrb[0].mxu0
  %v2981 = vadd.f32 0.0, %v2980
  %v2982 = vpop.f32.mrb[0].mxu0
  %2983 = vmatprep.mubr.bf16.mxu0 0
  %2984 = vmatmul.mubr.bf16.gmra.mrb[0].mxu0 %v2845
  %v2985 = vpop.f32.mrb[0].mxu0
  %v2986 = vadd.f32 0.0, %v2985
  %v2987 = vpop.f32.mrb[0].mxu0
  %v2988 = vpop.f32.mrb[0].mxu0
  %v2989 = vadd.f32 0.0, %v2988
  %v2990 = vpop.f32.mrb[0].mxu0
  %2991 = vmatprep.mubr.bf16.mxu0 0
  %2992 = vmatmul.mubr.bf16.gmra.mrb[0].mxu0 %v2846
  %v2993 = vpop.f32.mrb[0].mxu0
  %v2994 = vadd.f32 0.0, %v2993
  %v2995 = vpop.f32.mrb[0].mxu0
  %v2996 = vpop.f32.mrb[0].mxu0
  %v2997 = vadd.f32 0.0, %v2996
  %v2998 = vpop.f32.mrb[0].mxu0
  %2999 = vdwg.mxu0
  %v3000 = vadd.f32 %v2678, %v2938
  %v3001 = vadd.f32 %v2679, %v2941
  %v3002 = vadd.f32 %v2680, %v2946
  %v3003 = vadd.f32 %v2681, %v2949
  %v3004 = vadd.f32 %v2682, %v2954
  %v3005 = vadd.f32 %v2683, %v2957
  %v3006 = vadd.f32 %v2684, %v2962
  %v3007 = vadd.f32 %v2685, %v2965
  %v3008 = vadd.f32 %v2686, %v2970
  %v3009 = vadd.f32 %v2687, %v2973
  %v3010 = vadd.f32 %v2688, %v2978
  %v3011 = vadd.f32 %v2689, %v2981
  %v3012 = vadd.f32 %v2690, %v2986
  %v3013 = vadd.f32 %v2691, %v2989
  %v3014 = vadd.f32 %v2692, %v2994
  %v3015 = vadd.f32 %v2693, %v2997
  %s3016 = scalar_lea.vmem [#allocation2], 16
  %v3017 = vld [vmem:[%s3016] sm:$0xf]
  %v3018 = vld [vmem:[%s3016 + $0x8] sm:$0xf]
  %v3019 = vld [vmem:[%s3016 + $0x10] sm:$0xf]
  %v3020 = vld [vmem:[%s3016 + $0x18] sm:$0xf]
  %v3021 = vld [vmem:[%s3016 + $0x20] sm:$0xf]
  %v3022 = vld [vmem:[%s3016 + $0x28] sm:$0xf]
  %v3023 = vld [vmem:[%s3016 + $0x30] sm:$0xf]
  %v3024 = vld [vmem:[%s3016 + $0x38] sm:$0xf]
  %v3025 = vld [vmem:[%s3016 + $0x50] sm:$0xf]
  %v3026 = vld [vmem:[%s3016 + $0x58] sm:$0xf]
  %v3027 = vld [vmem:[%s3016 + $0x60] sm:$0xf]
  %v3028 = vld [vmem:[%s3016 + $0x68] sm:$0xf]
  %v3029 = vld [vmem:[%s3016 + $0x70] sm:$0xf]
  %v3030 = vld [vmem:[%s3016 + $0x78] sm:$0xf]
  %v3031 = vld [vmem:[%s3016 + $0x80] sm:$0xf]
  %v3032 = vld [vmem:[%s3016 + $0x88] sm:$0xf]
  %s3033 = scalar_lea.vmem %s6, 384
  %v3034 = vld [vmem:[%s3033] sm:$0xf]
  %v3035 = vld [vmem:[%s3033 + $0x4] sm:$0xf]
  %v3036 = vld [vmem:[%s3033 + $0x8] sm:$0xf]
  %v3037 = vld [vmem:[%s3033 + $0xc] sm:$0xf]
  %v3038 = vld [vmem:[%s3033 + $0x10] sm:$0xf]
  %v3039 = vld [vmem:[%s3033 + $0x14] sm:$0xf]
  %v3040 = vld [vmem:[%s3033 + $0x18] sm:$0xf]
  %v3041 = vld [vmem:[%s3033 + $0x1c] sm:$0xf]
  %v3042 = vld [vmem:[%s3033 + $0x20] sm:$0xf]
  %v3043 = vld [vmem:[%s3033 + $0x24] sm:$0xf]
  %v3044 = vld [vmem:[%s3033 + $0x28] sm:$0xf]
  %v3045 = vld [vmem:[%s3033 + $0x2c] sm:$0xf]
  %v3046 = vld [vmem:[%s3033 + $0x30] sm:$0xf]
  %v3047 = vld [vmem:[%s3033 + $0x34] sm:$0xf]
  %v3048 = vld [vmem:[%s3033 + $0x38] sm:$0xf]
  %v3049 = vld [vmem:[%s3033 + $0x3c] sm:$0xf]
  %v3066 = vunpack.c.l.b16 %v3017
  %v3067 = vunpack.c.l.b16 %v3018
  %v3068 = vunpack.c.l.b16 %v3019
  %v3069 = vunpack.c.l.b16 %v3020
  %v3070 = vunpack.c.l.b16 %v3021
  %v3071 = vunpack.c.l.b16 %v3022
  %v3072 = vunpack.c.l.b16 %v3023
  %v3073 = vunpack.c.l.b16 %v3024
  %v3074 = vunpack.c.l.b16 %v3025
  %v3075 = vunpack.c.l.b16 %v3026
  %v3076 = vunpack.c.l.b16 %v3027
  %v3077 = vunpack.c.l.b16 %v3028
  %v3078 = vunpack.c.l.b16 %v3029
  %v3079 = vunpack.c.l.b16 %v3030
  %v3080 = vunpack.c.l.b16 %v3031
  %v3081 = vunpack.c.l.b16 %v3032
  %v3082 = vpack.c.b16 %v3067, %v3066
  %v3083 = vpack.c.b16 %v3069, %v3068
  %v3084 = vpack.c.b16 %v3071, %v3070
  %v3085 = vpack.c.b16 %v3073, %v3072
  %v3086 = vpack.c.b16 %v3075, %v3074
  %v3087 = vpack.c.b16 %v3077, %v3076
  %v3088 = vpack.c.b16 %v3079, %v3078
  %v3089 = vpack.c.b16 %v3081, %v3080
  %v3114 = vunpack.c.l.b16 %v3034
  %v3115 = vunpack.c.l.b16 %v3035
  %v3116 = vunpack.c.l.b16 %v3036
  %v3117 = vunpack.c.l.b16 %v3037
  %v3118 = vunpack.c.l.b16 %v3038
  %v3119 = vunpack.c.l.b16 %v3039
  %v3120 = vunpack.c.l.b16 %v3040
  %v3121 = vunpack.c.l.b16 %v3041
  %v3122 = vunpack.c.l.b16 %v3042
  %v3123 = vunpack.c.l.b16 %v3043
  %v3124 = vunpack.c.l.b16 %v3044
  %v3125 = vunpack.c.l.b16 %v3045
  %v3126 = vunpack.c.l.b16 %v3046
  %v3127 = vunpack.c.l.b16 %v3047
  %v3128 = vunpack.c.l.b16 %v3048
  %v3129 = vunpack.c.l.b16 %v3049
  %v3130 = vpack.c.b16 %v3115, %v3114
  %v3131 = vpack.c.b16 %v3117, %v3116
  %v3132 = vpack.c.b16 %v3119, %v3118
  %v3133 = vpack.c.b16 %v3121, %v3120
  %v3134 = vpack.c.b16 %v3123, %v3122
  %v3135 = vpack.c.b16 %v3125, %v3124
  %v3136 = vpack.c.b16 %v3127, %v3126
  %v3137 = vpack.c.b16 %v3129, %v3128
  %3146 = vmatprep.subr.bf16.mxu0 0
  %3147 = vmatpush1.bf16.msra.mxu0 %v3130
  %3148 = vmatprep.subr.bf16.mxu0 0
  %3149 = vmatpush1.bf16.msra.mxu0 %v3131
  %3150 = vmatprep.subr.bf16.mxu0 0
  %3151 = vmatpush1.bf16.msra.mxu0 %v3132
  %3152 = vmatprep.subr.bf16.mxu0 0
  %3153 = vmatpush1.bf16.msra.mxu0 %v3133
  %3154 = vmatprep.subr.bf16.mxu0 0
  %3155 = vmatpush1.bf16.msra.mxu0 %v3134
  %3156 = vmatprep.subr.bf16.mxu0 0
  %3157 = vmatpush1.bf16.msra.mxu0 %v3135
  %3158 = vmatprep.subr.bf16.mxu0 0
  %3159 = vmatpush1.bf16.msra.mxu0 %v3136
  %3160 = vmatprep.subr.bf16.mxu0 0
  %3161 = vmatpush1.bf16.msra.mxu0 %v3137
  %3162 = vmatprep.subr.bf16.mxu0 0
  %3163 = vmatpush1.bf16.msra.mxu0 0
  %3164 = vmatprep.subr.bf16.mxu0 0
  %3165 = vmatpush1.bf16.msra.mxu0 0
  %3166 = vmatprep.subr.bf16.mxu0 0
  %3167 = vmatpush1.bf16.msra.mxu0 0
  %3168 = vmatprep.subr.bf16.mxu0 0
  %3169 = vmatpush1.bf16.msra.mxu0 0
  %3170 = vmatprep.subr.bf16.mxu0 0
  %3171 = vmatpush1.bf16.msra.mxu0 0
  %3172 = vmatprep.subr.bf16.mxu0 0
  %3173 = vmatpush1.bf16.msra.mxu0 0
  %3174 = vmatprep.subr.bf16.mxu0 0
  %3175 = vmatpush1.bf16.msra.mxu0 0
  %3176 = vmatprep.subr.bf16.mxu0 0
  %3177 = vmatpush1.bf16.msra.mxu0 0
  %3178 = vmatprep.mubr.bf16.mxu0 0
  %3179 = vmatmul.mubr.bf16.gmra.mrb[0].mxu0 %v3082
  %v3180 = vpop.f32.mrb[0].mxu0
  %v3181 = vadd.f32 0.0, %v3180
  %v3182 = vpop.f32.mrb[0].mxu0
  %v3183 = vpop.f32.mrb[0].mxu0
  %v3184 = vadd.f32 0.0, %v3183
  %v3185 = vpop.f32.mrb[0].mxu0
  %3186 = vmatprep.mubr.bf16.mxu0 0
  %3187 = vmatmul.mubr.bf16.gmra.mrb[0].mxu0 %v3083
  %v3188 = vpop.f32.mrb[0].mxu0
  %v3189 = vadd.f32 0.0, %v3188
  %v3190 = vpop.f32.mrb[0].mxu0
  %v3191 = vpop.f32.mrb[0].mxu0
  %v3192 = vadd.f32 0.0, %v3191
  %v3193 = vpop.f32.mrb[0].mxu0
  %3194 = vmatprep.mubr.bf16.mxu0 0
  %3195 = vmatmul.mubr.bf16.gmra.mrb[0].mxu0 %v3084
  %v3196 = vpop.f32.mrb[0].mxu0
  %v3197 = vadd.f32 0.0, %v3196
  %v3198 = vpop.f32.mrb[0].mxu0
  %v3199 = vpop.f32.mrb[0].mxu0
  %v3200 = vadd.f32 0.0, %v3199
  %v3201 = vpop.f32.mrb[0].mxu0
  %3202 = vmatprep.mubr.bf16.mxu0 0
  %3203 = vmatmul.mubr.bf16.gmra.mrb[0].mxu0 %v3085
  %v3204 = vpop.f32.mrb[0].mxu0
  %v3205 = vadd.f32 0.0, %v3204
  %v3206 = vpop.f32.mrb[0].mxu0
  %v3207 = vpop.f32.mrb[0].mxu0
  %v3208 = vadd.f32 0.0, %v3207
  %v3209 = vpop.f32.mrb[0].mxu0
  %3210 = vmatprep.mubr.bf16.mxu0 0
  %3211 = vmatmul.mubr.bf16.gmra.mrb[0].mxu0 %v3086
  %v3212 = vpop.f32.mrb[0].mxu0
  %v3213 = vadd.f32 0.0, %v3212
  %v3214 = vpop.f32.mrb[0].mxu0
  %v3215 = vpop.f32.mrb[0].mxu0
  %v3216 = vadd.f32 0.0, %v3215
  %v3217 = vpop.f32.mrb[0].mxu0
  %3218 = vmatprep.mubr.bf16.mxu0 0
  %3219 = vmatmul.mubr.bf16.gmra.mrb[0].mxu0 %v3087
  %v3220 = vpop.f32.mrb[0].mxu0
  %v3221 = vadd.f32 0.0, %v3220
  %v3222 = vpop.f32.mrb[0].mxu0
  %v3223 = vpop.f32.mrb[0].mxu0
  %v3224 = vadd.f32 0.0, %v3223
  %v3225 = vpop.f32.mrb[0].mxu0
  %3226 = vmatprep.mubr.bf16.mxu0 0
  %3227 = vmatmul.mubr.bf16.gmra.mrb[0].mxu0 %v3088
  %v3228 = vpop.f32.mrb[0].mxu0
  %v3229 = vadd.f32 0.0, %v3228
  %v3230 = vpop.f32.mrb[0].mxu0
  %v3231 = vpop.f32.mrb[0].mxu0
  %v3232 = vadd.f32 0.0, %v3231
  %v3233 = vpop.f32.mrb[0].mxu0
  %3234 = vmatprep.mubr.bf16.mxu0 0
  %3235 = vmatmul.mubr.bf16.gmra.mrb[0].mxu0 %v3089
  %v3236 = vpop.f32.mrb[0].mxu0
  %v3237 = vadd.f32 0.0, %v3236
  %v3238 = vpop.f32.mrb[0].mxu0
  %v3239 = vpop.f32.mrb[0].mxu0
  %v3240 = vadd.f32 0.0, %v3239
  %v3241 = vpop.f32.mrb[0].mxu0
  %3242 = vdwg.mxu0
  %v3243 = vadd.f32 %v3000, %v3181
  %v3244 = vadd.f32 %v3001, %v3184
  %v3245 = vadd.f32 %v3002, %v3189
  %v3246 = vadd.f32 %v3003, %v3192
  %v3247 = vadd.f32 %v3004, %v3197
  %v3248 = vadd.f32 %v3005, %v3200
  %v3249 = vadd.f32 %v3006, %v3205
  %v3250 = vadd.f32 %v3007, %v3208
  %v3251 = vadd.f32 %v3008, %v3213
  %v3252 = vadd.f32 %v3009, %v3216
  %v3253 = vadd.f32 %v3010, %v3221
  %v3254 = vadd.f32 %v3011, %v3224
  %v3255 = vadd.f32 %v3012, %v3229
  %v3256 = vadd.f32 %v3013, %v3232
  %v3257 = vadd.f32 %v3014, %v3237
  %v3258 = vadd.f32 %v3015, %v3240
  %v3259 = vld [vmem:[%s3016] sm:$0xf]
  %v3260 = vld [vmem:[%s3016 + $0x4] sm:$0x1]
  %v3261 = vld [vmem:[%s3016 + $0x8] sm:$0xf]
  %v3262 = vld [vmem:[%s3016 + $0xc] sm:$0x1]
  %v3263 = vld [vmem:[%s3016 + $0x10] sm:$0xf]
  %v3264 = vld [vmem:[%s3016 + $0x14] sm:$0x1]
  %v3265 = vld [vmem:[%s3016 + $0x18] sm:$0xf]
  %v3266 = vld [vmem:[%s3016 + $0x1c] sm:$0x1]
  %v3267 = vld [vmem:[%s3016 + $0x20] sm:$0xf]
  %v3268 = vld [vmem:[%s3016 + $0x24] sm:$0x1]
  %v3269 = vld [vmem:[%s3016 + $0x28] sm:$0xf]
  %v3270 = vld [vmem:[%s3016 + $0x2c] sm:$0x1]
  %v3271 = vld [vmem:[%s3016 + $0x30] sm:$0xf]
  %v3272 = vld [vmem:[%s3016 + $0x34] sm:$0x1]
  %v3273 = vld [vmem:[%s3016 + $0x38] sm:$0xf]
  %v3274 = vld [vmem:[%s3016 + $0x3c] sm:$0x1]
  %v3275 = vld [vmem:[%s3016 + $0x50] sm:$0xf]
  %v3276 = vld [vmem:[%s3016 + $0x54] sm:$0x1]
  %v3277 = vld [vmem:[%s3016 + $0x58] sm:$0xf]
  %v3278 = vld [vmem:[%s3016 + $0x5c] sm:$0x1]
  %v3279 = vld [vmem:[%s3016 + $0x60] sm:$0xf]
  %v3280 = vld [vmem:[%s3016 + $0x64] sm:$0x1]
  %v3281 = vld [vmem:[%s3016 + $0x68] sm:$0xf]
  %v3282 = vld [vmem:[%s3016 + $0x6c] sm:$0x1]
  %v3283 = vld [vmem:[%s3016 + $0x70] sm:$0xf]
  %v3284 = vld [vmem:[%s3016 + $0x74] sm:$0x1]
  %v3285 = vld [vmem:[%s3016 + $0x78] sm:$0xf]
  %v3286 = vld [vmem:[%s3016 + $0x7c] sm:$0x1]
  %v3287 = vld [vmem:[%s3016 + $0x80] sm:$0xf]
  %v3288 = vld [vmem:[%s3016 + $0x84] sm:$0x1]
  %v3289 = vld [vmem:[%s3016 + $0x88] sm:$0xf]
  %v3290 = vld [vmem:[%s3016 + $0x8c] sm:$0x1]
  %v3292 = vshrl.u32 %v3259, 16
  %v3294 = vrot.slane %v3292, 4
  %v3295 = vshll.u32 %v3259, 16
  %v3297 = vrot.slane %v3295, 5
  %v3298 = vor.u32 %v3294, %v3297
  %v3299 = vrot.slane %v3298, 4
  %v3301 = vshll.u32 %v3260, 16
  %v3303 = vrot.slane %v3301, 5
  %v3304 = vsel %vm1049, %v3299, %v3303
  %v3306 = vshrl.u32 %v3261, 16
  %v3308 = vrot.slane %v3306, 4
  %v3309 = vshll.u32 %v3261, 16
  %v3311 = vrot.slane %v3309, 5
  %v3312 = vor.u32 %v3308, %v3311
  %v3313 = vrot.slane %v3312, 4
  %v3315 = vshll.u32 %v3262, 16
  %v3317 = vrot.slane %v3315, 5
  %v3318 = vsel %vm1049, %v3313, %v3317
  %v3320 = vshrl.u32 %v3263, 16
  %v3322 = vrot.slane %v3320, 4
  %v3323 = vshll.u32 %v3263, 16
  %v3325 = vrot.slane %v3323, 5
  %v3326 = vor.u32 %v3322, %v3325
  %v3327 = vrot.slane %v3326, 4
  %v3329 = vshll.u32 %v3264, 16
  %v3331 = vrot.slane %v3329, 5
  %v3332 = vsel %vm1049, %v3327, %v3331
  %v3334 = vshrl.u32 %v3265, 16
  %v3336 = vrot.slane %v3334, 4
  %v3337 = vshll.u32 %v3265, 16
  %v3339 = vrot.slane %v3337, 5
  %v3340 = vor.u32 %v3336, %v3339
  %v3341 = vrot.slane %v3340, 4
  %v3343 = vshll.u32 %v3266, 16
  %v3345 = vrot.slane %v3343, 5
  %v3346 = vsel %vm1049, %v3341, %v3345
  %v3348 = vshrl.u32 %v3267, 16
  %v3350 = vrot.slane %v3348, 4
  %v3351 = vshll.u32 %v3267, 16
  %v3353 = vrot.slane %v3351, 5
  %v3354 = vor.u32 %v3350, %v3353
  %v3355 = vrot.slane %v3354, 4
  %v3357 = vshll.u32 %v3268, 16
  %v3359 = vrot.slane %v3357, 5
  %v3360 = vsel %vm1049, %v3355, %v3359
  %v3362 = vshrl.u32 %v3269, 16
  %v3364 = vrot.slane %v3362, 4
  %v3365 = vshll.u32 %v3269, 16
  %v3367 = vrot.slane %v3365, 5
  %v3368 = vor.u32 %v3364, %v3367
  %v3369 = vrot.slane %v3368, 4
  %v3371 = vshll.u32 %v3270, 16
  %v3373 = vrot.slane %v3371, 5
  %v3374 = vsel %vm1049, %v3369, %v3373
  %v3376 = vshrl.u32 %v3271, 16
  %v3378 = vrot.slane %v3376, 4
  %v3379 = vshll.u32 %v3271, 16
  %v3381 = vrot.slane %v3379, 5
  %v3382 = vor.u32 %v3378, %v3381
  %v3383 = vrot.slane %v3382, 4
  %v3385 = vshll.u32 %v3272, 16
  %v3387 = vrot.slane %v3385, 5
  %v3388 = vsel %vm1049, %v3383, %v3387
  %v3390 = vshrl.u32 %v3273, 16
  %v3392 = vrot.slane %v3390, 4
  %v3393 = vshll.u32 %v3273, 16
  %v3395 = vrot.slane %v3393, 5
  %v3396 = vor.u32 %v3392, %v3395
  %v3397 = vrot.slane %v3396, 4
  %v3399 = vshll.u32 %v3274, 16
  %v3401 = vrot.slane %v3399, 5
  %v3402 = vsel %vm1049, %v3397, %v3401
  %v3404 = vshrl.u32 %v3275, 16
  %v3406 = vrot.slane %v3404, 4
  %v3407 = vshll.u32 %v3275, 16
  %v3409 = vrot.slane %v3407, 5
  %v3410 = vor.u32 %v3406, %v3409
  %v3411 = vrot.slane %v3410, 4
  %v3413 = vshll.u32 %v3276, 16
  %v3415 = vrot.slane %v3413, 5
  %v3416 = vsel %vm1049, %v3411, %v3415
  %v3418 = vshrl.u32 %v3277, 16
  %v3420 = vrot.slane %v3418, 4
  %v3421 = vshll.u32 %v3277, 16
  %v3423 = vrot.slane %v3421, 5
  %v3424 = vor.u32 %v3420, %v3423
  %v3425 = vrot.slane %v3424, 4
  %v3427 = vshll.u32 %v3278, 16
  %v3429 = vrot.slane %v3427, 5
  %v3430 = vsel %vm1049, %v3425, %v3429
  %v3432 = vshrl.u32 %v3279, 16
  %v3434 = vrot.slane %v3432, 4
  %v3435 = vshll.u32 %v3279, 16
  %v3437 = vrot.slane %v3435, 5
  %v3438 = vor.u32 %v3434, %v3437
  %v3439 = vrot.slane %v3438, 4
  %v3441 = vshll.u32 %v3280, 16
  %v3443 = vrot.slane %v3441, 5
  %v3444 = vsel %vm1049, %v3439, %v3443
  %v3446 = vshrl.u32 %v3281, 16
  %v3448 = vrot.slane %v3446, 4
  %v3449 = vshll.u32 %v3281, 16
  %v3451 = vrot.slane %v3449, 5
  %v3452 = vor.u32 %v3448, %v3451
  %v3453 = vrot.slane %v3452, 4
  %v3455 = vshll.u32 %v3282, 16
  %v3457 = vrot.slane %v3455, 5
  %v3458 = vsel %vm1049, %v3453, %v3457
  %v3460 = vshrl.u32 %v3283, 16
  %v3462 = vrot.slane %v3460, 4
  %v3463 = vshll.u32 %v3283, 16
  %v3465 = vrot.slane %v3463, 5
  %v3466 = vor.u32 %v3462, %v3465
  %v3467 = vrot.slane %v3466, 4
  %v3469 = vshll.u32 %v3284, 16
  %v3471 = vrot.slane %v3469, 5
  %v3472 = vsel %vm1049, %v3467, %v3471
  %v3474 = vshrl.u32 %v3285, 16
  %v3476 = vrot.slane %v3474, 4
  %v3477 = vshll.u32 %v3285, 16
  %v3479 = vrot.slane %v3477, 5
  %v3480 = vor.u32 %v3476, %v3479
  %v3481 = vrot.slane %v3480, 4
  %v3483 = vshll.u32 %v3286, 16
  %v3485 = vrot.slane %v3483, 5
  %v3486 = vsel %vm1049, %v3481, %v3485
  %v3488 = vshrl.u32 %v3287, 16
  %v3490 = vrot.slane %v3488, 4
  %v3491 = vshll.u32 %v3287, 16
  %v3493 = vrot.slane %v3491, 5
  %v3494 = vor.u32 %v3490, %v3493
  %v3495 = vrot.slane %v3494, 4
  %v3497 = vshll.u32 %v3288, 16
  %v3499 = vrot.slane %v3497, 5
  %v3500 = vsel %vm1049, %v3495, %v3499
  %v3502 = vshrl.u32 %v3289, 16
  %v3504 = vrot.slane %v3502, 4
  %v3505 = vshll.u32 %v3289, 16
  %v3507 = vrot.slane %v3505, 5
  %v3508 = vor.u32 %v3504, %v3507
  %v3509 = vrot.slane %v3508, 4
  %v3511 = vshll.u32 %v3290, 16
  %v3513 = vrot.slane %v3511, 5
  %v3514 = vsel %vm1049, %v3509, %v3513
  %s3515 = scalar_lea.vmem %s6, 448
  %v3516 = vld [vmem:[%s3515] sm:$0xf]
  %v3517 = vld [vmem:[%s3515 + $0x4] sm:$0xf]
  %v3518 = vld [vmem:[%s3515 + $0x8] sm:$0xf]
  %v3519 = vld [vmem:[%s3515 + $0xc] sm:$0xf]
  %v3520 = vld [vmem:[%s3515 + $0x10] sm:$0xf]
  %v3521 = vld [vmem:[%s3515 + $0x14] sm:$0xf]
  %v3522 = vld [vmem:[%s3515 + $0x18] sm:$0xf]
  %v3523 = vld [vmem:[%s3515 + $0x1c] sm:$0xf]
  %v3524 = vld [vmem:[%s3515 + $0x20] sm:$0xf]
  %v3525 = vld [vmem:[%s3515 + $0x24] sm:$0xf]
  %v3526 = vld [vmem:[%s3515 + $0x28] sm:$0xf]
  %v3527 = vld [vmem:[%s3515 + $0x2c] sm:$0xf]
  %v3528 = vld [vmem:[%s3515 + $0x30] sm:$0xf]
  %v3529 = vld [vmem:[%s3515 + $0x34] sm:$0xf]
  %v3530 = vld [vmem:[%s3515 + $0x38] sm:$0xf]
  %v3531 = vld [vmem:[%s3515 + $0x3c] sm:$0xf]
  %v3532 = vunpack.c.l.b16 %v3304
  %v3533 = vunpack.c.l.b16 %v3318
  %v3534 = vunpack.c.l.b16 %v3332
  %v3535 = vunpack.c.l.b16 %v3346
  %v3536 = vunpack.c.l.b16 %v3360
  %v3537 = vunpack.c.l.b16 %v3374
  %v3538 = vunpack.c.l.b16 %v3388
  %v3539 = vunpack.c.l.b16 %v3402
  %v3540 = vunpack.c.l.b16 %v3416
  %v3541 = vunpack.c.l.b16 %v3430
  %v3542 = vunpack.c.l.b16 %v3444
  %v3543 = vunpack.c.l.b16 %v3458
  %v3544 = vunpack.c.l.b16 %v3472
  %v3545 = vunpack.c.l.b16 %v3486
  %v3546 = vunpack.c.l.b16 %v3500
  %v3547 = vunpack.c.l.b16 %v3514
  %v3548 = vpack.c.b16 %v3533, %v3532
  %v3549 = vpack.c.b16 %v3535, %v3534
  %v3550 = vpack.c.b16 %v3537, %v3536
  %v3551 = vpack.c.b16 %v3539, %v3538
  %v3552 = vpack.c.b16 %v3541, %v3540
  %v3553 = vpack.c.b16 %v3543, %v3542
  %v3554 = vpack.c.b16 %v3545, %v3544
  %v3555 = vpack.c.b16 %v3547, %v3546
  %v3580 = vunpack.c.l.b16 %v3516
  %v3581 = vunpack.c.l.b16 %v3517
  %v3582 = vunpack.c.l.b16 %v3518
  %v3583 = vunpack.c.l.b16 %v3519
  %v3584 = vunpack.c.l.b16 %v3520
  %v3585 = vunpack.c.l.b16 %v3521
  %v3586 = vunpack.c.l.b16 %v3522
  %v3587 = vunpack.c.l.b16 %v3523
  %v3588 = vunpack.c.l.b16 %v3524
  %v3589 = vunpack.c.l.b16 %v3525
  %v3590 = vunpack.c.l.b16 %v3526
  %v3591 = vunpack.c.l.b16 %v3527
  %v3592 = vunpack.c.l.b16 %v3528
  %v3593 = vunpack.c.l.b16 %v3529
  %v3594 = vunpack.c.l.b16 %v3530
  %v3595 = vunpack.c.l.b16 %v3531
  %v3596 = vpack.c.b16 %v3581, %v3580
  %v3597 = vpack.c.b16 %v3583, %v3582
  %v3598 = vpack.c.b16 %v3585, %v3584
  %v3599 = vpack.c.b16 %v3587, %v3586
  %v3600 = vpack.c.b16 %v3589, %v3588
  %v3601 = vpack.c.b16 %v3591, %v3590
  %v3602 = vpack.c.b16 %v3593, %v3592
  %v3603 = vpack.c.b16 %v3595, %v3594
  %3612 = vmatprep.subr.bf16.mxu0 0
  %3613 = vmatpush1.bf16.msra.mxu0 %v3596
  %3614 = vmatprep.subr.bf16.mxu0 0
  %3615 = vmatpush1.bf16.msra.mxu0 %v3597
  %3616 = vmatprep.subr.bf16.mxu0 0
  %3617 = vmatpush1.bf16.msra.mxu0 %v3598
  %3618 = vmatprep.subr.bf16.mxu0 0
  %3619 = vmatpush1.bf16.msra.mxu0 %v3599
  %3620 = vmatprep.subr.bf16.mxu0 0
  %3621 = vmatpush1.bf16.msra.mxu0 %v3600
  %3622 = vmatprep.subr.bf16.mxu0 0
  %3623 = vmatpush1.bf16.msra.mxu0 %v3601
  %3624 = vmatprep.subr.bf16.mxu0 0
  %3625 = vmatpush1.bf16.msra.mxu0 %v3602
  %3626 = vmatprep.subr.bf16.mxu0 0
  %3627 = vmatpush1.bf16.msra.mxu0 %v3603
  %3628 = vmatprep.subr.bf16.mxu0 0
  %3629 = vmatpush1.bf16.msra.mxu0 0
  %3630 = vmatprep.subr.bf16.mxu0 0
  %3631 = vmatpush1.bf16.msra.mxu0 0
  %3632 = vmatprep.subr.bf16.mxu0 0
  %3633 = vmatpush1.bf16.msra.mxu0 0
  %3634 = vmatprep.subr.bf16.mxu0 0
  %3635 = vmatpush1.bf16.msra.mxu0 0
  %3636 = vmatprep.subr.bf16.mxu0 0
  %3637 = vmatpush1.bf16.msra.mxu0 0
  %3638 = vmatprep.subr.bf16.mxu0 0
  %3639 = vmatpush1.bf16.msra.mxu0 0
  %3640 = vmatprep.subr.bf16.mxu0 0
  %3641 = vmatpush1.bf16.msra.mxu0 0
  %3642 = vmatprep.subr.bf16.mxu0 0
  %3643 = vmatpush1.bf16.msra.mxu0 0
  %3644 = vmatprep.mubr.bf16.mxu0 0
  %3645 = vmatmul.mubr.bf16.gmra.mrb[0].mxu0 %v3548
  %v3646 = vpop.f32.mrb[0].mxu0
  %v3647 = vadd.f32 0.0, %v3646
  %v3648 = vpop.f32.mrb[0].mxu0
  %v3649 = vpop.f32.mrb[0].mxu0
  %v3650 = vadd.f32 0.0, %v3649
  %v3651 = vpop.f32.mrb[0].mxu0
  %3652 = vmatprep.mubr.bf16.mxu0 0
  %3653 = vmatmul.mubr.bf16.gmra.mrb[0].mxu0 %v3549
  %v3654 = vpop.f32.mrb[0].mxu0
  %v3655 = vadd.f32 0.0, %v3654
  %v3656 = vpop.f32.mrb[0].mxu0
  %v3657 = vpop.f32.mrb[0].mxu0
  %v3658 = vadd.f32 0.0, %v3657
  %v3659 = vpop.f32.mrb[0].mxu0
  %3660 = vmatprep.mubr.bf16.mxu0 0
  %3661 = vmatmul.mubr.bf16.gmra.mrb[0].mxu0 %v3550
  %v3662 = vpop.f32.mrb[0].mxu0
  %v3663 = vadd.f32 0.0, %v3662
  %v3664 = vpop.f32.mrb[0].mxu0
  %v3665 = vpop.f32.mrb[0].mxu0
  %v3666 = vadd.f32 0.0, %v3665
  %v3667 = vpop.f32.mrb[0].mxu0
  %3668 = vmatprep.mubr.bf16.mxu0 0
  %3669 = vmatmul.mubr.bf16.gmra.mrb[0].mxu0 %v3551
  %v3670 = vpop.f32.mrb[0].mxu0
  %v3671 = vadd.f32 0.0, %v3670
  %v3672 = vpop.f32.mrb[0].mxu0
  %v3673 = vpop.f32.mrb[0].mxu0
  %v3674 = vadd.f32 0.0, %v3673
  %v3675 = vpop.f32.mrb[0].mxu0
  %3676 = vmatprep.mubr.bf16.mxu0 0
  %3677 = vmatmul.mubr.bf16.gmra.mrb[0].mxu0 %v3552
  %v3678 = vpop.f32.mrb[0].mxu0
  %v3679 = vadd.f32 0.0, %v3678
  %v3680 = vpop.f32.mrb[0].mxu0
  %v3681 = vpop.f32.mrb[0].mxu0
  %v3682 = vadd.f32 0.0, %v3681
  %v3683 = vpop.f32.mrb[0].mxu0
  %3684 = vmatprep.mubr.bf16.mxu0 0
  %3685 = vmatmul.mubr.bf16.gmra.mrb[0].mxu0 %v3553
  %v3686 = vpop.f32.mrb[0].mxu0
  %v3687 = vadd.f32 0.0, %v3686
  %v3688 = vpop.f32.mrb[0].mxu0
  %v3689 = vpop.f32.mrb[0].mxu0
  %v3690 = vadd.f32 0.0, %v3689
  %v3691 = vpop.f32.mrb[0].mxu0
  %3692 = vmatprep.mubr.bf16.mxu0 0
  %3693 = vmatmul.mubr.bf16.gmra.mrb[0].mxu0 %v3554
  %v3694 = vpop.f32.mrb[0].mxu0
  %v3695 = vadd.f32 0.0, %v3694
  %v3696 = vpop.f32.mrb[0].mxu0
  %v3697 = vpop.f32.mrb[0].mxu0
  %v3698 = vadd.f32 0.0, %v3697
  %v3699 = vpop.f32.mrb[0].mxu0
  %3700 = vmatprep.mubr.bf16.mxu0 0
  %3701 = vmatmul.mubr.bf16.gmra.mrb[0].mxu0 %v3555
  %v3702 = vpop.f32.mrb[0].mxu0
  %v3703 = vadd.f32 0.0, %v3702
  %v3704 = vpop.f32.mrb[0].mxu0
  %v3705 = vpop.f32.mrb[0].mxu0
  %v3706 = vadd.f32 0.0, %v3705
  %v3707 = vpop.f32.mrb[0].mxu0
  %3708 = vdwg.mxu0
  %v3709 = vadd.f32 %v3243, %v3647
  %v3710 = vadd.f32 %v3244, %v3650
  %v3711 = vadd.f32 %v3245, %v3655
  %v3712 = vadd.f32 %v3246, %v3658
  %v3713 = vadd.f32 %v3247, %v3663
  %v3714 = vadd.f32 %v3248, %v3666
  %v3715 = vadd.f32 %v3249, %v3671
  %v3716 = vadd.f32 %v3250, %v3674
  %v3717 = vadd.f32 %v3251, %v3679
  %v3718 = vadd.f32 %v3252, %v3682
  %v3719 = vadd.f32 %v3253, %v3687
  %v3720 = vadd.f32 %v3254, %v3690
  %v3721 = vadd.f32 %v3255, %v3695
  %v3722 = vadd.f32 %v3256, %v3698
  %v3723 = vadd.f32 %v3257, %v3703
  %v3724 = vadd.f32 %v3258, %v3706
  %v3725 = vld [vmem:[%s3016] sm:$0xe]
  %v3726 = vld [vmem:[%s3016 + $0x8] sm:$0xe]
  %v3727 = vld [vmem:[%s3016 + $0x10] sm:$0xe]
  %v3728 = vld [vmem:[%s3016 + $0x18] sm:$0xe]
  %v3729 = vld [vmem:[%s3016 + $0x20] sm:$0xe]
  %v3730 = vld [vmem:[%s3016 + $0x28] sm:$0xe]
  %v3731 = vld [vmem:[%s3016 + $0x30] sm:$0xe]
  %v3732 = vld [vmem:[%s3016 + $0x38] sm:$0xe]
  %v3733 = vld [vmem:[%s3016 + $0x50] sm:$0xe]
  %v3734 = vld [vmem:[%s3016 + $0x58] sm:$0xe]
  %v3735 = vld [vmem:[%s3016 + $0x60] sm:$0xe]
  %v3736 = vld [vmem:[%s3016 + $0x68] sm:$0xe]
  %v3737 = vld [vmem:[%s3016 + $0x70] sm:$0xe]
  %v3738 = vld [vmem:[%s3016 + $0x78] sm:$0xe]
  %v3739 = vld [vmem:[%s3016 + $0x80] sm:$0xe]
  %v3740 = vld [vmem:[%s3016 + $0x88] sm:$0xe]
  %v3773 = vrot.slane %v3725, 5
  %v3774 = vrot.slane %v3773, 4
  %v3775 = vrot.slane %v3260, 5
  %v3776 = vsel %vm1711, %v3774, %v3775
  %v3777 = vrot.slane %v3726, 5
  %v3778 = vrot.slane %v3777, 4
  %v3779 = vrot.slane %v3262, 5
  %v3780 = vsel %vm1711, %v3778, %v3779
  %v3781 = vrot.slane %v3727, 5
  %v3782 = vrot.slane %v3781, 4
  %v3783 = vrot.slane %v3264, 5
  %v3784 = vsel %vm1711, %v3782, %v3783
  %v3785 = vrot.slane %v3728, 5
  %v3786 = vrot.slane %v3785, 4
  %v3787 = vrot.slane %v3266, 5
  %v3788 = vsel %vm1711, %v3786, %v3787
  %v3789 = vrot.slane %v3729, 5
  %v3790 = vrot.slane %v3789, 4
  %v3791 = vrot.slane %v3268, 5
  %v3792 = vsel %vm1711, %v3790, %v3791
  %v3793 = vrot.slane %v3730, 5
  %v3794 = vrot.slane %v3793, 4
  %v3795 = vrot.slane %v3270, 5
  %v3796 = vsel %vm1711, %v3794, %v3795
  %v3797 = vrot.slane %v3731, 5
  %v3798 = vrot.slane %v3797, 4
  %v3799 = vrot.slane %v3272, 5
  %v3800 = vsel %vm1711, %v3798, %v3799
  %v3801 = vrot.slane %v3732, 5
  %v3802 = vrot.slane %v3801, 4
  %v3803 = vrot.slane %v3274, 5
  %v3804 = vsel %vm1711, %v3802, %v3803
  %v3805 = vrot.slane %v3733, 5
  %v3806 = vrot.slane %v3805, 4
  %v3807 = vrot.slane %v3276, 5
  %v3808 = vsel %vm1711, %v3806, %v3807
  %v3809 = vrot.slane %v3734, 5
  %v3810 = vrot.slane %v3809, 4
  %v3811 = vrot.slane %v3278, 5
  %v3812 = vsel %vm1711, %v3810, %v3811
  %v3813 = vrot.slane %v3735, 5
  %v3814 = vrot.slane %v3813, 4
  %v3815 = vrot.slane %v3280, 5
  %v3816 = vsel %vm1711, %v3814, %v3815
  %v3817 = vrot.slane %v3736, 5
  %v3818 = vrot.slane %v3817, 4
  %v3819 = vrot.slane %v3282, 5
  %v3820 = vsel %vm1711, %v3818, %v3819
  %v3821 = vrot.slane %v3737, 5
  %v3822 = vrot.slane %v3821, 4
  %v3823 = vrot.slane %v3284, 5
  %v3824 = vsel %vm1711, %v3822, %v3823
  %v3825 = vrot.slane %v3738, 5
  %v3826 = vrot.slane %v3825, 4
  %v3827 = vrot.slane %v3286, 5
  %v3828 = vsel %vm1711, %v3826, %v3827
  %v3829 = vrot.slane %v3739, 5
  %v3830 = vrot.slane %v3829, 4
  %v3831 = vrot.slane %v3288, 5
  %v3832 = vsel %vm1711, %v3830, %v3831
  %v3833 = vrot.slane %v3740, 5
  %v3834 = vrot.slane %v3833, 4
  %v3835 = vrot.slane %v3290, 5
  %v3836 = vsel %vm1711, %v3834, %v3835
  %s3837 = scalar_lea.vmem %s6, 512
  %v3838 = vld [vmem:[%s3837] sm:$0xf]
  %v3839 = vld [vmem:[%s3837 + $0x4] sm:$0xf]
  %v3840 = vld [vmem:[%s3837 + $0x8] sm:$0xf]
  %v3841 = vld [vmem:[%s3837 + $0xc] sm:$0xf]
  %v3842 = vld [vmem:[%s3837 + $0x10] sm:$0xf]
  %v3843 = vld [vmem:[%s3837 + $0x14] sm:$0xf]
  %v3844 = vld [vmem:[%s3837 + $0x18] sm:$0xf]
  %v3845 = vld [vmem:[%s3837 + $0x1c] sm:$0xf]
  %v3846 = vld [vmem:[%s3837 + $0x20] sm:$0xf]
  %v3847 = vld [vmem:[%s3837 + $0x24] sm:$0xf]
  %v3848 = vld [vmem:[%s3837 + $0x28] sm:$0xf]
  %v3849 = vld [vmem:[%s3837 + $0x2c] sm:$0xf]
  %v3850 = vld [vmem:[%s3837 + $0x30] sm:$0xf]
  %v3851 = vld [vmem:[%s3837 + $0x34] sm:$0xf]
  %v3852 = vld [vmem:[%s3837 + $0x38] sm:$0xf]
  %v3853 = vld [vmem:[%s3837 + $0x3c] sm:$0xf]
  %v3854 = vunpack.c.l.b16 %v3776
  %v3855 = vunpack.c.l.b16 %v3780
  %v3856 = vunpack.c.l.b16 %v3784
  %v3857 = vunpack.c.l.b16 %v3788
  %v3858 = vunpack.c.l.b16 %v3792
  %v3859 = vunpack.c.l.b16 %v3796
  %v3860 = vunpack.c.l.b16 %v3800
  %v3861 = vunpack.c.l.b16 %v3804
  %v3862 = vunpack.c.l.b16 %v3808
  %v3863 = vunpack.c.l.b16 %v3812
  %v3864 = vunpack.c.l.b16 %v3816
  %v3865 = vunpack.c.l.b16 %v3820
  %v3866 = vunpack.c.l.b16 %v3824
  %v3867 = vunpack.c.l.b16 %v3828
  %v3868 = vunpack.c.l.b16 %v3832
  %v3869 = vunpack.c.l.b16 %v3836
  %v3870 = vpack.c.b16 %v3855, %v3854
  %v3871 = vpack.c.b16 %v3857, %v3856
  %v3872 = vpack.c.b16 %v3859, %v3858
  %v3873 = vpack.c.b16 %v3861, %v3860
  %v3874 = vpack.c.b16 %v3863, %v3862
  %v3875 = vpack.c.b16 %v3865, %v3864
  %v3876 = vpack.c.b16 %v3867, %v3866
  %v3877 = vpack.c.b16 %v3869, %v3868
  %v3902 = vunpack.c.l.b16 %v3838
  %v3903 = vunpack.c.l.b16 %v3839
  %v3904 = vunpack.c.l.b16 %v3840
  %v3905 = vunpack.c.l.b16 %v3841
  %v3906 = vunpack.c.l.b16 %v3842
  %v3907 = vunpack.c.l.b16 %v3843
  %v3908 = vunpack.c.l.b16 %v3844
  %v3909 = vunpack.c.l.b16 %v3845
  %v3910 = vunpack.c.l.b16 %v3846
  %v3911 = vunpack.c.l.b16 %v3847
  %v3912 = vunpack.c.l.b16 %v3848
  %v3913 = vunpack.c.l.b16 %v3849
  %v3914 = vunpack.c.l.b16 %v3850
  %v3915 = vunpack.c.l.b16 %v3851
  %v3916 = vunpack.c.l.b16 %v3852
  %v3917 = vunpack.c.l.b16 %v3853
  %v3918 = vpack.c.b16 %v3903, %v3902
  %v3919 = vpack.c.b16 %v3905, %v3904
  %v3920 = vpack.c.b16 %v3907, %v3906
  %v3921 = vpack.c.b16 %v3909, %v3908
  %v3922 = vpack.c.b16 %v3911, %v3910
  %v3923 = vpack.c.b16 %v3913, %v3912
  %v3924 = vpack.c.b16 %v3915, %v3914
  %v3925 = vpack.c.b16 %v3917, %v3916
  %3934 = vmatprep.subr.bf16.mxu0 0
  %3935 = vmatpush1.bf16.msra.mxu0 %v3918
  %3936 = vmatprep.subr.bf16.mxu0 0
  %3937 = vmatpush1.bf16.msra.mxu0 %v3919
  %3938 = vmatprep.subr.bf16.mxu0 0
  %3939 = vmatpush1.bf16.msra.mxu0 %v3920
  %3940 = vmatprep.subr.bf16.mxu0 0
  %3941 = vmatpush1.bf16.msra.mxu0 %v3921
  %3942 = vmatprep.subr.bf16.mxu0 0
  %3943 = vmatpush1.bf16.msra.mxu0 %v3922
  %3944 = vmatprep.subr.bf16.mxu0 0
  %3945 = vmatpush1.bf16.msra.mxu0 %v3923
  %3946 = vmatprep.subr.bf16.mxu0 0
  %3947 = vmatpush1.bf16.msra.mxu0 %v3924
  %3948 = vmatprep.subr.bf16.mxu0 0
  %3949 = vmatpush1.bf16.msra.mxu0 %v3925
  %3950 = vmatprep.subr.bf16.mxu0 0
  %3951 = vmatpush1.bf16.msra.mxu0 0
  %3952 = vmatprep.subr.bf16.mxu0 0
  %3953 = vmatpush1.bf16.msra.mxu0 0
  %3954 = vmatprep.subr.bf16.mxu0 0
  %3955 = vmatpush1.bf16.msra.mxu0 0
  %3956 = vmatprep.subr.bf16.mxu0 0
  %3957 = vmatpush1.bf16.msra.mxu0 0
  %3958 = vmatprep.subr.bf16.mxu0 0
  %3959 = vmatpush1.bf16.msra.mxu0 0
  %3960 = vmatprep.subr.bf16.mxu0 0
  %3961 = vmatpush1.bf16.msra.mxu0 0
  %3962 = vmatprep.subr.bf16.mxu0 0
  %3963 = vmatpush1.bf16.msra.mxu0 0
  %3964 = vmatprep.subr.bf16.mxu0 0
  %3965 = vmatpush1.bf16.msra.mxu0 0
  %3966 = vmatprep.mubr.bf16.mxu0 0
  %3967 = vmatmul.mubr.bf16.gmra.mrb[0].mxu0 %v3870
  %v3968 = vpop.f32.mrb[0].mxu0
  %v3969 = vadd.f32 0.0, %v3968
  %v3970 = vpop.f32.mrb[0].mxu0
  %v3971 = vpop.f32.mrb[0].mxu0
  %v3972 = vadd.f32 0.0, %v3971
  %v3973 = vpop.f32.mrb[0].mxu0
  %3974 = vmatprep.mubr.bf16.mxu0 0
  %3975 = vmatmul.mubr.bf16.gmra.mrb[0].mxu0 %v3871
  %v3976 = vpop.f32.mrb[0].mxu0
  %v3977 = vadd.f32 0.0, %v3976
  %v3978 = vpop.f32.mrb[0].mxu0
  %v3979 = vpop.f32.mrb[0].mxu0
  %v3980 = vadd.f32 0.0, %v3979
  %v3981 = vpop.f32.mrb[0].mxu0
  %3982 = vmatprep.mubr.bf16.mxu0 0
  %3983 = vmatmul.mubr.bf16.gmra.mrb[0].mxu0 %v3872
  %v3984 = vpop.f32.mrb[0].mxu0
  %v3985 = vadd.f32 0.0, %v3984
  %v3986 = vpop.f32.mrb[0].mxu0
  %v3987 = vpop.f32.mrb[0].mxu0
  %v3988 = vadd.f32 0.0, %v3987
  %v3989 = vpop.f32.mrb[0].mxu0
  %3990 = vmatprep.mubr.bf16.mxu0 0
  %3991 = vmatmul.mubr.bf16.gmra.mrb[0].mxu0 %v3873
  %v3992 = vpop.f32.mrb[0].mxu0
  %v3993 = vadd.f32 0.0, %v3992
  %v3994 = vpop.f32.mrb[0].mxu0
  %v3995 = vpop.f32.mrb[0].mxu0
  %v3996 = vadd.f32 0.0, %v3995
  %v3997 = vpop.f32.mrb[0].mxu0
  %3998 = vmatprep.mubr.bf16.mxu0 0
  %3999 = vmatmul.mubr.bf16.gmra.mrb[0].mxu0 %v3874
  %v4000 = vpop.f32.mrb[0].mxu0
  %v4001 = vadd.f32 0.0, %v4000
  %v4002 = vpop.f32.mrb[0].mxu0
  %v4003 = vpop.f32.mrb[0].mxu0
  %v4004 = vadd.f32 0.0, %v4003
  %v4005 = vpop.f32.mrb[0].mxu0
  %4006 = vmatprep.mubr.bf16.mxu0 0
  %4007 = vmatmul.mubr.bf16.gmra.mrb[0].mxu0 %v3875
  %v4008 = vpop.f32.mrb[0].mxu0
  %v4009 = vadd.f32 0.0, %v4008
  %v4010 = vpop.f32.mrb[0].mxu0
  %v4011 = vpop.f32.mrb[0].mxu0
  %v4012 = vadd.f32 0.0, %v4011
  %v4013 = vpop.f32.mrb[0].mxu0
  %4014 = vmatprep.mubr.bf16.mxu0 0
  %4015 = vmatmul.mubr.bf16.gmra.mrb[0].mxu0 %v3876
  %v4016 = vpop.f32.mrb[0].mxu0
  %v4017 = vadd.f32 0.0, %v4016
  %v4018 = vpop.f32.mrb[0].mxu0
  %v4019 = vpop.f32.mrb[0].mxu0
  %v4020 = vadd.f32 0.0, %v4019
  %v4021 = vpop.f32.mrb[0].mxu0
  %4022 = vmatprep.mubr.bf16.mxu0 0
  %4023 = vmatmul.mubr.bf16.gmra.mrb[0].mxu0 %v3877
  %v4024 = vpop.f32.mrb[0].mxu0
  %v4025 = vadd.f32 0.0, %v4024
  %v4026 = vpop.f32.mrb[0].mxu0
  %v4027 = vpop.f32.mrb[0].mxu0
  %v4028 = vadd.f32 0.0, %v4027
  %v4029 = vpop.f32.mrb[0].mxu0
  %4030 = vdwg.mxu0
  %v4031 = vadd.f32 %v3709, %v3969
  %v4032 = vadd.f32 %v3710, %v3972
  %v4033 = vadd.f32 %v3711, %v3977
  %v4034 = vadd.f32 %v3712, %v3980
  %v4035 = vadd.f32 %v3713, %v3985
  %v4036 = vadd.f32 %v3714, %v3988
  %v4037 = vadd.f32 %v3715, %v3993
  %v4038 = vadd.f32 %v3716, %v3996
  %v4039 = vadd.f32 %v3717, %v4001
  %v4040 = vadd.f32 %v3718, %v4004
  %v4041 = vadd.f32 %v3719, %v4009
  %v4042 = vadd.f32 %v3720, %v4012
  %v4043 = vadd.f32 %v3721, %v4017
  %v4044 = vadd.f32 %v3722, %v4020
  %v4045 = vadd.f32 %v3723, %v4025
  %v4046 = vadd.f32 %v3724, %v4028
  %v4048 = vlaneseq
  %v4049 = vshrl.u32 %v4048, 7
  %v4050 = vsub.s32 0, %v4049
  %v4051 = vrot.slane %v998, %v4050
  %v4053 = vadd.f32 %v4031, %v4051
  %v4054 = vadd.f32 %v4032, %v4051
  %v4055 = vadd.f32 %v4033, %v4051
  %v4056 = vadd.f32 %v4034, %v4051
  %v4057 = vadd.f32 %v4035, %v4051
  %v4058 = vadd.f32 %v4036, %v4051
  %v4059 = vadd.f32 %v4037, %v4051
  %v4060 = vadd.f32 %v4038, %v4051
  %v4061 = vadd.f32 %v4039, %v4051
  %v4062 = vadd.f32 %v4040, %v4051
  %v4063 = vadd.f32 %v4041, %v4051
  %v4064 = vadd.f32 %v4042, %v4051
  %v4065 = vadd.f32 %v4043, %v4051
  %v4066 = vadd.f32 %v4044, %v4051
  %v4067 = vadd.f32 %v4045, %v4051
  %v4068 = vadd.f32 %v4046, %v4051
  %v4069 = vld [vmem:[%s1] sm:$0x3]
  %v4070 = vxor.u32 %v4069, 2147483648
  %v4071 = vmul.f32 %v4070, 1.442695
  %v4072 = vpow.pop %v4071
  %v4073 = vadd.f32 %v4072, 1.0
  %v4074 = vrcp.pop %v4073
  %v4075 = vmul.f32 1.0, %v4074
  %v4076 = vmul.f32 %v4069, %v4075
  %v4077 = vpack.c.bf16 %v4076, %v4076
  %v4078 = vld [vmem:[%s8] sm:$0xf]
  %v4079 = vld [vmem:[%s8 + $0x4] sm:$0xf]
  %v4080 = vld [vmem:[%s8 + $0x8] sm:$0xf]
  %v4081 = vld [vmem:[%s8 + $0xc] sm:$0xf]
  %v4082 = vld [vmem:[%s9] sm:$0x1]
  %v4084 = vlaneseq
  %v4085 = vshrl.u32 %v4084, 7
  %v4086 = vsub.s32 0, %v4085
  %v4087 = vrot.slane %v4082, %v4086
  %v4093 = vunpack.c.l.b16 %v4078
  %v4094 = vunpack.c.l.b16 %v4079
  %v4095 = vunpack.c.l.b16 %v4080
  %v4096 = vunpack.c.l.b16 %v4081
  %v4097 = vpack.c.b16 %v4094, %v4093
  %v4098 = vpack.c.b16 %v4096, %v4095
  %v4102 = vsel %vm258, %v4077, 0
  %4104 = vmatprep.subr.bf16.mxu0 0
  %4105 = vmatpush1.bf16.msra.mxu0 %v4097
  %4106 = vmatprep.subr.bf16.mxu0 0
  %4107 = vmatpush1.bf16.msra.mxu0 %v4098
  %4108 = vmatprep.subr.bf16.mxu0 0
  %4109 = vmatpush1.bf16.msra.mxu0 0
  %4110 = vmatprep.subr.bf16.mxu0 0
  %4111 = vmatpush1.bf16.msra.mxu0 0
  %4112 = vmatprep.subr.bf16.mxu0 0
  %4113 = vmatpush1.bf16.msra.mxu0 0
  %4114 = vmatprep.subr.bf16.mxu0 0
  %4115 = vmatpush1.bf16.msra.mxu0 0
  %4116 = vmatprep.subr.bf16.mxu0 0
  %4117 = vmatpush1.bf16.msra.mxu0 0
  %4118 = vmatprep.subr.bf16.mxu0 0
  %4119 = vmatpush1.bf16.msra.mxu0 0
  %4120 = vmatprep.subr.bf16.mxu0 0
  %4121 = vmatpush1.bf16.msra.mxu0 0
  %4122 = vmatprep.subr.bf16.mxu0 0
  %4123 = vmatpush1.bf16.msra.mxu0 0
  %4124 = vmatprep.subr.bf16.mxu0 0
  %4125 = vmatpush1.bf16.msra.mxu0 0
  %4126 = vmatprep.subr.bf16.mxu0 0
  %4127 = vmatpush1.bf16.msra.mxu0 0
  %4128 = vmatprep.subr.bf16.mxu0 0
  %4129 = vmatpush1.bf16.msra.mxu0 0
  %4130 = vmatprep.subr.bf16.mxu0 0
  %4131 = vmatpush1.bf16.msra.mxu0 0
  %4132 = vmatprep.subr.bf16.mxu0 0
  %4133 = vmatpush1.bf16.msra.mxu0 0
  %4134 = vmatprep.subr.bf16.mxu0 0
  %4135 = vmatpush1.bf16.msra.mxu0 0
  %4136 = vmatprep.mubr.bf16.mxu0 0
  %4137 = vmatmul.mubr.bf16.gmra.mrb[0].mxu0 %v4102
  %v4138 = vpop.f32.mrb[0].mxu0
  %v4139 = vadd.f32 %v4087, %v4138
  %v4140 = vpop.f32.mrb[0].mxu0
  %v4141 = vpop.f32.mrb[0].mxu0
  %v4142 = vpop.f32.mrb[0].mxu0
  %4143 = vdwg.mxu0
  %v4146 = vunpack.c.l.s4 1966171168
  %v4147 = vunpack.c.0.s8 %v4146
  %v4148 = vlaneseq
  %v4149 = vshrl.u32 %v4148, 7
  %v4150 = vsub.s32 %v4147, %v4149
  %v4151 = vrot.slane %v4139, %v4150
  %v4152 = vcombine.high %v4151, %v4151
  %v4154 = vunpack.c.l.s4 1966171168
  %v4155 = vunpack.c.0.s8 %v4154
  %v4156 = vlaneseq
  %v4157 = vshrl.u32 %v4156, 7
  %v4158 = vsub.s32 %v4155, %v4157
  %v4159 = vrot.slane %v4151, %v4158
  %v4161 = vunpack.c.l.s4 1966171168
  %v4162 = vunpack.c.0.s8 %v4161
  %v4163 = vlaneseq
  %v4164 = vshrl.u32 %v4163, 7
  %v4165 = vsub.s32 %v4162, %v4164
  %v4166 = vrot.slane %v4152, %v4165
  %v4167 = vlaneseq
  %v4168 = vshrl.u32 %v4167, 7
  %v4169 = vsub.s32 0, %v4168
  %v4170 = vrot.slane %v4159, %v4169
  %v4171 = vlaneseq
  %v4172 = vshrl.u32 %v4171, 7
  %v4173 = vsub.s32 0, %v4172
  %v4174 = vrot.slane %v4166, %v4173
  %v4177 = vadd.f32 %v4053, %v4170
  %v4178 = vadd.f32 %v4054, %v4170
  %v4179 = vadd.f32 %v4055, %v4170
  %v4180 = vadd.f32 %v4056, %v4170
  %v4181 = vadd.f32 %v4057, %v4170
  %v4182 = vadd.f32 %v4058, %v4170
  %v4183 = vadd.f32 %v4059, %v4170
  %v4184 = vadd.f32 %v4060, %v4170
  %v4185 = vadd.f32 %v4061, %v4174
  %v4186 = vadd.f32 %v4062, %v4174
  %v4187 = vadd.f32 %v4063, %v4174
  %v4188 = vadd.f32 %v4064, %v4174
  %v4189 = vadd.f32 %v4065, %v4174
  %v4190 = vadd.f32 %v4066, %v4174
  %v4191 = vadd.f32 %v4067, %v4174
  %v4192 = vadd.f32 %v4068, %v4174
  %v4193 = vld [vmem:[%s10] sm:$0x1]
  %v4194 = vld [vmem:[%s11] sm:$0x1]
  %v4195 = vld [vmem:[%s12] sm:$0xff]
  %v4196 = vld [vmem:[%s12 + $0x8] sm:$0xff]
  %v4197 = vld [vmem:[%s12 + $0x10] sm:$0xff]
  %v4198 = vld [vmem:[%s12 + $0x18] sm:$0xff]
  %v4199 = vld [vmem:[%s12 + $0x20] sm:$0xff]
  %v4200 = vld [vmem:[%s12 + $0x28] sm:$0xff]
  %v4201 = vld [vmem:[%s12 + $0x30] sm:$0xff]
  %v4202 = vld [vmem:[%s12 + $0x38] sm:$0xff]
  %v4203 = vld [vmem:[%s12 + $0x40] sm:$0xff]
  %v4204 = vld [vmem:[%s12 + $0x48] sm:$0xff]
  %v4205 = vld [vmem:[%s12 + $0x50] sm:$0xff]
  %v4206 = vld [vmem:[%s12 + $0x58] sm:$0xff]
  %v4207 = vld [vmem:[%s12 + $0x60] sm:$0xff]
  %v4208 = vld [vmem:[%s12 + $0x68] sm:$0xff]
  %v4209 = vld [vmem:[%s12 + $0x70] sm:$0xff]
  %v4210 = vld [vmem:[%s12 + $0x78] sm:$0xff]
  %v4211 = vld [vmem:[%s13] sm:$0xff]
  %v4212 = vld [vmem:[%s13 + $0x8] sm:$0xff]
  %v4213 = vld [vmem:[%s13 + $0x10] sm:$0xff]
  %v4214 = vld [vmem:[%s13 + $0x18] sm:$0xff]
  %v4215 = vadd.f32 %v4177, %v4178
  %v4216 = vadd.f32 %v4215, %v4179
  %v4217 = vadd.f32 %v4216, %v4180
  %v4218 = vadd.f32 %v4217, %v4181
  %v4219 = vadd.f32 %v4218, %v4182
  %v4220 = vadd.f32 %v4219, %v4183
  %v4221 = vadd.f32 %v4220, %v4184
  %v4222 = vrot.slane %v4221, 4
  %v4223 = vadd.f32 %v4221, %v4222
  %v4224 = vrot.slane %v4223, 2
  %v4225 = vadd.f32 %v4223, %v4224
  %v4226 = vrot.slane %v4225, 1
  %v4227 = vadd.f32 %v4225, %v4226
  %v4228 = vadd.f32 %v4185, %v4186
  %v4229 = vadd.f32 %v4228, %v4187
  %v4230 = vadd.f32 %v4229, %v4188
  %v4231 = vadd.f32 %v4230, %v4189
  %v4232 = vadd.f32 %v4231, %v4190
  %v4233 = vadd.f32 %v4232, %v4191
  %v4234 = vadd.f32 %v4233, %v4192
  %v4235 = vrot.slane %v4234, 4
  %v4236 = vadd.f32 %v4234, %v4235
  %v4237 = vrot.slane %v4236, 2
  %v4238 = vadd.f32 %v4236, %v4237
  %v4239 = vrot.slane %v4238, 1
  %v4240 = vadd.f32 %v4238, %v4239
  %v4241 = vmul.f32 %v4177, %v4177
  %v4242 = vmul.f32 %v4178, %v4178
  %v4243 = vmul.f32 %v4179, %v4179
  %v4244 = vmul.f32 %v4180, %v4180
  %v4245 = vmul.f32 %v4181, %v4181
  %v4246 = vmul.f32 %v4182, %v4182
  %v4247 = vmul.f32 %v4183, %v4183
  %v4248 = vmul.f32 %v4184, %v4184
  %v4249 = vmul.f32 %v4185, %v4185
  %v4250 = vmul.f32 %v4186, %v4186
  %v4251 = vmul.f32 %v4187, %v4187
  %v4252 = vmul.f32 %v4188, %v4188
  %v4253 = vmul.f32 %v4189, %v4189
  %v4254 = vmul.f32 %v4190, %v4190
  %v4255 = vmul.f32 %v4191, %v4191
  %v4256 = vmul.f32 %v4192, %v4192
  %v4257 = vadd.f32 %v4241, %v4242
  %v4258 = vadd.f32 %v4257, %v4243
  %v4259 = vadd.f32 %v4258, %v4244
  %v4260 = vadd.f32 %v4259, %v4245
  %v4261 = vadd.f32 %v4260, %v4246
  %v4262 = vadd.f32 %v4261, %v4247
  %v4263 = vadd.f32 %v4262, %v4248
  %v4264 = vrot.slane %v4263, 4
  %v4265 = vadd.f32 %v4263, %v4264
  %v4266 = vrot.slane %v4265, 2
  %v4267 = vadd.f32 %v4265, %v4266
  %v4268 = vrot.slane %v4267, 1
  %v4269 = vadd.f32 %v4267, %v4268
  %v4270 = vadd.f32 %v4249, %v4250
  %v4271 = vadd.f32 %v4270, %v4251
  %v4272 = vadd.f32 %v4271, %v4252
  %v4273 = vadd.f32 %v4272, %v4253
  %v4274 = vadd.f32 %v4273, %v4254
  %v4275 = vadd.f32 %v4274, %v4255
  %v4276 = vadd.f32 %v4275, %v4256
  %v4277 = vrot.slane %v4276, 4
  %v4278 = vadd.f32 %v4276, %v4277
  %v4279 = vrot.slane %v4278, 2
  %v4280 = vadd.f32 %v4278, %v4279
  %v4281 = vrot.slane %v4280, 1
  %v4282 = vadd.f32 %v4280, %v4281
  %v4285 = vsel %vm168, %v4240, %v4227
  %v4289 = vsel %vm173, %v4282, %v4269
  %v4291 = vsel %vm176, %v4285, %v4289
  %4292 = vmatprep.subr.mxu0 0.0
  %4293 = vmatpush1.msra.mxu0 %v4195
  %4294 = vmatprep.subr.mxu0 0.0
  %4295 = vmatpush1.msra.mxu0 %v4196
  %4296 = vmatprep.subr.mxu0 0.0
  %4297 = vmatpush1.msra.mxu0 %v4197
  %4298 = vmatprep.subr.mxu0 0.0
  %4299 = vmatpush1.msra.mxu0 %v4198
  %4300 = vmatprep.subr.mxu0 0.0
  %4301 = vmatpush1.msra.mxu0 %v4199
  %4302 = vmatprep.subr.mxu0 0.0
  %4303 = vmatpush1.msra.mxu0 %v4200
  %4304 = vmatprep.subr.mxu0 0.0
  %4305 = vmatpush1.msra.mxu0 %v4201
  %4306 = vmatprep.subr.mxu0 0.0
  %4307 = vmatpush1.msra.mxu0 %v4202
  %4308 = vmatprep.subr.mxu0 0.0
  %4309 = vmatpush1.msra.mxu0 %v4203
  %4310 = vmatprep.subr.mxu0 0.0
  %4311 = vmatpush1.msra.mxu0 %v4204
  %4312 = vmatprep.subr.mxu0 0.0
  %4313 = vmatpush1.msra.mxu0 %v4205
  %4314 = vmatprep.subr.mxu0 0.0
  %4315 = vmatpush1.msra.mxu0 %v4206
  %4316 = vmatprep.subr.mxu0 0.0
  %4317 = vmatpush1.msra.mxu0 %v4207
  %4318 = vmatprep.subr.mxu0 0.0
  %4319 = vmatpush1.msra.mxu0 %v4208
  %4320 = vmatprep.subr.mxu0 0.0
  %4321 = vmatpush1.msra.mxu0 %v4209
  %4322 = vmatprep.subr.mxu0 0.0
  %4323 = vmatpush1.msra.mxu0 %v4210
  %4324 = vmatprep.subr.mxu0 0.0
  %4325 = vmatpush1.msra.mxu0 0.0
  %4326 = vmatprep.subr.mxu0 0.0
  %4327 = vmatpush1.msra.mxu0 0.0
  %4328 = vmatprep.subr.mxu0 0.0
  %4329 = vmatpush1.msra.mxu0 0.0
  %4330 = vmatprep.subr.mxu0 0.0
  %4331 = vmatpush1.msra.mxu0 0.0
  %4332 = vmatprep.subr.mxu0 0.0
  %4333 = vmatpush1.msra.mxu0 0.0
  %4334 = vmatprep.subr.mxu0 0.0
  %4335 = vmatpush1.msra.mxu0 0.0
  %4336 = vmatprep.subr.mxu0 0.0
  %4337 = vmatpush1.msra.mxu0 0.0
  %4338 = vmatprep.subr.mxu0 0.0
  %4339 = vmatpush1.msra.mxu0 0.0
  %4340 = vmatprep.subr.mxu0 0.0
  %4341 = vmatpush1.msra.mxu0 0.0
  %4342 = vmatprep.subr.mxu0 0.0
  %4343 = vmatpush1.msra.mxu0 0.0
  %4344 = vmatprep.subr.mxu0 0.0
  %4345 = vmatpush1.msra.mxu0 0.0
  %4346 = vmatprep.subr.mxu0 0.0
  %4347 = vmatpush1.msra.mxu0 0.0
  %4348 = vmatprep.subr.mxu0 0.0
  %4349 = vmatpush1.msra.mxu0 0.0
  %4350 = vmatprep.subr.mxu0 0.0
  %4351 = vmatpush1.msra.mxu0 0.0
  %4352 = vmatprep.subr.mxu0 0.0
  %4353 = vmatpush1.msra.mxu0 0.0
  %4354 = vmatprep.subr.mxu0 0.0
  %4355 = vmatpush1.msra.mxu0 0.0
  %4356 = vmatprep.mubr.f32.mxu0 0.0
  %4357 = vmatmul.mubr.f32.gmra.mrb[0].mxu0 %v4291
  %v4358 = vpop.f32.mrb[0].mxu0
  %v4359 = vadd.f32 0.0, %v4358
  %v4360 = vpop.f32.mrb[0].mxu0
  %4361 = vdwg.mxu0
  %v4362 = vmul.f32 %v4359, 0.0078125
  %v4363 = vmul.f32 %v4362, %v4362
  %v4365 = vrot.slane %v4363, 6
  %v4367 = vsub.f32 %v4362, %v4365
  %v4368 = vmax.f32 %v4367, 0.0
  %v4369 = vadd.f32 %v4368, 1e-05
  %v4370 = vrsqrt.pop %v4369
  %v4371 = vsel %vm176, %v4362, %v4370
  %v4373 = vsel %vm258, %v4371, 0
  %4375 = vmatprep.subr.mxu0 0.0
  %4376 = vmatpush1.msra.mxu0 %v4211
  %4377 = vmatprep.subr.mxu0 0.0
  %4378 = vmatpush1.msra.mxu0 %v4212
  %4379 = vmatprep.subr.mxu0 0.0
  %4380 = vmatpush1.msra.mxu0 %v4213
  %4381 = vmatprep.subr.mxu0 0.0
  %4382 = vmatpush1.msra.mxu0 %v4214
  %4383 = vmatprep.subr.mxu0 0.0
  %4384 = vmatpush1.msra.mxu0 0.0
  %4385 = vmatprep.subr.mxu0 0.0
  %4386 = vmatpush1.msra.mxu0 0.0
  %4387 = vmatprep.subr.mxu0 0.0
  %4388 = vmatpush1.msra.mxu0 0.0
  %4389 = vmatprep.subr.mxu0 0.0
  %4390 = vmatpush1.msra.mxu0 0.0
  %4391 = vmatprep.subr.mxu0 0.0
  %4392 = vmatpush1.msra.mxu0 0.0
  %4393 = vmatprep.subr.mxu0 0.0
  %4394 = vmatpush1.msra.mxu0 0.0
  %4395 = vmatprep.subr.mxu0 0.0
  %4396 = vmatpush1.msra.mxu0 0.0
  %4397 = vmatprep.subr.mxu0 0.0
  %4398 = vmatpush1.msra.mxu0 0.0
  %4399 = vmatprep.subr.mxu0 0.0
  %4400 = vmatpush1.msra.mxu0 0.0
  %4401 = vmatprep.subr.mxu0 0.0
  %4402 = vmatpush1.msra.mxu0 0.0
  %4403 = vmatprep.subr.mxu0 0.0
  %4404 = vmatpush1.msra.mxu0 0.0
  %4405 = vmatprep.subr.mxu0 0.0
  %4406 = vmatpush1.msra.mxu0 0.0
  %4407 = vmatprep.subr.mxu0 0.0
  %4408 = vmatpush1.msra.mxu0 0.0
  %4409 = vmatprep.subr.mxu0 0.0
  %4410 = vmatpush1.msra.mxu0 0.0
  %4411 = vmatprep.subr.mxu0 0.0
  %4412 = vmatpush1.msra.mxu0 0.0
  %4413 = vmatprep.subr.mxu0 0.0
  %4414 = vmatpush1.msra.mxu0 0.0
  %4415 = vmatprep.subr.mxu0 0.0
  %4416 = vmatpush1.msra.mxu0 0.0
  %4417 = vmatprep.subr.mxu0 0.0
  %4418 = vmatpush1.msra.mxu0 0.0
  %4419 = vmatprep.subr.mxu0 0.0
  %4420 = vmatpush1.msra.mxu0 0.0
  %4421 = vmatprep.subr.mxu0 0.0
  %4422 = vmatpush1.msra.mxu0 0.0
  %4423 = vmatprep.subr.mxu0 0.0
  %4424 = vmatpush1.msra.mxu0 0.0
  %4425 = vmatprep.subr.mxu0 0.0
  %4426 = vmatpush1.msra.mxu0 0.0
  %4427 = vmatprep.subr.mxu0 0.0
  %4428 = vmatpush1.msra.mxu0 0.0
  %4429 = vmatprep.subr.mxu0 0.0
  %4430 = vmatpush1.msra.mxu0 0.0
  %4431 = vmatprep.subr.mxu0 0.0
  %4432 = vmatpush1.msra.mxu0 0.0
  %4433 = vmatprep.subr.mxu0 0.0
  %4434 = vmatpush1.msra.mxu0 0.0
  %4435 = vmatprep.subr.mxu0 0.0
  %4436 = vmatpush1.msra.mxu0 0.0
  %4437 = vmatprep.subr.mxu0 0.0
  %4438 = vmatpush1.msra.mxu0 0.0
  %4439 = vmatprep.mubr.f32.mxu0 0.0
  %4440 = vmatmul.mubr.f32.gmra.mrb[0].mxu0 %v4373
  %v4441 = vpop.f32.mrb[0].mxu0
  %v4442 = vadd.f32 0.0, %v4441
  %v4443 = vpop.f32.mrb[0].mxu0
  %4444 = vdwg.mxu0
  %v4447 = vunpack.c.l.s4 1966171168
  %v4448 = vunpack.c.0.s8 %v4447
  %v4449 = vlaneseq
  %v4450 = vshrl.u32 %v4449, 7
  %v4451 = vsub.s32 %v4448, %v4450
  %v4452 = vrot.slane %v4442, %v4451
  %v4453 = vcombine.high %v4452, %v4452
  %v4455 = vunpack.c.l.s4 1966171168
  %v4456 = vunpack.c.0.s8 %v4455
  %v4457 = vlaneseq
  %v4458 = vshrl.u32 %v4457, 7
  %v4459 = vsub.s32 %v4456, %v4458
  %v4460 = vrot.slane %v4452, %v4459
  %v4462 = vunpack.c.l.s4 1966171168
  %v4463 = vunpack.c.0.s8 %v4462
  %v4464 = vlaneseq
  %v4465 = vshrl.u32 %v4464, 7
  %v4466 = vsub.s32 %v4463, %v4465
  %v4467 = vrot.slane %v4453, %v4466
  %v4468 = vlaneseq
  %v4469 = vshrl.u32 %v4468, 7
  %v4470 = vsub.s32 0, %v4469
  %v4471 = vrot.slane %v4460, %v4470
  %v4472 = vlaneseq
  %v4473 = vshrl.u32 %v4472, 7
  %v4474 = vsub.s32 0, %v4473
  %v4475 = vrot.slane %v4467, %v4474
  %v4478 = vsub.f32 %v4177, %v4471
  %v4479 = vsub.f32 %v4178, %v4471
  %v4480 = vsub.f32 %v4179, %v4471
  %v4481 = vsub.f32 %v4180, %v4471
  %v4482 = vsub.f32 %v4181, %v4471
  %v4483 = vsub.f32 %v4182, %v4471
  %v4484 = vsub.f32 %v4183, %v4471
  %v4485 = vsub.f32 %v4184, %v4471
  %v4486 = vsub.f32 %v4185, %v4475
  %v4487 = vsub.f32 %v4186, %v4475
  %v4488 = vsub.f32 %v4187, %v4475
  %v4489 = vsub.f32 %v4188, %v4475
  %v4490 = vsub.f32 %v4189, %v4475
  %v4491 = vsub.f32 %v4190, %v4475
  %v4492 = vsub.f32 %v4191, %v4475
  %v4493 = vsub.f32 %v4192, %v4475
  %v4494 = vcombine.high %v4460, %v4460
  %v4495 = vcombine.high %v4467, %v4467
  %v4496 = vlaneseq
  %v4497 = vshrl.u32 %v4496, 7
  %v4498 = vsub.s32 0, %v4497
  %v4499 = vrot.slane %v4494, %v4498
  %v4500 = vlaneseq
  %v4501 = vshrl.u32 %v4500, 7
  %v4502 = vsub.s32 0, %v4501
  %v4503 = vrot.slane %v4495, %v4502
  %v4506 = vmul.f32 %v4478, %v4499
  %v4507 = vmul.f32 %v4479, %v4499
  %v4508 = vmul.f32 %v4480, %v4499
  %v4509 = vmul.f32 %v4481, %v4499
  %v4510 = vmul.f32 %v4482, %v4499
  %v4511 = vmul.f32 %v4483, %v4499
  %v4512 = vmul.f32 %v4484, %v4499
  %v4513 = vmul.f32 %v4485, %v4499
  %v4514 = vmul.f32 %v4486, %v4503
  %v4515 = vmul.f32 %v4487, %v4503
  %v4516 = vmul.f32 %v4488, %v4503
  %v4517 = vmul.f32 %v4489, %v4503
  %v4518 = vmul.f32 %v4490, %v4503
  %v4519 = vmul.f32 %v4491, %v4503
  %v4520 = vmul.f32 %v4492, %v4503
  %v4521 = vmul.f32 %v4493, %v4503
  %v4523 = vlaneseq
  %v4524 = vshrl.u32 %v4523, 7
  %v4525 = vsub.s32 0, %v4524
  %v4526 = vrot.slane %v4193, %v4525
  %v4528 = vmul.f32 %v4506, %v4526
  %v4529 = vmul.f32 %v4507, %v4526
  %v4530 = vmul.f32 %v4508, %v4526
  %v4531 = vmul.f32 %v4509, %v4526
  %v4532 = vmul.f32 %v4510, %v4526
  %v4533 = vmul.f32 %v4511, %v4526
  %v4534 = vmul.f32 %v4512, %v4526
  %v4535 = vmul.f32 %v4513, %v4526
  %v4536 = vmul.f32 %v4514, %v4526
  %v4537 = vmul.f32 %v4515, %v4526
  %v4538 = vmul.f32 %v4516, %v4526
  %v4539 = vmul.f32 %v4517, %v4526
  %v4540 = vmul.f32 %v4518, %v4526
  %v4541 = vmul.f32 %v4519, %v4526
  %v4542 = vmul.f32 %v4520, %v4526
  %v4543 = vmul.f32 %v4521, %v4526
  %v4545 = vlaneseq
  %v4546 = vshrl.u32 %v4545, 7
  %v4547 = vsub.s32 0, %v4546
  %v4548 = vrot.slane %v4194, %v4547
  %v4550 = vadd.f32 %v4528, %v4548
  %v4551 = vadd.f32 %v4529, %v4548
  %v4552 = vadd.f32 %v4530, %v4548
  %v4553 = vadd.f32 %v4531, %v4548
  %v4554 = vadd.f32 %v4532, %v4548
  %v4555 = vadd.f32 %v4533, %v4548
  %v4556 = vadd.f32 %v4534, %v4548
  %v4557 = vadd.f32 %v4535, %v4548
  %v4558 = vadd.f32 %v4536, %v4548
  %v4559 = vadd.f32 %v4537, %v4548
  %v4560 = vadd.f32 %v4538, %v4548
  %v4561 = vadd.f32 %v4539, %v4548
  %v4562 = vadd.f32 %v4540, %v4548
  %v4563 = vadd.f32 %v4541, %v4548
  %v4564 = vadd.f32 %v4542, %v4548
  %v4565 = vadd.f32 %v4543, %v4548
  %v4566 = vxor.u32 %v4550, 2147483648
  %v4567 = vxor.u32 %v4551, 2147483648
  %v4568 = vxor.u32 %v4552, 2147483648
  %v4569 = vxor.u32 %v4553, 2147483648
  %v4570 = vxor.u32 %v4554, 2147483648
  %v4571 = vxor.u32 %v4555, 2147483648
  %v4572 = vxor.u32 %v4556, 2147483648
  %v4573 = vxor.u32 %v4557, 2147483648
  %v4574 = vxor.u32 %v4558, 2147483648
  %v4575 = vxor.u32 %v4559, 2147483648
  %v4576 = vxor.u32 %v4560, 2147483648
  %v4577 = vxor.u32 %v4561, 2147483648
  %v4578 = vxor.u32 %v4562, 2147483648
  %v4579 = vxor.u32 %v4563, 2147483648
  %v4580 = vxor.u32 %v4564, 2147483648
  %v4581 = vxor.u32 %v4565, 2147483648
  %v4582 = vmul.f32 %v4566, 1.442695
  %v4583 = vpow.pop %v4582
  %v4584 = vmul.f32 %v4567, 1.442695
  %v4585 = vpow.pop %v4584
  %v4586 = vmul.f32 %v4568, 1.442695
  %v4587 = vpow.pop %v4586
  %v4588 = vmul.f32 %v4569, 1.442695
  %v4589 = vpow.pop %v4588
  %v4590 = vmul.f32 %v4570, 1.442695
  %v4591 = vpow.pop %v4590
  %v4592 = vmul.f32 %v4571, 1.442695
  %v4593 = vpow.pop %v4592
  %v4594 = vmul.f32 %v4572, 1.442695
  %v4595 = vpow.pop %v4594
  %v4596 = vmul.f32 %v4573, 1.442695
  %v4597 = vpow.pop %v4596
  %v4598 = vmul.f32 %v4574, 1.442695
  %v4599 = vpow.pop %v4598
  %v4600 = vmul.f32 %v4575, 1.442695
  %v4601 = vpow.pop %v4600
  %v4602 = vmul.f32 %v4576, 1.442695
  %v4603 = vpow.pop %v4602
  %v4604 = vmul.f32 %v4577, 1.442695
  %v4605 = vpow.pop %v4604
  %v4606 = vmul.f32 %v4578, 1.442695
  %v4607 = vpow.pop %v4606
  %v4608 = vmul.f32 %v4579, 1.442695
  %v4609 = vpow.pop %v4608
  %v4610 = vmul.f32 %v4580, 1.442695
  %v4611 = vpow.pop %v4610
  %v4612 = vmul.f32 %v4581, 1.442695
  %v4613 = vpow.pop %v4612
  %v4614 = vadd.f32 %v4583, 1.0
  %v4615 = vadd.f32 %v4585, 1.0
  %v4616 = vadd.f32 %v4587, 1.0
  %v4617 = vadd.f32 %v4589, 1.0
  %v4618 = vadd.f32 %v4591, 1.0
  %v4619 = vadd.f32 %v4593, 1.0
  %v4620 = vadd.f32 %v4595, 1.0
  %v4621 = vadd.f32 %v4597, 1.0
  %v4622 = vadd.f32 %v4599, 1.0
  %v4623 = vadd.f32 %v4601, 1.0
  %v4624 = vadd.f32 %v4603, 1.0
  %v4625 = vadd.f32 %v4605, 1.0
  %v4626 = vadd.f32 %v4607, 1.0
  %v4627 = vadd.f32 %v4609, 1.0
  %v4628 = vadd.f32 %v4611, 1.0
  %v4629 = vadd.f32 %v4613, 1.0
  %v4630 = vrcp.pop %v4614
  %v4631 = vmul.f32 1.0, %v4630
  %v4632 = vrcp.pop %v4615
  %v4633 = vmul.f32 1.0, %v4632
  %v4634 = vrcp.pop %v4616
  %v4635 = vmul.f32 1.0, %v4634
  %v4636 = vrcp.pop %v4617
  %v4637 = vmul.f32 1.0, %v4636
  %v4638 = vrcp.pop %v4618
  %v4639 = vmul.f32 1.0, %v4638
  %v4640 = vrcp.pop %v4619
  %v4641 = vmul.f32 1.0, %v4640
  %v4642 = vrcp.pop %v4620
  %v4643 = vmul.f32 1.0, %v4642
  %v4644 = vrcp.pop %v4621
  %v4645 = vmul.f32 1.0, %v4644
  %v4646 = vrcp.pop %v4622
  %v4647 = vmul.f32 1.0, %v4646
  %v4648 = vrcp.pop %v4623
  %v4649 = vmul.f32 1.0, %v4648
  %v4650 = vrcp.pop %v4624
  %v4651 = vmul.f32 1.0, %v4650
  %v4652 = vrcp.pop %v4625
  %v4653 = vmul.f32 1.0, %v4652
  %v4654 = vrcp.pop %v4626
  %v4655 = vmul.f32 1.0, %v4654
  %v4656 = vrcp.pop %v4627
  %v4657 = vmul.f32 1.0, %v4656
  %v4658 = vrcp.pop %v4628
  %v4659 = vmul.f32 1.0, %v4658
  %v4660 = vrcp.pop %v4629
  %v4661 = vmul.f32 1.0, %v4660
  %v4662 = vmul.f32 %v4550, %v4631
  %v4663 = vmul.f32 %v4551, %v4633
  %v4664 = vmul.f32 %v4552, %v4635
  %v4665 = vmul.f32 %v4553, %v4637
  %v4666 = vmul.f32 %v4554, %v4639
  %v4667 = vmul.f32 %v4555, %v4641
  %v4668 = vmul.f32 %v4556, %v4643
  %v4669 = vmul.f32 %v4557, %v4645
  %v4670 = vmul.f32 %v4558, %v4647
  %v4671 = vmul.f32 %v4559, %v4649
  %v4672 = vmul.f32 %v4560, %v4651
  %v4673 = vmul.f32 %v4561, %v4653
  %v4674 = vmul.f32 %v4562, %v4655
  %v4675 = vmul.f32 %v4563, %v4657
  %v4676 = vmul.f32 %v4564, %v4659
  %v4677 = vmul.f32 %v4565, %v4661
  %v4678 = vpack.c.bf16 %v4662, %v4662
  %v4679 = vpack.c.bf16 %v4663, %v4663
  %v4680 = vpack.c.bf16 %v4664, %v4664
  %v4681 = vpack.c.bf16 %v4665, %v4665
  %v4682 = vpack.c.bf16 %v4666, %v4666
  %v4683 = vpack.c.bf16 %v4667, %v4667
  %v4684 = vpack.c.bf16 %v4668, %v4668
  %v4685 = vpack.c.bf16 %v4669, %v4669
  %v4686 = vpack.c.bf16 %v4670, %v4670
  %v4687 = vpack.c.bf16 %v4671, %v4671
  %v4688 = vpack.c.bf16 %v4672, %v4672
  %v4689 = vpack.c.bf16 %v4673, %v4673
  %v4690 = vpack.c.bf16 %v4674, %v4674
  %v4691 = vpack.c.bf16 %v4675, %v4675
  %v4692 = vpack.c.bf16 %v4676, %v4676
  %v4693 = vpack.c.bf16 %v4677, %v4677
  %4694 = vst [vmem:[#allocation2] sm:$0xf] 0
  %4695 = vst [vmem:[#allocation2 + $0x4] sm:$0x1] 0
  %4696 = vst [vmem:[#allocation2 + $0x50] sm:$0xf] 0
  %4697 = vst [vmem:[#allocation2 + $0x54] sm:$0x1] 0
  %4698 = vst [vmem:[%s585] sm:$0xf] 0
  %4699 = vst [vmem:[%s585 + $0x4] sm:$0x1] 0
  %4700 = vst [vmem:[%s585 + $0x50] sm:$0xf] 0
  %4701 = vst [vmem:[%s585 + $0x54] sm:$0x1] 0
  %v4702 = vld [vmem:[%s590] sm:$0x1]
  %v4703 = vsel %vm593, 0, %v4702
  %4704 = vst [vmem:[%s590] sm:$0x1] %v4703
  %v4705 = vld [vmem:[%s590 + $0x8] sm:$0x1]
  %v4706 = vsel %vm593, 0, %v4705
  %4707 = vst [vmem:[%s590 + $0x8] sm:$0x1] %v4706
  %v4708 = vld [vmem:[%s590 + $0x10] sm:$0x1]
  %v4709 = vsel %vm593, 0, %v4708
  %4710 = vst [vmem:[%s590 + $0x10] sm:$0x1] %v4709
  %v4711 = vld [vmem:[%s590 + $0x18] sm:$0x1]
  %v4712 = vsel %vm593, 0, %v4711
  %4713 = vst [vmem:[%s590 + $0x18] sm:$0x1] %v4712
  %v4714 = vld [vmem:[%s590 + $0x20] sm:$0x1]
  %v4715 = vsel %vm593, 0, %v4714
  %4716 = vst [vmem:[%s590 + $0x20] sm:$0x1] %v4715
  %v4717 = vld [vmem:[%s590 + $0x28] sm:$0x1]
  %v4718 = vsel %vm593, 0, %v4717
  %4719 = vst [vmem:[%s590 + $0x28] sm:$0x1] %v4718
  %v4720 = vld [vmem:[%s590 + $0x30] sm:$0x1]
  %v4721 = vsel %vm593, 0, %v4720
  %4722 = vst [vmem:[%s590 + $0x30] sm:$0x1] %v4721
  %v4723 = vld [vmem:[%s590 + $0x38] sm:$0x1]
  %v4724 = vsel %vm593, 0, %v4723
  %4725 = vst [vmem:[%s590 + $0x38] sm:$0x1] %v4724
  %v4726 = vld [vmem:[%s590 + $0x50] sm:$0x1]
  %v4727 = vsel %vm593, 0, %v4726
  %4728 = vst [vmem:[%s590 + $0x50] sm:$0x1] %v4727
  %v4729 = vld [vmem:[%s590 + $0x58] sm:$0x1]
  %v4730 = vsel %vm593, 0, %v4729
  %4731 = vst [vmem:[%s590 + $0x58] sm:$0x1] %v4730
  %v4732 = vld [vmem:[%s590 + $0x60] sm:$0x1]
  %v4733 = vsel %vm593, 0, %v4732
  %4734 = vst [vmem:[%s590 + $0x60] sm:$0x1] %v4733
  %v4735 = vld [vmem:[%s590 + $0x68] sm:$0x1]
  %v4736 = vsel %vm593, 0, %v4735
  %4737 = vst [vmem:[%s590 + $0x68] sm:$0x1] %v4736
  %v4738 = vld [vmem:[%s590 + $0x70] sm:$0x1]
  %v4739 = vsel %vm593, 0, %v4738
  %4740 = vst [vmem:[%s590 + $0x70] sm:$0x1] %v4739
  %v4741 = vld [vmem:[%s590 + $0x78] sm:$0x1]
  %v4742 = vsel %vm593, 0, %v4741
  %4743 = vst [vmem:[%s590 + $0x78] sm:$0x1] %v4742
  %v4744 = vld [vmem:[%s590 + $0x80] sm:$0x1]
  %v4745 = vsel %vm593, 0, %v4744
  %4746 = vst [vmem:[%s590 + $0x80] sm:$0x1] %v4745
  %v4747 = vld [vmem:[%s590 + $0x88] sm:$0x1]
  %v4748 = vsel %vm593, 0, %v4747
  %4749 = vst [vmem:[%s590 + $0x88] sm:$0x1] %v4748
  %v4750 = vld [vmem:[%s590 + $0x4] sm:$0x1]
  %v4751 = vsel %vm643, 0, %v4750
  %4752 = vst [vmem:[%s590 + $0x4] sm:$0x1] %v4751
  %v4753 = vld [vmem:[%s590 + $0xc] sm:$0x1]
  %v4754 = vsel %vm643, 0, %v4753
  %4755 = vst [vmem:[%s590 + $0xc] sm:$0x1] %v4754
  %v4756 = vld [vmem:[%s590 + $0x14] sm:$0x1]
  %v4757 = vsel %vm643, 0, %v4756
  %4758 = vst [vmem:[%s590 + $0x14] sm:$0x1] %v4757
  %v4759 = vld [vmem:[%s590 + $0x1c] sm:$0x1]
  %v4760 = vsel %vm643, 0, %v4759
  %4761 = vst [vmem:[%s590 + $0x1c] sm:$0x1] %v4760
  %v4762 = vld [vmem:[%s590 + $0x24] sm:$0x1]
  %v4763 = vsel %vm643, 0, %v4762
  %4764 = vst [vmem:[%s590 + $0x24] sm:$0x1] %v4763
  %v4765 = vld [vmem:[%s590 + $0x2c] sm:$0x1]
  %v4766 = vsel %vm643, 0, %v4765
  %4767 = vst [vmem:[%s590 + $0x2c] sm:$0x1] %v4766
  %v4768 = vld [vmem:[%s590 + $0x34] sm:$0x1]
  %v4769 = vsel %vm643, 0, %v4768
  %4770 = vst [vmem:[%s590 + $0x34] sm:$0x1] %v4769
  %v4771 = vld [vmem:[%s590 + $0x3c] sm:$0x1]
  %v4772 = vsel %vm643, 0, %v4771
  %4773 = vst [vmem:[%s590 + $0x3c] sm:$0x1] %v4772
  %v4774 = vld [vmem:[%s590 + $0x54] sm:$0x1]
  %v4775 = vsel %vm643, 0, %v4774
  %4776 = vst [vmem:[%s590 + $0x54] sm:$0x1] %v4775
  %v4777 = vld [vmem:[%s590 + $0x5c] sm:$0x1]
  %v4778 = vsel %vm643, 0, %v4777
  %4779 = vst [vmem:[%s590 + $0x5c] sm:$0x1] %v4778
  %v4780 = vld [vmem:[%s590 + $0x64] sm:$0x1]
  %v4781 = vsel %vm643, 0, %v4780
  %4782 = vst [vmem:[%s590 + $0x64] sm:$0x1] %v4781
  %v4783 = vld [vmem:[%s590 + $0x6c] sm:$0x1]
  %v4784 = vsel %vm643, 0, %v4783
  %4785 = vst [vmem:[%s590 + $0x6c] sm:$0x1] %v4784
  %v4786 = vld [vmem:[%s590 + $0x74] sm:$0x1]
  %v4787 = vsel %vm643, 0, %v4786
  %4788 = vst [vmem:[%s590 + $0x74] sm:$0x1] %v4787
  %v4789 = vld [vmem:[%s590 + $0x7c] sm:$0x1]
  %v4790 = vsel %vm643, 0, %v4789
  %4791 = vst [vmem:[%s590 + $0x7c] sm:$0x1] %v4790
  %v4792 = vld [vmem:[%s590 + $0x84] sm:$0x1]
  %v4793 = vsel %vm643, 0, %v4792
  %4794 = vst [vmem:[%s590 + $0x84] sm:$0x1] %v4793
  %v4795 = vld [vmem:[%s590 + $0x8c] sm:$0x1]
  %v4796 = vsel %vm643, 0, %v4795
  %4797 = vst [vmem:[%s590 + $0x8c] sm:$0x1] %v4796
  %v4814 = vunpack.c.l.b16 %v4678
  %v4815 = vunpack.c.l.b16 %v4679
  %v4816 = vunpack.c.l.b16 %v4680
  %v4817 = vunpack.c.l.b16 %v4681
  %v4818 = vunpack.c.l.b16 %v4682
  %v4819 = vunpack.c.l.b16 %v4683
  %v4820 = vunpack.c.l.b16 %v4684
  %v4821 = vunpack.c.l.b16 %v4685
  %v4822 = vunpack.c.l.b16 %v4686
  %v4823 = vunpack.c.l.b16 %v4687
  %v4824 = vunpack.c.l.b16 %v4688
  %v4825 = vunpack.c.l.b16 %v4689
  %v4826 = vunpack.c.l.b16 %v4690
  %v4827 = vunpack.c.l.b16 %v4691
  %v4828 = vunpack.c.l.b16 %v4692
  %v4829 = vunpack.c.l.b16 %v4693
  %v4830 = vpack.c.b16 %v4814, %v4814
  %v4831 = vpack.c.b16 %v4815, %v4815
  %v4832 = vpack.c.b16 %v4816, %v4816
  %v4833 = vpack.c.b16 %v4817, %v4817
  %v4834 = vpack.c.b16 %v4818, %v4818
  %v4835 = vpack.c.b16 %v4819, %v4819
  %v4836 = vpack.c.b16 %v4820, %v4820
  %v4837 = vpack.c.b16 %v4821, %v4821
  %v4838 = vpack.c.b16 %v4822, %v4822
  %v4839 = vpack.c.b16 %v4823, %v4823
  %v4840 = vpack.c.b16 %v4824, %v4824
  %v4841 = vpack.c.b16 %v4825, %v4825
  %v4842 = vpack.c.b16 %v4826, %v4826
  %v4843 = vpack.c.b16 %v4827, %v4827
  %v4844 = vpack.c.b16 %v4828, %v4828
  %v4845 = vpack.c.b16 %v4829, %v4829
  %v4847 = vshrl.u32 %v4830, 16
  %v4849 = vrot.slane %v4847, 7
  %v4850 = vshll.u32 %v4830, 16
  %v4852 = vor.u32 %v4849, %v4850
  %v4853 = vrot.slane %v4849, 4
  %v4855 = vshrl.u32 %v4831, 16
  %v4857 = vrot.slane %v4855, 7
  %v4858 = vshll.u32 %v4831, 16
  %v4860 = vor.u32 %v4857, %v4858
  %v4861 = vrot.slane %v4857, 4
  %v4863 = vshrl.u32 %v4832, 16
  %v4865 = vrot.slane %v4863, 7
  %v4866 = vshll.u32 %v4832, 16
  %v4868 = vor.u32 %v4865, %v4866
  %v4869 = vrot.slane %v4865, 4
  %v4871 = vshrl.u32 %v4833, 16
  %v4873 = vrot.slane %v4871, 7
  %v4874 = vshll.u32 %v4833, 16
  %v4876 = vor.u32 %v4873, %v4874
  %v4877 = vrot.slane %v4873, 4
  %v4879 = vshrl.u32 %v4834, 16
  %v4881 = vrot.slane %v4879, 7
  %v4882 = vshll.u32 %v4834, 16
  %v4884 = vor.u32 %v4881, %v4882
  %v4885 = vrot.slane %v4881, 4
  %v4887 = vshrl.u32 %v4835, 16
  %v4889 = vrot.slane %v4887, 7
  %v4890 = vshll.u32 %v4835, 16
  %v4892 = vor.u32 %v4889, %v4890
  %v4893 = vrot.slane %v4889, 4
  %v4895 = vshrl.u32 %v4836, 16
  %v4897 = vrot.slane %v4895, 7
  %v4898 = vshll.u32 %v4836, 16
  %v4900 = vor.u32 %v4897, %v4898
  %v4901 = vrot.slane %v4897, 4
  %v4903 = vshrl.u32 %v4837, 16
  %v4905 = vrot.slane %v4903, 7
  %v4906 = vshll.u32 %v4837, 16
  %v4908 = vor.u32 %v4905, %v4906
  %v4909 = vrot.slane %v4905, 4
  %v4911 = vshrl.u32 %v4838, 16
  %v4913 = vrot.slane %v4911, 7
  %v4914 = vshll.u32 %v4838, 16
  %v4916 = vor.u32 %v4913, %v4914
  %v4917 = vrot.slane %v4913, 4
  %v4919 = vshrl.u32 %v4839, 16
  %v4921 = vrot.slane %v4919, 7
  %v4922 = vshll.u32 %v4839, 16
  %v4924 = vor.u32 %v4921, %v4922
  %v4925 = vrot.slane %v4921, 4
  %v4927 = vshrl.u32 %v4840, 16
  %v4929 = vrot.slane %v4927, 7
  %v4930 = vshll.u32 %v4840, 16
  %v4932 = vor.u32 %v4929, %v4930
  %v4933 = vrot.slane %v4929, 4
  %v4935 = vshrl.u32 %v4841, 16
  %v4937 = vrot.slane %v4935, 7
  %v4938 = vshll.u32 %v4841, 16
  %v4940 = vor.u32 %v4937, %v4938
  %v4941 = vrot.slane %v4937, 4
  %v4943 = vshrl.u32 %v4842, 16
  %v4945 = vrot.slane %v4943, 7
  %v4946 = vshll.u32 %v4842, 16
  %v4948 = vor.u32 %v4945, %v4946
  %v4949 = vrot.slane %v4945, 4
  %v4951 = vshrl.u32 %v4843, 16
  %v4953 = vrot.slane %v4951, 7
  %v4954 = vshll.u32 %v4843, 16
  %v4956 = vor.u32 %v4953, %v4954
  %v4957 = vrot.slane %v4953, 4
  %v4959 = vshrl.u32 %v4844, 16
  %v4961 = vrot.slane %v4959, 7
  %v4962 = vshll.u32 %v4844, 16
  %v4964 = vor.u32 %v4961, %v4962
  %v4965 = vrot.slane %v4961, 4
  %v4967 = vshrl.u32 %v4845, 16
  %v4969 = vrot.slane %v4967, 7
  %v4970 = vshll.u32 %v4845, 16
  %v4972 = vor.u32 %v4969, %v4970
  %v4973 = vrot.slane %v4969, 4
  %v5006 = vld [vmem:[%s590] sm:$0xf]
  %v5007 = vsel %vm901, %v4852, %v5006
  %5008 = vst [vmem:[%s590] sm:$0xf] %v5007
  %v5009 = vld [vmem:[%s590 + $0x4] sm:$0x1]
  %v5010 = vsel %vm593, %v4853, %v5009
  %5011 = vst [vmem:[%s590 + $0x4] sm:$0x1] %v5010
  %v5012 = vld [vmem:[%s590 + $0x8] sm:$0xf]
  %v5013 = vsel %vm901, %v4860, %v5012
  %5014 = vst [vmem:[%s590 + $0x8] sm:$0xf] %v5013
  %v5015 = vld [vmem:[%s590 + $0xc] sm:$0x1]
  %v5016 = vsel %vm593, %v4861, %v5015
  %5017 = vst [vmem:[%s590 + $0xc] sm:$0x1] %v5016
  %v5018 = vld [vmem:[%s590 + $0x10] sm:$0xf]
  %v5019 = vsel %vm901, %v4868, %v5018
  %5020 = vst [vmem:[%s590 + $0x10] sm:$0xf] %v5019
  %v5021 = vld [vmem:[%s590 + $0x14] sm:$0x1]
  %v5022 = vsel %vm593, %v4869, %v5021
  %5023 = vst [vmem:[%s590 + $0x14] sm:$0x1] %v5022
  %v5024 = vld [vmem:[%s590 + $0x18] sm:$0xf]
  %v5025 = vsel %vm901, %v4876, %v5024
  %5026 = vst [vmem:[%s590 + $0x18] sm:$0xf] %v5025
  %v5027 = vld [vmem:[%s590 + $0x1c] sm:$0x1]
  %v5028 = vsel %vm593, %v4877, %v5027
  %5029 = vst [vmem:[%s590 + $0x1c] sm:$0x1] %v5028
  %v5030 = vld [vmem:[%s590 + $0x20] sm:$0xf]
  %v5031 = vsel %vm901, %v4884, %v5030
  %5032 = vst [vmem:[%s590 + $0x20] sm:$0xf] %v5031
  %v5033 = vld [vmem:[%s590 + $0x24] sm:$0x1]
  %v5034 = vsel %vm593, %v4885, %v5033
  %5035 = vst [vmem:[%s590 + $0x24] sm:$0x1] %v5034
  %v5036 = vld [vmem:[%s590 + $0x28] sm:$0xf]
  %v5037 = vsel %vm901, %v4892, %v5036
  %5038 = vst [vmem:[%s590 + $0x28] sm:$0xf] %v5037
  %v5039 = vld [vmem:[%s590 + $0x2c] sm:$0x1]
  %v5040 = vsel %vm593, %v4893, %v5039
  %5041 = vst [vmem:[%s590 + $0x2c] sm:$0x1] %v5040
  %v5042 = vld [vmem:[%s590 + $0x30] sm:$0xf]
  %v5043 = vsel %vm901, %v4900, %v5042
  %5044 = vst [vmem:[%s590 + $0x30] sm:$0xf] %v5043
  %v5045 = vld [vmem:[%s590 + $0x34] sm:$0x1]
  %v5046 = vsel %vm593, %v4901, %v5045
  %5047 = vst [vmem:[%s590 + $0x34] sm:$0x1] %v5046
  %v5048 = vld [vmem:[%s590 + $0x38] sm:$0xf]
  %v5049 = vsel %vm901, %v4908, %v5048
  %5050 = vst [vmem:[%s590 + $0x38] sm:$0xf] %v5049
  %v5051 = vld [vmem:[%s590 + $0x3c] sm:$0x1]
  %v5052 = vsel %vm593, %v4909, %v5051
  %5053 = vst [vmem:[%s590 + $0x3c] sm:$0x1] %v5052
  %v5054 = vld [vmem:[%s590 + $0x50] sm:$0xf]
  %v5055 = vsel %vm901, %v4916, %v5054
  %5056 = vst [vmem:[%s590 + $0x50] sm:$0xf] %v5055
  %v5057 = vld [vmem:[%s590 + $0x54] sm:$0x1]
  %v5058 = vsel %vm593, %v4917, %v5057
  %5059 = vst [vmem:[%s590 + $0x54] sm:$0x1] %v5058
  %v5060 = vld [vmem:[%s590 + $0x58] sm:$0xf]
  %v5061 = vsel %vm901, %v4924, %v5060
  %5062 = vst [vmem:[%s590 + $0x58] sm:$0xf] %v5061
  %v5063 = vld [vmem:[%s590 + $0x5c] sm:$0x1]
  %v5064 = vsel %vm593, %v4925, %v5063
  %5065 = vst [vmem:[%s590 + $0x5c] sm:$0x1] %v5064
  %v5066 = vld [vmem:[%s590 + $0x60] sm:$0xf]
  %v5067 = vsel %vm901, %v4932, %v5066
  %5068 = vst [vmem:[%s590 + $0x60] sm:$0xf] %v5067
  %v5069 = vld [vmem:[%s590 + $0x64] sm:$0x1]
  %v5070 = vsel %vm593, %v4933, %v5069
  %5071 = vst [vmem:[%s590 + $0x64] sm:$0x1] %v5070
  %v5072 = vld [vmem:[%s590 + $0x68] sm:$0xf]
  %v5073 = vsel %vm901, %v4940, %v5072
  %5074 = vst [vmem:[%s590 + $0x68] sm:$0xf] %v5073
  %v5075 = vld [vmem:[%s590 + $0x6c] sm:$0x1]
  %v5076 = vsel %vm593, %v4941, %v5075
  %5077 = vst [vmem:[%s590 + $0x6c] sm:$0x1] %v5076
  %v5078 = vld [vmem:[%s590 + $0x70] sm:$0xf]
  %v5079 = vsel %vm901, %v4948, %v5078
  %5080 = vst [vmem:[%s590 + $0x70] sm:$0xf] %v5079
  %v5081 = vld [vmem:[%s590 + $0x74] sm:$0x1]
  %v5082 = vsel %vm593, %v4949, %v5081
  %5083 = vst [vmem:[%s590 + $0x74] sm:$0x1] %v5082
  %v5084 = vld [vmem:[%s590 + $0x78] sm:$0xf]
  %v5085 = vsel %vm901, %v4956, %v5084
  %5086 = vst [vmem:[%s590 + $0x78] sm:$0xf] %v5085
  %v5087 = vld [vmem:[%s590 + $0x7c] sm:$0x1]
  %v5088 = vsel %vm593, %v4957, %v5087
  %5089 = vst [vmem:[%s590 + $0x7c] sm:$0x1] %v5088
  %v5090 = vld [vmem:[%s590 + $0x80] sm:$0xf]
  %v5091 = vsel %vm901, %v4964, %v5090
  %5092 = vst [vmem:[%s590 + $0x80] sm:$0xf] %v5091
  %v5093 = vld [vmem:[%s590 + $0x84] sm:$0x1]
  %v5094 = vsel %vm593, %v4965, %v5093
  %5095 = vst [vmem:[%s590 + $0x84] sm:$0x1] %v5094
  %v5096 = vld [vmem:[%s590 + $0x88] sm:$0xf]
  %v5097 = vsel %vm901, %v4972, %v5096
  %5098 = vst [vmem:[%s590 + $0x88] sm:$0xf] %v5097
  %v5099 = vld [vmem:[%s590 + $0x8c] sm:$0x1]
  %v5100 = vsel %vm593, %v4973, %v5099
  %5101 = vst [vmem:[%s590 + $0x8c] sm:$0x1] %v5100
  %v5102 = vld [vmem:[%s15] sm:$0x1]
  %v5103 = vld [vmem:[#allocation2] sm:$0xf]
  %v5104 = vld [vmem:[#allocation2 + $0x8] sm:$0xf]
  %v5105 = vld [vmem:[#allocation2 + $0x10] sm:$0xf]
  %v5106 = vld [vmem:[#allocation2 + $0x18] sm:$0xf]
  %v5107 = vld [vmem:[#allocation2 + $0x20] sm:$0xf]
  %v5108 = vld [vmem:[#allocation2 + $0x28] sm:$0xf]
  %v5109 = vld [vmem:[#allocation2 + $0x30] sm:$0xf]
  %v5110 = vld [vmem:[#allocation2 + $0x38] sm:$0xf]
  %v5111 = vld [vmem:[#allocation2 + $0x50] sm:$0xf]
  %v5112 = vld [vmem:[#allocation2 + $0x58] sm:$0xf]
  %v5113 = vld [vmem:[#allocation2 + $0x60] sm:$0xf]
  %v5114 = vld [vmem:[#allocation2 + $0x68] sm:$0xf]
  %v5115 = vld [vmem:[#allocation2 + $0x70] sm:$0xf]
  %v5116 = vld [vmem:[#allocation2 + $0x78] sm:$0xf]
  %v5117 = vld [vmem:[#allocation2 + $0x80] sm:$0xf]
  %v5118 = vld [vmem:[#allocation2 + $0x88] sm:$0xf]
  %v5119 = vld [vmem:[%s14] sm:$0xf]
  %v5120 = vld [vmem:[%s14 + $0x4] sm:$0xf]
  %v5121 = vld [vmem:[%s14 + $0x8] sm:$0xf]
  %v5122 = vld [vmem:[%s14 + $0xc] sm:$0xf]
  %v5123 = vld [vmem:[%s14 + $0x10] sm:$0xf]
  %v5124 = vld [vmem:[%s14 + $0x14] sm:$0xf]
  %v5125 = vld [vmem:[%s14 + $0x18] sm:$0xf]
  %v5126 = vld [vmem:[%s14 + $0x1c] sm:$0xf]
  %v5127 = vld [vmem:[%s14 + $0x20] sm:$0xf]
  %v5128 = vld [vmem:[%s14 + $0x24] sm:$0xf]
  %v5129 = vld [vmem:[%s14 + $0x28] sm:$0xf]
  %v5130 = vld [vmem:[%s14 + $0x2c] sm:$0xf]
  %v5131 = vld [vmem:[%s14 + $0x30] sm:$0xf]
  %v5132 = vld [vmem:[%s14 + $0x34] sm:$0xf]
  %v5133 = vld [vmem:[%s14 + $0x38] sm:$0xf]
  %v5134 = vld [vmem:[%s14 + $0x3c] sm:$0xf]
  %v5135 = vld [vmem:[#allocation2 + $0x4] sm:$0x1]
  %v5136 = vld [vmem:[#allocation2 + $0xc] sm:$0x1]
  %v5137 = vld [vmem:[#allocation2 + $0x14] sm:$0x1]
  %v5138 = vld [vmem:[#allocation2 + $0x1c] sm:$0x1]
  %v5139 = vld [vmem:[#allocation2 + $0x24] sm:$0x1]
  %v5140 = vld [vmem:[#allocation2 + $0x2c] sm:$0x1]
  %v5141 = vld [vmem:[#allocation2 + $0x34] sm:$0x1]
  %v5142 = vld [vmem:[#allocation2 + $0x3c] sm:$0x1]
  %v5143 = vld [vmem:[#allocation2 + $0x54] sm:$0x1]
  %v5144 = vld [vmem:[#allocation2 + $0x5c] sm:$0x1]
  %v5145 = vld [vmem:[#allocation2 + $0x64] sm:$0x1]
  %v5146 = vld [vmem:[#allocation2 + $0x6c] sm:$0x1]
  %v5147 = vld [vmem:[#allocation2 + $0x74] sm:$0x1]
  %v5148 = vld [vmem:[#allocation2 + $0x7c] sm:$0x1]
  %v5149 = vld [vmem:[#allocation2 + $0x84] sm:$0x1]
  %v5150 = vld [vmem:[#allocation2 + $0x8c] sm:$0x1]
  %v5152 = vshrl.u32 %v5103, 16
  %v5154 = vrot.slane %v5152, 4
  %v5155 = vshll.u32 %v5103, 16
  %v5157 = vrot.slane %v5155, 5
  %v5158 = vor.u32 %v5154, %v5157
  %v5159 = vrot.slane %v5158, 4
  %v5161 = vshll.u32 %v5135, 16
  %v5163 = vrot.slane %v5161, 5
  %v5164 = vsel %vm1049, %v5159, %v5163
  %v5166 = vshrl.u32 %v5104, 16
  %v5168 = vrot.slane %v5166, 4
  %v5169 = vshll.u32 %v5104, 16
  %v5171 = vrot.slane %v5169, 5
  %v5172 = vor.u32 %v5168, %v5171
  %v5173 = vrot.slane %v5172, 4
  %v5175 = vshll.u32 %v5136, 16
  %v5177 = vrot.slane %v5175, 5
  %v5178 = vsel %vm1049, %v5173, %v5177
  %v5180 = vshrl.u32 %v5105, 16
  %v5182 = vrot.slane %v5180, 4
  %v5183 = vshll.u32 %v5105, 16
  %v5185 = vrot.slane %v5183, 5
  %v5186 = vor.u32 %v5182, %v5185
  %v5187 = vrot.slane %v5186, 4
  %v5189 = vshll.u32 %v5137, 16
  %v5191 = vrot.slane %v5189, 5
  %v5192 = vsel %vm1049, %v5187, %v5191
  %v5194 = vshrl.u32 %v5106, 16
  %v5196 = vrot.slane %v5194, 4
  %v5197 = vshll.u32 %v5106, 16
  %v5199 = vrot.slane %v5197, 5
  %v5200 = vor.u32 %v5196, %v5199
  %v5201 = vrot.slane %v5200, 4
  %v5203 = vshll.u32 %v5138, 16
  %v5205 = vrot.slane %v5203, 5
  %v5206 = vsel %vm1049, %v5201, %v5205
  %v5208 = vshrl.u32 %v5107, 16
  %v5210 = vrot.slane %v5208, 4
  %v5211 = vshll.u32 %v5107, 16
  %v5213 = vrot.slane %v5211, 5
  %v5214 = vor.u32 %v5210, %v5213
  %v5215 = vrot.slane %v5214, 4
  %v5217 = vshll.u32 %v5139, 16
  %v5219 = vrot.slane %v5217, 5
  %v5220 = vsel %vm1049, %v5215, %v5219
  %v5222 = vshrl.u32 %v5108, 16
  %v5224 = vrot.slane %v5222, 4
  %v5225 = vshll.u32 %v5108, 16
  %v5227 = vrot.slane %v5225, 5
  %v5228 = vor.u32 %v5224, %v5227
  %v5229 = vrot.slane %v5228, 4
  %v5231 = vshll.u32 %v5140, 16
  %v5233 = vrot.slane %v5231, 5
  %v5234 = vsel %vm1049, %v5229, %v5233
  %v5236 = vshrl.u32 %v5109, 16
  %v5238 = vrot.slane %v5236, 4
  %v5239 = vshll.u32 %v5109, 16
  %v5241 = vrot.slane %v5239, 5
  %v5242 = vor.u32 %v5238, %v5241
  %v5243 = vrot.slane %v5242, 4
  %v5245 = vshll.u32 %v5141, 16
  %v5247 = vrot.slane %v5245, 5
  %v5248 = vsel %vm1049, %v5243, %v5247
  %v5250 = vshrl.u32 %v5110, 16
  %v5252 = vrot.slane %v5250, 4
  %v5253 = vshll.u32 %v5110, 16
  %v5255 = vrot.slane %v5253, 5
  %v5256 = vor.u32 %v5252, %v5255
  %v5257 = vrot.slane %v5256, 4
  %v5259 = vshll.u32 %v5142, 16
  %v5261 = vrot.slane %v5259, 5
  %v5262 = vsel %vm1049, %v5257, %v5261
  %v5264 = vshrl.u32 %v5111, 16
  %v5266 = vrot.slane %v5264, 4
  %v5267 = vshll.u32 %v5111, 16
  %v5269 = vrot.slane %v5267, 5
  %v5270 = vor.u32 %v5266, %v5269
  %v5271 = vrot.slane %v5270, 4
  %v5273 = vshll.u32 %v5143, 16
  %v5275 = vrot.slane %v5273, 5
  %v5276 = vsel %vm1049, %v5271, %v5275
  %v5278 = vshrl.u32 %v5112, 16
  %v5280 = vrot.slane %v5278, 4
  %v5281 = vshll.u32 %v5112, 16
  %v5283 = vrot.slane %v5281, 5
  %v5284 = vor.u32 %v5280, %v5283
  %v5285 = vrot.slane %v5284, 4
  %v5287 = vshll.u32 %v5144, 16
  %v5289 = vrot.slane %v5287, 5
  %v5290 = vsel %vm1049, %v5285, %v5289
  %v5292 = vshrl.u32 %v5113, 16
  %v5294 = vrot.slane %v5292, 4
  %v5295 = vshll.u32 %v5113, 16
  %v5297 = vrot.slane %v5295, 5
  %v5298 = vor.u32 %v5294, %v5297
  %v5299 = vrot.slane %v5298, 4
  %v5301 = vshll.u32 %v5145, 16
  %v5303 = vrot.slane %v5301, 5
  %v5304 = vsel %vm1049, %v5299, %v5303
  %v5306 = vshrl.u32 %v5114, 16
  %v5308 = vrot.slane %v5306, 4
  %v5309 = vshll.u32 %v5114, 16
  %v5311 = vrot.slane %v5309, 5
  %v5312 = vor.u32 %v5308, %v5311
  %v5313 = vrot.slane %v5312, 4
  %v5315 = vshll.u32 %v5146, 16
  %v5317 = vrot.slane %v5315, 5
  %v5318 = vsel %vm1049, %v5313, %v5317
  %v5320 = vshrl.u32 %v5115, 16
  %v5322 = vrot.slane %v5320, 4
  %v5323 = vshll.u32 %v5115, 16
  %v5325 = vrot.slane %v5323, 5
  %v5326 = vor.u32 %v5322, %v5325
  %v5327 = vrot.slane %v5326, 4
  %v5329 = vshll.u32 %v5147, 16
  %v5331 = vrot.slane %v5329, 5
  %v5332 = vsel %vm1049, %v5327, %v5331
  %v5334 = vshrl.u32 %v5116, 16
  %v5336 = vrot.slane %v5334, 4
  %v5337 = vshll.u32 %v5116, 16
  %v5339 = vrot.slane %v5337, 5
  %v5340 = vor.u32 %v5336, %v5339
  %v5341 = vrot.slane %v5340, 4
  %v5343 = vshll.u32 %v5148, 16
  %v5345 = vrot.slane %v5343, 5
  %v5346 = vsel %vm1049, %v5341, %v5345
  %v5348 = vshrl.u32 %v5117, 16
  %v5350 = vrot.slane %v5348, 4
  %v5351 = vshll.u32 %v5117, 16
  %v5353 = vrot.slane %v5351, 5
  %v5354 = vor.u32 %v5350, %v5353
  %v5355 = vrot.slane %v5354, 4
  %v5357 = vshll.u32 %v5149, 16
  %v5359 = vrot.slane %v5357, 5
  %v5360 = vsel %vm1049, %v5355, %v5359
  %v5362 = vshrl.u32 %v5118, 16
  %v5364 = vrot.slane %v5362, 4
  %v5365 = vshll.u32 %v5118, 16
  %v5367 = vrot.slane %v5365, 5
  %v5368 = vor.u32 %v5364, %v5367
  %v5369 = vrot.slane %v5368, 4
  %v5371 = vshll.u32 %v5150, 16
  %v5373 = vrot.slane %v5371, 5
  %v5374 = vsel %vm1049, %v5369, %v5373
  %s5375 = scalar_lea.vmem %s14, 64
  %v5376 = vld [vmem:[%s5375] sm:$0xf]
  %v5377 = vld [vmem:[%s5375 + $0x4] sm:$0xf]
  %v5378 = vld [vmem:[%s5375 + $0x8] sm:$0xf]
  %v5379 = vld [vmem:[%s5375 + $0xc] sm:$0xf]
  %v5380 = vld [vmem:[%s5375 + $0x10] sm:$0xf]
  %v5381 = vld [vmem:[%s5375 + $0x14] sm:$0xf]
  %v5382 = vld [vmem:[%s5375 + $0x18] sm:$0xf]
  %v5383 = vld [vmem:[%s5375 + $0x1c] sm:$0xf]
  %v5384 = vld [vmem:[%s5375 + $0x20] sm:$0xf]
  %v5385 = vld [vmem:[%s5375 + $0x24] sm:$0xf]
  %v5386 = vld [vmem:[%s5375 + $0x28] sm:$0xf]
  %v5387 = vld [vmem:[%s5375 + $0x2c] sm:$0xf]
  %v5388 = vld [vmem:[%s5375 + $0x30] sm:$0xf]
  %v5389 = vld [vmem:[%s5375 + $0x34] sm:$0xf]
  %v5390 = vld [vmem:[%s5375 + $0x38] sm:$0xf]
  %v5391 = vld [vmem:[%s5375 + $0x3c] sm:$0xf]
  %v5392 = vunpack.c.l.b16 %v5164
  %v5393 = vunpack.c.l.b16 %v5178
  %v5394 = vunpack.c.l.b16 %v5192
  %v5395 = vunpack.c.l.b16 %v5206
  %v5396 = vunpack.c.l.b16 %v5220
  %v5397 = vunpack.c.l.b16 %v5234
  %v5398 = vunpack.c.l.b16 %v5248
  %v5399 = vunpack.c.l.b16 %v5262
  %v5400 = vunpack.c.l.b16 %v5276
  %v5401 = vunpack.c.l.b16 %v5290
  %v5402 = vunpack.c.l.b16 %v5304
  %v5403 = vunpack.c.l.b16 %v5318
  %v5404 = vunpack.c.l.b16 %v5332
  %v5405 = vunpack.c.l.b16 %v5346
  %v5406 = vunpack.c.l.b16 %v5360
  %v5407 = vunpack.c.l.b16 %v5374
  %v5408 = vpack.c.b16 %v5393, %v5392
  %v5409 = vpack.c.b16 %v5395, %v5394
  %v5410 = vpack.c.b16 %v5397, %v5396
  %v5411 = vpack.c.b16 %v5399, %v5398
  %v5412 = vpack.c.b16 %v5401, %v5400
  %v5413 = vpack.c.b16 %v5403, %v5402
  %v5414 = vpack.c.b16 %v5405, %v5404
  %v5415 = vpack.c.b16 %v5407, %v5406
  %v5440 = vunpack.c.l.b16 %v5376
  %v5441 = vunpack.c.l.b16 %v5377
  %v5442 = vunpack.c.l.b16 %v5378
  %v5443 = vunpack.c.l.b16 %v5379
  %v5444 = vunpack.c.l.b16 %v5380
  %v5445 = vunpack.c.l.b16 %v5381
  %v5446 = vunpack.c.l.b16 %v5382
  %v5447 = vunpack.c.l.b16 %v5383
  %v5448 = vunpack.c.l.b16 %v5384
  %v5449 = vunpack.c.l.b16 %v5385
  %v5450 = vunpack.c.l.b16 %v5386
  %v5451 = vunpack.c.l.b16 %v5387
  %v5452 = vunpack.c.l.b16 %v5388
  %v5453 = vunpack.c.l.b16 %v5389
  %v5454 = vunpack.c.l.b16 %v5390
  %v5455 = vunpack.c.l.b16 %v5391
  %v5456 = vpack.c.b16 %v5441, %v5440
  %v5457 = vpack.c.b16 %v5443, %v5442
  %v5458 = vpack.c.b16 %v5445, %v5444
  %v5459 = vpack.c.b16 %v5447, %v5446
  %v5460 = vpack.c.b16 %v5449, %v5448
  %v5461 = vpack.c.b16 %v5451, %v5450
  %v5462 = vpack.c.b16 %v5453, %v5452
  %v5463 = vpack.c.b16 %v5455, %v5454
  %5472 = vmatprep.subr.bf16.mxu0 0
  %5473 = vmatpush1.bf16.msra.mxu0 %v5456
  %5474 = vmatprep.subr.bf16.mxu0 0
  %5475 = vmatpush1.bf16.msra.mxu0 %v5457
  %5476 = vmatprep.subr.bf16.mxu0 0
  %5477 = vmatpush1.bf16.msra.mxu0 %v5458
  %5478 = vmatprep.subr.bf16.mxu0 0
  %5479 = vmatpush1.bf16.msra.mxu0 %v5459
  %5480 = vmatprep.subr.bf16.mxu0 0
  %5481 = vmatpush1.bf16.msra.mxu0 %v5460
  %5482 = vmatprep.subr.bf16.mxu0 0
  %5483 = vmatpush1.bf16.msra.mxu0 %v5461
  %5484 = vmatprep.subr.bf16.mxu0 0
  %5485 = vmatpush1.bf16.msra.mxu0 %v5462
  %5486 = vmatprep.subr.bf16.mxu0 0
  %5487 = vmatpush1.bf16.msra.mxu0 %v5463
  %5488 = vmatprep.subr.bf16.mxu0 0
  %5489 = vmatpush1.bf16.msra.mxu0 0
  %5490 = vmatprep.subr.bf16.mxu0 0
  %5491 = vmatpush1.bf16.msra.mxu0 0
  %5492 = vmatprep.subr.bf16.mxu0 0
  %5493 = vmatpush1.bf16.msra.mxu0 0
  %5494 = vmatprep.subr.bf16.mxu0 0
  %5495 = vmatpush1.bf16.msra.mxu0 0
  %5496 = vmatprep.subr.bf16.mxu0 0
  %5497 = vmatpush1.bf16.msra.mxu0 0
  %5498 = vmatprep.subr.bf16.mxu0 0
  %5499 = vmatpush1.bf16.msra.mxu0 0
  %5500 = vmatprep.subr.bf16.mxu0 0
  %5501 = vmatpush1.bf16.msra.mxu0 0
  %5502 = vmatprep.subr.bf16.mxu0 0
  %5503 = vmatpush1.bf16.msra.mxu0 0
  %5504 = vmatprep.mubr.bf16.mxu0 0
  %5505 = vmatmul.mubr.bf16.gmra.mrb[0].mxu0 %v5408
  %v5506 = vpop.f32.mrb[0].mxu0
  %v5507 = vadd.f32 0.0, %v5506
  %v5508 = vpop.f32.mrb[0].mxu0
  %v5509 = vpop.f32.mrb[0].mxu0
  %v5510 = vadd.f32 0.0, %v5509
  %v5511 = vpop.f32.mrb[0].mxu0
  %5512 = vmatprep.mubr.bf16.mxu0 0
  %5513 = vmatmul.mubr.bf16.gmra.mrb[0].mxu0 %v5409
  %v5514 = vpop.f32.mrb[0].mxu0
  %v5515 = vadd.f32 0.0, %v5514
  %v5516 = vpop.f32.mrb[0].mxu0
  %v5517 = vpop.f32.mrb[0].mxu0
  %v5518 = vadd.f32 0.0, %v5517
  %v5519 = vpop.f32.mrb[0].mxu0
  %5520 = vmatprep.mubr.bf16.mxu0 0
  %5521 = vmatmul.mubr.bf16.gmra.mrb[0].mxu0 %v5410
  %v5522 = vpop.f32.mrb[0].mxu0
  %v5523 = vadd.f32 0.0, %v5522
  %v5524 = vpop.f32.mrb[0].mxu0
  %v5525 = vpop.f32.mrb[0].mxu0
  %v5526 = vadd.f32 0.0, %v5525
  %v5527 = vpop.f32.mrb[0].mxu0
  %5528 = vmatprep.mubr.bf16.mxu0 0
  %5529 = vmatmul.mubr.bf16.gmra.mrb[0].mxu0 %v5411
  %v5530 = vpop.f32.mrb[0].mxu0
  %v5531 = vadd.f32 0.0, %v5530
  %v5532 = vpop.f32.mrb[0].mxu0
  %v5533 = vpop.f32.mrb[0].mxu0
  %v5534 = vadd.f32 0.0, %v5533
  %v5535 = vpop.f32.mrb[0].mxu0
  %5536 = vmatprep.mubr.bf16.mxu0 0
  %5537 = vmatmul.mubr.bf16.gmra.mrb[0].mxu0 %v5412
  %v5538 = vpop.f32.mrb[0].mxu0
  %v5539 = vadd.f32 0.0, %v5538
  %v5540 = vpop.f32.mrb[0].mxu0
  %v5541 = vpop.f32.mrb[0].mxu0
  %v5542 = vadd.f32 0.0, %v5541
  %v5543 = vpop.f32.mrb[0].mxu0
  %5544 = vmatprep.mubr.bf16.mxu0 0
  %5545 = vmatmul.mubr.bf16.gmra.mrb[0].mxu0 %v5413
  %v5546 = vpop.f32.mrb[0].mxu0
  %v5547 = vadd.f32 0.0, %v5546
  %v5548 = vpop.f32.mrb[0].mxu0
  %v5549 = vpop.f32.mrb[0].mxu0
  %v5550 = vadd.f32 0.0, %v5549
  %v5551 = vpop.f32.mrb[0].mxu0
  %5552 = vmatprep.mubr.bf16.mxu0 0
  %5553 = vmatmul.mubr.bf16.gmra.mrb[0].mxu0 %v5414
  %v5554 = vpop.f32.mrb[0].mxu0
  %v5555 = vadd.f32 0.0, %v5554
  %v5556 = vpop.f32.mrb[0].mxu0
  %v5557 = vpop.f32.mrb[0].mxu0
  %v5558 = vadd.f32 0.0, %v5557
  %v5559 = vpop.f32.mrb[0].mxu0
  %5560 = vmatprep.mubr.bf16.mxu0 0
  %5561 = vmatmul.mubr.bf16.gmra.mrb[0].mxu0 %v5415
  %v5562 = vpop.f32.mrb[0].mxu0
  %v5563 = vadd.f32 0.0, %v5562
  %v5564 = vpop.f32.mrb[0].mxu0
  %v5565 = vpop.f32.mrb[0].mxu0
  %v5566 = vadd.f32 0.0, %v5565
  %v5567 = vpop.f32.mrb[0].mxu0
  %5568 = vdwg.mxu0
  %v5585 = vunpack.c.l.b16 %v5103
  %v5586 = vunpack.c.l.b16 %v5104
  %v5587 = vunpack.c.l.b16 %v5105
  %v5588 = vunpack.c.l.b16 %v5106
  %v5589 = vunpack.c.l.b16 %v5107
  %v5590 = vunpack.c.l.b16 %v5108
  %v5591 = vunpack.c.l.b16 %v5109
  %v5592 = vunpack.c.l.b16 %v5110
  %v5593 = vunpack.c.l.b16 %v5111
  %v5594 = vunpack.c.l.b16 %v5112
  %v5595 = vunpack.c.l.b16 %v5113
  %v5596 = vunpack.c.l.b16 %v5114
  %v5597 = vunpack.c.l.b16 %v5115
  %v5598 = vunpack.c.l.b16 %v5116
  %v5599 = vunpack.c.l.b16 %v5117
  %v5600 = vunpack.c.l.b16 %v5118
  %v5601 = vpack.c.b16 %v5586, %v5585
  %v5602 = vpack.c.b16 %v5588, %v5587
  %v5603 = vpack.c.b16 %v5590, %v5589
  %v5604 = vpack.c.b16 %v5592, %v5591
  %v5605 = vpack.c.b16 %v5594, %v5593
  %v5606 = vpack.c.b16 %v5596, %v5595
  %v5607 = vpack.c.b16 %v5598, %v5597
  %v5608 = vpack.c.b16 %v5600, %v5599
  %v5633 = vunpack.c.l.b16 %v5119
  %v5634 = vunpack.c.l.b16 %v5120
  %v5635 = vunpack.c.l.b16 %v5121
  %v5636 = vunpack.c.l.b16 %v5122
  %v5637 = vunpack.c.l.b16 %v5123
  %v5638 = vunpack.c.l.b16 %v5124
  %v5639 = vunpack.c.l.b16 %v5125
  %v5640 = vunpack.c.l.b16 %v5126
  %v5641 = vunpack.c.l.b16 %v5127
  %v5642 = vunpack.c.l.b16 %v5128
  %v5643 = vunpack.c.l.b16 %v5129
  %v5644 = vunpack.c.l.b16 %v5130
  %v5645 = vunpack.c.l.b16 %v5131
  %v5646 = vunpack.c.l.b16 %v5132
  %v5647 = vunpack.c.l.b16 %v5133
  %v5648 = vunpack.c.l.b16 %v5134
  %v5649 = vpack.c.b16 %v5634, %v5633
  %v5650 = vpack.c.b16 %v5636, %v5635
  %v5651 = vpack.c.b16 %v5638, %v5637
  %v5652 = vpack.c.b16 %v5640, %v5639
  %v5653 = vpack.c.b16 %v5642, %v5641
  %v5654 = vpack.c.b16 %v5644, %v5643
  %v5655 = vpack.c.b16 %v5646, %v5645
  %v5656 = vpack.c.b16 %v5648, %v5647
  %5665 = vmatprep.subr.bf16.mxu0 0
  %5666 = vmatpush1.bf16.msra.mxu0 %v5649
  %5667 = vmatprep.subr.bf16.mxu0 0
  %5668 = vmatpush1.bf16.msra.mxu0 %v5650
  %5669 = vmatprep.subr.bf16.mxu0 0
  %5670 = vmatpush1.bf16.msra.mxu0 %v5651
  %5671 = vmatprep.subr.bf16.mxu0 0
  %5672 = vmatpush1.bf16.msra.mxu0 %v5652
  %5673 = vmatprep.subr.bf16.mxu0 0
  %5674 = vmatpush1.bf16.msra.mxu0 %v5653
  %5675 = vmatprep.subr.bf16.mxu0 0
  %5676 = vmatpush1.bf16.msra.mxu0 %v5654
  %5677 = vmatprep.subr.bf16.mxu0 0
  %5678 = vmatpush1.bf16.msra.mxu0 %v5655
  %5679 = vmatprep.subr.bf16.mxu0 0
  %5680 = vmatpush1.bf16.msra.mxu0 %v5656
  %5681 = vmatprep.subr.bf16.mxu0 0
  %5682 = vmatpush1.bf16.msra.mxu0 0
  %5683 = vmatprep.subr.bf16.mxu0 0
  %5684 = vmatpush1.bf16.msra.mxu0 0
  %5685 = vmatprep.subr.bf16.mxu0 0
  %5686 = vmatpush1.bf16.msra.mxu0 0
  %5687 = vmatprep.subr.bf16.mxu0 0
  %5688 = vmatpush1.bf16.msra.mxu0 0
  %5689 = vmatprep.subr.bf16.mxu0 0
  %5690 = vmatpush1.bf16.msra.mxu0 0
  %5691 = vmatprep.subr.bf16.mxu0 0
  %5692 = vmatpush1.bf16.msra.mxu0 0
  %5693 = vmatprep.subr.bf16.mxu0 0
  %5694 = vmatpush1.bf16.msra.mxu0 0
  %5695 = vmatprep.subr.bf16.mxu0 0
  %5696 = vmatpush1.bf16.msra.mxu0 0
  %5697 = vmatprep.mubr.bf16.mxu0 0
  %5698 = vmatmul.mubr.bf16.gmra.mrb[0].mxu0 %v5601
  %v5699 = vpop.f32.mrb[0].mxu0
  %v5700 = vadd.f32 %v5507, %v5699
  %v5701 = vpop.f32.mrb[0].mxu0
  %v5702 = vpop.f32.mrb[0].mxu0
  %v5703 = vadd.f32 %v5510, %v5702
  %v5704 = vpop.f32.mrb[0].mxu0
  %5705 = vmatprep.mubr.bf16.mxu0 0
  %5706 = vmatmul.mubr.bf16.gmra.mrb[0].mxu0 %v5602
  %v5707 = vpop.f32.mrb[0].mxu0
  %v5708 = vadd.f32 %v5515, %v5707
  %v5709 = vpop.f32.mrb[0].mxu0
  %v5710 = vpop.f32.mrb[0].mxu0
  %v5711 = vadd.f32 %v5518, %v5710
  %v5712 = vpop.f32.mrb[0].mxu0
  %5713 = vmatprep.mubr.bf16.mxu0 0
  %5714 = vmatmul.mubr.bf16.gmra.mrb[0].mxu0 %v5603
  %v5715 = vpop.f32.mrb[0].mxu0
  %v5716 = vadd.f32 %v5523, %v5715
  %v5717 = vpop.f32.mrb[0].mxu0
  %v5718 = vpop.f32.mrb[0].mxu0
  %v5719 = vadd.f32 %v5526, %v5718
  %v5720 = vpop.f32.mrb[0].mxu0
  %5721 = vmatprep.mubr.bf16.mxu0 0
  %5722 = vmatmul.mubr.bf16.gmra.mrb[0].mxu0 %v5604
  %v5723 = vpop.f32.mrb[0].mxu0
  %v5724 = vadd.f32 %v5531, %v5723
  %v5725 = vpop.f32.mrb[0].mxu0
  %v5726 = vpop.f32.mrb[0].mxu0
  %v5727 = vadd.f32 %v5534, %v5726
  %v5728 = vpop.f32.mrb[0].mxu0
  %5729 = vmatprep.mubr.bf16.mxu0 0
  %5730 = vmatmul.mubr.bf16.gmra.mrb[0].mxu0 %v5605
  %v5731 = vpop.f32.mrb[0].mxu0
  %v5732 = vadd.f32 %v5539, %v5731
  %v5733 = vpop.f32.mrb[0].mxu0
  %v5734 = vpop.f32.mrb[0].mxu0
  %v5735 = vadd.f32 %v5542, %v5734
  %v5736 = vpop.f32.mrb[0].mxu0
  %5737 = vmatprep.mubr.bf16.mxu0 0
  %5738 = vmatmul.mubr.bf16.gmra.mrb[0].mxu0 %v5606
  %v5739 = vpop.f32.mrb[0].mxu0
  %v5740 = vadd.f32 %v5547, %v5739
  %v5741 = vpop.f32.mrb[0].mxu0
  %v5742 = vpop.f32.mrb[0].mxu0
  %v5743 = vadd.f32 %v5550, %v5742
  %v5744 = vpop.f32.mrb[0].mxu0
  %5745 = vmatprep.mubr.bf16.mxu0 0
  %5746 = vmatmul.mubr.bf16.gmra.mrb[0].mxu0 %v5607
  %v5747 = vpop.f32.mrb[0].mxu0
  %v5748 = vadd.f32 %v5555, %v5747
  %v5749 = vpop.f32.mrb[0].mxu0
  %v5750 = vpop.f32.mrb[0].mxu0
  %v5751 = vadd.f32 %v5558, %v5750
  %v5752 = vpop.f32.mrb[0].mxu0
  %5753 = vmatprep.mubr.bf16.mxu0 0
  %5754 = vmatmul.mubr.bf16.gmra.mrb[0].mxu0 %v5608
  %v5755 = vpop.f32.mrb[0].mxu0
  %v5756 = vadd.f32 %v5563, %v5755
  %v5757 = vpop.f32.mrb[0].mxu0
  %v5758 = vpop.f32.mrb[0].mxu0
  %v5759 = vadd.f32 %v5566, %v5758
  %v5760 = vpop.f32.mrb[0].mxu0
  %5761 = vdwg.mxu0
  %v5762 = vld [vmem:[#allocation2] sm:$0xe]
  %v5763 = vld [vmem:[#allocation2 + $0x8] sm:$0xe]
  %v5764 = vld [vmem:[#allocation2 + $0x10] sm:$0xe]
  %v5765 = vld [vmem:[#allocation2 + $0x18] sm:$0xe]
  %v5766 = vld [vmem:[#allocation2 + $0x20] sm:$0xe]
  %v5767 = vld [vmem:[#allocation2 + $0x28] sm:$0xe]
  %v5768 = vld [vmem:[#allocation2 + $0x30] sm:$0xe]
  %v5769 = vld [vmem:[#allocation2 + $0x38] sm:$0xe]
  %v5770 = vld [vmem:[#allocation2 + $0x50] sm:$0xe]
  %v5771 = vld [vmem:[#allocation2 + $0x58] sm:$0xe]
  %v5772 = vld [vmem:[#allocation2 + $0x60] sm:$0xe]
  %v5773 = vld [vmem:[#allocation2 + $0x68] sm:$0xe]
  %v5774 = vld [vmem:[#allocation2 + $0x70] sm:$0xe]
  %v5775 = vld [vmem:[#allocation2 + $0x78] sm:$0xe]
  %v5776 = vld [vmem:[#allocation2 + $0x80] sm:$0xe]
  %v5777 = vld [vmem:[#allocation2 + $0x88] sm:$0xe]
  %v5810 = vrot.slane %v5762, 5
  %v5811 = vrot.slane %v5810, 4
  %v5812 = vrot.slane %v5135, 5
  %v5813 = vsel %vm1711, %v5811, %v5812
  %v5814 = vrot.slane %v5763, 5
  %v5815 = vrot.slane %v5814, 4
  %v5816 = vrot.slane %v5136, 5
  %v5817 = vsel %vm1711, %v5815, %v5816
  %v5818 = vrot.slane %v5764, 5
  %v5819 = vrot.slane %v5818, 4
  %v5820 = vrot.slane %v5137, 5
  %v5821 = vsel %vm1711, %v5819, %v5820
  %v5822 = vrot.slane %v5765, 5
  %v5823 = vrot.slane %v5822, 4
  %v5824 = vrot.slane %v5138, 5
  %v5825 = vsel %vm1711, %v5823, %v5824
  %v5826 = vrot.slane %v5766, 5
  %v5827 = vrot.slane %v5826, 4
  %v5828 = vrot.slane %v5139, 5
  %v5829 = vsel %vm1711, %v5827, %v5828
  %v5830 = vrot.slane %v5767, 5
  %v5831 = vrot.slane %v5830, 4
  %v5832 = vrot.slane %v5140, 5
  %v5833 = vsel %vm1711, %v5831, %v5832
  %v5834 = vrot.slane %v5768, 5
  %v5835 = vrot.slane %v5834, 4
  %v5836 = vrot.slane %v5141, 5
  %v5837 = vsel %vm1711, %v5835, %v5836
  %v5838 = vrot.slane %v5769, 5
  %v5839 = vrot.slane %v5838, 4
  %v5840 = vrot.slane %v5142, 5
  %v5841 = vsel %vm1711, %v5839, %v5840
  %v5842 = vrot.slane %v5770, 5
  %v5843 = vrot.slane %v5842, 4
  %v5844 = vrot.slane %v5143, 5
  %v5845 = vsel %vm1711, %v5843, %v5844
  %v5846 = vrot.slane %v5771, 5
  %v5847 = vrot.slane %v5846, 4
  %v5848 = vrot.slane %v5144, 5
  %v5849 = vsel %vm1711, %v5847, %v5848
  %v5850 = vrot.slane %v5772, 5
  %v5851 = vrot.slane %v5850, 4
  %v5852 = vrot.slane %v5145, 5
  %v5853 = vsel %vm1711, %v5851, %v5852
  %v5854 = vrot.slane %v5773, 5
  %v5855 = vrot.slane %v5854, 4
  %v5856 = vrot.slane %v5146, 5
  %v5857 = vsel %vm1711, %v5855, %v5856
  %v5858 = vrot.slane %v5774, 5
  %v5859 = vrot.slane %v5858, 4
  %v5860 = vrot.slane %v5147, 5
  %v5861 = vsel %vm1711, %v5859, %v5860
  %v5862 = vrot.slane %v5775, 5
  %v5863 = vrot.slane %v5862, 4
  %v5864 = vrot.slane %v5148, 5
  %v5865 = vsel %vm1711, %v5863, %v5864
  %v5866 = vrot.slane %v5776, 5
  %v5867 = vrot.slane %v5866, 4
  %v5868 = vrot.slane %v5149, 5
  %v5869 = vsel %vm1711, %v5867, %v5868
  %v5870 = vrot.slane %v5777, 5
  %v5871 = vrot.slane %v5870, 4
  %v5872 = vrot.slane %v5150, 5
  %v5873 = vsel %vm1711, %v5871, %v5872
  %s5874 = scalar_lea.vmem %s14, 128
  %v5875 = vld [vmem:[%s5874] sm:$0xf]
  %v5876 = vld [vmem:[%s5874 + $0x4] sm:$0xf]
  %v5877 = vld [vmem:[%s5874 + $0x8] sm:$0xf]
  %v5878 = vld [vmem:[%s5874 + $0xc] sm:$0xf]
  %v5879 = vld [vmem:[%s5874 + $0x10] sm:$0xf]
  %v5880 = vld [vmem:[%s5874 + $0x14] sm:$0xf]
  %v5881 = vld [vmem:[%s5874 + $0x18] sm:$0xf]
  %v5882 = vld [vmem:[%s5874 + $0x1c] sm:$0xf]
  %v5883 = vld [vmem:[%s5874 + $0x20] sm:$0xf]
  %v5884 = vld [vmem:[%s5874 + $0x24] sm:$0xf]
  %v5885 = vld [vmem:[%s5874 + $0x28] sm:$0xf]
  %v5886 = vld [vmem:[%s5874 + $0x2c] sm:$0xf]
  %v5887 = vld [vmem:[%s5874 + $0x30] sm:$0xf]
  %v5888 = vld [vmem:[%s5874 + $0x34] sm:$0xf]
  %v5889 = vld [vmem:[%s5874 + $0x38] sm:$0xf]
  %v5890 = vld [vmem:[%s5874 + $0x3c] sm:$0xf]
  %v5891 = vunpack.c.l.b16 %v5813
  %v5892 = vunpack.c.l.b16 %v5817
  %v5893 = vunpack.c.l.b16 %v5821
  %v5894 = vunpack.c.l.b16 %v5825
  %v5895 = vunpack.c.l.b16 %v5829
  %v5896 = vunpack.c.l.b16 %v5833
  %v5897 = vunpack.c.l.b16 %v5837
  %v5898 = vunpack.c.l.b16 %v5841
  %v5899 = vunpack.c.l.b16 %v5845
  %v5900 = vunpack.c.l.b16 %v5849
  %v5901 = vunpack.c.l.b16 %v5853
  %v5902 = vunpack.c.l.b16 %v5857
  %v5903 = vunpack.c.l.b16 %v5861
  %v5904 = vunpack.c.l.b16 %v5865
  %v5905 = vunpack.c.l.b16 %v5869
  %v5906 = vunpack.c.l.b16 %v5873
  %v5907 = vpack.c.b16 %v5892, %v5891
  %v5908 = vpack.c.b16 %v5894, %v5893
  %v5909 = vpack.c.b16 %v5896, %v5895
  %v5910 = vpack.c.b16 %v5898, %v5897
  %v5911 = vpack.c.b16 %v5900, %v5899
  %v5912 = vpack.c.b16 %v5902, %v5901
  %v5913 = vpack.c.b16 %v5904, %v5903
  %v5914 = vpack.c.b16 %v5906, %v5905
  %v5939 = vunpack.c.l.b16 %v5875
  %v5940 = vunpack.c.l.b16 %v5876
  %v5941 = vunpack.c.l.b16 %v5877
  %v5942 = vunpack.c.l.b16 %v5878
  %v5943 = vunpack.c.l.b16 %v5879
  %v5944 = vunpack.c.l.b16 %v5880
  %v5945 = vunpack.c.l.b16 %v5881
  %v5946 = vunpack.c.l.b16 %v5882
  %v5947 = vunpack.c.l.b16 %v5883
  %v5948 = vunpack.c.l.b16 %v5884
  %v5949 = vunpack.c.l.b16 %v5885
  %v5950 = vunpack.c.l.b16 %v5886
  %v5951 = vunpack.c.l.b16 %v5887
  %v5952 = vunpack.c.l.b16 %v5888
  %v5953 = vunpack.c.l.b16 %v5889
  %v5954 = vunpack.c.l.b16 %v5890
  %v5955 = vpack.c.b16 %v5940, %v5939
  %v5956 = vpack.c.b16 %v5942, %v5941
  %v5957 = vpack.c.b16 %v5944, %v5943
  %v5958 = vpack.c.b16 %v5946, %v5945
  %v5959 = vpack.c.b16 %v5948, %v5947
  %v5960 = vpack.c.b16 %v5950, %v5949
  %v5961 = vpack.c.b16 %v5952, %v5951
  %v5962 = vpack.c.b16 %v5954, %v5953
  %5971 = vmatprep.subr.bf16.mxu0 0
  %5972 = vmatpush1.bf16.msra.mxu0 %v5955
  %5973 = vmatprep.subr.bf16.mxu0 0
  %5974 = vmatpush1.bf16.msra.mxu0 %v5956
  %5975 = vmatprep.subr.bf16.mxu0 0
  %5976 = vmatpush1.bf16.msra.mxu0 %v5957
  %5977 = vmatprep.subr.bf16.mxu0 0
  %5978 = vmatpush1.bf16.msra.mxu0 %v5958
  %5979 = vmatprep.subr.bf16.mxu0 0
  %5980 = vmatpush1.bf16.msra.mxu0 %v5959
  %5981 = vmatprep.subr.bf16.mxu0 0
  %5982 = vmatpush1.bf16.msra.mxu0 %v5960
  %5983 = vmatprep.subr.bf16.mxu0 0
  %5984 = vmatpush1.bf16.msra.mxu0 %v5961
  %5985 = vmatprep.subr.bf16.mxu0 0
  %5986 = vmatpush1.bf16.msra.mxu0 %v5962
  %5987 = vmatprep.subr.bf16.mxu0 0
  %5988 = vmatpush1.bf16.msra.mxu0 0
  %5989 = vmatprep.subr.bf16.mxu0 0
  %5990 = vmatpush1.bf16.msra.mxu0 0
  %5991 = vmatprep.subr.bf16.mxu0 0
  %5992 = vmatpush1.bf16.msra.mxu0 0
  %5993 = vmatprep.subr.bf16.mxu0 0
  %5994 = vmatpush1.bf16.msra.mxu0 0
  %5995 = vmatprep.subr.bf16.mxu0 0
  %5996 = vmatpush1.bf16.msra.mxu0 0
  %5997 = vmatprep.subr.bf16.mxu0 0
  %5998 = vmatpush1.bf16.msra.mxu0 0
  %5999 = vmatprep.subr.bf16.mxu0 0
  %6000 = vmatpush1.bf16.msra.mxu0 0
  %6001 = vmatprep.subr.bf16.mxu0 0
  %6002 = vmatpush1.bf16.msra.mxu0 0
  %6003 = vmatprep.mubr.bf16.mxu0 0
  %6004 = vmatmul.mubr.bf16.gmra.mrb[0].mxu0 %v5907
  %v6005 = vpop.f32.mrb[0].mxu0
  %v6006 = vadd.f32 0.0, %v6005
  %v6007 = vpop.f32.mrb[0].mxu0
  %v6008 = vpop.f32.mrb[0].mxu0
  %v6009 = vadd.f32 0.0, %v6008
  %v6010 = vpop.f32.mrb[0].mxu0
  %6011 = vmatprep.mubr.bf16.mxu0 0
  %6012 = vmatmul.mubr.bf16.gmra.mrb[0].mxu0 %v5908
  %v6013 = vpop.f32.mrb[0].mxu0
  %v6014 = vadd.f32 0.0, %v6013
  %v6015 = vpop.f32.mrb[0].mxu0
  %v6016 = vpop.f32.mrb[0].mxu0
  %v6017 = vadd.f32 0.0, %v6016
  %v6018 = vpop.f32.mrb[0].mxu0
  %6019 = vmatprep.mubr.bf16.mxu0 0
  %6020 = vmatmul.mubr.bf16.gmra.mrb[0].mxu0 %v5909
  %v6021 = vpop.f32.mrb[0].mxu0
  %v6022 = vadd.f32 0.0, %v6021
  %v6023 = vpop.f32.mrb[0].mxu0
  %v6024 = vpop.f32.mrb[0].mxu0
  %v6025 = vadd.f32 0.0, %v6024
  %v6026 = vpop.f32.mrb[0].mxu0
  %6027 = vmatprep.mubr.bf16.mxu0 0
  %6028 = vmatmul.mubr.bf16.gmra.mrb[0].mxu0 %v5910
  %v6029 = vpop.f32.mrb[0].mxu0
  %v6030 = vadd.f32 0.0, %v6029
  %v6031 = vpop.f32.mrb[0].mxu0
  %v6032 = vpop.f32.mrb[0].mxu0
  %v6033 = vadd.f32 0.0, %v6032
  %v6034 = vpop.f32.mrb[0].mxu0
  %6035 = vmatprep.mubr.bf16.mxu0 0
  %6036 = vmatmul.mubr.bf16.gmra.mrb[0].mxu0 %v5911
  %v6037 = vpop.f32.mrb[0].mxu0
  %v6038 = vadd.f32 0.0, %v6037
  %v6039 = vpop.f32.mrb[0].mxu0
  %v6040 = vpop.f32.mrb[0].mxu0
  %v6041 = vadd.f32 0.0, %v6040
  %v6042 = vpop.f32.mrb[0].mxu0
  %6043 = vmatprep.mubr.bf16.mxu0 0
  %6044 = vmatmul.mubr.bf16.gmra.mrb[0].mxu0 %v5912
  %v6045 = vpop.f32.mrb[0].mxu0
  %v6046 = vadd.f32 0.0, %v6045
  %v6047 = vpop.f32.mrb[0].mxu0
  %v6048 = vpop.f32.mrb[0].mxu0
  %v6049 = vadd.f32 0.0, %v6048
  %v6050 = vpop.f32.mrb[0].mxu0
  %6051 = vmatprep.mubr.bf16.mxu0 0
  %6052 = vmatmul.mubr.bf16.gmra.mrb[0].mxu0 %v5913
  %v6053 = vpop.f32.mrb[0].mxu0
  %v6054 = vadd.f32 0.0, %v6053
  %v6055 = vpop.f32.mrb[0].mxu0
  %v6056 = vpop.f32.mrb[0].mxu0
  %v6057 = vadd.f32 0.0, %v6056
  %v6058 = vpop.f32.mrb[0].mxu0
  %6059 = vmatprep.mubr.bf16.mxu0 0
  %6060 = vmatmul.mubr.bf16.gmra.mrb[0].mxu0 %v5914
  %v6061 = vpop.f32.mrb[0].mxu0
  %v6062 = vadd.f32 0.0, %v6061
  %v6063 = vpop.f32.mrb[0].mxu0
  %v6064 = vpop.f32.mrb[0].mxu0
  %v6065 = vadd.f32 0.0, %v6064
  %v6066 = vpop.f32.mrb[0].mxu0
  %6067 = vdwg.mxu0
  %v6068 = vadd.f32 %v5700, %v6006
  %v6069 = vadd.f32 %v5703, %v6009
  %v6070 = vadd.f32 %v5708, %v6014
  %v6071 = vadd.f32 %v5711, %v6017
  %v6072 = vadd.f32 %v5716, %v6022
  %v6073 = vadd.f32 %v5719, %v6025
  %v6074 = vadd.f32 %v5724, %v6030
  %v6075 = vadd.f32 %v5727, %v6033
  %v6076 = vadd.f32 %v5732, %v6038
  %v6077 = vadd.f32 %v5735, %v6041
  %v6078 = vadd.f32 %v5740, %v6046
  %v6079 = vadd.f32 %v5743, %v6049
  %v6080 = vadd.f32 %v5748, %v6054
  %v6081 = vadd.f32 %v5751, %v6057
  %v6082 = vadd.f32 %v5756, %v6062
  %v6083 = vadd.f32 %v5759, %v6065
  %v6084 = vld [vmem:[%s590] sm:$0xf]
  %v6085 = vld [vmem:[%s590 + $0x8] sm:$0xf]
  %v6086 = vld [vmem:[%s590 + $0x10] sm:$0xf]
  %v6087 = vld [vmem:[%s590 + $0x18] sm:$0xf]
  %v6088 = vld [vmem:[%s590 + $0x20] sm:$0xf]
  %v6089 = vld [vmem:[%s590 + $0x28] sm:$0xf]
  %v6090 = vld [vmem:[%s590 + $0x30] sm:$0xf]
  %v6091 = vld [vmem:[%s590 + $0x38] sm:$0xf]
  %v6092 = vld [vmem:[%s590 + $0x50] sm:$0xf]
  %v6093 = vld [vmem:[%s590 + $0x58] sm:$0xf]
  %v6094 = vld [vmem:[%s590 + $0x60] sm:$0xf]
  %v6095 = vld [vmem:[%s590 + $0x68] sm:$0xf]
  %v6096 = vld [vmem:[%s590 + $0x70] sm:$0xf]
  %v6097 = vld [vmem:[%s590 + $0x78] sm:$0xf]
  %v6098 = vld [vmem:[%s590 + $0x80] sm:$0xf]
  %v6099 = vld [vmem:[%s590 + $0x88] sm:$0xf]
  %s6100 = scalar_lea.vmem %s14, 192
  %v6101 = vld [vmem:[%s6100] sm:$0xf]
  %v6102 = vld [vmem:[%s6100 + $0x4] sm:$0xf]
  %v6103 = vld [vmem:[%s6100 + $0x8] sm:$0xf]
  %v6104 = vld [vmem:[%s6100 + $0xc] sm:$0xf]
  %v6105 = vld [vmem:[%s6100 + $0x10] sm:$0xf]
  %v6106 = vld [vmem:[%s6100 + $0x14] sm:$0xf]
  %v6107 = vld [vmem:[%s6100 + $0x18] sm:$0xf]
  %v6108 = vld [vmem:[%s6100 + $0x1c] sm:$0xf]
  %v6109 = vld [vmem:[%s6100 + $0x20] sm:$0xf]
  %v6110 = vld [vmem:[%s6100 + $0x24] sm:$0xf]
  %v6111 = vld [vmem:[%s6100 + $0x28] sm:$0xf]
  %v6112 = vld [vmem:[%s6100 + $0x2c] sm:$0xf]
  %v6113 = vld [vmem:[%s6100 + $0x30] sm:$0xf]
  %v6114 = vld [vmem:[%s6100 + $0x34] sm:$0xf]
  %v6115 = vld [vmem:[%s6100 + $0x38] sm:$0xf]
  %v6116 = vld [vmem:[%s6100 + $0x3c] sm:$0xf]
  %v6133 = vunpack.c.l.b16 %v6084
  %v6134 = vunpack.c.l.b16 %v6085
  %v6135 = vunpack.c.l.b16 %v6086
  %v6136 = vunpack.c.l.b16 %v6087
  %v6137 = vunpack.c.l.b16 %v6088
  %v6138 = vunpack.c.l.b16 %v6089
  %v6139 = vunpack.c.l.b16 %v6090
  %v6140 = vunpack.c.l.b16 %v6091
  %v6141 = vunpack.c.l.b16 %v6092
  %v6142 = vunpack.c.l.b16 %v6093
  %v6143 = vunpack.c.l.b16 %v6094
  %v6144 = vunpack.c.l.b16 %v6095
  %v6145 = vunpack.c.l.b16 %v6096
  %v6146 = vunpack.c.l.b16 %v6097
  %v6147 = vunpack.c.l.b16 %v6098
  %v6148 = vunpack.c.l.b16 %v6099
  %v6149 = vpack.c.b16 %v6134, %v6133
  %v6150 = vpack.c.b16 %v6136, %v6135
  %v6151 = vpack.c.b16 %v6138, %v6137
  %v6152 = vpack.c.b16 %v6140, %v6139
  %v6153 = vpack.c.b16 %v6142, %v6141
  %v6154 = vpack.c.b16 %v6144, %v6143
  %v6155 = vpack.c.b16 %v6146, %v6145
  %v6156 = vpack.c.b16 %v6148, %v6147
  %v6181 = vunpack.c.l.b16 %v6101
  %v6182 = vunpack.c.l.b16 %v6102
  %v6183 = vunpack.c.l.b16 %v6103
  %v6184 = vunpack.c.l.b16 %v6104
  %v6185 = vunpack.c.l.b16 %v6105
  %v6186 = vunpack.c.l.b16 %v6106
  %v6187 = vunpack.c.l.b16 %v6107
  %v6188 = vunpack.c.l.b16 %v6108
  %v6189 = vunpack.c.l.b16 %v6109
  %v6190 = vunpack.c.l.b16 %v6110
  %v6191 = vunpack.c.l.b16 %v6111
  %v6192 = vunpack.c.l.b16 %v6112
  %v6193 = vunpack.c.l.b16 %v6113
  %v6194 = vunpack.c.l.b16 %v6114
  %v6195 = vunpack.c.l.b16 %v6115
  %v6196 = vunpack.c.l.b16 %v6116
  %v6197 = vpack.c.b16 %v6182, %v6181
  %v6198 = vpack.c.b16 %v6184, %v6183
  %v6199 = vpack.c.b16 %v6186, %v6185
  %v6200 = vpack.c.b16 %v6188, %v6187
  %v6201 = vpack.c.b16 %v6190, %v6189
  %v6202 = vpack.c.b16 %v6192, %v6191
  %v6203 = vpack.c.b16 %v6194, %v6193
  %v6204 = vpack.c.b16 %v6196, %v6195
  %6213 = vmatprep.subr.bf16.mxu0 0
  %6214 = vmatpush1.bf16.msra.mxu0 %v6197
  %6215 = vmatprep.subr.bf16.mxu0 0
  %6216 = vmatpush1.bf16.msra.mxu0 %v6198
  %6217 = vmatprep.subr.bf16.mxu0 0
  %6218 = vmatpush1.bf16.msra.mxu0 %v6199
  %6219 = vmatprep.subr.bf16.mxu0 0
  %6220 = vmatpush1.bf16.msra.mxu0 %v6200
  %6221 = vmatprep.subr.bf16.mxu0 0
  %6222 = vmatpush1.bf16.msra.mxu0 %v6201
  %6223 = vmatprep.subr.bf16.mxu0 0
  %6224 = vmatpush1.bf16.msra.mxu0 %v6202
  %6225 = vmatprep.subr.bf16.mxu0 0
  %6226 = vmatpush1.bf16.msra.mxu0 %v6203
  %6227 = vmatprep.subr.bf16.mxu0 0
  %6228 = vmatpush1.bf16.msra.mxu0 %v6204
  %6229 = vmatprep.subr.bf16.mxu0 0
  %6230 = vmatpush1.bf16.msra.mxu0 0
  %6231 = vmatprep.subr.bf16.mxu0 0
  %6232 = vmatpush1.bf16.msra.mxu0 0
  %6233 = vmatprep.subr.bf16.mxu0 0
  %6234 = vmatpush1.bf16.msra.mxu0 0
  %6235 = vmatprep.subr.bf16.mxu0 0
  %6236 = vmatpush1.bf16.msra.mxu0 0
  %6237 = vmatprep.subr.bf16.mxu0 0
  %6238 = vmatpush1.bf16.msra.mxu0 0
  %6239 = vmatprep.subr.bf16.mxu0 0
  %6240 = vmatpush1.bf16.msra.mxu0 0
  %6241 = vmatprep.subr.bf16.mxu0 0
  %6242 = vmatpush1.bf16.msra.mxu0 0
  %6243 = vmatprep.subr.bf16.mxu0 0
  %6244 = vmatpush1.bf16.msra.mxu0 0
  %6245 = vmatprep.mubr.bf16.mxu0 0
  %6246 = vmatmul.mubr.bf16.gmra.mrb[0].mxu0 %v6149
  %v6247 = vpop.f32.mrb[0].mxu0
  %v6248 = vadd.f32 0.0, %v6247
  %v6249 = vpop.f32.mrb[0].mxu0
  %v6250 = vpop.f32.mrb[0].mxu0
  %v6251 = vadd.f32 0.0, %v6250
  %v6252 = vpop.f32.mrb[0].mxu0
  %6253 = vmatprep.mubr.bf16.mxu0 0
  %6254 = vmatmul.mubr.bf16.gmra.mrb[0].mxu0 %v6150
  %v6255 = vpop.f32.mrb[0].mxu0
  %v6256 = vadd.f32 0.0, %v6255
  %v6257 = vpop.f32.mrb[0].mxu0
  %v6258 = vpop.f32.mrb[0].mxu0
  %v6259 = vadd.f32 0.0, %v6258
  %v6260 = vpop.f32.mrb[0].mxu0
  %6261 = vmatprep.mubr.bf16.mxu0 0
  %6262 = vmatmul.mubr.bf16.gmra.mrb[0].mxu0 %v6151
  %v6263 = vpop.f32.mrb[0].mxu0
  %v6264 = vadd.f32 0.0, %v6263
  %v6265 = vpop.f32.mrb[0].mxu0
  %v6266 = vpop.f32.mrb[0].mxu0
  %v6267 = vadd.f32 0.0, %v6266
  %v6268 = vpop.f32.mrb[0].mxu0
  %6269 = vmatprep.mubr.bf16.mxu0 0
  %6270 = vmatmul.mubr.bf16.gmra.mrb[0].mxu0 %v6152
  %v6271 = vpop.f32.mrb[0].mxu0
  %v6272 = vadd.f32 0.0, %v6271
  %v6273 = vpop.f32.mrb[0].mxu0
  %v6274 = vpop.f32.mrb[0].mxu0
  %v6275 = vadd.f32 0.0, %v6274
  %v6276 = vpop.f32.mrb[0].mxu0
  %6277 = vmatprep.mubr.bf16.mxu0 0
  %6278 = vmatmul.mubr.bf16.gmra.mrb[0].mxu0 %v6153
  %v6279 = vpop.f32.mrb[0].mxu0
  %v6280 = vadd.f32 0.0, %v6279
  %v6281 = vpop.f32.mrb[0].mxu0
  %v6282 = vpop.f32.mrb[0].mxu0
  %v6283 = vadd.f32 0.0, %v6282
  %v6284 = vpop.f32.mrb[0].mxu0
  %6285 = vmatprep.mubr.bf16.mxu0 0
  %6286 = vmatmul.mubr.bf16.gmra.mrb[0].mxu0 %v6154
  %v6287 = vpop.f32.mrb[0].mxu0
  %v6288 = vadd.f32 0.0, %v6287
  %v6289 = vpop.f32.mrb[0].mxu0
  %v6290 = vpop.f32.mrb[0].mxu0
  %v6291 = vadd.f32 0.0, %v6290
  %v6292 = vpop.f32.mrb[0].mxu0
  %6293 = vmatprep.mubr.bf16.mxu0 0
  %6294 = vmatmul.mubr.bf16.gmra.mrb[0].mxu0 %v6155
  %v6295 = vpop.f32.mrb[0].mxu0
  %v6296 = vadd.f32 0.0, %v6295
  %v6297 = vpop.f32.mrb[0].mxu0
  %v6298 = vpop.f32.mrb[0].mxu0
  %v6299 = vadd.f32 0.0, %v6298
  %v6300 = vpop.f32.mrb[0].mxu0
  %6301 = vmatprep.mubr.bf16.mxu0 0
  %6302 = vmatmul.mubr.bf16.gmra.mrb[0].mxu0 %v6156
  %v6303 = vpop.f32.mrb[0].mxu0
  %v6304 = vadd.f32 0.0, %v6303
  %v6305 = vpop.f32.mrb[0].mxu0
  %v6306 = vpop.f32.mrb[0].mxu0
  %v6307 = vadd.f32 0.0, %v6306
  %v6308 = vpop.f32.mrb[0].mxu0
  %6309 = vdwg.mxu0
  %v6310 = vadd.f32 %v6068, %v6248
  %v6311 = vadd.f32 %v6069, %v6251
  %v6312 = vadd.f32 %v6070, %v6256
  %v6313 = vadd.f32 %v6071, %v6259
  %v6314 = vadd.f32 %v6072, %v6264
  %v6315 = vadd.f32 %v6073, %v6267
  %v6316 = vadd.f32 %v6074, %v6272
  %v6317 = vadd.f32 %v6075, %v6275
  %v6318 = vadd.f32 %v6076, %v6280
  %v6319 = vadd.f32 %v6077, %v6283
  %v6320 = vadd.f32 %v6078, %v6288
  %v6321 = vadd.f32 %v6079, %v6291
  %v6322 = vadd.f32 %v6080, %v6296
  %v6323 = vadd.f32 %v6081, %v6299
  %v6324 = vadd.f32 %v6082, %v6304
  %v6325 = vadd.f32 %v6083, %v6307
  %v6326 = vld [vmem:[%s590] sm:$0xf]
  %v6327 = vld [vmem:[%s590 + $0x4] sm:$0x1]
  %v6328 = vld [vmem:[%s590 + $0x8] sm:$0xf]
  %v6329 = vld [vmem:[%s590 + $0xc] sm:$0x1]
  %v6330 = vld [vmem:[%s590 + $0x10] sm:$0xf]
  %v6331 = vld [vmem:[%s590 + $0x14] sm:$0x1]
  %v6332 = vld [vmem:[%s590 + $0x18] sm:$0xf]
  %v6333 = vld [vmem:[%s590 + $0x1c] sm:$0x1]
  %v6334 = vld [vmem:[%s590 + $0x20] sm:$0xf]
  %v6335 = vld [vmem:[%s590 + $0x24] sm:$0x1]
  %v6336 = vld [vmem:[%s590 + $0x28] sm:$0xf]
  %v6337 = vld [vmem:[%s590 + $0x2c] sm:$0x1]
  %v6338 = vld [vmem:[%s590 + $0x30] sm:$0xf]
  %v6339 = vld [vmem:[%s590 + $0x34] sm:$0x1]
  %v6340 = vld [vmem:[%s590 + $0x38] sm:$0xf]
  %v6341 = vld [vmem:[%s590 + $0x3c] sm:$0x1]
  %v6342 = vld [vmem:[%s590 + $0x50] sm:$0xf]
  %v6343 = vld [vmem:[%s590 + $0x54] sm:$0x1]
  %v6344 = vld [vmem:[%s590 + $0x58] sm:$0xf]
  %v6345 = vld [vmem:[%s590 + $0x5c] sm:$0x1]
  %v6346 = vld [vmem:[%s590 + $0x60] sm:$0xf]
  %v6347 = vld [vmem:[%s590 + $0x64] sm:$0x1]
  %v6348 = vld [vmem:[%s590 + $0x68] sm:$0xf]
  %v6349 = vld [vmem:[%s590 + $0x6c] sm:$0x1]
  %v6350 = vld [vmem:[%s590 + $0x70] sm:$0xf]
  %v6351 = vld [vmem:[%s590 + $0x74] sm:$0x1]
  %v6352 = vld [vmem:[%s590 + $0x78] sm:$0xf]
  %v6353 = vld [vmem:[%s590 + $0x7c] sm:$0x1]
  %v6354 = vld [vmem:[%s590 + $0x80] sm:$0xf]
  %v6355 = vld [vmem:[%s590 + $0x84] sm:$0x1]
  %v6356 = vld [vmem:[%s590 + $0x88] sm:$0xf]
  %v6357 = vld [vmem:[%s590 + $0x8c] sm:$0x1]
  %v6359 = vshrl.u32 %v6326, 16
  %v6361 = vrot.slane %v6359, 4
  %v6362 = vshll.u32 %v6326, 16
  %v6364 = vrot.slane %v6362, 5
  %v6365 = vor.u32 %v6361, %v6364
  %v6366 = vrot.slane %v6365, 4
  %v6368 = vshll.u32 %v6327, 16
  %v6370 = vrot.slane %v6368, 5
  %v6371 = vsel %vm1049, %v6366, %v6370
  %v6373 = vshrl.u32 %v6328, 16
  %v6375 = vrot.slane %v6373, 4
  %v6376 = vshll.u32 %v6328, 16
  %v6378 = vrot.slane %v6376, 5
  %v6379 = vor.u32 %v6375, %v6378
  %v6380 = vrot.slane %v6379, 4
  %v6382 = vshll.u32 %v6329, 16
  %v6384 = vrot.slane %v6382, 5
  %v6385 = vsel %vm1049, %v6380, %v6384
  %v6387 = vshrl.u32 %v6330, 16
  %v6389 = vrot.slane %v6387, 4
  %v6390 = vshll.u32 %v6330, 16
  %v6392 = vrot.slane %v6390, 5
  %v6393 = vor.u32 %v6389, %v6392
  %v6394 = vrot.slane %v6393, 4
  %v6396 = vshll.u32 %v6331, 16
  %v6398 = vrot.slane %v6396, 5
  %v6399 = vsel %vm1049, %v6394, %v6398
  %v6401 = vshrl.u32 %v6332, 16
  %v6403 = vrot.slane %v6401, 4
  %v6404 = vshll.u32 %v6332, 16
  %v6406 = vrot.slane %v6404, 5
  %v6407 = vor.u32 %v6403, %v6406
  %v6408 = vrot.slane %v6407, 4
  %v6410 = vshll.u32 %v6333, 16
  %v6412 = vrot.slane %v6410, 5
  %v6413 = vsel %vm1049, %v6408, %v6412
  %v6415 = vshrl.u32 %v6334, 16
  %v6417 = vrot.slane %v6415, 4
  %v6418 = vshll.u32 %v6334, 16
  %v6420 = vrot.slane %v6418, 5
  %v6421 = vor.u32 %v6417, %v6420
  %v6422 = vrot.slane %v6421, 4
  %v6424 = vshll.u32 %v6335, 16
  %v6426 = vrot.slane %v6424, 5
  %v6427 = vsel %vm1049, %v6422, %v6426
  %v6429 = vshrl.u32 %v6336, 16
  %v6431 = vrot.slane %v6429, 4
  %v6432 = vshll.u32 %v6336, 16
  %v6434 = vrot.slane %v6432, 5
  %v6435 = vor.u32 %v6431, %v6434
  %v6436 = vrot.slane %v6435, 4
  %v6438 = vshll.u32 %v6337, 16
  %v6440 = vrot.slane %v6438, 5
  %v6441 = vsel %vm1049, %v6436, %v6440
  %v6443 = vshrl.u32 %v6338, 16
  %v6445 = vrot.slane %v6443, 4
  %v6446 = vshll.u32 %v6338, 16
  %v6448 = vrot.slane %v6446, 5
  %v6449 = vor.u32 %v6445, %v6448
  %v6450 = vrot.slane %v6449, 4
  %v6452 = vshll.u32 %v6339, 16
  %v6454 = vrot.slane %v6452, 5
  %v6455 = vsel %vm1049, %v6450, %v6454
  %v6457 = vshrl.u32 %v6340, 16
  %v6459 = vrot.slane %v6457, 4
  %v6460 = vshll.u32 %v6340, 16
  %v6462 = vrot.slane %v6460, 5
  %v6463 = vor.u32 %v6459, %v6462
  %v6464 = vrot.slane %v6463, 4
  %v6466 = vshll.u32 %v6341, 16
  %v6468 = vrot.slane %v6466, 5
  %v6469 = vsel %vm1049, %v6464, %v6468
  %v6471 = vshrl.u32 %v6342, 16
  %v6473 = vrot.slane %v6471, 4
  %v6474 = vshll.u32 %v6342, 16
  %v6476 = vrot.slane %v6474, 5
  %v6477 = vor.u32 %v6473, %v6476
  %v6478 = vrot.slane %v6477, 4
  %v6480 = vshll.u32 %v6343, 16
  %v6482 = vrot.slane %v6480, 5
  %v6483 = vsel %vm1049, %v6478, %v6482
  %v6485 = vshrl.u32 %v6344, 16
  %v6487 = vrot.slane %v6485, 4
  %v6488 = vshll.u32 %v6344, 16
  %v6490 = vrot.slane %v6488, 5
  %v6491 = vor.u32 %v6487, %v6490
  %v6492 = vrot.slane %v6491, 4
  %v6494 = vshll.u32 %v6345, 16
  %v6496 = vrot.slane %v6494, 5
  %v6497 = vsel %vm1049, %v6492, %v6496
  %v6499 = vshrl.u32 %v6346, 16
  %v6501 = vrot.slane %v6499, 4
  %v6502 = vshll.u32 %v6346, 16
  %v6504 = vrot.slane %v6502, 5
  %v6505 = vor.u32 %v6501, %v6504
  %v6506 = vrot.slane %v6505, 4
  %v6508 = vshll.u32 %v6347, 16
  %v6510 = vrot.slane %v6508, 5
  %v6511 = vsel %vm1049, %v6506, %v6510
  %v6513 = vshrl.u32 %v6348, 16
  %v6515 = vrot.slane %v6513, 4
  %v6516 = vshll.u32 %v6348, 16
  %v6518 = vrot.slane %v6516, 5
  %v6519 = vor.u32 %v6515, %v6518
  %v6520 = vrot.slane %v6519, 4
  %v6522 = vshll.u32 %v6349, 16
  %v6524 = vrot.slane %v6522, 5
  %v6525 = vsel %vm1049, %v6520, %v6524
  %v6527 = vshrl.u32 %v6350, 16
  %v6529 = vrot.slane %v6527, 4
  %v6530 = vshll.u32 %v6350, 16
  %v6532 = vrot.slane %v6530, 5
  %v6533 = vor.u32 %v6529, %v6532
  %v6534 = vrot.slane %v6533, 4
  %v6536 = vshll.u32 %v6351, 16
  %v6538 = vrot.slane %v6536, 5
  %v6539 = vsel %vm1049, %v6534, %v6538
  %v6541 = vshrl.u32 %v6352, 16
  %v6543 = vrot.slane %v6541, 4
  %v6544 = vshll.u32 %v6352, 16
  %v6546 = vrot.slane %v6544, 5
  %v6547 = vor.u32 %v6543, %v6546
  %v6548 = vrot.slane %v6547, 4
  %v6550 = vshll.u32 %v6353, 16
  %v6552 = vrot.slane %v6550, 5
  %v6553 = vsel %vm1049, %v6548, %v6552
  %v6555 = vshrl.u32 %v6354, 16
  %v6557 = vrot.slane %v6555, 4
  %v6558 = vshll.u32 %v6354, 16
  %v6560 = vrot.slane %v6558, 5
  %v6561 = vor.u32 %v6557, %v6560
  %v6562 = vrot.slane %v6561, 4
  %v6564 = vshll.u32 %v6355, 16
  %v6566 = vrot.slane %v6564, 5
  %v6567 = vsel %vm1049, %v6562, %v6566
  %v6569 = vshrl.u32 %v6356, 16
  %v6571 = vrot.slane %v6569, 4
  %v6572 = vshll.u32 %v6356, 16
  %v6574 = vrot.slane %v6572, 5
  %v6575 = vor.u32 %v6571, %v6574
  %v6576 = vrot.slane %v6575, 4
  %v6578 = vshll.u32 %v6357, 16
  %v6580 = vrot.slane %v6578, 5
  %v6581 = vsel %vm1049, %v6576, %v6580
  %s6582 = scalar_lea.vmem %s14, 256
  %v6583 = vld [vmem:[%s6582] sm:$0xf]
  %v6584 = vld [vmem:[%s6582 + $0x4] sm:$0xf]
  %v6585 = vld [vmem:[%s6582 + $0x8] sm:$0xf]
  %v6586 = vld [vmem:[%s6582 + $0xc] sm:$0xf]
  %v6587 = vld [vmem:[%s6582 + $0x10] sm:$0xf]
  %v6588 = vld [vmem:[%s6582 + $0x14] sm:$0xf]
  %v6589 = vld [vmem:[%s6582 + $0x18] sm:$0xf]
  %v6590 = vld [vmem:[%s6582 + $0x1c] sm:$0xf]
  %v6591 = vld [vmem:[%s6582 + $0x20] sm:$0xf]
  %v6592 = vld [vmem:[%s6582 + $0x24] sm:$0xf]
  %v6593 = vld [vmem:[%s6582 + $0x28] sm:$0xf]
  %v6594 = vld [vmem:[%s6582 + $0x2c] sm:$0xf]
  %v6595 = vld [vmem:[%s6582 + $0x30] sm:$0xf]
  %v6596 = vld [vmem:[%s6582 + $0x34] sm:$0xf]
  %v6597 = vld [vmem:[%s6582 + $0x38] sm:$0xf]
  %v6598 = vld [vmem:[%s6582 + $0x3c] sm:$0xf]
  %v6599 = vunpack.c.l.b16 %v6371
  %v6600 = vunpack.c.l.b16 %v6385
  %v6601 = vunpack.c.l.b16 %v6399
  %v6602 = vunpack.c.l.b16 %v6413
  %v6603 = vunpack.c.l.b16 %v6427
  %v6604 = vunpack.c.l.b16 %v6441
  %v6605 = vunpack.c.l.b16 %v6455
  %v6606 = vunpack.c.l.b16 %v6469
  %v6607 = vunpack.c.l.b16 %v6483
  %v6608 = vunpack.c.l.b16 %v6497
  %v6609 = vunpack.c.l.b16 %v6511
  %v6610 = vunpack.c.l.b16 %v6525
  %v6611 = vunpack.c.l.b16 %v6539
  %v6612 = vunpack.c.l.b16 %v6553
  %v6613 = vunpack.c.l.b16 %v6567
  %v6614 = vunpack.c.l.b16 %v6581
  %v6615 = vpack.c.b16 %v6600, %v6599
  %v6616 = vpack.c.b16 %v6602, %v6601
  %v6617 = vpack.c.b16 %v6604, %v6603
  %v6618 = vpack.c.b16 %v6606, %v6605
  %v6619 = vpack.c.b16 %v6608, %v6607
  %v6620 = vpack.c.b16 %v6610, %v6609
  %v6621 = vpack.c.b16 %v6612, %v6611
  %v6622 = vpack.c.b16 %v6614, %v6613
  %v6647 = vunpack.c.l.b16 %v6583
  %v6648 = vunpack.c.l.b16 %v6584
  %v6649 = vunpack.c.l.b16 %v6585
  %v6650 = vunpack.c.l.b16 %v6586
  %v6651 = vunpack.c.l.b16 %v6587
  %v6652 = vunpack.c.l.b16 %v6588
  %v6653 = vunpack.c.l.b16 %v6589
  %v6654 = vunpack.c.l.b16 %v6590
  %v6655 = vunpack.c.l.b16 %v6591
  %v6656 = vunpack.c.l.b16 %v6592
  %v6657 = vunpack.c.l.b16 %v6593
  %v6658 = vunpack.c.l.b16 %v6594
  %v6659 = vunpack.c.l.b16 %v6595
  %v6660 = vunpack.c.l.b16 %v6596
  %v6661 = vunpack.c.l.b16 %v6597
  %v6662 = vunpack.c.l.b16 %v6598
  %v6663 = vpack.c.b16 %v6648, %v6647
  %v6664 = vpack.c.b16 %v6650, %v6649
  %v6665 = vpack.c.b16 %v6652, %v6651
  %v6666 = vpack.c.b16 %v6654, %v6653
  %v6667 = vpack.c.b16 %v6656, %v6655
  %v6668 = vpack.c.b16 %v6658, %v6657
  %v6669 = vpack.c.b16 %v6660, %v6659
  %v6670 = vpack.c.b16 %v6662, %v6661
  %6679 = vmatprep.subr.bf16.mxu0 0
  %6680 = vmatpush1.bf16.msra.mxu0 %v6663
  %6681 = vmatprep.subr.bf16.mxu0 0
  %6682 = vmatpush1.bf16.msra.mxu0 %v6664
  %6683 = vmatprep.subr.bf16.mxu0 0
  %6684 = vmatpush1.bf16.msra.mxu0 %v6665
  %6685 = vmatprep.subr.bf16.mxu0 0
  %6686 = vmatpush1.bf16.msra.mxu0 %v6666
  %6687 = vmatprep.subr.bf16.mxu0 0
  %6688 = vmatpush1.bf16.msra.mxu0 %v6667
  %6689 = vmatprep.subr.bf16.mxu0 0
  %6690 = vmatpush1.bf16.msra.mxu0 %v6668
  %6691 = vmatprep.subr.bf16.mxu0 0
  %6692 = vmatpush1.bf16.msra.mxu0 %v6669
  %6693 = vmatprep.subr.bf16.mxu0 0
  %6694 = vmatpush1.bf16.msra.mxu0 %v6670
  %6695 = vmatprep.subr.bf16.mxu0 0
  %6696 = vmatpush1.bf16.msra.mxu0 0
  %6697 = vmatprep.subr.bf16.mxu0 0
  %6698 = vmatpush1.bf16.msra.mxu0 0
  %6699 = vmatprep.subr.bf16.mxu0 0
  %6700 = vmatpush1.bf16.msra.mxu0 0
  %6701 = vmatprep.subr.bf16.mxu0 0
  %6702 = vmatpush1.bf16.msra.mxu0 0
  %6703 = vmatprep.subr.bf16.mxu0 0
  %6704 = vmatpush1.bf16.msra.mxu0 0
  %6705 = vmatprep.subr.bf16.mxu0 0
  %6706 = vmatpush1.bf16.msra.mxu0 0
  %6707 = vmatprep.subr.bf16.mxu0 0
  %6708 = vmatpush1.bf16.msra.mxu0 0
  %6709 = vmatprep.subr.bf16.mxu0 0
  %6710 = vmatpush1.bf16.msra.mxu0 0
  %6711 = vmatprep.mubr.bf16.mxu0 0
  %6712 = vmatmul.mubr.bf16.gmra.mrb[0].mxu0 %v6615
  %v6713 = vpop.f32.mrb[0].mxu0
  %v6714 = vadd.f32 0.0, %v6713
  %v6715 = vpop.f32.mrb[0].mxu0
  %v6716 = vpop.f32.mrb[0].mxu0
  %v6717 = vadd.f32 0.0, %v6716
  %v6718 = vpop.f32.mrb[0].mxu0
  %6719 = vmatprep.mubr.bf16.mxu0 0
  %6720 = vmatmul.mubr.bf16.gmra.mrb[0].mxu0 %v6616
  %v6721 = vpop.f32.mrb[0].mxu0
  %v6722 = vadd.f32 0.0, %v6721
  %v6723 = vpop.f32.mrb[0].mxu0
  %v6724 = vpop.f32.mrb[0].mxu0
  %v6725 = vadd.f32 0.0, %v6724
  %v6726 = vpop.f32.mrb[0].mxu0
  %6727 = vmatprep.mubr.bf16.mxu0 0
  %6728 = vmatmul.mubr.bf16.gmra.mrb[0].mxu0 %v6617
  %v6729 = vpop.f32.mrb[0].mxu0
  %v6730 = vadd.f32 0.0, %v6729
  %v6731 = vpop.f32.mrb[0].mxu0
  %v6732 = vpop.f32.mrb[0].mxu0
  %v6733 = vadd.f32 0.0, %v6732
  %v6734 = vpop.f32.mrb[0].mxu0
  %6735 = vmatprep.mubr.bf16.mxu0 0
  %6736 = vmatmul.mubr.bf16.gmra.mrb[0].mxu0 %v6618
  %v6737 = vpop.f32.mrb[0].mxu0
  %v6738 = vadd.f32 0.0, %v6737
  %v6739 = vpop.f32.mrb[0].mxu0
  %v6740 = vpop.f32.mrb[0].mxu0
  %v6741 = vadd.f32 0.0, %v6740
  %v6742 = vpop.f32.mrb[0].mxu0
  %6743 = vmatprep.mubr.bf16.mxu0 0
  %6744 = vmatmul.mubr.bf16.gmra.mrb[0].mxu0 %v6619
  %v6745 = vpop.f32.mrb[0].mxu0
  %v6746 = vadd.f32 0.0, %v6745
  %v6747 = vpop.f32.mrb[0].mxu0
  %v6748 = vpop.f32.mrb[0].mxu0
  %v6749 = vadd.f32 0.0, %v6748
  %v6750 = vpop.f32.mrb[0].mxu0
  %6751 = vmatprep.mubr.bf16.mxu0 0
  %6752 = vmatmul.mubr.bf16.gmra.mrb[0].mxu0 %v6620
  %v6753 = vpop.f32.mrb[0].mxu0
  %v6754 = vadd.f32 0.0, %v6753
  %v6755 = vpop.f32.mrb[0].mxu0
  %v6756 = vpop.f32.mrb[0].mxu0
  %v6757 = vadd.f32 0.0, %v6756
  %v6758 = vpop.f32.mrb[0].mxu0
  %6759 = vmatprep.mubr.bf16.mxu0 0
  %6760 = vmatmul.mubr.bf16.gmra.mrb[0].mxu0 %v6621
  %v6761 = vpop.f32.mrb[0].mxu0
  %v6762 = vadd.f32 0.0, %v6761
  %v6763 = vpop.f32.mrb[0].mxu0
  %v6764 = vpop.f32.mrb[0].mxu0
  %v6765 = vadd.f32 0.0, %v6764
  %v6766 = vpop.f32.mrb[0].mxu0
  %6767 = vmatprep.mubr.bf16.mxu0 0
  %6768 = vmatmul.mubr.bf16.gmra.mrb[0].mxu0 %v6622
  %v6769 = vpop.f32.mrb[0].mxu0
  %v6770 = vadd.f32 0.0, %v6769
  %v6771 = vpop.f32.mrb[0].mxu0
  %v6772 = vpop.f32.mrb[0].mxu0
  %v6773 = vadd.f32 0.0, %v6772
  %v6774 = vpop.f32.mrb[0].mxu0
  %6775 = vdwg.mxu0
  %v6776 = vadd.f32 %v6310, %v6714
  %v6777 = vadd.f32 %v6311, %v6717
  %v6778 = vadd.f32 %v6312, %v6722
  %v6779 = vadd.f32 %v6313, %v6725
  %v6780 = vadd.f32 %v6314, %v6730
  %v6781 = vadd.f32 %v6315, %v6733
  %v6782 = vadd.f32 %v6316, %v6738
  %v6783 = vadd.f32 %v6317, %v6741
  %v6784 = vadd.f32 %v6318, %v6746
  %v6785 = vadd.f32 %v6319, %v6749
  %v6786 = vadd.f32 %v6320, %v6754
  %v6787 = vadd.f32 %v6321, %v6757
  %v6788 = vadd.f32 %v6322, %v6762
  %v6789 = vadd.f32 %v6323, %v6765
  %v6790 = vadd.f32 %v6324, %v6770
  %v6791 = vadd.f32 %v6325, %v6773
  %v6792 = vld [vmem:[%s590] sm:$0xe]
  %v6793 = vld [vmem:[%s590 + $0x8] sm:$0xe]
  %v6794 = vld [vmem:[%s590 + $0x10] sm:$0xe]
  %v6795 = vld [vmem:[%s590 + $0x18] sm:$0xe]
  %v6796 = vld [vmem:[%s590 + $0x20] sm:$0xe]
  %v6797 = vld [vmem:[%s590 + $0x28] sm:$0xe]
  %v6798 = vld [vmem:[%s590 + $0x30] sm:$0xe]
  %v6799 = vld [vmem:[%s590 + $0x38] sm:$0xe]
  %v6800 = vld [vmem:[%s590 + $0x50] sm:$0xe]
  %v6801 = vld [vmem:[%s590 + $0x58] sm:$0xe]
  %v6802 = vld [vmem:[%s590 + $0x60] sm:$0xe]
  %v6803 = vld [vmem:[%s590 + $0x68] sm:$0xe]
  %v6804 = vld [vmem:[%s590 + $0x70] sm:$0xe]
  %v6805 = vld [vmem:[%s590 + $0x78] sm:$0xe]
  %v6806 = vld [vmem:[%s590 + $0x80] sm:$0xe]
  %v6807 = vld [vmem:[%s590 + $0x88] sm:$0xe]
  %v6840 = vrot.slane %v6792, 5
  %v6841 = vrot.slane %v6840, 4
  %v6842 = vrot.slane %v6327, 5
  %v6843 = vsel %vm1711, %v6841, %v6842
  %v6844 = vrot.slane %v6793, 5
  %v6845 = vrot.slane %v6844, 4
  %v6846 = vrot.slane %v6329, 5
  %v6847 = vsel %vm1711, %v6845, %v6846
  %v6848 = vrot.slane %v6794, 5
  %v6849 = vrot.slane %v6848, 4
  %v6850 = vrot.slane %v6331, 5
  %v6851 = vsel %vm1711, %v6849, %v6850
  %v6852 = vrot.slane %v6795, 5
  %v6853 = vrot.slane %v6852, 4
  %v6854 = vrot.slane %v6333, 5
  %v6855 = vsel %vm1711, %v6853, %v6854
  %v6856 = vrot.slane %v6796, 5
  %v6857 = vrot.slane %v6856, 4
  %v6858 = vrot.slane %v6335, 5
  %v6859 = vsel %vm1711, %v6857, %v6858
  %v6860 = vrot.slane %v6797, 5
  %v6861 = vrot.slane %v6860, 4
  %v6862 = vrot.slane %v6337, 5
  %v6863 = vsel %vm1711, %v6861, %v6862
  %v6864 = vrot.slane %v6798, 5
  %v6865 = vrot.slane %v6864, 4
  %v6866 = vrot.slane %v6339, 5
  %v6867 = vsel %vm1711, %v6865, %v6866
  %v6868 = vrot.slane %v6799, 5
  %v6869 = vrot.slane %v6868, 4
  %v6870 = vrot.slane %v6341, 5
  %v6871 = vsel %vm1711, %v6869, %v6870
  %v6872 = vrot.slane %v6800, 5
  %v6873 = vrot.slane %v6872, 4
  %v6874 = vrot.slane %v6343, 5
  %v6875 = vsel %vm1711, %v6873, %v6874
  %v6876 = vrot.slane %v6801, 5
  %v6877 = vrot.slane %v6876, 4
  %v6878 = vrot.slane %v6345, 5
  %v6879 = vsel %vm1711, %v6877, %v6878
  %v6880 = vrot.slane %v6802, 5
  %v6881 = vrot.slane %v6880, 4
  %v6882 = vrot.slane %v6347, 5
  %v6883 = vsel %vm1711, %v6881, %v6882
  %v6884 = vrot.slane %v6803, 5
  %v6885 = vrot.slane %v6884, 4
  %v6886 = vrot.slane %v6349, 5
  %v6887 = vsel %vm1711, %v6885, %v6886
  %v6888 = vrot.slane %v6804, 5
  %v6889 = vrot.slane %v6888, 4
  %v6890 = vrot.slane %v6351, 5
  %v6891 = vsel %vm1711, %v6889, %v6890
  %v6892 = vrot.slane %v6805, 5
  %v6893 = vrot.slane %v6892, 4
  %v6894 = vrot.slane %v6353, 5
  %v6895 = vsel %vm1711, %v6893, %v6894
  %v6896 = vrot.slane %v6806, 5
  %v6897 = vrot.slane %v6896, 4
  %v6898 = vrot.slane %v6355, 5
  %v6899 = vsel %vm1711, %v6897, %v6898
  %v6900 = vrot.slane %v6807, 5
  %v6901 = vrot.slane %v6900, 4
  %v6902 = vrot.slane %v6357, 5
  %v6903 = vsel %vm1711, %v6901, %v6902
  %s6904 = scalar_lea.vmem %s14, 320
  %v6905 = vld [vmem:[%s6904] sm:$0xf]
  %v6906 = vld [vmem:[%s6904 + $0x4] sm:$0xf]
  %v6907 = vld [vmem:[%s6904 + $0x8] sm:$0xf]
  %v6908 = vld [vmem:[%s6904 + $0xc] sm:$0xf]
  %v6909 = vld [vmem:[%s6904 + $0x10] sm:$0xf]
  %v6910 = vld [vmem:[%s6904 + $0x14] sm:$0xf]
  %v6911 = vld [vmem:[%s6904 + $0x18] sm:$0xf]
  %v6912 = vld [vmem:[%s6904 + $0x1c] sm:$0xf]
  %v6913 = vld [vmem:[%s6904 + $0x20] sm:$0xf]
  %v6914 = vld [vmem:[%s6904 + $0x24] sm:$0xf]
  %v6915 = vld [vmem:[%s6904 + $0x28] sm:$0xf]
  %v6916 = vld [vmem:[%s6904 + $0x2c] sm:$0xf]
  %v6917 = vld [vmem:[%s6904 + $0x30] sm:$0xf]
  %v6918 = vld [vmem:[%s6904 + $0x34] sm:$0xf]
  %v6919 = vld [vmem:[%s6904 + $0x38] sm:$0xf]
  %v6920 = vld [vmem:[%s6904 + $0x3c] sm:$0xf]
  %v6921 = vunpack.c.l.b16 %v6843
  %v6922 = vunpack.c.l.b16 %v6847
  %v6923 = vunpack.c.l.b16 %v6851
  %v6924 = vunpack.c.l.b16 %v6855
  %v6925 = vunpack.c.l.b16 %v6859
  %v6926 = vunpack.c.l.b16 %v6863
  %v6927 = vunpack.c.l.b16 %v6867
  %v6928 = vunpack.c.l.b16 %v6871
  %v6929 = vunpack.c.l.b16 %v6875
  %v6930 = vunpack.c.l.b16 %v6879
  %v6931 = vunpack.c.l.b16 %v6883
  %v6932 = vunpack.c.l.b16 %v6887
  %v6933 = vunpack.c.l.b16 %v6891
  %v6934 = vunpack.c.l.b16 %v6895
  %v6935 = vunpack.c.l.b16 %v6899
  %v6936 = vunpack.c.l.b16 %v6903
  %v6937 = vpack.c.b16 %v6922, %v6921
  %v6938 = vpack.c.b16 %v6924, %v6923
  %v6939 = vpack.c.b16 %v6926, %v6925
  %v6940 = vpack.c.b16 %v6928, %v6927
  %v6941 = vpack.c.b16 %v6930, %v6929
  %v6942 = vpack.c.b16 %v6932, %v6931
  %v6943 = vpack.c.b16 %v6934, %v6933
  %v6944 = vpack.c.b16 %v6936, %v6935
  %v6969 = vunpack.c.l.b16 %v6905
  %v6970 = vunpack.c.l.b16 %v6906
  %v6971 = vunpack.c.l.b16 %v6907
  %v6972 = vunpack.c.l.b16 %v6908
  %v6973 = vunpack.c.l.b16 %v6909
  %v6974 = vunpack.c.l.b16 %v6910
  %v6975 = vunpack.c.l.b16 %v6911
  %v6976 = vunpack.c.l.b16 %v6912
  %v6977 = vunpack.c.l.b16 %v6913
  %v6978 = vunpack.c.l.b16 %v6914
  %v6979 = vunpack.c.l.b16 %v6915
  %v6980 = vunpack.c.l.b16 %v6916
  %v6981 = vunpack.c.l.b16 %v6917
  %v6982 = vunpack.c.l.b16 %v6918
  %v6983 = vunpack.c.l.b16 %v6919
  %v6984 = vunpack.c.l.b16 %v6920
  %v6985 = vpack.c.b16 %v6970, %v6969
  %v6986 = vpack.c.b16 %v6972, %v6971
  %v6987 = vpack.c.b16 %v6974, %v6973
  %v6988 = vpack.c.b16 %v6976, %v6975
  %v6989 = vpack.c.b16 %v6978, %v6977
  %v6990 = vpack.c.b16 %v6980, %v6979
  %v6991 = vpack.c.b16 %v6982, %v6981
  %v6992 = vpack.c.b16 %v6984, %v6983
  %7001 = vmatprep.subr.bf16.mxu0 0
  %7002 = vmatpush1.bf16.msra.mxu0 %v6985
  %7003 = vmatprep.subr.bf16.mxu0 0
  %7004 = vmatpush1.bf16.msra.mxu0 %v6986
  %7005 = vmatprep.subr.bf16.mxu0 0
  %7006 = vmatpush1.bf16.msra.mxu0 %v6987
  %7007 = vmatprep.subr.bf16.mxu0 0
  %7008 = vmatpush1.bf16.msra.mxu0 %v6988
  %7009 = vmatprep.subr.bf16.mxu0 0
  %7010 = vmatpush1.bf16.msra.mxu0 %v6989
  %7011 = vmatprep.subr.bf16.mxu0 0
  %7012 = vmatpush1.bf16.msra.mxu0 %v6990
  %7013 = vmatprep.subr.bf16.mxu0 0
  %7014 = vmatpush1.bf16.msra.mxu0 %v6991
  %7015 = vmatprep.subr.bf16.mxu0 0
  %7016 = vmatpush1.bf16.msra.mxu0 %v6992
  %7017 = vmatprep.subr.bf16.mxu0 0
  %7018 = vmatpush1.bf16.msra.mxu0 0
  %7019 = vmatprep.subr.bf16.mxu0 0
  %7020 = vmatpush1.bf16.msra.mxu0 0
  %7021 = vmatprep.subr.bf16.mxu0 0
  %7022 = vmatpush1.bf16.msra.mxu0 0
  %7023 = vmatprep.subr.bf16.mxu0 0
  %7024 = vmatpush1.bf16.msra.mxu0 0
  %7025 = vmatprep.subr.bf16.mxu0 0
  %7026 = vmatpush1.bf16.msra.mxu0 0
  %7027 = vmatprep.subr.bf16.mxu0 0
  %7028 = vmatpush1.bf16.msra.mxu0 0
  %7029 = vmatprep.subr.bf16.mxu0 0
  %7030 = vmatpush1.bf16.msra.mxu0 0
  %7031 = vmatprep.subr.bf16.mxu0 0
  %7032 = vmatpush1.bf16.msra.mxu0 0
  %7033 = vmatprep.mubr.bf16.mxu0 0
  %7034 = vmatmul.mubr.bf16.gmra.mrb[0].mxu0 %v6937
  %v7035 = vpop.f32.mrb[0].mxu0
  %v7036 = vadd.f32 0.0, %v7035
  %v7037 = vpop.f32.mrb[0].mxu0
  %v7038 = vpop.f32.mrb[0].mxu0
  %v7039 = vadd.f32 0.0, %v7038
  %v7040 = vpop.f32.mrb[0].mxu0
  %7041 = vmatprep.mubr.bf16.mxu0 0
  %7042 = vmatmul.mubr.bf16.gmra.mrb[0].mxu0 %v6938
  %v7043 = vpop.f32.mrb[0].mxu0
  %v7044 = vadd.f32 0.0, %v7043
  %v7045 = vpop.f32.mrb[0].mxu0
  %v7046 = vpop.f32.mrb[0].mxu0
  %v7047 = vadd.f32 0.0, %v7046
  %v7048 = vpop.f32.mrb[0].mxu0
  %7049 = vmatprep.mubr.bf16.mxu0 0
  %7050 = vmatmul.mubr.bf16.gmra.mrb[0].mxu0 %v6939
  %v7051 = vpop.f32.mrb[0].mxu0
  %v7052 = vadd.f32 0.0, %v7051
  %v7053 = vpop.f32.mrb[0].mxu0
  %v7054 = vpop.f32.mrb[0].mxu0
  %v7055 = vadd.f32 0.0, %v7054
  %v7056 = vpop.f32.mrb[0].mxu0
  %7057 = vmatprep.mubr.bf16.mxu0 0
  %7058 = vmatmul.mubr.bf16.gmra.mrb[0].mxu0 %v6940
  %v7059 = vpop.f32.mrb[0].mxu0
  %v7060 = vadd.f32 0.0, %v7059
  %v7061 = vpop.f32.mrb[0].mxu0
  %v7062 = vpop.f32.mrb[0].mxu0
  %v7063 = vadd.f32 0.0, %v7062
  %v7064 = vpop.f32.mrb[0].mxu0
  %7065 = vmatprep.mubr.bf16.mxu0 0
  %7066 = vmatmul.mubr.bf16.gmra.mrb[0].mxu0 %v6941
  %v7067 = vpop.f32.mrb[0].mxu0
  %v7068 = vadd.f32 0.0, %v7067
  %v7069 = vpop.f32.mrb[0].mxu0
  %v7070 = vpop.f32.mrb[0].mxu0
  %v7071 = vadd.f32 0.0, %v7070
  %v7072 = vpop.f32.mrb[0].mxu0
  %7073 = vmatprep.mubr.bf16.mxu0 0
  %7074 = vmatmul.mubr.bf16.gmra.mrb[0].mxu0 %v6942
  %v7075 = vpop.f32.mrb[0].mxu0
  %v7076 = vadd.f32 0.0, %v7075
  %v7077 = vpop.f32.mrb[0].mxu0
  %v7078 = vpop.f32.mrb[0].mxu0
  %v7079 = vadd.f32 0.0, %v7078
  %v7080 = vpop.f32.mrb[0].mxu0
  %7081 = vmatprep.mubr.bf16.mxu0 0
  %7082 = vmatmul.mubr.bf16.gmra.mrb[0].mxu0 %v6943
  %v7083 = vpop.f32.mrb[0].mxu0
  %v7084 = vadd.f32 0.0, %v7083
  %v7085 = vpop.f32.mrb[0].mxu0
  %v7086 = vpop.f32.mrb[0].mxu0
  %v7087 = vadd.f32 0.0, %v7086
  %v7088 = vpop.f32.mrb[0].mxu0
  %7089 = vmatprep.mubr.bf16.mxu0 0
  %7090 = vmatmul.mubr.bf16.gmra.mrb[0].mxu0 %v6944
  %v7091 = vpop.f32.mrb[0].mxu0
  %v7092 = vadd.f32 0.0, %v7091
  %v7093 = vpop.f32.mrb[0].mxu0
  %v7094 = vpop.f32.mrb[0].mxu0
  %v7095 = vadd.f32 0.0, %v7094
  %v7096 = vpop.f32.mrb[0].mxu0
  %7097 = vdwg.mxu0
  %v7098 = vadd.f32 %v6776, %v7036
  %v7099 = vadd.f32 %v6777, %v7039
  %v7100 = vadd.f32 %v6778, %v7044
  %v7101 = vadd.f32 %v6779, %v7047
  %v7102 = vadd.f32 %v6780, %v7052
  %v7103 = vadd.f32 %v6781, %v7055
  %v7104 = vadd.f32 %v6782, %v7060
  %v7105 = vadd.f32 %v6783, %v7063
  %v7106 = vadd.f32 %v6784, %v7068
  %v7107 = vadd.f32 %v6785, %v7071
  %v7108 = vadd.f32 %v6786, %v7076
  %v7109 = vadd.f32 %v6787, %v7079
  %v7110 = vadd.f32 %v6788, %v7084
  %v7111 = vadd.f32 %v6789, %v7087
  %v7112 = vadd.f32 %v6790, %v7092
  %v7113 = vadd.f32 %v6791, %v7095
  %v7114 = vld [vmem:[%s3016] sm:$0xf]
  %v7115 = vld [vmem:[%s3016 + $0x8] sm:$0xf]
  %v7116 = vld [vmem:[%s3016 + $0x10] sm:$0xf]
  %v7117 = vld [vmem:[%s3016 + $0x18] sm:$0xf]
  %v7118 = vld [vmem:[%s3016 + $0x20] sm:$0xf]
  %v7119 = vld [vmem:[%s3016 + $0x28] sm:$0xf]
  %v7120 = vld [vmem:[%s3016 + $0x30] sm:$0xf]
  %v7121 = vld [vmem:[%s3016 + $0x38] sm:$0xf]
  %v7122 = vld [vmem:[%s3016 + $0x50] sm:$0xf]
  %v7123 = vld [vmem:[%s3016 + $0x58] sm:$0xf]
  %v7124 = vld [vmem:[%s3016 + $0x60] sm:$0xf]
  %v7125 = vld [vmem:[%s3016 + $0x68] sm:$0xf]
  %v7126 = vld [vmem:[%s3016 + $0x70] sm:$0xf]
  %v7127 = vld [vmem:[%s3016 + $0x78] sm:$0xf]
  %v7128 = vld [vmem:[%s3016 + $0x80] sm:$0xf]
  %v7129 = vld [vmem:[%s3016 + $0x88] sm:$0xf]
  %s7130 = scalar_lea.vmem %s14, 384
  %v7131 = vld [vmem:[%s7130] sm:$0xf]
  %v7132 = vld [vmem:[%s7130 + $0x4] sm:$0xf]
  %v7133 = vld [vmem:[%s7130 + $0x8] sm:$0xf]
  %v7134 = vld [vmem:[%s7130 + $0xc] sm:$0xf]
  %v7135 = vld [vmem:[%s7130 + $0x10] sm:$0xf]
  %v7136 = vld [vmem:[%s7130 + $0x14] sm:$0xf]
  %v7137 = vld [vmem:[%s7130 + $0x18] sm:$0xf]
  %v7138 = vld [vmem:[%s7130 + $0x1c] sm:$0xf]
  %v7139 = vld [vmem:[%s7130 + $0x20] sm:$0xf]
  %v7140 = vld [vmem:[%s7130 + $0x24] sm:$0xf]
  %v7141 = vld [vmem:[%s7130 + $0x28] sm:$0xf]
  %v7142 = vld [vmem:[%s7130 + $0x2c] sm:$0xf]
  %v7143 = vld [vmem:[%s7130 + $0x30] sm:$0xf]
  %v7144 = vld [vmem:[%s7130 + $0x34] sm:$0xf]
  %v7145 = vld [vmem:[%s7130 + $0x38] sm:$0xf]
  %v7146 = vld [vmem:[%s7130 + $0x3c] sm:$0xf]
  %v7163 = vunpack.c.l.b16 %v7114
  %v7164 = vunpack.c.l.b16 %v7115
  %v7165 = vunpack.c.l.b16 %v7116
  %v7166 = vunpack.c.l.b16 %v7117
  %v7167 = vunpack.c.l.b16 %v7118
  %v7168 = vunpack.c.l.b16 %v7119
  %v7169 = vunpack.c.l.b16 %v7120
  %v7170 = vunpack.c.l.b16 %v7121
  %v7171 = vunpack.c.l.b16 %v7122
  %v7172 = vunpack.c.l.b16 %v7123
  %v7173 = vunpack.c.l.b16 %v7124
  %v7174 = vunpack.c.l.b16 %v7125
  %v7175 = vunpack.c.l.b16 %v7126
  %v7176 = vunpack.c.l.b16 %v7127
  %v7177 = vunpack.c.l.b16 %v7128
  %v7178 = vunpack.c.l.b16 %v7129
  %v7179 = vpack.c.b16 %v7164, %v7163
  %v7180 = vpack.c.b16 %v7166, %v7165
  %v7181 = vpack.c.b16 %v7168, %v7167
  %v7182 = vpack.c.b16 %v7170, %v7169
  %v7183 = vpack.c.b16 %v7172, %v7171
  %v7184 = vpack.c.b16 %v7174, %v7173
  %v7185 = vpack.c.b16 %v7176, %v7175
  %v7186 = vpack.c.b16 %v7178, %v7177
  %v7211 = vunpack.c.l.b16 %v7131
  %v7212 = vunpack.c.l.b16 %v7132
  %v7213 = vunpack.c.l.b16 %v7133
  %v7214 = vunpack.c.l.b16 %v7134
  %v7215 = vunpack.c.l.b16 %v7135
  %v7216 = vunpack.c.l.b16 %v7136
  %v7217 = vunpack.c.l.b16 %v7137
  %v7218 = vunpack.c.l.b16 %v7138
  %v7219 = vunpack.c.l.b16 %v7139
  %v7220 = vunpack.c.l.b16 %v7140
  %v7221 = vunpack.c.l.b16 %v7141
  %v7222 = vunpack.c.l.b16 %v7142
  %v7223 = vunpack.c.l.b16 %v7143
  %v7224 = vunpack.c.l.b16 %v7144
  %v7225 = vunpack.c.l.b16 %v7145
  %v7226 = vunpack.c.l.b16 %v7146
  %v7227 = vpack.c.b16 %v7212, %v7211
  %v7228 = vpack.c.b16 %v7214, %v7213
  %v7229 = vpack.c.b16 %v7216, %v7215
  %v7230 = vpack.c.b16 %v7218, %v7217
  %v7231 = vpack.c.b16 %v7220, %v7219
  %v7232 = vpack.c.b16 %v7222, %v7221
  %v7233 = vpack.c.b16 %v7224, %v7223
  %v7234 = vpack.c.b16 %v7226, %v7225
  %7243 = vmatprep.subr.bf16.mxu0 0
  %7244 = vmatpush1.bf16.msra.mxu0 %v7227
  %7245 = vmatprep.subr.bf16.mxu0 0
  %7246 = vmatpush1.bf16.msra.mxu0 %v7228
  %7247 = vmatprep.subr.bf16.mxu0 0
  %7248 = vmatpush1.bf16.msra.mxu0 %v7229
  %7249 = vmatprep.subr.bf16.mxu0 0
  %7250 = vmatpush1.bf16.msra.mxu0 %v7230
  %7251 = vmatprep.subr.bf16.mxu0 0
  %7252 = vmatpush1.bf16.msra.mxu0 %v7231
  %7253 = vmatprep.subr.bf16.mxu0 0
  %7254 = vmatpush1.bf16.msra.mxu0 %v7232
  %7255 = vmatprep.subr.bf16.mxu0 0
  %7256 = vmatpush1.bf16.msra.mxu0 %v7233
  %7257 = vmatprep.subr.bf16.mxu0 0
  %7258 = vmatpush1.bf16.msra.mxu0 %v7234
  %7259 = vmatprep.subr.bf16.mxu0 0
  %7260 = vmatpush1.bf16.msra.mxu0 0
  %7261 = vmatprep.subr.bf16.mxu0 0
  %7262 = vmatpush1.bf16.msra.mxu0 0
  %7263 = vmatprep.subr.bf16.mxu0 0
  %7264 = vmatpush1.bf16.msra.mxu0 0
  %7265 = vmatprep.subr.bf16.mxu0 0
  %7266 = vmatpush1.bf16.msra.mxu0 0
  %7267 = vmatprep.subr.bf16.mxu0 0
  %7268 = vmatpush1.bf16.msra.mxu0 0
  %7269 = vmatprep.subr.bf16.mxu0 0
  %7270 = vmatpush1.bf16.msra.mxu0 0
  %7271 = vmatprep.subr.bf16.mxu0 0
  %7272 = vmatpush1.bf16.msra.mxu0 0
  %7273 = vmatprep.subr.bf16.mxu0 0
  %7274 = vmatpush1.bf16.msra.mxu0 0
  %7275 = vmatprep.mubr.bf16.mxu0 0
  %7276 = vmatmul.mubr.bf16.gmra.mrb[0].mxu0 %v7179
  %v7277 = vpop.f32.mrb[0].mxu0
  %v7278 = vadd.f32 0.0, %v7277
  %v7279 = vpop.f32.mrb[0].mxu0
  %v7280 = vpop.f32.mrb[0].mxu0
  %v7281 = vadd.f32 0.0, %v7280
  %v7282 = vpop.f32.mrb[0].mxu0
  %7283 = vmatprep.mubr.bf16.mxu0 0
  %7284 = vmatmul.mubr.bf16.gmra.mrb[0].mxu0 %v7180
  %v7285 = vpop.f32.mrb[0].mxu0
  %v7286 = vadd.f32 0.0, %v7285
  %v7287 = vpop.f32.mrb[0].mxu0
  %v7288 = vpop.f32.mrb[0].mxu0
  %v7289 = vadd.f32 0.0, %v7288
  %v7290 = vpop.f32.mrb[0].mxu0
  %7291 = vmatprep.mubr.bf16.mxu0 0
  %7292 = vmatmul.mubr.bf16.gmra.mrb[0].mxu0 %v7181
  %v7293 = vpop.f32.mrb[0].mxu0
  %v7294 = vadd.f32 0.0, %v7293
  %v7295 = vpop.f32.mrb[0].mxu0
  %v7296 = vpop.f32.mrb[0].mxu0
  %v7297 = vadd.f32 0.0, %v7296
  %v7298 = vpop.f32.mrb[0].mxu0
  %7299 = vmatprep.mubr.bf16.mxu0 0
  %7300 = vmatmul.mubr.bf16.gmra.mrb[0].mxu0 %v7182
  %v7301 = vpop.f32.mrb[0].mxu0
  %v7302 = vadd.f32 0.0, %v7301
  %v7303 = vpop.f32.mrb[0].mxu0
  %v7304 = vpop.f32.mrb[0].mxu0
  %v7305 = vadd.f32 0.0, %v7304
  %v7306 = vpop.f32.mrb[0].mxu0
  %7307 = vmatprep.mubr.bf16.mxu0 0
  %7308 = vmatmul.mubr.bf16.gmra.mrb[0].mxu0 %v7183
  %v7309 = vpop.f32.mrb[0].mxu0
  %v7310 = vadd.f32 0.0, %v7309
  %v7311 = vpop.f32.mrb[0].mxu0
  %v7312 = vpop.f32.mrb[0].mxu0
  %v7313 = vadd.f32 0.0, %v7312
  %v7314 = vpop.f32.mrb[0].mxu0
  %7315 = vmatprep.mubr.bf16.mxu0 0
  %7316 = vmatmul.mubr.bf16.gmra.mrb[0].mxu0 %v7184
  %v7317 = vpop.f32.mrb[0].mxu0
  %v7318 = vadd.f32 0.0, %v7317
  %v7319 = vpop.f32.mrb[0].mxu0
  %v7320 = vpop.f32.mrb[0].mxu0
  %v7321 = vadd.f32 0.0, %v7320
  %v7322 = vpop.f32.mrb[0].mxu0
  %7323 = vmatprep.mubr.bf16.mxu0 0
  %7324 = vmatmul.mubr.bf16.gmra.mrb[0].mxu0 %v7185
  %v7325 = vpop.f32.mrb[0].mxu0
  %v7326 = vadd.f32 0.0, %v7325
  %v7327 = vpop.f32.mrb[0].mxu0
  %v7328 = vpop.f32.mrb[0].mxu0
  %v7329 = vadd.f32 0.0, %v7328
  %v7330 = vpop.f32.mrb[0].mxu0
  %7331 = vmatprep.mubr.bf16.mxu0 0
  %7332 = vmatmul.mubr.bf16.gmra.mrb[0].mxu0 %v7186
  %v7333 = vpop.f32.mrb[0].mxu0
  %v7334 = vadd.f32 0.0, %v7333
  %v7335 = vpop.f32.mrb[0].mxu0
  %v7336 = vpop.f32.mrb[0].mxu0
  %v7337 = vadd.f32 0.0, %v7336
  %v7338 = vpop.f32.mrb[0].mxu0
  %7339 = vdwg.mxu0
  %v7340 = vadd.f32 %v7098, %v7278
  %v7341 = vadd.f32 %v7099, %v7281
  %v7342 = vadd.f32 %v7100, %v7286
  %v7343 = vadd.f32 %v7101, %v7289
  %v7344 = vadd.f32 %v7102, %v7294
  %v7345 = vadd.f32 %v7103, %v7297
  %v7346 = vadd.f32 %v7104, %v7302
  %v7347 = vadd.f32 %v7105, %v7305
  %v7348 = vadd.f32 %v7106, %v7310
  %v7349 = vadd.f32 %v7107, %v7313
  %v7350 = vadd.f32 %v7108, %v7318
  %v7351 = vadd.f32 %v7109, %v7321
  %v7352 = vadd.f32 %v7110, %v7326
  %v7353 = vadd.f32 %v7111, %v7329
  %v7354 = vadd.f32 %v7112, %v7334
  %v7355 = vadd.f32 %v7113, %v7337
  %v7356 = vld [vmem:[%s3016] sm:$0xf]
  %v7357 = vld [vmem:[%s3016 + $0x4] sm:$0x1]
  %v7358 = vld [vmem:[%s3016 + $0x8] sm:$0xf]
  %v7359 = vld [vmem:[%s3016 + $0xc] sm:$0x1]
  %v7360 = vld [vmem:[%s3016 + $0x10] sm:$0xf]
  %v7361 = vld [vmem:[%s3016 + $0x14] sm:$0x1]
  %v7362 = vld [vmem:[%s3016 + $0x18] sm:$0xf]
  %v7363 = vld [vmem:[%s3016 + $0x1c] sm:$0x1]
  %v7364 = vld [vmem:[%s3016 + $0x20] sm:$0xf]
  %v7365 = vld [vmem:[%s3016 + $0x24] sm:$0x1]
  %v7366 = vld [vmem:[%s3016 + $0x28] sm:$0xf]
  %v7367 = vld [vmem:[%s3016 + $0x2c] sm:$0x1]
  %v7368 = vld [vmem:[%s3016 + $0x30] sm:$0xf]
  %v7369 = vld [vmem:[%s3016 + $0x34] sm:$0x1]
  %v7370 = vld [vmem:[%s3016 + $0x38] sm:$0xf]
  %v7371 = vld [vmem:[%s3016 + $0x3c] sm:$0x1]
  %v7372 = vld [vmem:[%s3016 + $0x50] sm:$0xf]
  %v7373 = vld [vmem:[%s3016 + $0x54] sm:$0x1]
  %v7374 = vld [vmem:[%s3016 + $0x58] sm:$0xf]
  %v7375 = vld [vmem:[%s3016 + $0x5c] sm:$0x1]
  %v7376 = vld [vmem:[%s3016 + $0x60] sm:$0xf]
  %v7377 = vld [vmem:[%s3016 + $0x64] sm:$0x1]
  %v7378 = vld [vmem:[%s3016 + $0x68] sm:$0xf]
  %v7379 = vld [vmem:[%s3016 + $0x6c] sm:$0x1]
  %v7380 = vld [vmem:[%s3016 + $0x70] sm:$0xf]
  %v7381 = vld [vmem:[%s3016 + $0x74] sm:$0x1]
  %v7382 = vld [vmem:[%s3016 + $0x78] sm:$0xf]
  %v7383 = vld [vmem:[%s3016 + $0x7c] sm:$0x1]
  %v7384 = vld [vmem:[%s3016 + $0x80] sm:$0xf]
  %v7385 = vld [vmem:[%s3016 + $0x84] sm:$0x1]
  %v7386 = vld [vmem:[%s3016 + $0x88] sm:$0xf]
  %v7387 = vld [vmem:[%s3016 + $0x8c] sm:$0x1]
  %v7389 = vshrl.u32 %v7356, 16
  %v7391 = vrot.slane %v7389, 4
  %v7392 = vshll.u32 %v7356, 16
  %v7394 = vrot.slane %v7392, 5
  %v7395 = vor.u32 %v7391, %v7394
  %v7396 = vrot.slane %v7395, 4
  %v7398 = vshll.u32 %v7357, 16
  %v7400 = vrot.slane %v7398, 5
  %v7401 = vsel %vm1049, %v7396, %v7400
  %v7403 = vshrl.u32 %v7358, 16
  %v7405 = vrot.slane %v7403, 4
  %v7406 = vshll.u32 %v7358, 16
  %v7408 = vrot.slane %v7406, 5
  %v7409 = vor.u32 %v7405, %v7408
  %v7410 = vrot.slane %v7409, 4
  %v7412 = vshll.u32 %v7359, 16
  %v7414 = vrot.slane %v7412, 5
  %v7415 = vsel %vm1049, %v7410, %v7414
  %v7417 = vshrl.u32 %v7360, 16
  %v7419 = vrot.slane %v7417, 4
  %v7420 = vshll.u32 %v7360, 16
  %v7422 = vrot.slane %v7420, 5
  %v7423 = vor.u32 %v7419, %v7422
  %v7424 = vrot.slane %v7423, 4
  %v7426 = vshll.u32 %v7361, 16
  %v7428 = vrot.slane %v7426, 5
  %v7429 = vsel %vm1049, %v7424, %v7428
  %v7431 = vshrl.u32 %v7362, 16
  %v7433 = vrot.slane %v7431, 4
  %v7434 = vshll.u32 %v7362, 16
  %v7436 = vrot.slane %v7434, 5
  %v7437 = vor.u32 %v7433, %v7436
  %v7438 = vrot.slane %v7437, 4
  %v7440 = vshll.u32 %v7363, 16
  %v7442 = vrot.slane %v7440, 5
  %v7443 = vsel %vm1049, %v7438, %v7442
  %v7445 = vshrl.u32 %v7364, 16
  %v7447 = vrot.slane %v7445, 4
  %v7448 = vshll.u32 %v7364, 16
  %v7450 = vrot.slane %v7448, 5
  %v7451 = vor.u32 %v7447, %v7450
  %v7452 = vrot.slane %v7451, 4
  %v7454 = vshll.u32 %v7365, 16
  %v7456 = vrot.slane %v7454, 5
  %v7457 = vsel %vm1049, %v7452, %v7456
  %v7459 = vshrl.u32 %v7366, 16
  %v7461 = vrot.slane %v7459, 4
  %v7462 = vshll.u32 %v7366, 16
  %v7464 = vrot.slane %v7462, 5
  %v7465 = vor.u32 %v7461, %v7464
  %v7466 = vrot.slane %v7465, 4
  %v7468 = vshll.u32 %v7367, 16
  %v7470 = vrot.slane %v7468, 5
  %v7471 = vsel %vm1049, %v7466, %v7470
  %v7473 = vshrl.u32 %v7368, 16
  %v7475 = vrot.slane %v7473, 4
  %v7476 = vshll.u32 %v7368, 16
  %v7478 = vrot.slane %v7476, 5
  %v7479 = vor.u32 %v7475, %v7478
  %v7480 = vrot.slane %v7479, 4
  %v7482 = vshll.u32 %v7369, 16
  %v7484 = vrot.slane %v7482, 5
  %v7485 = vsel %vm1049, %v7480, %v7484
  %v7487 = vshrl.u32 %v7370, 16
  %v7489 = vrot.slane %v7487, 4
  %v7490 = vshll.u32 %v7370, 16
  %v7492 = vrot.slane %v7490, 5
  %v7493 = vor.u32 %v7489, %v7492
  %v7494 = vrot.slane %v7493, 4
  %v7496 = vshll.u32 %v7371, 16
  %v7498 = vrot.slane %v7496, 5
  %v7499 = vsel %vm1049, %v7494, %v7498
  %v7501 = vshrl.u32 %v7372, 16
  %v7503 = vrot.slane %v7501, 4
  %v7504 = vshll.u32 %v7372, 16
  %v7506 = vrot.slane %v7504, 5
  %v7507 = vor.u32 %v7503, %v7506
  %v7508 = vrot.slane %v7507, 4
  %v7510 = vshll.u32 %v7373, 16
  %v7512 = vrot.slane %v7510, 5
  %v7513 = vsel %vm1049, %v7508, %v7512
  %v7515 = vshrl.u32 %v7374, 16
  %v7517 = vrot.slane %v7515, 4
  %v7518 = vshll.u32 %v7374, 16
  %v7520 = vrot.slane %v7518, 5
  %v7521 = vor.u32 %v7517, %v7520
  %v7522 = vrot.slane %v7521, 4
  %v7524 = vshll.u32 %v7375, 16
  %v7526 = vrot.slane %v7524, 5
  %v7527 = vsel %vm1049, %v7522, %v7526
  %v7529 = vshrl.u32 %v7376, 16
  %v7531 = vrot.slane %v7529, 4
  %v7532 = vshll.u32 %v7376, 16
  %v7534 = vrot.slane %v7532, 5
  %v7535 = vor.u32 %v7531, %v7534
  %v7536 = vrot.slane %v7535, 4
  %v7538 = vshll.u32 %v7377, 16
  %v7540 = vrot.slane %v7538, 5
  %v7541 = vsel %vm1049, %v7536, %v7540
  %v7543 = vshrl.u32 %v7378, 16
  %v7545 = vrot.slane %v7543, 4
  %v7546 = vshll.u32 %v7378, 16
  %v7548 = vrot.slane %v7546, 5
  %v7549 = vor.u32 %v7545, %v7548
  %v7550 = vrot.slane %v7549, 4
  %v7552 = vshll.u32 %v7379, 16
  %v7554 = vrot.slane %v7552, 5
  %v7555 = vsel %vm1049, %v7550, %v7554
  %v7557 = vshrl.u32 %v7380, 16
  %v7559 = vrot.slane %v7557, 4
  %v7560 = vshll.u32 %v7380, 16
  %v7562 = vrot.slane %v7560, 5
  %v7563 = vor.u32 %v7559, %v7562
  %v7564 = vrot.slane %v7563, 4
  %v7566 = vshll.u32 %v7381, 16
  %v7568 = vrot.slane %v7566, 5
  %v7569 = vsel %vm1049, %v7564, %v7568
  %v7571 = vshrl.u32 %v7382, 16
  %v7573 = vrot.slane %v7571, 4
  %v7574 = vshll.u32 %v7382, 16
  %v7576 = vrot.slane %v7574, 5
  %v7577 = vor.u32 %v7573, %v7576
  %v7578 = vrot.slane %v7577, 4
  %v7580 = vshll.u32 %v7383, 16
  %v7582 = vrot.slane %v7580, 5
  %v7583 = vsel %vm1049, %v7578, %v7582
  %v7585 = vshrl.u32 %v7384, 16
  %v7587 = vrot.slane %v7585, 4
  %v7588 = vshll.u32 %v7384, 16
  %v7590 = vrot.slane %v7588, 5
  %v7591 = vor.u32 %v7587, %v7590
  %v7592 = vrot.slane %v7591, 4
  %v7594 = vshll.u32 %v7385, 16
  %v7596 = vrot.slane %v7594, 5
  %v7597 = vsel %vm1049, %v7592, %v7596
  %v7599 = vshrl.u32 %v7386, 16
  %v7601 = vrot.slane %v7599, 4
  %v7602 = vshll.u32 %v7386, 16
  %v7604 = vrot.slane %v7602, 5
  %v7605 = vor.u32 %v7601, %v7604
  %v7606 = vrot.slane %v7605, 4
  %v7608 = vshll.u32 %v7387, 16
  %v7610 = vrot.slane %v7608, 5
  %v7611 = vsel %vm1049, %v7606, %v7610
  %s7612 = scalar_lea.vmem %s14, 448
  %v7613 = vld [vmem:[%s7612] sm:$0xf]
  %v7614 = vld [vmem:[%s7612 + $0x4] sm:$0xf]
  %v7615 = vld [vmem:[%s7612 + $0x8] sm:$0xf]
  %v7616 = vld [vmem:[%s7612 + $0xc] sm:$0xf]
  %v7617 = vld [vmem:[%s7612 + $0x10] sm:$0xf]
  %v7618 = vld [vmem:[%s7612 + $0x14] sm:$0xf]
  %v7619 = vld [vmem:[%s7612 + $0x18] sm:$0xf]
  %v7620 = vld [vmem:[%s7612 + $0x1c] sm:$0xf]
  %v7621 = vld [vmem:[%s7612 + $0x20] sm:$0xf]
  %v7622 = vld [vmem:[%s7612 + $0x24] sm:$0xf]
  %v7623 = vld [vmem:[%s7612 + $0x28] sm:$0xf]
  %v7624 = vld [vmem:[%s7612 + $0x2c] sm:$0xf]
  %v7625 = vld [vmem:[%s7612 + $0x30] sm:$0xf]
  %v7626 = vld [vmem:[%s7612 + $0x34] sm:$0xf]
  %v7627 = vld [vmem:[%s7612 + $0x38] sm:$0xf]
  %v7628 = vld [vmem:[%s7612 + $0x3c] sm:$0xf]
  %v7629 = vunpack.c.l.b16 %v7401
  %v7630 = vunpack.c.l.b16 %v7415
  %v7631 = vunpack.c.l.b16 %v7429
  %v7632 = vunpack.c.l.b16 %v7443
  %v7633 = vunpack.c.l.b16 %v7457
  %v7634 = vunpack.c.l.b16 %v7471
  %v7635 = vunpack.c.l.b16 %v7485
  %v7636 = vunpack.c.l.b16 %v7499
  %v7637 = vunpack.c.l.b16 %v7513
  %v7638 = vunpack.c.l.b16 %v7527
  %v7639 = vunpack.c.l.b16 %v7541
  %v7640 = vunpack.c.l.b16 %v7555
  %v7641 = vunpack.c.l.b16 %v7569
  %v7642 = vunpack.c.l.b16 %v7583
  %v7643 = vunpack.c.l.b16 %v7597
  %v7644 = vunpack.c.l.b16 %v7611
  %v7645 = vpack.c.b16 %v7630, %v7629
  %v7646 = vpack.c.b16 %v7632, %v7631
  %v7647 = vpack.c.b16 %v7634, %v7633
  %v7648 = vpack.c.b16 %v7636, %v7635
  %v7649 = vpack.c.b16 %v7638, %v7637
  %v7650 = vpack.c.b16 %v7640, %v7639
  %v7651 = vpack.c.b16 %v7642, %v7641
  %v7652 = vpack.c.b16 %v7644, %v7643
  %v7677 = vunpack.c.l.b16 %v7613
  %v7678 = vunpack.c.l.b16 %v7614
  %v7679 = vunpack.c.l.b16 %v7615
  %v7680 = vunpack.c.l.b16 %v7616
  %v7681 = vunpack.c.l.b16 %v7617
  %v7682 = vunpack.c.l.b16 %v7618
  %v7683 = vunpack.c.l.b16 %v7619
  %v7684 = vunpack.c.l.b16 %v7620
  %v7685 = vunpack.c.l.b16 %v7621
  %v7686 = vunpack.c.l.b16 %v7622
  %v7687 = vunpack.c.l.b16 %v7623
  %v7688 = vunpack.c.l.b16 %v7624
  %v7689 = vunpack.c.l.b16 %v7625
  %v7690 = vunpack.c.l.b16 %v7626
  %v7691 = vunpack.c.l.b16 %v7627
  %v7692 = vunpack.c.l.b16 %v7628
  %v7693 = vpack.c.b16 %v7678, %v7677
  %v7694 = vpack.c.b16 %v7680, %v7679
  %v7695 = vpack.c.b16 %v7682, %v7681
  %v7696 = vpack.c.b16 %v7684, %v7683
  %v7697 = vpack.c.b16 %v7686, %v7685
  %v7698 = vpack.c.b16 %v7688, %v7687
  %v7699 = vpack.c.b16 %v7690, %v7689
  %v7700 = vpack.c.b16 %v7692, %v7691
  %7709 = vmatprep.subr.bf16.mxu0 0
  %7710 = vmatpush1.bf16.msra.mxu0 %v7693
  %7711 = vmatprep.subr.bf16.mxu0 0
  %7712 = vmatpush1.bf16.msra.mxu0 %v7694
  %7713 = vmatprep.subr.bf16.mxu0 0
  %7714 = vmatpush1.bf16.msra.mxu0 %v7695
  %7715 = vmatprep.subr.bf16.mxu0 0
  %7716 = vmatpush1.bf16.msra.mxu0 %v7696
  %7717 = vmatprep.subr.bf16.mxu0 0
  %7718 = vmatpush1.bf16.msra.mxu0 %v7697
  %7719 = vmatprep.subr.bf16.mxu0 0
  %7720 = vmatpush1.bf16.msra.mxu0 %v7698
  %7721 = vmatprep.subr.bf16.mxu0 0
  %7722 = vmatpush1.bf16.msra.mxu0 %v7699
  %7723 = vmatprep.subr.bf16.mxu0 0
  %7724 = vmatpush1.bf16.msra.mxu0 %v7700
  %7725 = vmatprep.subr.bf16.mxu0 0
  %7726 = vmatpush1.bf16.msra.mxu0 0
  %7727 = vmatprep.subr.bf16.mxu0 0
  %7728 = vmatpush1.bf16.msra.mxu0 0
  %7729 = vmatprep.subr.bf16.mxu0 0
  %7730 = vmatpush1.bf16.msra.mxu0 0
  %7731 = vmatprep.subr.bf16.mxu0 0
  %7732 = vmatpush1.bf16.msra.mxu0 0
  %7733 = vmatprep.subr.bf16.mxu0 0
  %7734 = vmatpush1.bf16.msra.mxu0 0
  %7735 = vmatprep.subr.bf16.mxu0 0
  %7736 = vmatpush1.bf16.msra.mxu0 0
  %7737 = vmatprep.subr.bf16.mxu0 0
  %7738 = vmatpush1.bf16.msra.mxu0 0
  %7739 = vmatprep.subr.bf16.mxu0 0
  %7740 = vmatpush1.bf16.msra.mxu0 0
  %7741 = vmatprep.mubr.bf16.mxu0 0
  %7742 = vmatmul.mubr.bf16.gmra.mrb[0].mxu0 %v7645
  %v7743 = vpop.f32.mrb[0].mxu0
  %v7744 = vadd.f32 0.0, %v7743
  %v7745 = vpop.f32.mrb[0].mxu0
  %v7746 = vpop.f32.mrb[0].mxu0
  %v7747 = vadd.f32 0.0, %v7746
  %v7748 = vpop.f32.mrb[0].mxu0
  %7749 = vmatprep.mubr.bf16.mxu0 0
  %7750 = vmatmul.mubr.bf16.gmra.mrb[0].mxu0 %v7646
  %v7751 = vpop.f32.mrb[0].mxu0
  %v7752 = vadd.f32 0.0, %v7751
  %v7753 = vpop.f32.mrb[0].mxu0
  %v7754 = vpop.f32.mrb[0].mxu0
  %v7755 = vadd.f32 0.0, %v7754
  %v7756 = vpop.f32.mrb[0].mxu0
  %7757 = vmatprep.mubr.bf16.mxu0 0
  %7758 = vmatmul.mubr.bf16.gmra.mrb[0].mxu0 %v7647
  %v7759 = vpop.f32.mrb[0].mxu0
  %v7760 = vadd.f32 0.0, %v7759
  %v7761 = vpop.f32.mrb[0].mxu0
  %v7762 = vpop.f32.mrb[0].mxu0
  %v7763 = vadd.f32 0.0, %v7762
  %v7764 = vpop.f32.mrb[0].mxu0
  %7765 = vmatprep.mubr.bf16.mxu0 0
  %7766 = vmatmul.mubr.bf16.gmra.mrb[0].mxu0 %v7648
  %v7767 = vpop.f32.mrb[0].mxu0
  %v7768 = vadd.f32 0.0, %v7767
  %v7769 = vpop.f32.mrb[0].mxu0
  %v7770 = vpop.f32.mrb[0].mxu0
  %v7771 = vadd.f32 0.0, %v7770
  %v7772 = vpop.f32.mrb[0].mxu0
  %7773 = vmatprep.mubr.bf16.mxu0 0
  %7774 = vmatmul.mubr.bf16.gmra.mrb[0].mxu0 %v7649
  %v7775 = vpop.f32.mrb[0].mxu0
  %v7776 = vadd.f32 0.0, %v7775
  %v7777 = vpop.f32.mrb[0].mxu0
  %v7778 = vpop.f32.mrb[0].mxu0
  %v7779 = vadd.f32 0.0, %v7778
  %v7780 = vpop.f32.mrb[0].mxu0
  %7781 = vmatprep.mubr.bf16.mxu0 0
  %7782 = vmatmul.mubr.bf16.gmra.mrb[0].mxu0 %v7650
  %v7783 = vpop.f32.mrb[0].mxu0
  %v7784 = vadd.f32 0.0, %v7783
  %v7785 = vpop.f32.mrb[0].mxu0
  %v7786 = vpop.f32.mrb[0].mxu0
  %v7787 = vadd.f32 0.0, %v7786
  %v7788 = vpop.f32.mrb[0].mxu0
  %7789 = vmatprep.mubr.bf16.mxu0 0
  %7790 = vmatmul.mubr.bf16.gmra.mrb[0].mxu0 %v7651
  %v7791 = vpop.f32.mrb[0].mxu0
  %v7792 = vadd.f32 0.0, %v7791
  %v7793 = vpop.f32.mrb[0].mxu0
  %v7794 = vpop.f32.mrb[0].mxu0
  %v7795 = vadd.f32 0.0, %v7794
  %v7796 = vpop.f32.mrb[0].mxu0
  %7797 = vmatprep.mubr.bf16.mxu0 0
  %7798 = vmatmul.mubr.bf16.gmra.mrb[0].mxu0 %v7652
  %v7799 = vpop.f32.mrb[0].mxu0
  %v7800 = vadd.f32 0.0, %v7799
  %v7801 = vpop.f32.mrb[0].mxu0
  %v7802 = vpop.f32.mrb[0].mxu0
  %v7803 = vadd.f32 0.0, %v7802
  %v7804 = vpop.f32.mrb[0].mxu0
  %7805 = vdwg.mxu0
  %v7806 = vadd.f32 %v7340, %v7744
  %v7807 = vadd.f32 %v7341, %v7747
  %v7808 = vadd.f32 %v7342, %v7752
  %v7809 = vadd.f32 %v7343, %v7755
  %v7810 = vadd.f32 %v7344, %v7760
  %v7811 = vadd.f32 %v7345, %v7763
  %v7812 = vadd.f32 %v7346, %v7768
  %v7813 = vadd.f32 %v7347, %v7771
  %v7814 = vadd.f32 %v7348, %v7776
  %v7815 = vadd.f32 %v7349, %v7779
  %v7816 = vadd.f32 %v7350, %v7784
  %v7817 = vadd.f32 %v7351, %v7787
  %v7818 = vadd.f32 %v7352, %v7792
  %v7819 = vadd.f32 %v7353, %v7795
  %v7820 = vadd.f32 %v7354, %v7800
  %v7821 = vadd.f32 %v7355, %v7803
  %v7822 = vld [vmem:[%s3016] sm:$0xe]
  %v7823 = vld [vmem:[%s3016 + $0x8] sm:$0xe]
  %v7824 = vld [vmem:[%s3016 + $0x10] sm:$0xe]
  %v7825 = vld [vmem:[%s3016 + $0x18] sm:$0xe]
  %v7826 = vld [vmem:[%s3016 + $0x20] sm:$0xe]
  %v7827 = vld [vmem:[%s3016 + $0x28] sm:$0xe]
  %v7828 = vld [vmem:[%s3016 + $0x30] sm:$0xe]
  %v7829 = vld [vmem:[%s3016 + $0x38] sm:$0xe]
  %v7830 = vld [vmem:[%s3016 + $0x50] sm:$0xe]
  %v7831 = vld [vmem:[%s3016 + $0x58] sm:$0xe]
  %v7832 = vld [vmem:[%s3016 + $0x60] sm:$0xe]
  %v7833 = vld [vmem:[%s3016 + $0x68] sm:$0xe]
  %v7834 = vld [vmem:[%s3016 + $0x70] sm:$0xe]
  %v7835 = vld [vmem:[%s3016 + $0x78] sm:$0xe]
  %v7836 = vld [vmem:[%s3016 + $0x80] sm:$0xe]
  %v7837 = vld [vmem:[%s3016 + $0x88] sm:$0xe]
  %v7870 = vrot.slane %v7822, 5
  %v7871 = vrot.slane %v7870, 4
  %v7872 = vrot.slane %v7357, 5
  %v7873 = vsel %vm1711, %v7871, %v7872
  %v7874 = vrot.slane %v7823, 5
  %v7875 = vrot.slane %v7874, 4
  %v7876 = vrot.slane %v7359, 5
  %v7877 = vsel %vm1711, %v7875, %v7876
  %v7878 = vrot.slane %v7824, 5
  %v7879 = vrot.slane %v7878, 4
  %v7880 = vrot.slane %v7361, 5
  %v7881 = vsel %vm1711, %v7879, %v7880
  %v7882 = vrot.slane %v7825, 5
  %v7883 = vrot.slane %v7882, 4
  %v7884 = vrot.slane %v7363, 5
  %v7885 = vsel %vm1711, %v7883, %v7884
  %v7886 = vrot.slane %v7826, 5
  %v7887 = vrot.slane %v7886, 4
  %v7888 = vrot.slane %v7365, 5
  %v7889 = vsel %vm1711, %v7887, %v7888
  %v7890 = vrot.slane %v7827, 5
  %v7891 = vrot.slane %v7890, 4
  %v7892 = vrot.slane %v7367, 5
  %v7893 = vsel %vm1711, %v7891, %v7892
  %v7894 = vrot.slane %v7828, 5
  %v7895 = vrot.slane %v7894, 4
  %v7896 = vrot.slane %v7369, 5
  %v7897 = vsel %vm1711, %v7895, %v7896
  %v7898 = vrot.slane %v7829, 5
  %v7899 = vrot.slane %v7898, 4
  %v7900 = vrot.slane %v7371, 5
  %v7901 = vsel %vm1711, %v7899, %v7900
  %v7902 = vrot.slane %v7830, 5
  %v7903 = vrot.slane %v7902, 4
  %v7904 = vrot.slane %v7373, 5
  %v7905 = vsel %vm1711, %v7903, %v7904
  %v7906 = vrot.slane %v7831, 5
  %v7907 = vrot.slane %v7906, 4
  %v7908 = vrot.slane %v7375, 5
  %v7909 = vsel %vm1711, %v7907, %v7908
  %v7910 = vrot.slane %v7832, 5
  %v7911 = vrot.slane %v7910, 4
  %v7912 = vrot.slane %v7377, 5
  %v7913 = vsel %vm1711, %v7911, %v7912
  %v7914 = vrot.slane %v7833, 5
  %v7915 = vrot.slane %v7914, 4
  %v7916 = vrot.slane %v7379, 5
  %v7917 = vsel %vm1711, %v7915, %v7916
  %v7918 = vrot.slane %v7834, 5
  %v7919 = vrot.slane %v7918, 4
  %v7920 = vrot.slane %v7381, 5
  %v7921 = vsel %vm1711, %v7919, %v7920
  %v7922 = vrot.slane %v7835, 5
  %v7923 = vrot.slane %v7922, 4
  %v7924 = vrot.slane %v7383, 5
  %v7925 = vsel %vm1711, %v7923, %v7924
  %v7926 = vrot.slane %v7836, 5
  %v7927 = vrot.slane %v7926, 4
  %v7928 = vrot.slane %v7385, 5
  %v7929 = vsel %vm1711, %v7927, %v7928
  %v7930 = vrot.slane %v7837, 5
  %v7931 = vrot.slane %v7930, 4
  %v7932 = vrot.slane %v7387, 5
  %v7933 = vsel %vm1711, %v7931, %v7932
  %s7934 = scalar_lea.vmem %s14, 512
  %v7935 = vld [vmem:[%s7934] sm:$0xf]
  %v7936 = vld [vmem:[%s7934 + $0x4] sm:$0xf]
  %v7937 = vld [vmem:[%s7934 + $0x8] sm:$0xf]
  %v7938 = vld [vmem:[%s7934 + $0xc] sm:$0xf]
  %v7939 = vld [vmem:[%s7934 + $0x10] sm:$0xf]
  %v7940 = vld [vmem:[%s7934 + $0x14] sm:$0xf]
  %v7941 = vld [vmem:[%s7934 + $0x18] sm:$0xf]
  %v7942 = vld [vmem:[%s7934 + $0x1c] sm:$0xf]
  %v7943 = vld [vmem:[%s7934 + $0x20] sm:$0xf]
  %v7944 = vld [vmem:[%s7934 + $0x24] sm:$0xf]
  %v7945 = vld [vmem:[%s7934 + $0x28] sm:$0xf]
  %v7946 = vld [vmem:[%s7934 + $0x2c] sm:$0xf]
  %v7947 = vld [vmem:[%s7934 + $0x30] sm:$0xf]
  %v7948 = vld [vmem:[%s7934 + $0x34] sm:$0xf]
  %v7949 = vld [vmem:[%s7934 + $0x38] sm:$0xf]
  %v7950 = vld [vmem:[%s7934 + $0x3c] sm:$0xf]
  %v7951 = vunpack.c.l.b16 %v7873
  %v7952 = vunpack.c.l.b16 %v7877
  %v7953 = vunpack.c.l.b16 %v7881
  %v7954 = vunpack.c.l.b16 %v7885
  %v7955 = vunpack.c.l.b16 %v7889
  %v7956 = vunpack.c.l.b16 %v7893
  %v7957 = vunpack.c.l.b16 %v7897
  %v7958 = vunpack.c.l.b16 %v7901
  %v7959 = vunpack.c.l.b16 %v7905
  %v7960 = vunpack.c.l.b16 %v7909
  %v7961 = vunpack.c.l.b16 %v7913
  %v7962 = vunpack.c.l.b16 %v7917
  %v7963 = vunpack.c.l.b16 %v7921
  %v7964 = vunpack.c.l.b16 %v7925
  %v7965 = vunpack.c.l.b16 %v7929
  %v7966 = vunpack.c.l.b16 %v7933
  %v7967 = vpack.c.b16 %v7952, %v7951
  %v7968 = vpack.c.b16 %v7954, %v7953
  %v7969 = vpack.c.b16 %v7956, %v7955
  %v7970 = vpack.c.b16 %v7958, %v7957
  %v7971 = vpack.c.b16 %v7960, %v7959
  %v7972 = vpack.c.b16 %v7962, %v7961
  %v7973 = vpack.c.b16 %v7964, %v7963
  %v7974 = vpack.c.b16 %v7966, %v7965
  %v7999 = vunpack.c.l.b16 %v7935
  %v8000 = vunpack.c.l.b16 %v7936
  %v8001 = vunpack.c.l.b16 %v7937
  %v8002 = vunpack.c.l.b16 %v7938
  %v8003 = vunpack.c.l.b16 %v7939
  %v8004 = vunpack.c.l.b16 %v7940
  %v8005 = vunpack.c.l.b16 %v7941
  %v8006 = vunpack.c.l.b16 %v7942
  %v8007 = vunpack.c.l.b16 %v7943
  %v8008 = vunpack.c.l.b16 %v7944
  %v8009 = vunpack.c.l.b16 %v7945
  %v8010 = vunpack.c.l.b16 %v7946
  %v8011 = vunpack.c.l.b16 %v7947
  %v8012 = vunpack.c.l.b16 %v7948
  %v8013 = vunpack.c.l.b16 %v7949
  %v8014 = vunpack.c.l.b16 %v7950
  %v8015 = vpack.c.b16 %v8000, %v7999
  %v8016 = vpack.c.b16 %v8002, %v8001
  %v8017 = vpack.c.b16 %v8004, %v8003
  %v8018 = vpack.c.b16 %v8006, %v8005
  %v8019 = vpack.c.b16 %v8008, %v8007
  %v8020 = vpack.c.b16 %v8010, %v8009
  %v8021 = vpack.c.b16 %v8012, %v8011
  %v8022 = vpack.c.b16 %v8014, %v8013
  %8031 = vmatprep.subr.bf16.mxu0 0
  %8032 = vmatpush1.bf16.msra.mxu0 %v8015
  %8033 = vmatprep.subr.bf16.mxu0 0
  %8034 = vmatpush1.bf16.msra.mxu0 %v8016
  %8035 = vmatprep.subr.bf16.mxu0 0
  %8036 = vmatpush1.bf16.msra.mxu0 %v8017
  %8037 = vmatprep.subr.bf16.mxu0 0
  %8038 = vmatpush1.bf16.msra.mxu0 %v8018
  %8039 = vmatprep.subr.bf16.mxu0 0
  %8040 = vmatpush1.bf16.msra.mxu0 %v8019
  %8041 = vmatprep.subr.bf16.mxu0 0
  %8042 = vmatpush1.bf16.msra.mxu0 %v8020
  %8043 = vmatprep.subr.bf16.mxu0 0
  %8044 = vmatpush1.bf16.msra.mxu0 %v8021
  %8045 = vmatprep.subr.bf16.mxu0 0
  %8046 = vmatpush1.bf16.msra.mxu0 %v8022
  %8047 = vmatprep.subr.bf16.mxu0 0
  %8048 = vmatpush1.bf16.msra.mxu0 0
  %8049 = vmatprep.subr.bf16.mxu0 0
  %8050 = vmatpush1.bf16.msra.mxu0 0
  %8051 = vmatprep.subr.bf16.mxu0 0
  %8052 = vmatpush1.bf16.msra.mxu0 0
  %8053 = vmatprep.subr.bf16.mxu0 0
  %8054 = vmatpush1.bf16.msra.mxu0 0
  %8055 = vmatprep.subr.bf16.mxu0 0
  %8056 = vmatpush1.bf16.msra.mxu0 0
  %8057 = vmatprep.subr.bf16.mxu0 0
  %8058 = vmatpush1.bf16.msra.mxu0 0
  %8059 = vmatprep.subr.bf16.mxu0 0
  %8060 = vmatpush1.bf16.msra.mxu0 0
  %8061 = vmatprep.subr.bf16.mxu0 0
  %8062 = vmatpush1.bf16.msra.mxu0 0
  %8063 = vmatprep.mubr.bf16.mxu0 0
  %8064 = vmatmul.mubr.bf16.gmra.mrb[0].mxu0 %v7967
  %v8065 = vpop.f32.mrb[0].mxu0
  %v8066 = vadd.f32 0.0, %v8065
  %v8067 = vpop.f32.mrb[0].mxu0
  %v8068 = vpop.f32.mrb[0].mxu0
  %v8069 = vadd.f32 0.0, %v8068
  %v8070 = vpop.f32.mrb[0].mxu0
  %8071 = vmatprep.mubr.bf16.mxu0 0
  %8072 = vmatmul.mubr.bf16.gmra.mrb[0].mxu0 %v7968
  %v8073 = vpop.f32.mrb[0].mxu0
  %v8074 = vadd.f32 0.0, %v8073
  %v8075 = vpop.f32.mrb[0].mxu0
  %v8076 = vpop.f32.mrb[0].mxu0
  %v8077 = vadd.f32 0.0, %v8076
  %v8078 = vpop.f32.mrb[0].mxu0
  %8079 = vmatprep.mubr.bf16.mxu0 0
  %8080 = vmatmul.mubr.bf16.gmra.mrb[0].mxu0 %v7969
  %v8081 = vpop.f32.mrb[0].mxu0
  %v8082 = vadd.f32 0.0, %v8081
  %v8083 = vpop.f32.mrb[0].mxu0
  %v8084 = vpop.f32.mrb[0].mxu0
  %v8085 = vadd.f32 0.0, %v8084
  %v8086 = vpop.f32.mrb[0].mxu0
  %8087 = vmatprep.mubr.bf16.mxu0 0
  %8088 = vmatmul.mubr.bf16.gmra.mrb[0].mxu0 %v7970
  %v8089 = vpop.f32.mrb[0].mxu0
  %v8090 = vadd.f32 0.0, %v8089
  %v8091 = vpop.f32.mrb[0].mxu0
  %v8092 = vpop.f32.mrb[0].mxu0
  %v8093 = vadd.f32 0.0, %v8092
  %v8094 = vpop.f32.mrb[0].mxu0
  %8095 = vmatprep.mubr.bf16.mxu0 0
  %8096 = vmatmul.mubr.bf16.gmra.mrb[0].mxu0 %v7971
  %v8097 = vpop.f32.mrb[0].mxu0
  %v8098 = vadd.f32 0.0, %v8097
  %v8099 = vpop.f32.mrb[0].mxu0
  %v8100 = vpop.f32.mrb[0].mxu0
  %v8101 = vadd.f32 0.0, %v8100
  %v8102 = vpop.f32.mrb[0].mxu0
  %8103 = vmatprep.mubr.bf16.mxu0 0
  %8104 = vmatmul.mubr.bf16.gmra.mrb[0].mxu0 %v7972
  %v8105 = vpop.f32.mrb[0].mxu0
  %v8106 = vadd.f32 0.0, %v8105
  %v8107 = vpop.f32.mrb[0].mxu0
  %v8108 = vpop.f32.mrb[0].mxu0
  %v8109 = vadd.f32 0.0, %v8108
  %v8110 = vpop.f32.mrb[0].mxu0
  %8111 = vmatprep.mubr.bf16.mxu0 0
  %8112 = vmatmul.mubr.bf16.gmra.mrb[0].mxu0 %v7973
  %v8113 = vpop.f32.mrb[0].mxu0
  %v8114 = vadd.f32 0.0, %v8113
  %v8115 = vpop.f32.mrb[0].mxu0
  %v8116 = vpop.f32.mrb[0].mxu0
  %v8117 = vadd.f32 0.0, %v8116
  %v8118 = vpop.f32.mrb[0].mxu0
  %8119 = vmatprep.mubr.bf16.mxu0 0
  %8120 = vmatmul.mubr.bf16.gmra.mrb[0].mxu0 %v7974
  %v8121 = vpop.f32.mrb[0].mxu0
  %v8122 = vadd.f32 0.0, %v8121
  %v8123 = vpop.f32.mrb[0].mxu0
  %v8124 = vpop.f32.mrb[0].mxu0
  %v8125 = vadd.f32 0.0, %v8124
  %v8126 = vpop.f32.mrb[0].mxu0
  %8127 = vdwg.mxu0
  %v8128 = vadd.f32 %v7806, %v8066
  %v8129 = vadd.f32 %v7807, %v8069
  %v8130 = vadd.f32 %v7808, %v8074
  %v8131 = vadd.f32 %v7809, %v8077
  %v8132 = vadd.f32 %v7810, %v8082
  %v8133 = vadd.f32 %v7811, %v8085
  %v8134 = vadd.f32 %v7812, %v8090
  %v8135 = vadd.f32 %v7813, %v8093
  %v8136 = vadd.f32 %v7814, %v8098
  %v8137 = vadd.f32 %v7815, %v8101
  %v8138 = vadd.f32 %v7816, %v8106
  %v8139 = vadd.f32 %v7817, %v8109
  %v8140 = vadd.f32 %v7818, %v8114
  %v8141 = vadd.f32 %v7819, %v8117
  %v8142 = vadd.f32 %v7820, %v8122
  %v8143 = vadd.f32 %v7821, %v8125
  %v8145 = vlaneseq
  %v8146 = vshrl.u32 %v8145, 7
  %v8147 = vsub.s32 0, %v8146
  %v8148 = vrot.slane %v5102, %v8147
  %v8150 = vadd.f32 %v8128, %v8148
  %v8151 = vadd.f32 %v8129, %v8148
  %v8152 = vadd.f32 %v8130, %v8148
  %v8153 = vadd.f32 %v8131, %v8148
  %v8154 = vadd.f32 %v8132, %v8148
  %v8155 = vadd.f32 %v8133, %v8148
  %v8156 = vadd.f32 %v8134, %v8148
  %v8157 = vadd.f32 %v8135, %v8148
  %v8158 = vadd.f32 %v8136, %v8148
  %v8159 = vadd.f32 %v8137, %v8148
  %v8160 = vadd.f32 %v8138, %v8148
  %v8161 = vadd.f32 %v8139, %v8148
  %v8162 = vadd.f32 %v8140, %v8148
  %v8163 = vadd.f32 %v8141, %v8148
  %v8164 = vadd.f32 %v8142, %v8148
  %v8165 = vadd.f32 %v8143, %v8148
  %v8166 = vpack.c.bf16 %v61, %v60
  %v8167 = vpack.c.bf16 %v63, %v62
  %v8168 = vpack.c.bf16 %v65, %v64
  %v8169 = vpack.c.bf16 %v67, %v66
  %v8170 = vpack.c.bf16 %v69, %v68
  %v8171 = vpack.c.bf16 %v71, %v70
  %v8172 = vpack.c.bf16 %v73, %v72
  %v8173 = vpack.c.bf16 %v75, %v74
  %v8174 = vld [vmem:[%s16] sm:$0xf]
  %v8175 = vld [vmem:[%s16 + $0x4] sm:$0xf]
  %v8176 = vld [vmem:[%s16 + $0x8] sm:$0xf]
  %v8177 = vld [vmem:[%s16 + $0xc] sm:$0xf]
  %v8178 = vld [vmem:[%s16 + $0x10] sm:$0xf]
  %v8179 = vld [vmem:[%s16 + $0x14] sm:$0xf]
  %v8180 = vld [vmem:[%s16 + $0x18] sm:$0xf]
  %v8181 = vld [vmem:[%s16 + $0x1c] sm:$0xf]
  %v8182 = vld [vmem:[%s16 + $0x20] sm:$0xf]
  %v8183 = vld [vmem:[%s16 + $0x24] sm:$0xf]
  %v8184 = vld [vmem:[%s16 + $0x28] sm:$0xf]
  %v8185 = vld [vmem:[%s16 + $0x2c] sm:$0xf]
  %v8186 = vld [vmem:[%s16 + $0x30] sm:$0xf]
  %v8187 = vld [vmem:[%s16 + $0x34] sm:$0xf]
  %v8188 = vld [vmem:[%s16 + $0x38] sm:$0xf]
  %v8189 = vld [vmem:[%s16 + $0x3c] sm:$0xf]
  %v8190 = vld [vmem:[%s17] sm:$0x1]
  %v8192 = vlaneseq
  %v8193 = vshrl.u32 %v8192, 7
  %v8194 = vsub.s32 0, %v8193
  %v8195 = vrot.slane %v8190, %v8194
  %v8213 = vunpack.c.l.b16 %v8174
  %v8214 = vunpack.c.l.b16 %v8175
  %v8215 = vunpack.c.l.b16 %v8176
  %v8216 = vunpack.c.l.b16 %v8177
  %v8217 = vunpack.c.l.b16 %v8178
  %v8218 = vunpack.c.l.b16 %v8179
  %v8219 = vunpack.c.l.b16 %v8180
  %v8220 = vunpack.c.l.b16 %v8181
  %v8221 = vunpack.c.l.b16 %v8182
  %v8222 = vunpack.c.l.b16 %v8183
  %v8223 = vunpack.c.l.b16 %v8184
  %v8224 = vunpack.c.l.b16 %v8185
  %v8225 = vunpack.c.l.b16 %v8186
  %v8226 = vunpack.c.l.b16 %v8187
  %v8227 = vunpack.c.l.b16 %v8188
  %v8228 = vunpack.c.l.b16 %v8189
  %v8229 = vpack.c.b16 %v8214, %v8213
  %v8230 = vpack.c.b16 %v8216, %v8215
  %v8231 = vpack.c.b16 %v8218, %v8217
  %v8232 = vpack.c.b16 %v8220, %v8219
  %v8233 = vpack.c.b16 %v8222, %v8221
  %v8234 = vpack.c.b16 %v8224, %v8223
  %v8235 = vpack.c.b16 %v8226, %v8225
  %v8236 = vpack.c.b16 %v8228, %v8227
  %8245 = vmatprep.subr.bf16.mxu0 0
  %8246 = vmatpush1.bf16.msra.mxu0 %v8229
  %8247 = vmatprep.subr.bf16.mxu0 0
  %8248 = vmatpush1.bf16.msra.mxu0 %v8230
  %8249 = vmatprep.subr.bf16.mxu0 0
  %8250 = vmatpush1.bf16.msra.mxu0 %v8231
  %8251 = vmatprep.subr.bf16.mxu0 0
  %8252 = vmatpush1.bf16.msra.mxu0 %v8232
  %8253 = vmatprep.subr.bf16.mxu0 0
  %8254 = vmatpush1.bf16.msra.mxu0 %v8233
  %8255 = vmatprep.subr.bf16.mxu0 0
  %8256 = vmatpush1.bf16.msra.mxu0 %v8234
  %8257 = vmatprep.subr.bf16.mxu0 0
  %8258 = vmatpush1.bf16.msra.mxu0 %v8235
  %8259 = vmatprep.subr.bf16.mxu0 0
  %8260 = vmatpush1.bf16.msra.mxu0 %v8236
  %8261 = vmatprep.subr.bf16.mxu0 0
  %8262 = vmatpush1.bf16.msra.mxu0 0
  %8263 = vmatprep.subr.bf16.mxu0 0
  %8264 = vmatpush1.bf16.msra.mxu0 0
  %8265 = vmatprep.subr.bf16.mxu0 0
  %8266 = vmatpush1.bf16.msra.mxu0 0
  %8267 = vmatprep.subr.bf16.mxu0 0
  %8268 = vmatpush1.bf16.msra.mxu0 0
  %8269 = vmatprep.subr.bf16.mxu0 0
  %8270 = vmatpush1.bf16.msra.mxu0 0
  %8271 = vmatprep.subr.bf16.mxu0 0
  %8272 = vmatpush1.bf16.msra.mxu0 0
  %8273 = vmatprep.subr.bf16.mxu0 0
  %8274 = vmatpush1.bf16.msra.mxu0 0
  %8275 = vmatprep.subr.bf16.mxu0 0
  %8276 = vmatpush1.bf16.msra.mxu0 0
  %8277 = vmatprep.mubr.bf16.mxu0 0
  %8278 = vmatmul.mubr.bf16.gmra.mrb[0].mxu0 %v8166
  %v8279 = vpop.f32.mrb[0].mxu0
  %v8280 = vadd.f32 %v8195, %v8279
  %v8281 = vpop.f32.mrb[0].mxu0
  %v8282 = vpop.f32.mrb[0].mxu0
  %v8283 = vadd.f32 %v8195, %v8282
  %v8284 = vpop.f32.mrb[0].mxu0
  %8285 = vmatprep.mubr.bf16.mxu0 0
  %8286 = vmatmul.mubr.bf16.gmra.mrb[0].mxu0 %v8167
  %v8287 = vpop.f32.mrb[0].mxu0
  %v8288 = vadd.f32 %v8195, %v8287
  %v8289 = vpop.f32.mrb[0].mxu0
  %v8290 = vpop.f32.mrb[0].mxu0
  %v8291 = vadd.f32 %v8195, %v8290
  %v8292 = vpop.f32.mrb[0].mxu0
  %8293 = vmatprep.mubr.bf16.mxu0 0
  %8294 = vmatmul.mubr.bf16.gmra.mrb[0].mxu0 %v8168
  %v8295 = vpop.f32.mrb[0].mxu0
  %v8296 = vadd.f32 %v8195, %v8295
  %v8297 = vpop.f32.mrb[0].mxu0
  %v8298 = vpop.f32.mrb[0].mxu0
  %v8299 = vadd.f32 %v8195, %v8298
  %v8300 = vpop.f32.mrb[0].mxu0
  %8301 = vmatprep.mubr.bf16.mxu0 0
  %8302 = vmatmul.mubr.bf16.gmra.mrb[0].mxu0 %v8169
  %v8303 = vpop.f32.mrb[0].mxu0
  %v8304 = vadd.f32 %v8195, %v8303
  %v8305 = vpop.f32.mrb[0].mxu0
  %v8306 = vpop.f32.mrb[0].mxu0
  %v8307 = vadd.f32 %v8195, %v8306
  %v8308 = vpop.f32.mrb[0].mxu0
  %8309 = vmatprep.mubr.bf16.mxu0 0
  %8310 = vmatmul.mubr.bf16.gmra.mrb[0].mxu0 %v8170
  %v8311 = vpop.f32.mrb[0].mxu0
  %v8312 = vadd.f32 %v8195, %v8311
  %v8313 = vpop.f32.mrb[0].mxu0
  %v8314 = vpop.f32.mrb[0].mxu0
  %v8315 = vadd.f32 %v8195, %v8314
  %v8316 = vpop.f32.mrb[0].mxu0
  %8317 = vmatprep.mubr.bf16.mxu0 0
  %8318 = vmatmul.mubr.bf16.gmra.mrb[0].mxu0 %v8171
  %v8319 = vpop.f32.mrb[0].mxu0
  %v8320 = vadd.f32 %v8195, %v8319
  %v8321 = vpop.f32.mrb[0].mxu0
  %v8322 = vpop.f32.mrb[0].mxu0
  %v8323 = vadd.f32 %v8195, %v8322
  %v8324 = vpop.f32.mrb[0].mxu0
  %8325 = vmatprep.mubr.bf16.mxu0 0
  %8326 = vmatmul.mubr.bf16.gmra.mrb[0].mxu0 %v8172
  %v8327 = vpop.f32.mrb[0].mxu0
  %v8328 = vadd.f32 %v8195, %v8327
  %v8329 = vpop.f32.mrb[0].mxu0
  %v8330 = vpop.f32.mrb[0].mxu0
  %v8331 = vadd.f32 %v8195, %v8330
  %v8332 = vpop.f32.mrb[0].mxu0
  %8333 = vmatprep.mubr.bf16.mxu0 0
  %8334 = vmatmul.mubr.bf16.gmra.mrb[0].mxu0 %v8173
  %v8335 = vpop.f32.mrb[0].mxu0
  %v8336 = vadd.f32 %v8195, %v8335
  %v8337 = vpop.f32.mrb[0].mxu0
  %v8338 = vpop.f32.mrb[0].mxu0
  %v8339 = vadd.f32 %v8195, %v8338
  %v8340 = vpop.f32.mrb[0].mxu0
  %8341 = vdwg.mxu0
  %v8342 = vadd.f32 %v8150, %v8280
  %v8343 = vadd.f32 %v8151, %v8283
  %v8344 = vadd.f32 %v8152, %v8288
  %v8345 = vadd.f32 %v8153, %v8291
  %v8346 = vadd.f32 %v8154, %v8296
  %v8347 = vadd.f32 %v8155, %v8299
  %v8348 = vadd.f32 %v8156, %v8304
  %v8349 = vadd.f32 %v8157, %v8307
  %v8350 = vadd.f32 %v8158, %v8312
  %v8351 = vadd.f32 %v8159, %v8315
  %v8352 = vadd.f32 %v8160, %v8320
  %v8353 = vadd.f32 %v8161, %v8323
  %v8354 = vadd.f32 %v8162, %v8328
  %v8355 = vadd.f32 %v8163, %v8331
  %v8356 = vadd.f32 %v8164, %v8336
  %v8357 = vadd.f32 %v8165, %v8339
  %8358 = vst [vmem:[%s18] sm:$0xff] %v8342
  %8359 = vst [vmem:[%s18 + $0x8] sm:$0xff] %v8343
  %8360 = vst [vmem:[%s18 + $0x10] sm:$0xff] %v8344
  %8361 = vst [vmem:[%s18 + $0x18] sm:$0xff] %v8345
  %8362 = vst [vmem:[%s18 + $0x20] sm:$0xff] %v8346
  %8363 = vst [vmem:[%s18 + $0x28] sm:$0xff] %v8347
  %8364 = vst [vmem:[%s18 + $0x30] sm:$0xff] %v8348
  %8365 = vst [vmem:[%s18 + $0x38] sm:$0xff] %v8349
  %8366 = vst [vmem:[%s18 + $0x40] sm:$0xff] %v8350
  %8367 = vst [vmem:[%s18 + $0x48] sm:$0xff] %v8351
  %8368 = vst [vmem:[%s18 + $0x50] sm:$0xff] %v8352
  %8369 = vst [vmem:[%s18 + $0x58] sm:$0xff] %v8353
  %8370 = vst [vmem:[%s18 + $0x60] sm:$0xff] %v8354
  %8371 = vst [vmem:[%s18 + $0x68] sm:$0xff] %v8355
  %8372 = vst [vmem:[%s18 + $0x70] sm:$0xff] %v8356
  %8373 = vst [vmem:[%s18 + $0x78] sm:$0xff] %v8357
  // Predicated region
  $region74: #{residual_block_forward.1} parent=0 // pred_check
    _
  $region75: #{residual_block_forward.1} parent=0 // pred_check_branch
    %8375 = sbr.rel (0) target = $region77
  $region76: #{residual_block_forward.1} parent=0 // pred_region
    _
  $region77: #{residual_block_forward.1} parent=0 // pred_fallthru
    _
  // Predicated region
  $region78: #{residual_block_forward.1} parent=0 // pred_check
    _
  $region79: #{residual_block_forward.1} parent=0 // pred_check_branch
    %8377 = sbr.rel (0) target = $region81
  $region80: #{residual_block_forward.1} parent=0 // pred_region
    _
  $region81: #{residual_block_forward.1} parent=0 // pred_fallthru
    _

</llo_original>
